<compile_context>
chip_gen: v7x
topology: tpu7x:2x2x1
jax: 0.10.0
libtpu: 0.0.40
codegen_flags: <defaults>
</compile_context>

<pallas_src>
import jax
import jax.numpy as jnp
import numpy as np
from jax.experimental import pallas as pl
from jax.experimental.pallas import tpu as pltpu


# ------------------------------- Pallas kernel -------------------------------

def _basicblock_kernel(xp_ref, t1_ref, b1_ref, t2_ref, b2_ref, o_ref, h1_ref):
    # xp_ref: (1, D+2, H+2, W*Cin)  bf16, zero-padded in D and H (W pad is in T)
    # t1_ref: (9*W*Cin, W*Cmid)     bf16 block-Toeplitz conv1 weights (BN folded)
    # b1_ref: (1, W*Cmid)           f32 folded BN bias, tiled across W
    # t2_ref: (9*W*Cmid, W*Cout)    bf16 block-Toeplitz conv2 weights (BN folded)
    # b2_ref: (1, W*Cout)           f32
    # o_ref : (1, D, H, W*Cout)     f32
    # h1_ref: (D+2, H+2, W*Cmid)    bf16 VMEM scratch (padded intermediate act.)
    _, Dp, Hp, _ = xp_ref.shape
    D, H = Dp - 2, Hp - 2

    # Zero the intermediate-activation halo once per grid step (interior is
    # overwritten below); this provides conv2's D/H zero padding.
    h1_ref[...] = jnp.zeros_like(h1_ref)

    def im2col_rows(load_slab, d):
        # Gather the 9 (kd, kh) row-windows feeding output depth slice d and
        # concatenate along lanes -> (H, 9*lane_width).  kw shifts and W padding
        # are folded into the Toeplitz weight, so only contiguous row slices here.
        pieces = []
        for kd in range(3):
            rows = load_slab(d + kd)              # (Hp, lane_width)
            for kh in range(3):
                pieces.append(rows[kh:kh + H, :])
        return jnp.concatenate(pieces, axis=-1)

    # ---- stage 1: conv1 (3x3x3, pad 1) + folded BN + ReLU -> h1 (VMEM) -------
    for d in range(D):
        lhs = im2col_rows(lambda dd: xp_ref[0, dd], d)              # (H, 9*W*Cin)
        acc = jnp.dot(lhs, t1_ref[...], preferred_element_type=jnp.float32)
        h1 = jnp.maximum(acc + b1_ref[...], 0.0)
        h1_ref[d + 1, 1:H + 1, :] = h1.astype(h1_ref.dtype)

    # ---- stage 2: conv2 (3x3x3, pad 1) + folded BN, + residual, + ReLU -------
    for d in range(D):
        lhs = im2col_rows(lambda dd: h1_ref[dd], d)                 # (H, 9*W*Cmid)
        acc = jnp.dot(lhs, t2_ref[...], preferred_element_type=jnp.float32)
        residual = xp_ref[0, d + 1, 1:H + 1, :].astype(jnp.float32)  # from VMEM block
        out = jnp.maximum(acc + b2_ref[...] + residual, 0.0)
        o_ref[0, d] = out.astype(o_ref.dtype)


# --------------------------------- wrapper -----------------------------------

def basicblock_forward(x_ncdhw, params):
    x = jnp.transpose(x_ncdhw, (0, 2, 3, 4, 1))          # NCDHW -> NDHWC
    N, D, H, W, Cin = x.shape
    WCin = W * Cin
    WCmid = params["t1"].shape[-1]
    WCout = params["t2"].shape[-1]
    assert WCout == WCin, "identity residual requires inplanes == planes (expansion=1)"

    # Fold W into the lane dim (lane index = w*C + c) and add D/H halos only.
    x_l = x.reshape(N, D, H, WCin).astype(jnp.bfloat16)
    xp = jnp.pad(x_l, ((0, 0), (1, 1), (1, 1), (0, 0)))

    out = pl.pallas_call(
        _basicblock_kernel,
        out_shape=jax.ShapeDtypeStruct((N, D, H, WCout), jnp.float32),
        grid=(N,),
        in_specs=[
            pl.BlockSpec((1, D + 2, H + 2, WCin), lambda n: (n, 0, 0, 0)),
            pl.BlockSpec((9 * WCin, WCmid), lambda n: (0, 0)),
            pl.BlockSpec((1, WCmid), lambda n: (0, 0)),
            pl.BlockSpec((9 * WCmid, WCout), lambda n: (0, 0)),
            pl.BlockSpec((1, WCout), lambda n: (0, 0)),
        ],
        out_specs=pl.BlockSpec((1, D, H, WCout), lambda n: (n, 0, 0, 0)),
        scratch_shapes=[pltpu.VMEM((D + 2, H + 2, WCmid), jnp.bfloat16)],
        compiler_params=pltpu.CompilerParams(
            dimension_semantics=("parallel",),
            vmem_limit_bytes=32 * 1024 * 1024),
    )(xp, params["t1"], params["b1"], params["t2"], params["b2"])

    out = out.reshape(N, D, H, W, WCout // W)
    return jnp.transpose(out, (0, 4, 1, 2, 3)).astype(x_ncdhw.dtype)  # back to NCDHW


# ------------------- parameters (deterministic) & weight prep -----------------

def _block_toeplitz(w_dhwio, W):
    """(3,3,3,Cin,Cout) conv taps -> (9*W*Cin, W*Cout) matrix acting on lane-packed
    rows (lane = w*C + c).  kw shifts and the W zero-padding are folded in."""
    w_np = np.asarray(jnp.asarray(w_dhwio, jnp.float32))
    _, _, _, Cin, Cout = w_np.shape
    T = np.zeros((9, W * Cin, W * Cout), np.float32)
    for kd in range(3):
        for kh in range(3):
            for kw in range(3):
                for wo in range(W):
                    wi = wo + kw - 1
                    if 0 <= wi < W:
                        T[kd * 3 + kh,
                          wi * Cin:(wi + 1) * Cin,
                          wo * Cout:(wo + 1) * Cout] = w_np[kd, kh, kw]
    return jnp.asarray(T.reshape(9 * W * Cin, W * Cout))


def init_params(key, planes, W, eps=1e-5):
    # BasicBlock(inplanes=planes, planes=planes, Conv3DSimple): expansion=1, so the
    # identity residual requires in/out channels equal.
    inplanes = planes
    ks = jax.random.split(key, 4)

    def bn_fold(k, c):
        kg, kb, km, kv = jax.random.split(k, 4)
        gamma = 1.0 + 0.1 * jax.random.normal(kg, (c,), jnp.float32)
        beta = 0.1 * jax.random.normal(kb, (c,), jnp.float32)
        mean = 0.1 * jax.random.normal(km, (c,), jnp.float32)
        var = jnp.abs(jax.random.normal(kv, (c,), jnp.float32)) + 0.5
        scale = gamma / jnp.sqrt(var + eps)
        return scale, beta - mean * scale

    # PyTorch Conv3d weight (out,in,kd,kh,kw); generated here directly in DHWIO.
    w1 = 0.1 * jax.random.normal(ks[0], (3, 3, 3, inplanes, planes), jnp.float32)
    s1, b1 = bn_fold(ks[1], planes)
    w1f = (w1 * s1).astype(jnp.bfloat16)          # BN-folded, bf16 (intended numerics)

    w2 = 0.1 * jax.random.normal(ks[2], (3, 3, 3, planes, planes), jnp.float32)
    s2, b2 = bn_fold(ks[3], planes)
    w2f = (w2 * s2).astype(jnp.bfloat16)

    return dict(
        t1=_block_toeplitz(w1f, W).astype(jnp.bfloat16),
        t2=_block_toeplitz(w2f, W).astype(jnp.bfloat16),
        b1=jnp.tile(b1, W).reshape(1, W * planes),
        b2=jnp.tile(b2, W).reshape(1, W * planes),
        # reference-path copies (same bf16-quantized folded weights / f32 biases)
        w1_full=w1f, w2_full=w2f, b1_ch=b1, b2_ch=b2,
    )


# ------------------------------ pure-JAX reference ----------------------------

def reference_forward(x_ncdhw, params):
    hp = jax.lax.Precision.HIGHEST
    x = jnp.transpose(x_ncdhw, (0, 2, 3, 4, 1))
    xq = x.astype(jnp.bfloat16).astype(jnp.float32)       # kernel streams x in bf16
    h1 = jax.lax.conv_general_dilated(
        xq, params["w1_full"].astype(jnp.float32), (1, 1, 1),
        ((1, 1), (1, 1), (1, 1)),
        dimension_numbers=("NDHWC", "DHWIO", "NDHWC"), precision=hp)
    h1 = jnp.maximum(h1 + params["b1_ch"], 0.0)
    h1 = h1.astype(jnp.bfloat16).astype(jnp.float32)      # kernel keeps h1 in bf16
    h2 = jax.lax.conv_general_dilated(
        h1, params["w2_full"].astype(jnp.float32), (1, 1, 1),
        ((1, 1), (1, 1), (1, 1)),
        dimension_numbers=("NDHWC", "DHWIO", "NDHWC"), precision=hp)
    out = jnp.maximum(h2 + params["b2_ch"] + xq, 0.0)
    return jnp.transpose(out, (0, 4, 1, 2, 3))


# ----------------------------------- main --------------------------------------

if __name__ == "__main__":
    key = jax.random.PRNGKey(0)
    kx, kp = jax.random.split(key)

    planes = 16                         # inplanes == planes (identity residual)
    N, D, H, W = 2, 4, 8, 8             # W*C = 128 -> fully lane-dense packing
    x = jax.random.normal(kx, (N, planes, D, H, W), jnp.float32)   # PyTorch NCDHW

    params = init_params(kp, planes, W)

    out = jax.block_until_ready(basicblock_forward(x, params))
    ref = jax.block_until_ready(reference_forward(x, params))

    assert out.shape == (N, planes, D, H, W), out.shape
    np.testing.assert_allclose(np.asarray(out), np.asarray(ref), rtol=1e-2, atol=1e-2)
    print("KERNEL_OK")
</pallas_src>

<mosaic_0001>
module attributes {stable_mosaic.version = 11 : i64} {
  func.func @_basicblock_kernel(%arg0: i32, %arg1: memref<1x6x10x128xbf16, #tpu.memory_space<vmem>>, %arg2: memref<1152x128xbf16, #tpu.memory_space<vmem>>, %arg3: memref<1x128xf32, #tpu.memory_space<vmem>>, %arg4: memref<1152x128xbf16, #tpu.memory_space<vmem>>, %arg5: memref<1x128xf32, #tpu.memory_space<vmem>>, %arg6: memref<1x4x8x128xf32, #tpu.memory_space<vmem>>, %arg7: memref<6x10x128xbf16, #tpu.memory_space<vmem>>) attributes {dimension_semantics = [#tpu.dimension_semantics<parallel>], iteration_bounds = array<i64: 2>, scalar_prefetch = 0 : i64, scratch_operands = 1 : i64, tpu.core_type = #tpu.core_type<tc>, window_params = [{transform_indices = @transform_0, window_bounds = array<i64: 1, 6, 10, 128>}, {pipeline_mode = #tpu.pipeline_mode<synchronous>, transform_indices = @transform_1, window_bounds = array<i64: 1152, 128>}, {pipeline_mode = #tpu.pipeline_mode<synchronous>, transform_indices = @transform_2, window_bounds = array<i64: 1, 128>}, {pipeline_mode = #tpu.pipeline_mode<synchronous>, transform_indices = @transform_3, window_bounds = array<i64: 1152, 128>}, {pipeline_mode = #tpu.pipeline_mode<synchronous>, transform_indices = @transform_4, window_bounds = array<i64: 1, 128>}, {transform_indices = @transform_5, window_bounds = array<i64: 1, 4, 8, 128>}]} {
    %cst = arith.constant 0.000000e+00 : bf16
    %0 = vector.broadcast %cst : bf16 to vector<6x10x128xbf16>
    %c0 = arith.constant 0 : index
    %c0_0 = arith.constant 0 : index
    %c0_1 = arith.constant 0 : index
    %1 = vector.load %arg7[%c0, %c0_0, %c0_1] : memref<6x10x128xbf16, #tpu.memory_space<vmem>>, vector<6x10x128xbf16>
    tpu.vector_store %arg7[%c0, %c0_0, %c0_1], %0 {strides = array<i32>} : memref<6x10x128xbf16, #tpu.memory_space<vmem>>, vector<6x10x128xbf16>,
    %c0_2 = arith.constant 0 : index
    %c0_3 = arith.constant 0 : index
    %c0_4 = arith.constant 0 : index
    %c0_5 = arith.constant 0 : index
    %2 = vector.load %arg1[%c0_2, %c0_3, %c0_4, %c0_5] : memref<1x6x10x128xbf16, #tpu.memory_space<vmem>>, vector<1x1x10x128xbf16>
    %3 = vector.shape_cast %2 : vector<1x1x10x128xbf16> to vector<10x128xbf16>
    %4 = vector.extract_strided_slice %3 {offsets = [0, 0], sizes = [8, 128], strides = [1, 1]} : vector<10x128xbf16> to vector<8x128xbf16>
    %5 = vector.extract_strided_slice %3 {offsets = [1, 0], sizes = [8, 128], strides = [1, 1]} : vector<10x128xbf16> to vector<8x128xbf16>
    %6 = vector.extract_strided_slice %3 {offsets = [2, 0], sizes = [8, 128], strides = [1, 1]} : vector<10x128xbf16> to vector<8x128xbf16>
    %c0_6 = arith.constant 0 : index
    %c1 = arith.constant 1 : index
    %c0_7 = arith.constant 0 : index
    %c0_8 = arith.constant 0 : index
    %7 = vector.load %arg1[%c0_6, %c1, %c0_7, %c0_8] : memref<1x6x10x128xbf16, #tpu.memory_space<vmem>>, vector<1x1x10x128xbf16>
    %8 = vector.shape_cast %7 : vector<1x1x10x128xbf16> to vector<10x128xbf16>
    %9 = vector.extract_strided_slice %8 {offsets = [0, 0], sizes = [8, 128], strides = [1, 1]} : vector<10x128xbf16> to vector<8x128xbf16>
    %10 = vector.extract_strided_slice %8 {offsets = [1, 0], sizes = [8, 128], strides = [1, 1]} : vector<10x128xbf16> to vector<8x128xbf16>
    %11 = vector.extract_strided_slice %8 {offsets = [2, 0], sizes = [8, 128], strides = [1, 1]} : vector<10x128xbf16> to vector<8x128xbf16>
    %c0_9 = arith.constant 0 : index
    %c2 = arith.constant 2 : index
    %c0_10 = arith.constant 0 : index
    %c0_11 = arith.constant 0 : index
    %12 = vector.load %arg1[%c0_9, %c2, %c0_10, %c0_11] : memref<1x6x10x128xbf16, #tpu.memory_space<vmem>>, vector<1x1x10x128xbf16>
    %13 = vector.shape_cast %12 : vector<1x1x10x128xbf16> to vector<10x128xbf16>
    %14 = vector.extract_strided_slice %13 {offsets = [0, 0], sizes = [8, 128], strides = [1, 1]} : vector<10x128xbf16> to vector<8x128xbf16>
    %15 = vector.extract_strided_slice %13 {offsets = [1, 0], sizes = [8, 128], strides = [1, 1]} : vector<10x128xbf16> to vector<8x128xbf16>
    %16 = vector.extract_strided_slice %13 {offsets = [2, 0], sizes = [8, 128], strides = [1, 1]} : vector<10x128xbf16> to vector<8x128xbf16>
    %17 = tpu.concatenate %4, %5, %6, %9, %10, %11, %14, %15, %16 in 1 : vector<8x128xbf16>, vector<8x128xbf16>, vector<8x128xbf16>, vector<8x128xbf16>, vector<8x128xbf16>, vector<8x128xbf16>, vector<8x128xbf16>, vector<8x128xbf16>, vector<8x128xbf16> -> vector<8x1152xbf16>
    %c0_12 = arith.constant 0 : index
    %c0_13 = arith.constant 0 : index
    %18 = vector.load %arg2[%c0_12, %c0_13] : memref<1152x128xbf16, #tpu.memory_space<vmem>>, vector<1152x128xbf16>
    %cst_14 = arith.constant dense<0.000000e+00> : vector<8x128xf32>
    %19 = tpu.matmul %17, %18, %cst_14 {dimension_numbers = #tpu.dot_dimension_numbers<[1], [0], [0], [1], [0, 0, 1, 1], [], []>} : vector<8x1152xbf16>, vector<1152x128xbf16>, vector<8x128xf32> -> vector<8x128xf32>
    %c0_15 = arith.constant 0 : index
    %c0_16 = arith.constant 0 : index
    %20 = vector.load %arg3[%c0_15, %c0_16] : memref<1x128xf32, #tpu.memory_space<vmem>>, vector<1x128xf32>
    %21 = vector.broadcast %20 : vector<1x128xf32> to vector<8x128xf32>
    %22 = arith.addf %19, %21 : vector<8x128xf32>
    %cst_17 = arith.constant 0.000000e+00 : f32
    %23 = vector.broadcast %cst_17 : f32 to vector<8x128xf32>
    %24 = arith.maximumf %22, %23 : vector<8x128xf32>
    %25 = arith.truncf %24 : vector<8x128xf32> to vector<8x128xbf16>
    %c1_18 = arith.constant 1 : index
    %c1_19 = arith.constant 1 : index
    %c0_20 = arith.constant 0 : index
    %26 = vector.load %arg7[%c1_18, %c1_19, %c0_20] : memref<6x10x128xbf16, #tpu.memory_space<vmem>>, vector<1x8x128xbf16>
    %27 = vector.shape_cast %26 : vector<1x8x128xbf16> to vector<8x128xbf16>
    %28 = vector.shape_cast %25 : vector<8x128xbf16> to vector<1x8x128xbf16>
    tpu.vector_store %arg7[%c1_18, %c1_19, %c0_20], %28 {strides = array<i32>} : memref<6x10x128xbf16, #tpu.memory_space<vmem>>, vector<1x8x128xbf16>,
    %c0_21 = arith.constant 0 : index
    %c1_22 = arith.constant 1 : index
    %c0_23 = arith.constant 0 : index
    %c0_24 = arith.constant 0 : index
    %29 = vector.load %arg1[%c0_21, %c1_22, %c0_23, %c0_24] : memref<1x6x10x128xbf16, #tpu.memory_space<vmem>>, vector<1x1x10x128xbf16>
    %30 = vector.shape_cast %29 : vector<1x1x10x128xbf16> to vector<10x128xbf16>
    %31 = vector.extract_strided_slice %30 {offsets = [0, 0], sizes = [8, 128], strides = [1, 1]} : vector<10x128xbf16> to vector<8x128xbf16>
    %32 = vector.extract_strided_slice %30 {offsets = [1, 0], sizes = [8, 128], strides = [1, 1]} : vector<10x128xbf16> to vector<8x128xbf16>
    %33 = vector.extract_strided_slice %30 {offsets = [2, 0], sizes = [8, 128], strides = [1, 1]} : vector<10x128xbf16> to vector<8x128xbf16>
    %c0_25 = arith.constant 0 : index
    %c2_26 = arith.constant 2 : index
    %c0_27 = arith.constant 0 : index
    %c0_28 = arith.constant 0 : index
    %34 = vector.load %arg1[%c0_25, %c2_26, %c0_27, %c0_28] : memref<1x6x10x128xbf16, #tpu.memory_space<vmem>>, vector<1x1x10x128xbf16>
    %35 = vector.shape_cast %34 : vector<1x1x10x128xbf16> to vector<10x128xbf16>
    %36 = vector.extract_strided_slice %35 {offsets = [0, 0], sizes = [8, 128], strides = [1, 1]} : vector<10x128xbf16> to vector<8x128xbf16>
    %37 = vector.extract_strided_slice %35 {offsets = [1, 0], sizes = [8, 128], strides = [1, 1]} : vector<10x128xbf16> to vector<8x128xbf16>
    %38 = vector.extract_strided_slice %35 {offsets = [2, 0], sizes = [8, 128], strides = [1, 1]} : vector<10x128xbf16> to vector<8x128xbf16>
    %c0_29 = arith.constant 0 : index
    %c3 = arith.constant 3 : index
    %c0_30 = arith.constant 0 : index
    %c0_31 = arith.constant 0 : index
    %39 = vector.load %arg1[%c0_29, %c3, %c0_30, %c0_31] : memref<1x6x10x128xbf16, #tpu.memory_space<vmem>>, vector<1x1x10x128xbf16>
    %40 = vector.shape_cast %39 : vector<1x1x10x128xbf16> to vector<10x128xbf16>
    %41 = vector.extract_strided_slice %40 {offsets = [0, 0], sizes = [8, 128], strides = [1, 1]} : vector<10x128xbf16> to vector<8x128xbf16>
    %42 = vector.extract_strided_slice %40 {offsets = [1, 0], sizes = [8, 128], strides = [1, 1]} : vector<10x128xbf16> to vector<8x128xbf16>
    %43 = vector.extract_strided_slice %40 {offsets = [2, 0], sizes = [8, 128], strides = [1, 1]} : vector<10x128xbf16> to vector<8x128xbf16>
    %44 = tpu.concatenate %31, %32, %33, %36, %37, %38, %41, %42, %43 in 1 : vector<8x128xbf16>, vector<8x128xbf16>, vector<8x128xbf16>, vector<8x128xbf16>, vector<8x128xbf16>, vector<8x128xbf16>, vector<8x128xbf16>, vector<8x128xbf16>, vector<8x128xbf16> -> vector<8x1152xbf16>
    %c0_32 = arith.constant 0 : index
    %c0_33 = arith.constant 0 : index
    %45 = vector.load %arg2[%c0_32, %c0_33] : memref<1152x128xbf16, #tpu.memory_space<vmem>>, vector<1152x128xbf16>
    %cst_34 = arith.constant dense<0.000000e+00> : vector<8x128xf32>
    %46 = tpu.matmul %44, %45, %cst_34 {dimension_numbers = #tpu.dot_dimension_numbers<[1], [0], [0], [1], [0, 0, 1, 1], [], []>} : vector<8x1152xbf16>, vector<1152x128xbf16>, vector<8x128xf32> -> vector<8x128xf32>
    %c0_35 = arith.constant 0 : index
    %c0_36 = arith.constant 0 : index
    %47 = vector.load %arg3[%c0_35, %c0_36] : memref<1x128xf32, #tpu.memory_space<vmem>>, vector<1x128xf32>
    %48 = vector.broadcast %47 : vector<1x128xf32> to vector<8x128xf32>
    %49 = arith.addf %46, %48 : vector<8x128xf32>
    %cst_37 = arith.constant 0.000000e+00 : f32
    %50 = vector.broadcast %cst_37 : f32 to vector<8x128xf32>
    %51 = arith.maximumf %49, %50 : vector<8x128xf32>
    %52 = arith.truncf %51 : vector<8x128xf32> to vector<8x128xbf16>
    %c2_38 = arith.constant 2 : index
    %c1_39 = arith.constant 1 : index
    %c0_40 = arith.constant 0 : index
    %53 = vector.load %arg7[%c2_38, %c1_39, %c0_40] : memref<6x10x128xbf16, #tpu.memory_space<vmem>>, vector<1x8x128xbf16>
    %54 = vector.shape_cast %53 : vector<1x8x128xbf16> to vector<8x128xbf16>
    %55 = vector.shape_cast %52 : vector<8x128xbf16> to vector<1x8x128xbf16>
    tpu.vector_store %arg7[%c2_38, %c1_39, %c0_40], %55 {strides = array<i32>} : memref<6x10x128xbf16, #tpu.memory_space<vmem>>, vector<1x8x128xbf16>,
    %c0_41 = arith.constant 0 : index
    %c2_42 = arith.constant 2 : index
    %c0_43 = arith.constant 0 : index
    %c0_44 = arith.constant 0 : index
    %56 = vector.load %arg1[%c0_41, %c2_42, %c0_43, %c0_44] : memref<1x6x10x128xbf16, #tpu.memory_space<vmem>>, vector<1x1x10x128xbf16>
    %57 = vector.shape_cast %56 : vector<1x1x10x128xbf16> to vector<10x128xbf16>
    %58 = vector.extract_strided_slice %57 {offsets = [0, 0], sizes = [8, 128], strides = [1, 1]} : vector<10x128xbf16> to vector<8x128xbf16>
    %59 = vector.extract_strided_slice %57 {offsets = [1, 0], sizes = [8, 128], strides = [1, 1]} : vector<10x128xbf16> to vector<8x128xbf16>
    %60 = vector.extract_strided_slice %57 {offsets = [2, 0], sizes = [8, 128], strides = [1, 1]} : vector<10x128xbf16> to vector<8x128xbf16>
    %c0_45 = arith.constant 0 : index
    %c3_46 = arith.constant 3 : index
    %c0_47 = arith.constant 0 : index
    %c0_48 = arith.constant 0 : index
    %61 = vector.load %arg1[%c0_45, %c3_46, %c0_47, %c0_48] : memref<1x6x10x128xbf16, #tpu.memory_space<vmem>>, vector<1x1x10x128xbf16>
    %62 = vector.shape_cast %61 : vector<1x1x10x128xbf16> to vector<10x128xbf16>
    %63 = vector.extract_strided_slice %62 {offsets = [0, 0], sizes = [8, 128], strides = [1, 1]} : vector<10x128xbf16> to vector<8x128xbf16>
    %64 = vector.extract_strided_slice %62 {offsets = [1, 0], sizes = [8, 128], strides = [1, 1]} : vector<10x128xbf16> to vector<8x128xbf16>
    %65 = vector.extract_strided_slice %62 {offsets = [2, 0], sizes = [8, 128], strides = [1, 1]} : vector<10x128xbf16> to vector<8x128xbf16>
    %c0_49 = arith.constant 0 : index
    %c4 = arith.constant 4 : index
    %c0_50 = arith.constant 0 : index
    %c0_51 = arith.constant 0 : index
    %66 = vector.load %arg1[%c0_49, %c4, %c0_50, %c0_51] : memref<1x6x10x128xbf16, #tpu.memory_space<vmem>>, vector<1x1x10x128xbf16>
    %67 = vector.shape_cast %66 : vector<1x1x10x128xbf16> to vector<10x128xbf16>
    %68 = vector.extract_strided_slice %67 {offsets = [0, 0], sizes = [8, 128], strides = [1, 1]} : vector<10x128xbf16> to vector<8x128xbf16>
    %69 = vector.extract_strided_slice %67 {offsets = [1, 0], sizes = [8, 128], strides = [1, 1]} : vector<10x128xbf16> to vector<8x128xbf16>
    %70 = vector.extract_strided_slice %67 {offsets = [2, 0], sizes = [8, 128], strides = [1, 1]} : vector<10x128xbf16> to vector<8x128xbf16>
    %71 = tpu.concatenate %58, %59, %60, %63, %64, %65, %68, %69, %70 in 1 : vector<8x128xbf16>, vector<8x128xbf16>, vector<8x128xbf16>, vector<8x128xbf16>, vector<8x128xbf16>, vector<8x128xbf16>, vector<8x128xbf16>, vector<8x128xbf16>, vector<8x128xbf16> -> vector<8x1152xbf16>
    %c0_52 = arith.constant 0 : index
    %c0_53 = arith.constant 0 : index
    %72 = vector.load %arg2[%c0_52, %c0_53] : memref<1152x128xbf16, #tpu.memory_space<vmem>>, vector<1152x128xbf16>
    %cst_54 = arith.constant dense<0.000000e+00> : vector<8x128xf32>
    %73 = tpu.matmul %71, %72, %cst_54 {dimension_numbers = #tpu.dot_dimension_numbers<[1], [0], [0], [1], [0, 0, 1, 1], [], []>} : vector<8x1152xbf16>, vector<1152x128xbf16>, vector<8x128xf32> -> vector<8x128xf32>
    %c0_55 = arith.constant 0 : index
    %c0_56 = arith.constant 0 : index
    %74 = vector.load %arg3[%c0_55, %c0_56] : memref<1x128xf32, #tpu.memory_space<vmem>>, vector<1x128xf32>
    %75 = vector.broadcast %74 : vector<1x128xf32> to vector<8x128xf32>
    %76 = arith.addf %73, %75 : vector<8x128xf32>
    %cst_57 = arith.constant 0.000000e+00 : f32
    %77 = vector.broadcast %cst_57 : f32 to vector<8x128xf32>
    %78 = arith.maximumf %76, %77 : vector<8x128xf32>
    %79 = arith.truncf %78 : vector<8x128xf32> to vector<8x128xbf16>
    %c3_58 = arith.constant 3 : index
    %c1_59 = arith.constant 1 : index
    %c0_60 = arith.constant 0 : index
    %80 = vector.load %arg7[%c3_58, %c1_59, %c0_60] : memref<6x10x128xbf16, #tpu.memory_space<vmem>>, vector<1x8x128xbf16>
    %81 = vector.shape_cast %80 : vector<1x8x128xbf16> to vector<8x128xbf16>
    %82 = vector.shape_cast %79 : vector<8x128xbf16> to vector<1x8x128xbf16>
    tpu.vector_store %arg7[%c3_58, %c1_59, %c0_60], %82 {strides = array<i32>} : memref<6x10x128xbf16, #tpu.memory_space<vmem>>, vector<1x8x128xbf16>,
    %c0_61 = arith.constant 0 : index
    %c3_62 = arith.constant 3 : index
    %c0_63 = arith.constant 0 : index
    %c0_64 = arith.constant 0 : index
    %83 = vector.load %arg1[%c0_61, %c3_62, %c0_63, %c0_64] : memref<1x6x10x128xbf16, #tpu.memory_space<vmem>>, vector<1x1x10x128xbf16>
    %84 = vector.shape_cast %83 : vector<1x1x10x128xbf16> to vector<10x128xbf16>
    %85 = vector.extract_strided_slice %84 {offsets = [0, 0], sizes = [8, 128], strides = [1, 1]} : vector<10x128xbf16> to vector<8x128xbf16>
    %86 = vector.extract_strided_slice %84 {offsets = [1, 0], sizes = [8, 128], strides = [1, 1]} : vector<10x128xbf16> to vector<8x128xbf16>
    %87 = vector.extract_strided_slice %84 {offsets = [2, 0], sizes = [8, 128], strides = [1, 1]} : vector<10x128xbf16> to vector<8x128xbf16>
    %c0_65 = arith.constant 0 : index
    %c4_66 = arith.constant 4 : index
    %c0_67 = arith.constant 0 : index
    %c0_68 = arith.constant 0 : index
    %88 = vector.load %arg1[%c0_65, %c4_66, %c0_67, %c0_68] : memref<1x6x10x128xbf16, #tpu.memory_space<vmem>>, vector<1x1x10x128xbf16>
    %89 = vector.shape_cast %88 : vector<1x1x10x128xbf16> to vector<10x128xbf16>
    %90 = vector.extract_strided_slice %89 {offsets = [0, 0], sizes = [8, 128], strides = [1, 1]} : vector<10x128xbf16> to vector<8x128xbf16>
    %91 = vector.extract_strided_slice %89 {offsets = [1, 0], sizes = [8, 128], strides = [1, 1]} : vector<10x128xbf16> to vector<8x128xbf16>
    %92 = vector.extract_strided_slice %89 {offsets = [2, 0], sizes = [8, 128], strides = [1, 1]} : vector<10x128xbf16> to vector<8x128xbf16>
    %c0_69 = arith.constant 0 : index
    %c5 = arith.constant 5 : index
    %c0_70 = arith.constant 0 : index
    %c0_71 = arith.constant 0 : index
    %93 = vector.load %arg1[%c0_69, %c5, %c0_70, %c0_71] : memref<1x6x10x128xbf16, #tpu.memory_space<vmem>>, vector<1x1x10x128xbf16>
    %94 = vector.shape_cast %93 : vector<1x1x10x128xbf16> to vector<10x128xbf16>
    %95 = vector.extract_strided_slice %94 {offsets = [0, 0], sizes = [8, 128], strides = [1, 1]} : vector<10x128xbf16> to vector<8x128xbf16>
    %96 = vector.extract_strided_slice %94 {offsets = [1, 0], sizes = [8, 128], strides = [1, 1]} : vector<10x128xbf16> to vector<8x128xbf16>
    %97 = vector.extract_strided_slice %94 {offsets = [2, 0], sizes = [8, 128], strides = [1, 1]} : vector<10x128xbf16> to vector<8x128xbf16>
    %98 = tpu.concatenate %85, %86, %87, %90, %91, %92, %95, %96, %97 in 1 : vector<8x128xbf16>, vector<8x128xbf16>, vector<8x128xbf16>, vector<8x128xbf16>, vector<8x128xbf16>, vector<8x128xbf16>, vector<8x128xbf16>, vector<8x128xbf16>, vector<8x128xbf16> -> vector<8x1152xbf16>
    %c0_72 = arith.constant 0 : index
    %c0_73 = arith.constant 0 : index
    %99 = vector.load %arg2[%c0_72, %c0_73] : memref<1152x128xbf16, #tpu.memory_space<vmem>>, vector<1152x128xbf16>
    %cst_74 = arith.constant dense<0.000000e+00> : vector<8x128xf32>
    %100 = tpu.matmul %98, %99, %cst_74 {dimension_numbers = #tpu.dot_dimension_numbers<[1], [0], [0], [1], [0, 0, 1, 1], [], []>} : vector<8x1152xbf16>, vector<1152x128xbf16>, vector<8x128xf32> -> vector<8x128xf32>
    %c0_75 = arith.constant 0 : index
    %c0_76 = arith.constant 0 : index
    %101 = vector.load %arg3[%c0_75, %c0_76] : memref<1x128xf32, #tpu.memory_space<vmem>>, vector<1x128xf32>
    %102 = vector.broadcast %101 : vector<1x128xf32> to vector<8x128xf32>
    %103 = arith.addf %100, %102 : vector<8x128xf32>
    %cst_77 = arith.constant 0.000000e+00 : f32
    %104 = vector.broadcast %cst_77 : f32 to vector<8x128xf32>
    %105 = arith.maximumf %103, %104 : vector<8x128xf32>
    %106 = arith.truncf %105 : vector<8x128xf32> to vector<8x128xbf16>
    %c4_78 = arith.constant 4 : index
    %c1_79 = arith.constant 1 : index
    %c0_80 = arith.constant 0 : index
    %107 = vector.load %arg7[%c4_78, %c1_79, %c0_80] : memref<6x10x128xbf16, #tpu.memory_space<vmem>>, vector<1x8x128xbf16>
    %108 = vector.shape_cast %107 : vector<1x8x128xbf16> to vector<8x128xbf16>
    %109 = vector.shape_cast %106 : vector<8x128xbf16> to vector<1x8x128xbf16>
    tpu.vector_store %arg7[%c4_78, %c1_79, %c0_80], %109 {strides = array<i32>} : memref<6x10x128xbf16, #tpu.memory_space<vmem>>, vector<1x8x128xbf16>,
    %c0_81 = arith.constant 0 : index
    %c0_82 = arith.constant 0 : index
    %c0_83 = arith.constant 0 : index
    %110 = vector.load %arg7[%c0_81, %c0_82, %c0_83] : memref<6x10x128xbf16, #tpu.memory_space<vmem>>, vector<1x10x128xbf16>
    %111 = vector.shape_cast %110 : vector<1x10x128xbf16> to vector<10x128xbf16>
    %112 = vector.extract_strided_slice %111 {offsets = [0, 0], sizes = [8, 128], strides = [1, 1]} : vector<10x128xbf16> to vector<8x128xbf16>
    %113 = vector.extract_strided_slice %111 {offsets = [1, 0], sizes = [8, 128], strides = [1, 1]} : vector<10x128xbf16> to vector<8x128xbf16>
    %114 = vector.extract_strided_slice %111 {offsets = [2, 0], sizes = [8, 128], strides = [1, 1]} : vector<10x128xbf16> to vector<8x128xbf16>
    %c1_84 = arith.constant 1 : index
    %c0_85 = arith.constant 0 : index
    %c0_86 = arith.constant 0 : index
    %115 = vector.load %arg7[%c1_84, %c0_85, %c0_86] : memref<6x10x128xbf16, #tpu.memory_space<vmem>>, vector<1x10x128xbf16>
    %116 = vector.shape_cast %115 : vector<1x10x128xbf16> to vector<10x128xbf16>
    %117 = vector.extract_strided_slice %116 {offsets = [0, 0], sizes = [8, 128], strides = [1, 1]} : vector<10x128xbf16> to vector<8x128xbf16>
    %118 = vector.extract_strided_slice %116 {offsets = [1, 0], sizes = [8, 128], strides = [1, 1]} : vector<10x128xbf16> to vector<8x128xbf16>
    %119 = vector.extract_strided_slice %116 {offsets = [2, 0], sizes = [8, 128], strides = [1, 1]} : vector<10x128xbf16> to vector<8x128xbf16>
    %c2_87 = arith.constant 2 : index
    %c0_88 = arith.constant 0 : index
    %c0_89 = arith.constant 0 : index
    %120 = vector.load %arg7[%c2_87, %c0_88, %c0_89] : memref<6x10x128xbf16, #tpu.memory_space<vmem>>, vector<1x10x128xbf16>
    %121 = vector.shape_cast %120 : vector<1x10x128xbf16> to vector<10x128xbf16>
    %122 = vector.extract_strided_slice %121 {offsets = [0, 0], sizes = [8, 128], strides = [1, 1]} : vector<10x128xbf16> to vector<8x128xbf16>
    %123 = vector.extract_strided_slice %121 {offsets = [1, 0], sizes = [8, 128], strides = [1, 1]} : vector<10x128xbf16> to vector<8x128xbf16>
    %124 = vector.extract_strided_slice %121 {offsets = [2, 0], sizes = [8, 128], strides = [1, 1]} : vector<10x128xbf16> to vector<8x128xbf16>
    %125 = tpu.concatenate %112, %113, %114, %117, %118, %119, %122, %123, %124 in 1 : vector<8x128xbf16>, vector<8x128xbf16>, vector<8x128xbf16>, vector<8x128xbf16>, vector<8x128xbf16>, vector<8x128xbf16>, vector<8x128xbf16>, vector<8x128xbf16>, vector<8x128xbf16> -> vector<8x1152xbf16>
    %c0_90 = arith.constant 0 : index
    %c0_91 = arith.constant 0 : index
    %126 = vector.load %arg4[%c0_90, %c0_91] : memref<1152x128xbf16, #tpu.memory_space<vmem>>, vector<1152x128xbf16>
    %cst_92 = arith.constant dense<0.000000e+00> : vector<8x128xf32>
    %127 = tpu.matmul %125, %126, %cst_92 {dimension_numbers = #tpu.dot_dimension_numbers<[1], [0], [0], [1], [0, 0, 1, 1], [], []>} : vector<8x1152xbf16>, vector<1152x128xbf16>, vector<8x128xf32> -> vector<8x128xf32>
    %c0_93 = arith.constant 0 : index
    %c1_94 = arith.constant 1 : index
    %c1_95 = arith.constant 1 : index
    %c0_96 = arith.constant 0 : index
    %128 = vector.load %arg1[%c0_93, %c1_94, %c1_95, %c0_96] : memref<1x6x10x128xbf16, #tpu.memory_space<vmem>>, vector<1x1x8x128xbf16>
    %129 = vector.shape_cast %128 : vector<1x1x8x128xbf16> to vector<8x128xbf16>
    %130 = arith.extf %129 : vector<8x128xbf16> to vector<8x128xf32>
    %c0_97 = arith.constant 0 : index
    %c0_98 = arith.constant 0 : index
    %131 = vector.load %arg5[%c0_97, %c0_98] : memref<1x128xf32, #tpu.memory_space<vmem>>, vector<1x128xf32>
    %132 = vector.broadcast %131 : vector<1x128xf32> to vector<8x128xf32>
    %133 = arith.addf %127, %132 : vector<8x128xf32>
    %134 = arith.addf %133, %130 : vector<8x128xf32>
    %cst_99 = arith.constant 0.000000e+00 : f32
    %135 = vector.broadcast %cst_99 : f32 to vector<8x128xf32>
    %136 = arith.maximumf %134, %135 : vector<8x128xf32>
    %c0_100 = arith.constant 0 : index
    %c0_101 = arith.constant 0 : index
    %c0_102 = arith.constant 0 : index
    %c0_103 = arith.constant 0 : index
    %137 = vector.load %arg6[%c0_100, %c0_101, %c0_102, %c0_103] : memref<1x4x8x128xf32, #tpu.memory_space<vmem>>, vector<1x1x8x128xf32>
    %138 = vector.shape_cast %137 : vector<1x1x8x128xf32> to vector<8x128xf32>
    %139 = vector.shape_cast %136 : vector<8x128xf32> to vector<1x1x8x128xf32>
    tpu.vector_store %arg6[%c0_100, %c0_101, %c0_102, %c0_103], %139 {strides = array<i32>} : memref<1x4x8x128xf32, #tpu.memory_space<vmem>>, vector<1x1x8x128xf32>,
    %c1_104 = arith.constant 1 : index
    %c0_105 = arith.constant 0 : index
    %c0_106 = arith.constant 0 : index
    %140 = vector.load %arg7[%c1_104, %c0_105, %c0_106] : memref<6x10x128xbf16, #tpu.memory_space<vmem>>, vector<1x10x128xbf16>
    %141 = vector.shape_cast %140 : vector<1x10x128xbf16> to vector<10x128xbf16>
    %142 = vector.extract_strided_slice %141 {offsets = [0, 0], sizes = [8, 128], strides = [1, 1]} : vector<10x128xbf16> to vector<8x128xbf16>
    %143 = vector.extract_strided_slice %141 {offsets = [1, 0], sizes = [8, 128], strides = [1, 1]} : vector<10x128xbf16> to vector<8x128xbf16>
    %144 = vector.extract_strided_slice %141 {offsets = [2, 0], sizes = [8, 128], strides = [1, 1]} : vector<10x128xbf16> to vector<8x128xbf16>
    %c2_107 = arith.constant 2 : index
    %c0_108 = arith.constant 0 : index
    %c0_109 = arith.constant 0 : index
    %145 = vector.load %arg7[%c2_107, %c0_108, %c0_109] : memref<6x10x128xbf16, #tpu.memory_space<vmem>>, vector<1x10x128xbf16>
    %146 = vector.shape_cast %145 : vector<1x10x128xbf16> to vector<10x128xbf16>
    %147 = vector.extract_strided_slice %146 {offsets = [0, 0], sizes = [8, 128], strides = [1, 1]} : vector<10x128xbf16> to vector<8x128xbf16>
    %148 = vector.extract_strided_slice %146 {offsets = [1, 0], sizes = [8, 128], strides = [1, 1]} : vector<10x128xbf16> to vector<8x128xbf16>
    %149 = vector.extract_strided_slice %146 {offsets = [2, 0], sizes = [8, 128], strides = [1, 1]} : vector<10x128xbf16> to vector<8x128xbf16>
    %c3_110 = arith.constant 3 : index
    %c0_111 = arith.constant 0 : index
    %c0_112 = arith.constant 0 : index
    %150 = vector.load %arg7[%c3_110, %c0_111, %c0_112] : memref<6x10x128xbf16, #tpu.memory_space<vmem>>, vector<1x10x128xbf16>
    %151 = vector.shape_cast %150 : vector<1x10x128xbf16> to vector<10x128xbf16>
    %152 = vector.extract_strided_slice %151 {offsets = [0, 0], sizes = [8, 128], strides = [1, 1]} : vector<10x128xbf16> to vector<8x128xbf16>
    %153 = vector.extract_strided_slice %151 {offsets = [1, 0], sizes = [8, 128], strides = [1, 1]} : vector<10x128xbf16> to vector<8x128xbf16>
    %154 = vector.extract_strided_slice %151 {offsets = [2, 0], sizes = [8, 128], strides = [1, 1]} : vector<10x128xbf16> to vector<8x128xbf16>
    %155 = tpu.concatenate %142, %143, %144, %147, %148, %149, %152, %153, %154 in 1 : vector<8x128xbf16>, vector<8x128xbf16>, vector<8x128xbf16>, vector<8x128xbf16>, vector<8x128xbf16>, vector<8x128xbf16>, vector<8x128xbf16>, vector<8x128xbf16>, vector<8x128xbf16> -> vector<8x1152xbf16>
    %c0_113 = arith.constant 0 : index
    %c0_114 = arith.constant 0 : index
    %156 = vector.load %arg4[%c0_113, %c0_114] : memref<1152x128xbf16, #tpu.memory_space<vmem>>, vector<1152x128xbf16>
    %cst_115 = arith.constant dense<0.000000e+00> : vector<8x128xf32>
    %157 = tpu.matmul %155, %156, %cst_115 {dimension_numbers = #tpu.dot_dimension_numbers<[1], [0], [0], [1], [0, 0, 1, 1], [], []>} : vector<8x1152xbf16>, vector<1152x128xbf16>, vector<8x128xf32> -> vector<8x128xf32>
    %c0_116 = arith.constant 0 : index
    %c2_117 = arith.constant 2 : index
    %c1_118 = arith.constant 1 : index
    %c0_119 = arith.constant 0 : index
    %158 = vector.load %arg1[%c0_116, %c2_117, %c1_118, %c0_119] : memref<1x6x10x128xbf16, #tpu.memory_space<vmem>>, vector<1x1x8x128xbf16>
    %159 = vector.shape_cast %158 : vector<1x1x8x128xbf16> to vector<8x128xbf16>
    %160 = arith.extf %159 : vector<8x128xbf16> to vector<8x128xf32>
    %c0_120 = arith.constant 0 : index
    %c0_121 = arith.constant 0 : index
    %161 = vector.load %arg5[%c0_120, %c0_121] : memref<1x128xf32, #tpu.memory_space<vmem>>, vector<1x128xf32>
    %162 = vector.broadcast %161 : vector<1x128xf32> to vector<8x128xf32>
    %163 = arith.addf %157, %162 : vector<8x128xf32>
    %164 = arith.addf %163, %160 : vector<8x128xf32>
    %cst_122 = arith.constant 0.000000e+00 : f32
    %165 = vector.broadcast %cst_122 : f32 to vector<8x128xf32>
    %166 = arith.maximumf %164, %165 : vector<8x128xf32>
    %c0_123 = arith.constant 0 : index
    %c1_124 = arith.constant 1 : index
    %c0_125 = arith.constant 0 : index
    %c0_126 = arith.constant 0 : index
    %167 = vector.load %arg6[%c0_123, %c1_124, %c0_125, %c0_126] : memref<1x4x8x128xf32, #tpu.memory_space<vmem>>, vector<1x1x8x128xf32>
    %168 = vector.shape_cast %167 : vector<1x1x8x128xf32> to vector<8x128xf32>
    %169 = vector.shape_cast %166 : vector<8x128xf32> to vector<1x1x8x128xf32>
    tpu.vector_store %arg6[%c0_123, %c1_124, %c0_125, %c0_126], %169 {strides = array<i32>} : memref<1x4x8x128xf32, #tpu.memory_space<vmem>>, vector<1x1x8x128xf32>,
    %c2_127 = arith.constant 2 : index
    %c0_128 = arith.constant 0 : index
    %c0_129 = arith.constant 0 : index
    %170 = vector.load %arg7[%c2_127, %c0_128, %c0_129] : memref<6x10x128xbf16, #tpu.memory_space<vmem>>, vector<1x10x128xbf16>
    %171 = vector.shape_cast %170 : vector<1x10x128xbf16> to vector<10x128xbf16>
    %172 = vector.extract_strided_slice %171 {offsets = [0, 0], sizes = [8, 128], strides = [1, 1]} : vector<10x128xbf16> to vector<8x128xbf16>
    %173 = vector.extract_strided_slice %171 {offsets = [1, 0], sizes = [8, 128], strides = [1, 1]} : vector<10x128xbf16> to vector<8x128xbf16>
    %174 = vector.extract_strided_slice %171 {offsets = [2, 0], sizes = [8, 128], strides = [1, 1]} : vector<10x128xbf16> to vector<8x128xbf16>
    %c3_130 = arith.constant 3 : index
    %c0_131 = arith.constant 0 : index
    %c0_132 = arith.constant 0 : index
    %175 = vector.load %arg7[%c3_130, %c0_131, %c0_132] : memref<6x10x128xbf16, #tpu.memory_space<vmem>>, vector<1x10x128xbf16>
    %176 = vector.shape_cast %175 : vector<1x10x128xbf16> to vector<10x128xbf16>
    %177 = vector.extract_strided_slice %176 {offsets = [0, 0], sizes = [8, 128], strides = [1, 1]} : vector<10x128xbf16> to vector<8x128xbf16>
    %178 = vector.extract_strided_slice %176 {offsets = [1, 0], sizes = [8, 128], strides = [1, 1]} : vector<10x128xbf16> to vector<8x128xbf16>
    %179 = vector.extract_strided_slice %176 {offsets = [2, 0], sizes = [8, 128], strides = [1, 1]} : vector<10x128xbf16> to vector<8x128xbf16>
    %c4_133 = arith.constant 4 : index
    %c0_134 = arith.constant 0 : index
    %c0_135 = arith.constant 0 : index
    %180 = vector.load %arg7[%c4_133, %c0_134, %c0_135] : memref<6x10x128xbf16, #tpu.memory_space<vmem>>, vector<1x10x128xbf16>
    %181 = vector.shape_cast %180 : vector<1x10x128xbf16> to vector<10x128xbf16>
    %182 = vector.extract_strided_slice %181 {offsets = [0, 0], sizes = [8, 128], strides = [1, 1]} : vector<10x128xbf16> to vector<8x128xbf16>
    %183 = vector.extract_strided_slice %181 {offsets = [1, 0], sizes = [8, 128], strides = [1, 1]} : vector<10x128xbf16> to vector<8x128xbf16>
    %184 = vector.extract_strided_slice %181 {offsets = [2, 0], sizes = [8, 128], strides = [1, 1]} : vector<10x128xbf16> to vector<8x128xbf16>
    %185 = tpu.concatenate %172, %173, %174, %177, %178, %179, %182, %183, %184 in 1 : vector<8x128xbf16>, vector<8x128xbf16>, vector<8x128xbf16>, vector<8x128xbf16>, vector<8x128xbf16>, vector<8x128xbf16>, vector<8x128xbf16>, vector<8x128xbf16>, vector<8x128xbf16> -> vector<8x1152xbf16>
    %c0_136 = arith.constant 0 : index
    %c0_137 = arith.constant 0 : index
    %186 = vector.load %arg4[%c0_136, %c0_137] : memref<1152x128xbf16, #tpu.memory_space<vmem>>, vector<1152x128xbf16>
    %cst_138 = arith.constant dense<0.000000e+00> : vector<8x128xf32>
    %187 = tpu.matmul %185, %186, %cst_138 {dimension_numbers = #tpu.dot_dimension_numbers<[1], [0], [0], [1], [0, 0, 1, 1], [], []>} : vector<8x1152xbf16>, vector<1152x128xbf16>, vector<8x128xf32> -> vector<8x128xf32>
    %c0_139 = arith.constant 0 : index
    %c3_140 = arith.constant 3 : index
    %c1_141 = arith.constant 1 : index
    %c0_142 = arith.constant 0 : index
    %188 = vector.load %arg1[%c0_139, %c3_140, %c1_141, %c0_142] : memref<1x6x10x128xbf16, #tpu.memory_space<vmem>>, vector<1x1x8x128xbf16>
    %189 = vector.shape_cast %188 : vector<1x1x8x128xbf16> to vector<8x128xbf16>
    %190 = arith.extf %189 : vector<8x128xbf16> to vector<8x128xf32>
    %c0_143 = arith.constant 0 : index
    %c0_144 = arith.constant 0 : index
    %191 = vector.load %arg5[%c0_143, %c0_144] : memref<1x128xf32, #tpu.memory_space<vmem>>, vector<1x128xf32>
    %192 = vector.broadcast %191 : vector<1x128xf32> to vector<8x128xf32>
    %193 = arith.addf %187, %192 : vector<8x128xf32>
    %194 = arith.addf %193, %190 : vector<8x128xf32>
    %cst_145 = arith.constant 0.000000e+00 : f32
    %195 = vector.broadcast %cst_145 : f32 to vector<8x128xf32>
    %196 = arith.maximumf %194, %195 : vector<8x128xf32>
    %c0_146 = arith.constant 0 : index
    %c2_147 = arith.constant 2 : index
    %c0_148 = arith.constant 0 : index
    %c0_149 = arith.constant 0 : index
    %197 = vector.load %arg6[%c0_146, %c2_147, %c0_148, %c0_149] : memref<1x4x8x128xf32, #tpu.memory_space<vmem>>, vector<1x1x8x128xf32>
    %198 = vector.shape_cast %197 : vector<1x1x8x128xf32> to vector<8x128xf32>
    %199 = vector.shape_cast %196 : vector<8x128xf32> to vector<1x1x8x128xf32>
    tpu.vector_store %arg6[%c0_146, %c2_147, %c0_148, %c0_149], %199 {strides = array<i32>} : memref<1x4x8x128xf32, #tpu.memory_space<vmem>>, vector<1x1x8x128xf32>,
    %c3_150 = arith.constant 3 : index
    %c0_151 = arith.constant 0 : index
    %c0_152 = arith.constant 0 : index
    %200 = vector.load %arg7[%c3_150, %c0_151, %c0_152] : memref<6x10x128xbf16, #tpu.memory_space<vmem>>, vector<1x10x128xbf16>
    %201 = vector.shape_cast %200 : vector<1x10x128xbf16> to vector<10x128xbf16>
    %202 = vector.extract_strided_slice %201 {offsets = [0, 0], sizes = [8, 128], strides = [1, 1]} : vector<10x128xbf16> to vector<8x128xbf16>
    %203 = vector.extract_strided_slice %201 {offsets = [1, 0], sizes = [8, 128], strides = [1, 1]} : vector<10x128xbf16> to vector<8x128xbf16>
    %204 = vector.extract_strided_slice %201 {offsets = [2, 0], sizes = [8, 128], strides = [1, 1]} : vector<10x128xbf16> to vector<8x128xbf16>
    %c4_153 = arith.constant 4 : index
    %c0_154 = arith.constant 0 : index
    %c0_155 = arith.constant 0 : index
    %205 = vector.load %arg7[%c4_153, %c0_154, %c0_155] : memref<6x10x128xbf16, #tpu.memory_space<vmem>>, vector<1x10x128xbf16>
    %206 = vector.shape_cast %205 : vector<1x10x128xbf16> to vector<10x128xbf16>
    %207 = vector.extract_strided_slice %206 {offsets = [0, 0], sizes = [8, 128], strides = [1, 1]} : vector<10x128xbf16> to vector<8x128xbf16>
    %208 = vector.extract_strided_slice %206 {offsets = [1, 0], sizes = [8, 128], strides = [1, 1]} : vector<10x128xbf16> to vector<8x128xbf16>
    %209 = vector.extract_strided_slice %206 {offsets = [2, 0], sizes = [8, 128], strides = [1, 1]} : vector<10x128xbf16> to vector<8x128xbf16>
    %c5_156 = arith.constant 5 : index
    %c0_157 = arith.constant 0 : index
    %c0_158 = arith.constant 0 : index
    %210 = vector.load %arg7[%c5_156, %c0_157, %c0_158] : memref<6x10x128xbf16, #tpu.memory_space<vmem>>, vector<1x10x128xbf16>
    %211 = vector.shape_cast %210 : vector<1x10x128xbf16> to vector<10x128xbf16>
    %212 = vector.extract_strided_slice %211 {offsets = [0, 0], sizes = [8, 128], strides = [1, 1]} : vector<10x128xbf16> to vector<8x128xbf16>
    %213 = vector.extract_strided_slice %211 {offsets = [1, 0], sizes = [8, 128], strides = [1, 1]} : vector<10x128xbf16> to vector<8x128xbf16>
    %214 = vector.extract_strided_slice %211 {offsets = [2, 0], sizes = [8, 128], strides = [1, 1]} : vector<10x128xbf16> to vector<8x128xbf16>
    %215 = tpu.concatenate %202, %203, %204, %207, %208, %209, %212, %213, %214 in 1 : vector<8x128xbf16>, vector<8x128xbf16>, vector<8x128xbf16>, vector<8x128xbf16>, vector<8x128xbf16>, vector<8x128xbf16>, vector<8x128xbf16>, vector<8x128xbf16>, vector<8x128xbf16> -> vector<8x1152xbf16>
    %c0_159 = arith.constant 0 : index
    %c0_160 = arith.constant 0 : index
    %216 = vector.load %arg4[%c0_159, %c0_160] : memref<1152x128xbf16, #tpu.memory_space<vmem>>, vector<1152x128xbf16>
    %cst_161 = arith.constant dense<0.000000e+00> : vector<8x128xf32>
    %217 = tpu.matmul %215, %216, %cst_161 {dimension_numbers = #tpu.dot_dimension_numbers<[1], [0], [0], [1], [0, 0, 1, 1], [], []>} : vector<8x1152xbf16>, vector<1152x128xbf16>, vector<8x128xf32> -> vector<8x128xf32>
    %c0_162 = arith.constant 0 : index
    %c4_163 = arith.constant 4 : index
    %c1_164 = arith.constant 1 : index
    %c0_165 = arith.constant 0 : index
    %218 = vector.load %arg1[%c0_162, %c4_163, %c1_164, %c0_165] : memref<1x6x10x128xbf16, #tpu.memory_space<vmem>>, vector<1x1x8x128xbf16>
    %219 = vector.shape_cast %218 : vector<1x1x8x128xbf16> to vector<8x128xbf16>
    %220 = arith.extf %219 : vector<8x128xbf16> to vector<8x128xf32>
    %c0_166 = arith.constant 0 : index
    %c0_167 = arith.constant 0 : index
    %221 = vector.load %arg5[%c0_166, %c0_167] : memref<1x128xf32, #tpu.memory_space<vmem>>, vector<1x128xf32>
    %222 = vector.broadcast %221 : vector<1x128xf32> to vector<8x128xf32>
    %223 = arith.addf %217, %222 : vector<8x128xf32>
    %224 = arith.addf %223, %220 : vector<8x128xf32>
    %cst_168 = arith.constant 0.000000e+00 : f32
    %225 = vector.broadcast %cst_168 : f32 to vector<8x128xf32>
    %226 = arith.maximumf %224, %225 : vector<8x128xf32>
    %c0_169 = arith.constant 0 : index
    %c3_170 = arith.constant 3 : index
    %c0_171 = arith.constant 0 : index
    %c0_172 = arith.constant 0 : index
    %227 = vector.load %arg6[%c0_169, %c3_170, %c0_171, %c0_172] : memref<1x4x8x128xf32, #tpu.memory_space<vmem>>, vector<1x1x8x128xf32>
    %228 = vector.shape_cast %227 : vector<1x1x8x128xf32> to vector<8x128xf32>
    %229 = vector.shape_cast %226 : vector<8x128xf32> to vector<1x1x8x128xf32>
    tpu.vector_store %arg6[%c0_169, %c3_170, %c0_171, %c0_172], %229 {strides = array<i32>} : memref<1x4x8x128xf32, #tpu.memory_space<vmem>>, vector<1x1x8x128xf32>,
    return
  }
  func.func @transform_0(%arg0: i32) -> (i32, i32, i32, i32) {
    %c0_i32 = arith.constant 0 : i32
    %c0_i32_0 = arith.constant 0 : i32
    %c0_i32_1 = arith.constant 0 : i32
    %c0_i32_2 = arith.constant 0 : i32
    return %arg0, %c0_i32, %c0_i32_0, %c0_i32_1 : i32, i32, i32, i32
  }
  func.func @transform_1(%arg0: i32) -> (i32, i32) {
    %c0_i32 = arith.constant 0 : i32
    %c0_i32_0 = arith.constant 0 : i32
    %c0_i32_1 = arith.constant 0 : i32
    return %c0_i32, %c0_i32_0 : i32, i32
  }
  func.func @transform_2(%arg0: i32) -> (i32, i32) {
    %c0_i32 = arith.constant 0 : i32
    %c0_i32_0 = arith.constant 0 : i32
    %c0_i32_1 = arith.constant 0 : i32
    return %c0_i32, %c0_i32_0 : i32, i32
  }
  func.func @transform_3(%arg0: i32) -> (i32, i32) {
    %c0_i32 = arith.constant 0 : i32
    %c0_i32_0 = arith.constant 0 : i32
    %c0_i32_1 = arith.constant 0 : i32
    return %c0_i32, %c0_i32_0 : i32, i32
  }
  func.func @transform_4(%arg0: i32) -> (i32, i32) {
    %c0_i32 = arith.constant 0 : i32
    %c0_i32_0 = arith.constant 0 : i32
    %c0_i32_1 = arith.constant 0 : i32
    return %c0_i32, %c0_i32_0 : i32, i32
  }
  func.func @transform_5(%arg0: i32) -> (i32, i32, i32, i32) {
    %c0_i32 = arith.constant 0 : i32
    %c0_i32_0 = arith.constant 0 : i32
    %c0_i32_1 = arith.constant 0 : i32
    %c0_i32_2 = arith.constant 0 : i32
    return %arg0, %c0_i32, %c0_i32_0, %c0_i32_1 : i32, i32, i32, i32
  }
}

</mosaic_0001>

<llo_original>
// kernel: tpu_custom_call.1
$region0: #{tpu_custom_call.1}
  #allocation0 [shape = 'u32[]', space=smem, size = 0x4, offset = 0x4, fixed_abs, tag = 'smem constant byte address 0x4 - core index']
  #allocation1 [shape = 'u32[144,128]{1,0:T(1,128)}', space=vmem, size = 0x12000, scoped, tag = 'internal scratch']
  #allocation2 [shape = 'bf16[6,10,128]{2,1,0:T(8,128)(2,1)}', space=vmem, size = 0x6000, scoped, tag = 'scratch operand']
  %s0 = inlined_call_operand.vmem [shape: bf16[2,6,10,128], index: 0, kind: input, shape index: {}]
  %s1 = inlined_call_operand.hbm [shape: bf16[1152,128], index: 1, kind: input, shape index: {}]
  %s2 = inlined_call_operand.vmem [shape: f32[1,128], index: 2, kind: input, shape index: {}]
  %s3 = inlined_call_operand.hbm [shape: bf16[1152,128], index: 3, kind: input, shape index: {}]
  %s4 = inlined_call_operand.vmem [shape: f32[1,128], index: 4, kind: input, shape index: {}]
  %s5 = inlined_call_operand.hbm [shape: f32[2,4,8,128], index: 5, kind: output, shape index: {}]
  %s6 = sld [smem:[#allocation0]]
  $region61: #{tpu_custom_call.1} parent=0
    _
  %s8 = ssub.s32 1, %s6
  %s9 = scalar_select 0, %s8, %s6
  $region1: #{tpu_custom_call.1} parent=0
    #allocation3 [shape = 'u8[294912]{0}', space=vmem, size = 0x48000, scoped, tag = 'input window, operand 1, single buffered']
    #allocation4 [shape = 's32[2]{0}', space=sflag, size = 0x8, scoped, tag = 'scoped memory for tpu_custom_call.1']
    #allocation5 [shape = 's32[2]{0}', space=sflag, size = 0x8, scoped, tag = 'scoped memory for tpu_custom_call.1']
    #allocation6 [shape = 'u8[294912]{0}', space=vmem, size = 0x48000, scoped, tag = 'input window, operand 3, single buffered']
    #allocation7 [shape = 's32[1]{0}', space=sflag, size = 0x4, scoped, tag = 'scoped memory for tpu_custom_call.1']
    #allocation8 [shape = 'u8[32768]{0}', space=vmem, size = 0x8000, scoped, tag = 'output window, operand 0']
    %10 = vsyncpa [#allocation4], 0
    %11 = vsyncpa [#allocation7], 0
    %12 = vsyncpa [#allocation5], 0
    %s13 = scalar_lea.sflag [#allocation5], 1
    %14 = vsyncpa %s13, 0
    loop: start=0, step=1, limit=4
    $region2: #{tpu_custom_call.1} parent=1 // loop_pre_header
      _
    $region3: #{tpu_custom_call.1} parent=1 // loop_header
      %s16 = sphi 0, %s20
      %p17 = scmp.ge.s32.totalorder %s16, 4
      %s26 = sphi 0, %s28
      %s29 = sphi 0, %s26
      %s30 = sphi 0, %s29
      %s46 = sphi 0, %s30
      %s50 = sphi 0, %s50
      %s52 = sphi 0, %s50
      %s53 = sphi 0, %s52
      %s67 = sphi 0, %s53
      %s71 = sphi 0, %s71
      %s73 = sphi 0, %s71
      %s74 = sphi 0, %s73
      %s88 = sphi 0, %s74
      %s92 = sphi 0, %s92
      %s94 = sphi 0, %s92
      %s95 = sphi 0, %s94
      %s109 = sphi 0, %s95
      %s113 = sphi 0, %s113
      %s115 = sphi 0, %s113
      %s116 = sphi 0, %s115
      %s130 = sphi 0, %s116
      %s136 = sphi 0, %s138
      %s139 = sphi 0, %s136
      %s140 = sphi 0, %s139
      %s156 = sphi 0, %s140
    $region4: #{tpu_custom_call.1} parent=1 // loop_header_branch
      %19 = sbr.rel (%p17) target = $region8
    $region5: #{tpu_custom_call.1} parent=1 // loop_body
      %s21 = ssub.s32 %s16, 1
      %s22 = ssub.s32 %s16, 2
      %s23 = sadd.s32 %s16, 1
      %s24 = ssub.s32 %s16, %s23
      %p25 = scmp.eq.s32.totalorder %s24, 0
      %s27 = sadd.s32 %s26, 1
      %s28 = scalar_select %p25, %s26, %s27
      %p31 = pneg %p25
      %p32 = scmp.eq.s32.totalorder %s16, 1
      %p33 = por %p31, %p32
      %p34 = scmp.ne.s32.totalorder %s26, %s29
      %p35 = scmp.eq.s32.totalorder %s16, 0
      %p36 = por %p34, %p35
      %p37 = scmp.ne.s32.totalorder %s26, %s29
      %p38 = scmp.eq.s32.totalorder %s21, 1
      %p39 = por %p37, %p38
      %p40 = scmp.ne.s32.totalorder %s29, %s30
      %p41 = scmp.eq.s32.totalorder %s21, 0
      %p42 = por %p40, %p41
      %p43 = scmp.ne.s32.totalorder %s29, %s30
      %p44 = scmp.eq.s32.totalorder %s22, 1
      %p45 = por %p43, %p44
      %p47 = scmp.ne.s32.totalorder %s30, %s46
      %p48 = scmp.eq.s32.totalorder %s22, 0
      %p49 = por %p47, %p48
      %s51 = sadd.s32 %s50, 1
      %p54 = scmp.eq.s32.totalorder %s16, 1
      %p55 = scmp.ne.s32.totalorder %s50, %s52
      %p56 = scmp.eq.s32.totalorder %s16, 0
      %p57 = por %p55, %p56
      %p58 = scmp.ne.s32.totalorder %s50, %s52
      %p59 = scmp.eq.s32.totalorder %s21, 1
      %p60 = por %p58, %p59
      %p61 = scmp.ne.s32.totalorder %s52, %s53
      %p62 = scmp.eq.s32.totalorder %s21, 0
      %p63 = por %p61, %p62
      %p64 = scmp.ne.s32.totalorder %s52, %s53
      %p65 = scmp.eq.s32.totalorder %s22, 1
      %p66 = por %p64, %p65
      %p68 = scmp.ne.s32.totalorder %s53, %s67
      %p69 = scmp.eq.s32.totalorder %s22, 0
      %p70 = por %p68, %p69
      %s72 = sadd.s32 %s71, 1
      %p75 = scmp.eq.s32.totalorder %s16, 1
      %p76 = scmp.ne.s32.totalorder %s71, %s73
      %p77 = scmp.eq.s32.totalorder %s16, 0
      %p78 = por %p76, %p77
      %p79 = scmp.ne.s32.totalorder %s71, %s73
      %p80 = scmp.eq.s32.totalorder %s21, 1
      %p81 = por %p79, %p80
      %p82 = scmp.ne.s32.totalorder %s73, %s74
      %p83 = scmp.eq.s32.totalorder %s21, 0
      %p84 = por %p82, %p83
      %p85 = scmp.ne.s32.totalorder %s73, %s74
      %p86 = scmp.eq.s32.totalorder %s22, 1
      %p87 = por %p85, %p86
      %p89 = scmp.ne.s32.totalorder %s74, %s88
      %p90 = scmp.eq.s32.totalorder %s22, 0
      %p91 = por %p89, %p90
      %s93 = sadd.s32 %s92, 1
      %p96 = scmp.eq.s32.totalorder %s16, 1
      %p97 = scmp.ne.s32.totalorder %s92, %s94
      %p98 = scmp.eq.s32.totalorder %s16, 0
      %p99 = por %p97, %p98
      %p100 = scmp.ne.s32.totalorder %s92, %s94
      %p101 = scmp.eq.s32.totalorder %s21, 1
      %p102 = por %p100, %p101
      %p103 = scmp.ne.s32.totalorder %s94, %s95
      %p104 = scmp.eq.s32.totalorder %s21, 0
      %p105 = por %p103, %p104
      %p106 = scmp.ne.s32.totalorder %s94, %s95
      %p107 = scmp.eq.s32.totalorder %s22, 1
      %p108 = por %p106, %p107
      %p110 = scmp.ne.s32.totalorder %s95, %s109
      %p111 = scmp.eq.s32.totalorder %s22, 0
      %p112 = por %p110, %p111
      %s114 = sadd.s32 %s113, 1
      %p117 = scmp.eq.s32.totalorder %s16, 1
      %p118 = scmp.ne.s32.totalorder %s113, %s115
      %p119 = scmp.eq.s32.totalorder %s16, 0
      %p120 = por %p118, %p119
      %p121 = scmp.ne.s32.totalorder %s113, %s115
      %p122 = scmp.eq.s32.totalorder %s21, 1
      %p123 = por %p121, %p122
      %p124 = scmp.ne.s32.totalorder %s115, %s116
      %p125 = scmp.eq.s32.totalorder %s21, 0
      %p126 = por %p124, %p125
      %p127 = scmp.ne.s32.totalorder %s115, %s116
      %p128 = scmp.eq.s32.totalorder %s22, 1
      %p129 = por %p127, %p128
      %p131 = scmp.ne.s32.totalorder %s116, %s130
      %p132 = scmp.eq.s32.totalorder %s22, 0
      %p133 = por %p131, %p132
      %s134 = ssub.s32 %s16, %s23
      %p135 = scmp.eq.s32.totalorder %s134, 0
      %s137 = sadd.s32 %s136, 1
      %s138 = scalar_select %p135, %s136, %s137
      %p141 = pneg %p135
      %p142 = scmp.eq.s32.totalorder %s16, 1
      %p143 = por %p141, %p142
      %p144 = scmp.ne.s32.totalorder %s136, %s139
      %p145 = scmp.eq.s32.totalorder %s16, 0
      %p146 = por %p144, %p145
      %p147 = scmp.ne.s32.totalorder %s136, %s139
      %p148 = scmp.eq.s32.totalorder %s21, 1
      %p149 = por %p147, %p148
      %p150 = scmp.ne.s32.totalorder %s139, %s140
      %p151 = scmp.eq.s32.totalorder %s21, 0
      %p152 = por %p150, %p151
      %p153 = scmp.ne.s32.totalorder %s139, %s140
      %p154 = scmp.eq.s32.totalorder %s22, 1
      %p155 = por %p153, %p154
      %p157 = scmp.ne.s32.totalorder %s140, %s156
      %p158 = scmp.eq.s32.totalorder %s22, 0
      %p159 = por %p157, %p158
      %p160 = scmp.le.s32.totalorder 1, %s16
      %p161 = scmp.lt.s32.totalorder %s16, 3
      %p162 = pnand %p160, %p161
      %p163 = pneg %p162
      // Predicated region
      $region9: #{tpu_custom_call.1} parent=5 // pred_check
        _
      $region10: #{tpu_custom_call.1} parent=5 // pred_check_branch
        %165 = sbr.rel (%p162) target = $region12
      $region11: #{tpu_custom_call.1} parent=5 // pred_region
        %s166 = ssub.s32 %s16, 1
        // Predicated region
        $region13: #{tpu_custom_call.1} parent=11 // pred_check
          %p167 = pneg %p63
        $region14: #{tpu_custom_call.1} parent=11 // pred_check_branch
          %169 = sbr.rel (%p167) target = $region16
        $region15: #{tpu_custom_call.1} parent=11 // pred_region
          %s171 = ssub.s32 9216, 9216
          %172 = vsyncadd [#allocation4], %s171
          %s173 = sshll.u32 [#allocation3], 4
          %s174 = int_to_ptr.vmem [resolvable:$true] %s173
          %179 = dma.hbm_to_vmem [thread:$0]  %s1, 9216, %s174, [#allocation4], 64, 64, 4
        $region16: #{tpu_custom_call.1} parent=11 // pred_fallthru
          _
        // Predicated region
        $region17: #{tpu_custom_call.1} parent=11 // pred_check
          %p180 = pneg %p84
        $region18: #{tpu_custom_call.1} parent=11 // pred_check_branch
          %182 = sbr.rel (%p180) target = $region20
        $region19: #{tpu_custom_call.1} parent=11 // pred_region
          _
        $region20: #{tpu_custom_call.1} parent=11 // pred_fallthru
          _
        // Predicated region
        $region21: #{tpu_custom_call.1} parent=11 // pred_check
          %p183 = pneg %p105
        $region22: #{tpu_custom_call.1} parent=11 // pred_check_branch
          %185 = sbr.rel (%p183) target = $region24
        $region23: #{tpu_custom_call.1} parent=11 // pred_region
          %s187 = ssub.s32 9216, 9216
          %188 = vsyncadd [#allocation7], %s187
          %s189 = sshll.u32 [#allocation6], 4
          %s190 = int_to_ptr.vmem [resolvable:$true] %s189
          %195 = dma.hbm_to_vmem [thread:$0]  %s3, 9216, %s190, [#allocation7], 64, 64, 4
        $region24: #{tpu_custom_call.1} parent=11 // pred_fallthru
          _
        // Predicated region
        $region25: #{tpu_custom_call.1} parent=11 // pred_check
          %p196 = pneg %p126
        $region26: #{tpu_custom_call.1} parent=11 // pred_check_branch
          %198 = sbr.rel (%p196) target = $region28
        $region27: #{tpu_custom_call.1} parent=11 // pred_region
          _
        $region28: #{tpu_custom_call.1} parent=11 // pred_fallthru
          _
      $region12: #{tpu_custom_call.1} parent=5 // pred_fallthru
        _
      %p199 = scmp.lt.s32.totalorder %s16, 2
      // Predicated region
      $region29: #{tpu_custom_call.1} parent=5 // pred_check
        %p200 = pneg %p199
      $region30: #{tpu_custom_call.1} parent=5 // pred_check_branch
        %202 = sbr.rel (%p200) target = $region32
      $region31: #{tpu_custom_call.1} parent=5 // pred_region
        // Predicated region
        $region33: #{tpu_custom_call.1} parent=31 // pred_check
          %p203 = pneg %p36
        $region34: #{tpu_custom_call.1} parent=31 // pred_check_branch
          %205 = sbr.rel (%p203) target = $region36
        $region35: #{tpu_custom_call.1} parent=31 // pred_region
          %p206 = scmp.lt.s32.totalorder %s16, 1
          %s207 = scalar_select %p206, %s16, 1
          %s208 = smul.addr %s207, 12
          %s209 = smul.addr %s208, 4
          %s210 = scalar_lea.vmem %s0, %s209
        $region36: #{tpu_custom_call.1} parent=31 // pred_fallthru
          _
      $region32: #{tpu_custom_call.1} parent=5 // pred_fallthru
        _
      %p211 = scmp.le.s32.totalorder 1, %s16
      %p212 = scmp.lt.s32.totalorder %s16, 3
      %p213 = pnand %p211, %p212
      %p214 = pneg %p213
      // Predicated region
      $region37: #{tpu_custom_call.1} parent=5 // pred_check
        _
      $region38: #{tpu_custom_call.1} parent=5 // pred_check_branch
        %216 = sbr.rel (%p213) target = $region40
      $region39: #{tpu_custom_call.1} parent=5 // pred_region
        %s217 = ssub.s32 %s16, 1
        // Predicated region
        $region41: #{tpu_custom_call.1} parent=39 // pred_check
          %p218 = pneg %p63
        $region42: #{tpu_custom_call.1} parent=39 // pred_check_branch
          %220 = sbr.rel (%p218) target = $region44
        $region43: #{tpu_custom_call.1} parent=39 // pred_region
          %221 = dma.done [#allocation4], 9216
        $region44: #{tpu_custom_call.1} parent=39 // pred_fallthru
          _
        // Predicated region
        $region45: #{tpu_custom_call.1} parent=39 // pred_check
          %p222 = pneg %p105
        $region46: #{tpu_custom_call.1} parent=39 // pred_check_branch
          %224 = sbr.rel (%p222) target = $region48
        $region47: #{tpu_custom_call.1} parent=39 // pred_region
          %225 = dma.done [#allocation7], 9216
        $region48: #{tpu_custom_call.1} parent=39 // pred_fallthru
          _
        %p226 = scmp.lt.s32.totalorder %s21, 1
        %s227 = scalar_select %p226, %s21, 1
        %s228 = smul.addr %s227, 12
        %s229 = smul.addr %s228, 4
        %s230 = scalar_lea.vmem %s0, %s229
        %p231 = pneg %p42
        %p232 = pneg %p39
        %p233 = pneg %p63
        %p234 = pneg %p60
        %p235 = pneg %p84
        %p236 = pneg %p81
        %p237 = pneg %p105
        %p238 = pneg %p102
        %p239 = pneg %p126
        %p240 = pneg %p123
        %p241 = pneg %p152
        %p242 = pneg %p149
        %s243 = sand.u32 %s139, 1
        %s244 = scalar_lea.sflag [#allocation5], %s243
        %s245 = sand.u32 %s139, 1
        %s246 = smul.addr %s245, 32
        %s247 = scalar_lea.vmem [#allocation8], %s246
        %p248 = scmp.lt.s32.totalorder %s21, 1
        %s249 = scalar_select %p248, %s21, 1
        %s250 = smul.addr %s249, 12
        %s251 = smul.addr %s250, 4
        %s252 = scalar_lea.vmem %s0, %s251
        %254 = vst [vmem:[#allocation2] sm:$0xf] 0
        %255 = vst [vmem:[#allocation2 + $0x4] sm:$0x1] 0
        %256 = vst [vmem:[#allocation2 + $0x8] sm:$0xf] 0
        %257 = vst [vmem:[#allocation2 + $0xc] sm:$0x1] 0
        %258 = vst [vmem:[#allocation2 + $0x10] sm:$0xf] 0
        %259 = vst [vmem:[#allocation2 + $0x14] sm:$0x1] 0
        %260 = vst [vmem:[#allocation2 + $0x18] sm:$0xf] 0
        %261 = vst [vmem:[#allocation2 + $0x1c] sm:$0x1] 0
        %262 = vst [vmem:[#allocation2 + $0x20] sm:$0xf] 0
        %263 = vst [vmem:[#allocation2 + $0x24] sm:$0x1] 0
        %264 = vst [vmem:[#allocation2 + $0x28] sm:$0xf] 0
        %265 = vst [vmem:[#allocation2 + $0x2c] sm:$0x1] 0
        %v266 = vld [vmem:[%s252] sm:$0xf]
        %v267 = vld [vmem:[%s252 + $0x4] sm:$0x1]
        %s268 = scalar_lea.vmem %s252, 8
        %v269 = vld [vmem:[%s268] sm:$0xf]
        %v270 = vld [vmem:[%s268 + $0x4] sm:$0x1]
        %s271 = scalar_lea.vmem %s252, 16
        %v272 = vld [vmem:[%s271] sm:$0xf]
        %v273 = vld [vmem:[%s271 + $0x4] sm:$0x1]
        %v276 = vunpack.c.l.b16 %v266
        %v277 = vunpack.c.l.b16 %v267
        %v278 = vpack.c.b16 %v277, %v276
        %v280 = vshrl.u32 %v278, 16
        %v282 = vshll.u32 %v278, 16
        %v284 = vrot.slane %v282, 1
        %v285 = vor.u32 %v280, %v284
        %v287 = vrot.slane %v278, 1
        %v291 = vunpack.c.l.b16 %v269
        %v292 = vunpack.c.l.b16 %v270
        %v293 = vpack.c.b16 %v292, %v291
        %v295 = vshrl.u32 %v293, 16
        %v297 = vshll.u32 %v293, 16
        %v299 = vrot.slane %v297, 1
        %v300 = vor.u32 %v295, %v299
        %v302 = vrot.slane %v293, 1
        %v306 = vunpack.c.l.b16 %v272
        %v307 = vunpack.c.l.b16 %v273
        %v308 = vpack.c.b16 %v307, %v306
        %v310 = vshrl.u32 %v308, 16
        %v312 = vshll.u32 %v308, 16
        %v314 = vrot.slane %v312, 1
        %v315 = vor.u32 %v310, %v314
        %v317 = vrot.slane %v308, 1
        %v319 = vld [vmem:[#allocation3] sm:$0xf]
        %v320 = vld [vmem:[#allocation3 + $0x4] sm:$0xf]
        %v321 = vld [vmem:[#allocation3 + $0x8] sm:$0xf]
        %v322 = vld [vmem:[#allocation3 + $0xc] sm:$0xf]
        %v323 = vld [vmem:[#allocation3 + $0x10] sm:$0xf]
        %v324 = vld [vmem:[#allocation3 + $0x14] sm:$0xf]
        %v325 = vld [vmem:[#allocation3 + $0x18] sm:$0xf]
        %v326 = vld [vmem:[#allocation3 + $0x1c] sm:$0xf]
        %v327 = vld [vmem:[#allocation3 + $0x20] sm:$0xf]
        %v328 = vld [vmem:[#allocation3 + $0x24] sm:$0xf]
        %v329 = vld [vmem:[#allocation3 + $0x28] sm:$0xf]
        %v330 = vld [vmem:[#allocation3 + $0x2c] sm:$0xf]
        %v331 = vld [vmem:[#allocation3 + $0x30] sm:$0xf]
        %v332 = vld [vmem:[#allocation3 + $0x34] sm:$0xf]
        %v333 = vld [vmem:[#allocation3 + $0x38] sm:$0xf]
        %v334 = vld [vmem:[#allocation3 + $0x3c] sm:$0xf]
        %v335 = vld [vmem:[#allocation3 + $0x40] sm:$0xf]
        %v336 = vld [vmem:[#allocation3 + $0x44] sm:$0xf]
        %v337 = vld [vmem:[#allocation3 + $0x48] sm:$0xf]
        %v338 = vld [vmem:[#allocation3 + $0x4c] sm:$0xf]
        %v339 = vld [vmem:[#allocation3 + $0x50] sm:$0xf]
        %v340 = vld [vmem:[#allocation3 + $0x54] sm:$0xf]
        %v341 = vld [vmem:[#allocation3 + $0x58] sm:$0xf]
        %v342 = vld [vmem:[#allocation3 + $0x5c] sm:$0xf]
        %v343 = vld [vmem:[#allocation3 + $0x60] sm:$0xf]
        %v344 = vld [vmem:[#allocation3 + $0x64] sm:$0xf]
        %v345 = vld [vmem:[#allocation3 + $0x68] sm:$0xf]
        %v346 = vld [vmem:[#allocation3 + $0x6c] sm:$0xf]
        %v347 = vld [vmem:[#allocation3 + $0x70] sm:$0xf]
        %v348 = vld [vmem:[#allocation3 + $0x74] sm:$0xf]
        %v349 = vld [vmem:[#allocation3 + $0x78] sm:$0xf]
        %v350 = vld [vmem:[#allocation3 + $0x7c] sm:$0xf]
        %v351 = vld [vmem:[#allocation3 + $0x80] sm:$0xf]
        %v352 = vld [vmem:[#allocation3 + $0x84] sm:$0xf]
        %v353 = vld [vmem:[#allocation3 + $0x88] sm:$0xf]
        %v354 = vld [vmem:[#allocation3 + $0x8c] sm:$0xf]
        %v355 = vld [vmem:[#allocation3 + $0x90] sm:$0xf]
        %v356 = vld [vmem:[#allocation3 + $0x94] sm:$0xf]
        %v357 = vld [vmem:[#allocation3 + $0x98] sm:$0xf]
        %v358 = vld [vmem:[#allocation3 + $0x9c] sm:$0xf]
        %v359 = vld [vmem:[#allocation3 + $0xa0] sm:$0xf]
        %v360 = vld [vmem:[#allocation3 + $0xa4] sm:$0xf]
        %v361 = vld [vmem:[#allocation3 + $0xa8] sm:$0xf]
        %v362 = vld [vmem:[#allocation3 + $0xac] sm:$0xf]
        %v363 = vld [vmem:[#allocation3 + $0xb0] sm:$0xf]
        %v364 = vld [vmem:[#allocation3 + $0xb4] sm:$0xf]
        %v365 = vld [vmem:[#allocation3 + $0xb8] sm:$0xf]
        %v366 = vld [vmem:[#allocation3 + $0xbc] sm:$0xf]
        %v367 = vld [vmem:[#allocation3 + $0xc0] sm:$0xf]
        %v368 = vld [vmem:[#allocation3 + $0xc4] sm:$0xf]
        %v369 = vld [vmem:[#allocation3 + $0xc8] sm:$0xf]
        %v370 = vld [vmem:[#allocation3 + $0xcc] sm:$0xf]
        %v371 = vld [vmem:[#allocation3 + $0xd0] sm:$0xf]
        %v372 = vld [vmem:[#allocation3 + $0xd4] sm:$0xf]
        %v373 = vld [vmem:[#allocation3 + $0xd8] sm:$0xf]
        %v374 = vld [vmem:[#allocation3 + $0xdc] sm:$0xf]
        %v375 = vld [vmem:[#allocation3 + $0xe0] sm:$0xf]
        %v376 = vld [vmem:[#allocation3 + $0xe4] sm:$0xf]
        %v377 = vld [vmem:[#allocation3 + $0xe8] sm:$0xf]
        %v378 = vld [vmem:[#allocation3 + $0xec] sm:$0xf]
        %v379 = vld [vmem:[#allocation3 + $0xf0] sm:$0xf]
        %v380 = vld [vmem:[#allocation3 + $0xf4] sm:$0xf]
        %v381 = vld [vmem:[#allocation3 + $0xf8] sm:$0xf]
        %v382 = vld [vmem:[#allocation3 + $0xfc] sm:$0xf]
        %v383 = vld [vmem:[#allocation3 + $0x100] sm:$0xf]
        %v384 = vld [vmem:[#allocation3 + $0x104] sm:$0xf]
        %v385 = vld [vmem:[#allocation3 + $0x108] sm:$0xf]
        %v386 = vld [vmem:[#allocation3 + $0x10c] sm:$0xf]
        %v387 = vld [vmem:[#allocation3 + $0x110] sm:$0xf]
        %v388 = vld [vmem:[#allocation3 + $0x114] sm:$0xf]
        %v389 = vld [vmem:[#allocation3 + $0x118] sm:$0xf]
        %v390 = vld [vmem:[#allocation3 + $0x11c] sm:$0xf]
        %v391 = vld [vmem:[#allocation3 + $0x120] sm:$0xf]
        %v392 = vld [vmem:[#allocation3 + $0x124] sm:$0xf]
        %v393 = vld [vmem:[#allocation3 + $0x128] sm:$0xf]
        %v394 = vld [vmem:[#allocation3 + $0x12c] sm:$0xf]
        %v395 = vld [vmem:[#allocation3 + $0x130] sm:$0xf]
        %v396 = vld [vmem:[#allocation3 + $0x134] sm:$0xf]
        %v397 = vld [vmem:[#allocation3 + $0x138] sm:$0xf]
        %v398 = vld [vmem:[#allocation3 + $0x13c] sm:$0xf]
        %v399 = vld [vmem:[#allocation3 + $0x140] sm:$0xf]
        %v400 = vld [vmem:[#allocation3 + $0x144] sm:$0xf]
        %v401 = vld [vmem:[#allocation3 + $0x148] sm:$0xf]
        %v402 = vld [vmem:[#allocation3 + $0x14c] sm:$0xf]
        %v403 = vld [vmem:[#allocation3 + $0x150] sm:$0xf]
        %v404 = vld [vmem:[#allocation3 + $0x154] sm:$0xf]
        %v405 = vld [vmem:[#allocation3 + $0x158] sm:$0xf]
        %v406 = vld [vmem:[#allocation3 + $0x15c] sm:$0xf]
        %v407 = vld [vmem:[#allocation3 + $0x160] sm:$0xf]
        %v408 = vld [vmem:[#allocation3 + $0x164] sm:$0xf]
        %v409 = vld [vmem:[#allocation3 + $0x168] sm:$0xf]
        %v410 = vld [vmem:[#allocation3 + $0x16c] sm:$0xf]
        %v411 = vld [vmem:[#allocation3 + $0x170] sm:$0xf]
        %v412 = vld [vmem:[#allocation3 + $0x174] sm:$0xf]
        %v413 = vld [vmem:[#allocation3 + $0x178] sm:$0xf]
        %v414 = vld [vmem:[#allocation3 + $0x17c] sm:$0xf]
        %v415 = vld [vmem:[#allocation3 + $0x180] sm:$0xf]
        %v416 = vld [vmem:[#allocation3 + $0x184] sm:$0xf]
        %v417 = vld [vmem:[#allocation3 + $0x188] sm:$0xf]
        %v418 = vld [vmem:[#allocation3 + $0x18c] sm:$0xf]
        %v419 = vld [vmem:[#allocation3 + $0x190] sm:$0xf]
        %v420 = vld [vmem:[#allocation3 + $0x194] sm:$0xf]
        %v421 = vld [vmem:[#allocation3 + $0x198] sm:$0xf]
        %v422 = vld [vmem:[#allocation3 + $0x19c] sm:$0xf]
        %v423 = vld [vmem:[#allocation3 + $0x1a0] sm:$0xf]
        %v424 = vld [vmem:[#allocation3 + $0x1a4] sm:$0xf]
        %v425 = vld [vmem:[#allocation3 + $0x1a8] sm:$0xf]
        %v426 = vld [vmem:[#allocation3 + $0x1ac] sm:$0xf]
        %v427 = vld [vmem:[#allocation3 + $0x1b0] sm:$0xf]
        %v428 = vld [vmem:[#allocation3 + $0x1b4] sm:$0xf]
        %v429 = vld [vmem:[#allocation3 + $0x1b8] sm:$0xf]
        %v430 = vld [vmem:[#allocation3 + $0x1bc] sm:$0xf]
        %v431 = vld [vmem:[#allocation3 + $0x1c0] sm:$0xf]
        %v432 = vld [vmem:[#allocation3 + $0x1c4] sm:$0xf]
        %v433 = vld [vmem:[#allocation3 + $0x1c8] sm:$0xf]
        %v434 = vld [vmem:[#allocation3 + $0x1cc] sm:$0xf]
        %v435 = vld [vmem:[#allocation3 + $0x1d0] sm:$0xf]
        %v436 = vld [vmem:[#allocation3 + $0x1d4] sm:$0xf]
        %v437 = vld [vmem:[#allocation3 + $0x1d8] sm:$0xf]
        %v438 = vld [vmem:[#allocation3 + $0x1dc] sm:$0xf]
        %v439 = vld [vmem:[#allocation3 + $0x1e0] sm:$0xf]
        %v440 = vld [vmem:[#allocation3 + $0x1e4] sm:$0xf]
        %v441 = vld [vmem:[#allocation3 + $0x1e8] sm:$0xf]
        %v442 = vld [vmem:[#allocation3 + $0x1ec] sm:$0xf]
        %v443 = vld [vmem:[#allocation3 + $0x1f0] sm:$0xf]
        %v444 = vld [vmem:[#allocation3 + $0x1f4] sm:$0xf]
        %v445 = vld [vmem:[#allocation3 + $0x1f8] sm:$0xf]
        %v446 = vld [vmem:[#allocation3 + $0x1fc] sm:$0xf]
        %v447 = vld [vmem:[#allocation3 + $0x200] sm:$0xf]
        %v448 = vld [vmem:[#allocation3 + $0x204] sm:$0xf]
        %v449 = vld [vmem:[#allocation3 + $0x208] sm:$0xf]
        %v450 = vld [vmem:[#allocation3 + $0x20c] sm:$0xf]
        %v451 = vld [vmem:[#allocation3 + $0x210] sm:$0xf]
        %v452 = vld [vmem:[#allocation3 + $0x214] sm:$0xf]
        %v453 = vld [vmem:[#allocation3 + $0x218] sm:$0xf]
        %v454 = vld [vmem:[#allocation3 + $0x21c] sm:$0xf]
        %v455 = vld [vmem:[#allocation3 + $0x220] sm:$0xf]
        %v456 = vld [vmem:[#allocation3 + $0x224] sm:$0xf]
        %v457 = vld [vmem:[#allocation3 + $0x228] sm:$0xf]
        %v458 = vld [vmem:[#allocation3 + $0x22c] sm:$0xf]
        %v459 = vld [vmem:[#allocation3 + $0x230] sm:$0xf]
        %v460 = vld [vmem:[#allocation3 + $0x234] sm:$0xf]
        %v461 = vld [vmem:[#allocation3 + $0x238] sm:$0xf]
        %v462 = vld [vmem:[#allocation3 + $0x23c] sm:$0xf]
        %v463 = vld [vmem:[%s2] sm:$0x1]
        %v465 = vlaneseq
        %v466 = vshrl.u32 %v465, 7
        %v467 = vsub.s32 0, %v466
        %v468 = vrot.slane %v463, %v467
        %v614 = vunpack.c.l.b16 %v319
        %v615 = vunpack.c.l.b16 %v320
        %v616 = vunpack.c.l.b16 %v321
        %v617 = vunpack.c.l.b16 %v322
        %v618 = vunpack.c.l.b16 %v323
        %v619 = vunpack.c.l.b16 %v324
        %v620 = vunpack.c.l.b16 %v325
        %v621 = vunpack.c.l.b16 %v326
        %v622 = vunpack.c.l.b16 %v327
        %v623 = vunpack.c.l.b16 %v328
        %v624 = vunpack.c.l.b16 %v329
        %v625 = vunpack.c.l.b16 %v330
        %v626 = vunpack.c.l.b16 %v331
        %v627 = vunpack.c.l.b16 %v332
        %v628 = vunpack.c.l.b16 %v333
        %v629 = vunpack.c.l.b16 %v334
        %v630 = vunpack.c.l.b16 %v335
        %v631 = vunpack.c.l.b16 %v336
        %v632 = vunpack.c.l.b16 %v337
        %v633 = vunpack.c.l.b16 %v338
        %v634 = vunpack.c.l.b16 %v339
        %v635 = vunpack.c.l.b16 %v340
        %v636 = vunpack.c.l.b16 %v341
        %v637 = vunpack.c.l.b16 %v342
        %v638 = vunpack.c.l.b16 %v343
        %v639 = vunpack.c.l.b16 %v344
        %v640 = vunpack.c.l.b16 %v345
        %v641 = vunpack.c.l.b16 %v346
        %v642 = vunpack.c.l.b16 %v347
        %v643 = vunpack.c.l.b16 %v348
        %v644 = vunpack.c.l.b16 %v349
        %v645 = vunpack.c.l.b16 %v350
        %v646 = vunpack.c.l.b16 %v351
        %v647 = vunpack.c.l.b16 %v352
        %v648 = vunpack.c.l.b16 %v353
        %v649 = vunpack.c.l.b16 %v354
        %v650 = vunpack.c.l.b16 %v355
        %v651 = vunpack.c.l.b16 %v356
        %v652 = vunpack.c.l.b16 %v357
        %v653 = vunpack.c.l.b16 %v358
        %v654 = vunpack.c.l.b16 %v359
        %v655 = vunpack.c.l.b16 %v360
        %v656 = vunpack.c.l.b16 %v361
        %v657 = vunpack.c.l.b16 %v362
        %v658 = vunpack.c.l.b16 %v363
        %v659 = vunpack.c.l.b16 %v364
        %v660 = vunpack.c.l.b16 %v365
        %v661 = vunpack.c.l.b16 %v366
        %v662 = vunpack.c.l.b16 %v367
        %v663 = vunpack.c.l.b16 %v368
        %v664 = vunpack.c.l.b16 %v369
        %v665 = vunpack.c.l.b16 %v370
        %v666 = vunpack.c.l.b16 %v371
        %v667 = vunpack.c.l.b16 %v372
        %v668 = vunpack.c.l.b16 %v373
        %v669 = vunpack.c.l.b16 %v374
        %v670 = vunpack.c.l.b16 %v375
        %v671 = vunpack.c.l.b16 %v376
        %v672 = vunpack.c.l.b16 %v377
        %v673 = vunpack.c.l.b16 %v378
        %v674 = vunpack.c.l.b16 %v379
        %v675 = vunpack.c.l.b16 %v380
        %v676 = vunpack.c.l.b16 %v381
        %v677 = vunpack.c.l.b16 %v382
        %v678 = vunpack.c.l.b16 %v383
        %v679 = vunpack.c.l.b16 %v384
        %v680 = vunpack.c.l.b16 %v385
        %v681 = vunpack.c.l.b16 %v386
        %v682 = vunpack.c.l.b16 %v387
        %v683 = vunpack.c.l.b16 %v388
        %v684 = vunpack.c.l.b16 %v389
        %v685 = vunpack.c.l.b16 %v390
        %v686 = vunpack.c.l.b16 %v391
        %v687 = vunpack.c.l.b16 %v392
        %v688 = vunpack.c.l.b16 %v393
        %v689 = vunpack.c.l.b16 %v394
        %v690 = vunpack.c.l.b16 %v395
        %v691 = vunpack.c.l.b16 %v396
        %v692 = vunpack.c.l.b16 %v397
        %v693 = vunpack.c.l.b16 %v398
        %v694 = vunpack.c.l.b16 %v399
        %v695 = vunpack.c.l.b16 %v400
        %v696 = vunpack.c.l.b16 %v401
        %v697 = vunpack.c.l.b16 %v402
        %v698 = vunpack.c.l.b16 %v403
        %v699 = vunpack.c.l.b16 %v404
        %v700 = vunpack.c.l.b16 %v405
        %v701 = vunpack.c.l.b16 %v406
        %v702 = vunpack.c.l.b16 %v407
        %v703 = vunpack.c.l.b16 %v408
        %v704 = vunpack.c.l.b16 %v409
        %v705 = vunpack.c.l.b16 %v410
        %v706 = vunpack.c.l.b16 %v411
        %v707 = vunpack.c.l.b16 %v412
        %v708 = vunpack.c.l.b16 %v413
        %v709 = vunpack.c.l.b16 %v414
        %v710 = vunpack.c.l.b16 %v415
        %v711 = vunpack.c.l.b16 %v416
        %v712 = vunpack.c.l.b16 %v417
        %v713 = vunpack.c.l.b16 %v418
        %v714 = vunpack.c.l.b16 %v419
        %v715 = vunpack.c.l.b16 %v420
        %v716 = vunpack.c.l.b16 %v421
        %v717 = vunpack.c.l.b16 %v422
        %v718 = vunpack.c.l.b16 %v423
        %v719 = vunpack.c.l.b16 %v424
        %v720 = vunpack.c.l.b16 %v425
        %v721 = vunpack.c.l.b16 %v426
        %v722 = vunpack.c.l.b16 %v427
        %v723 = vunpack.c.l.b16 %v428
        %v724 = vunpack.c.l.b16 %v429
        %v725 = vunpack.c.l.b16 %v430
        %v726 = vunpack.c.l.b16 %v431
        %v727 = vunpack.c.l.b16 %v432
        %v728 = vunpack.c.l.b16 %v433
        %v729 = vunpack.c.l.b16 %v434
        %v730 = vunpack.c.l.b16 %v435
        %v731 = vunpack.c.l.b16 %v436
        %v732 = vunpack.c.l.b16 %v437
        %v733 = vunpack.c.l.b16 %v438
        %v734 = vunpack.c.l.b16 %v439
        %v735 = vunpack.c.l.b16 %v440
        %v736 = vunpack.c.l.b16 %v441
        %v737 = vunpack.c.l.b16 %v442
        %v738 = vunpack.c.l.b16 %v443
        %v739 = vunpack.c.l.b16 %v444
        %v740 = vunpack.c.l.b16 %v445
        %v741 = vunpack.c.l.b16 %v446
        %v742 = vunpack.c.l.b16 %v447
        %v743 = vunpack.c.l.b16 %v448
        %v744 = vunpack.c.l.b16 %v449
        %v745 = vunpack.c.l.b16 %v450
        %v746 = vunpack.c.l.b16 %v451
        %v747 = vunpack.c.l.b16 %v452
        %v748 = vunpack.c.l.b16 %v453
        %v749 = vunpack.c.l.b16 %v454
        %v750 = vunpack.c.l.b16 %v455
        %v751 = vunpack.c.l.b16 %v456
        %v752 = vunpack.c.l.b16 %v457
        %v753 = vunpack.c.l.b16 %v458
        %v754 = vunpack.c.l.b16 %v459
        %v755 = vunpack.c.l.b16 %v460
        %v756 = vunpack.c.l.b16 %v461
        %v757 = vunpack.c.l.b16 %v462
        %v758 = vpack.c.b16 %v615, %v614
        %v759 = vpack.c.b16 %v617, %v616
        %v760 = vpack.c.b16 %v619, %v618
        %v761 = vpack.c.b16 %v621, %v620
        %v762 = vpack.c.b16 %v623, %v622
        %v763 = vpack.c.b16 %v625, %v624
        %v764 = vpack.c.b16 %v627, %v626
        %v765 = vpack.c.b16 %v629, %v628
        %v766 = vpack.c.b16 %v631, %v630
        %v767 = vpack.c.b16 %v633, %v632
        %v768 = vpack.c.b16 %v635, %v634
        %v769 = vpack.c.b16 %v637, %v636
        %v770 = vpack.c.b16 %v639, %v638
        %v771 = vpack.c.b16 %v641, %v640
        %v772 = vpack.c.b16 %v643, %v642
        %v773 = vpack.c.b16 %v645, %v644
        %v774 = vpack.c.b16 %v647, %v646
        %v775 = vpack.c.b16 %v649, %v648
        %v776 = vpack.c.b16 %v651, %v650
        %v777 = vpack.c.b16 %v653, %v652
        %v778 = vpack.c.b16 %v655, %v654
        %v779 = vpack.c.b16 %v657, %v656
        %v780 = vpack.c.b16 %v659, %v658
        %v781 = vpack.c.b16 %v661, %v660
        %v782 = vpack.c.b16 %v663, %v662
        %v783 = vpack.c.b16 %v665, %v664
        %v784 = vpack.c.b16 %v667, %v666
        %v785 = vpack.c.b16 %v669, %v668
        %v786 = vpack.c.b16 %v671, %v670
        %v787 = vpack.c.b16 %v673, %v672
        %v788 = vpack.c.b16 %v675, %v674
        %v789 = vpack.c.b16 %v677, %v676
        %v790 = vpack.c.b16 %v679, %v678
        %v791 = vpack.c.b16 %v681, %v680
        %v792 = vpack.c.b16 %v683, %v682
        %v793 = vpack.c.b16 %v685, %v684
        %v794 = vpack.c.b16 %v687, %v686
        %v795 = vpack.c.b16 %v689, %v688
        %v796 = vpack.c.b16 %v691, %v690
        %v797 = vpack.c.b16 %v693, %v692
        %v798 = vpack.c.b16 %v695, %v694
        %v799 = vpack.c.b16 %v697, %v696
        %v800 = vpack.c.b16 %v699, %v698
        %v801 = vpack.c.b16 %v701, %v700
        %v802 = vpack.c.b16 %v703, %v702
        %v803 = vpack.c.b16 %v705, %v704
        %v804 = vpack.c.b16 %v707, %v706
        %v805 = vpack.c.b16 %v709, %v708
        %v806 = vpack.c.b16 %v711, %v710
        %v807 = vpack.c.b16 %v713, %v712
        %v808 = vpack.c.b16 %v715, %v714
        %v809 = vpack.c.b16 %v717, %v716
        %v810 = vpack.c.b16 %v719, %v718
        %v811 = vpack.c.b16 %v721, %v720
        %v812 = vpack.c.b16 %v723, %v722
        %v813 = vpack.c.b16 %v725, %v724
        %v814 = vpack.c.b16 %v727, %v726
        %v815 = vpack.c.b16 %v729, %v728
        %v816 = vpack.c.b16 %v731, %v730
        %v817 = vpack.c.b16 %v733, %v732
        %v818 = vpack.c.b16 %v735, %v734
        %v819 = vpack.c.b16 %v737, %v736
        %v820 = vpack.c.b16 %v739, %v738
        %v821 = vpack.c.b16 %v741, %v740
        %v822 = vpack.c.b16 %v743, %v742
        %v823 = vpack.c.b16 %v745, %v744
        %v824 = vpack.c.b16 %v747, %v746
        %v825 = vpack.c.b16 %v749, %v748
        %v826 = vpack.c.b16 %v751, %v750
        %v827 = vpack.c.b16 %v753, %v752
        %v828 = vpack.c.b16 %v755, %v754
        %v829 = vpack.c.b16 %v757, %v756
        %902 = vmatprep.subr.bf16.mxu0 0
        %903 = vmatpush1.bf16.msra.mxu0 %v758
        %904 = vmatprep.subr.bf16.mxu0 0
        %905 = vmatpush1.bf16.msra.mxu0 %v759
        %906 = vmatprep.subr.bf16.mxu0 0
        %907 = vmatpush1.bf16.msra.mxu0 %v760
        %908 = vmatprep.subr.bf16.mxu0 0
        %909 = vmatpush1.bf16.msra.mxu0 %v761
        %910 = vmatprep.subr.bf16.mxu0 0
        %911 = vmatpush1.bf16.msra.mxu0 %v762
        %912 = vmatprep.subr.bf16.mxu0 0
        %913 = vmatpush1.bf16.msra.mxu0 %v763
        %914 = vmatprep.subr.bf16.mxu0 0
        %915 = vmatpush1.bf16.msra.mxu0 %v764
        %916 = vmatprep.subr.bf16.mxu0 0
        %917 = vmatpush1.bf16.msra.mxu0 %v765
        %918 = vmatprep.subr.bf16.mxu0 0
        %919 = vmatpush1.bf16.msra.mxu0 %v766
        %920 = vmatprep.subr.bf16.mxu0 0
        %921 = vmatpush1.bf16.msra.mxu0 %v767
        %922 = vmatprep.subr.bf16.mxu0 0
        %923 = vmatpush1.bf16.msra.mxu0 %v768
        %924 = vmatprep.subr.bf16.mxu0 0
        %925 = vmatpush1.bf16.msra.mxu0 %v769
        %926 = vmatprep.subr.bf16.mxu0 0
        %927 = vmatpush1.bf16.msra.mxu0 %v770
        %928 = vmatprep.subr.bf16.mxu0 0
        %929 = vmatpush1.bf16.msra.mxu0 %v771
        %930 = vmatprep.subr.bf16.mxu0 0
        %931 = vmatpush1.bf16.msra.mxu0 %v772
        %932 = vmatprep.subr.bf16.mxu0 0
        %933 = vmatpush1.bf16.msra.mxu0 %v773
        %934 = vmatprep.mubr.bf16.mxu0 %v285
        %935 = vmatmul.mubr.bf16.gmra.mrb[0].mxu0 %v266
        %v936 = vpop.f32.mrb[0].mxu0
        %v937 = vadd.f32 %v468, %v936
        %v938 = vpop.f32.mrb[0].mxu0
        %v939 = vpop.f32.mrb[0].mxu0
        %v940 = vpop.f32.mrb[0].mxu0
        %941 = vdwg.mxu0
        %942 = vmatprep.subr.bf16.mxu0 0
        %943 = vmatpush1.bf16.msra.mxu0 %v774
        %944 = vmatprep.subr.bf16.mxu0 0
        %945 = vmatpush1.bf16.msra.mxu0 %v775
        %946 = vmatprep.subr.bf16.mxu0 0
        %947 = vmatpush1.bf16.msra.mxu0 %v776
        %948 = vmatprep.subr.bf16.mxu0 0
        %949 = vmatpush1.bf16.msra.mxu0 %v777
        %950 = vmatprep.subr.bf16.mxu0 0
        %951 = vmatpush1.bf16.msra.mxu0 %v778
        %952 = vmatprep.subr.bf16.mxu0 0
        %953 = vmatpush1.bf16.msra.mxu0 %v779
        %954 = vmatprep.subr.bf16.mxu0 0
        %955 = vmatpush1.bf16.msra.mxu0 %v780
        %956 = vmatprep.subr.bf16.mxu0 0
        %957 = vmatpush1.bf16.msra.mxu0 %v781
        %958 = vmatprep.subr.bf16.mxu0 0
        %959 = vmatpush1.bf16.msra.mxu0 %v782
        %960 = vmatprep.subr.bf16.mxu0 0
        %961 = vmatpush1.bf16.msra.mxu0 %v783
        %962 = vmatprep.subr.bf16.mxu0 0
        %963 = vmatpush1.bf16.msra.mxu0 %v784
        %964 = vmatprep.subr.bf16.mxu0 0
        %965 = vmatpush1.bf16.msra.mxu0 %v785
        %966 = vmatprep.subr.bf16.mxu0 0
        %967 = vmatpush1.bf16.msra.mxu0 %v786
        %968 = vmatprep.subr.bf16.mxu0 0
        %969 = vmatpush1.bf16.msra.mxu0 %v787
        %970 = vmatprep.subr.bf16.mxu0 0
        %971 = vmatpush1.bf16.msra.mxu0 %v788
        %972 = vmatprep.subr.bf16.mxu0 0
        %973 = vmatpush1.bf16.msra.mxu0 %v789
        %974 = vmatprep.mubr.bf16.mxu0 %v269
        %975 = vmatmul.mubr.bf16.gmra.mrb[0].mxu0 %v287
        %v976 = vpop.f32.mrb[0].mxu0
        %v977 = vadd.f32 %v937, %v976
        %v978 = vpop.f32.mrb[0].mxu0
        %v979 = vpop.f32.mrb[0].mxu0
        %v980 = vpop.f32.mrb[0].mxu0
        %981 = vdwg.mxu0
        %982 = vmatprep.subr.bf16.mxu0 0
        %983 = vmatpush1.bf16.msra.mxu0 %v790
        %984 = vmatprep.subr.bf16.mxu0 0
        %985 = vmatpush1.bf16.msra.mxu0 %v791
        %986 = vmatprep.subr.bf16.mxu0 0
        %987 = vmatpush1.bf16.msra.mxu0 %v792
        %988 = vmatprep.subr.bf16.mxu0 0
        %989 = vmatpush1.bf16.msra.mxu0 %v793
        %990 = vmatprep.subr.bf16.mxu0 0
        %991 = vmatpush1.bf16.msra.mxu0 %v794
        %992 = vmatprep.subr.bf16.mxu0 0
        %993 = vmatpush1.bf16.msra.mxu0 %v795
        %994 = vmatprep.subr.bf16.mxu0 0
        %995 = vmatpush1.bf16.msra.mxu0 %v796
        %996 = vmatprep.subr.bf16.mxu0 0
        %997 = vmatpush1.bf16.msra.mxu0 %v797
        %998 = vmatprep.subr.bf16.mxu0 0
        %999 = vmatpush1.bf16.msra.mxu0 %v798
        %1000 = vmatprep.subr.bf16.mxu0 0
        %1001 = vmatpush1.bf16.msra.mxu0 %v799
        %1002 = vmatprep.subr.bf16.mxu0 0
        %1003 = vmatpush1.bf16.msra.mxu0 %v800
        %1004 = vmatprep.subr.bf16.mxu0 0
        %1005 = vmatpush1.bf16.msra.mxu0 %v801
        %1006 = vmatprep.subr.bf16.mxu0 0
        %1007 = vmatpush1.bf16.msra.mxu0 %v802
        %1008 = vmatprep.subr.bf16.mxu0 0
        %1009 = vmatpush1.bf16.msra.mxu0 %v803
        %1010 = vmatprep.subr.bf16.mxu0 0
        %1011 = vmatpush1.bf16.msra.mxu0 %v804
        %1012 = vmatprep.subr.bf16.mxu0 0
        %1013 = vmatpush1.bf16.msra.mxu0 %v805
        %1014 = vmatprep.mubr.bf16.mxu0 %v302
        %1015 = vmatmul.mubr.bf16.gmra.mrb[0].mxu0 %v300
        %v1016 = vpop.f32.mrb[0].mxu0
        %v1017 = vadd.f32 %v977, %v1016
        %v1018 = vpop.f32.mrb[0].mxu0
        %v1019 = vpop.f32.mrb[0].mxu0
        %v1020 = vpop.f32.mrb[0].mxu0
        %1021 = vdwg.mxu0
        %1022 = vmatprep.subr.bf16.mxu0 0
        %1023 = vmatpush1.bf16.msra.mxu0 %v806
        %1024 = vmatprep.subr.bf16.mxu0 0
        %1025 = vmatpush1.bf16.msra.mxu0 %v807
        %1026 = vmatprep.subr.bf16.mxu0 0
        %1027 = vmatpush1.bf16.msra.mxu0 %v808
        %1028 = vmatprep.subr.bf16.mxu0 0
        %1029 = vmatpush1.bf16.msra.mxu0 %v809
        %1030 = vmatprep.subr.bf16.mxu0 0
        %1031 = vmatpush1.bf16.msra.mxu0 %v810
        %1032 = vmatprep.subr.bf16.mxu0 0
        %1033 = vmatpush1.bf16.msra.mxu0 %v811
        %1034 = vmatprep.subr.bf16.mxu0 0
        %1035 = vmatpush1.bf16.msra.mxu0 %v812
        %1036 = vmatprep.subr.bf16.mxu0 0
        %1037 = vmatpush1.bf16.msra.mxu0 %v813
        %1038 = vmatprep.subr.bf16.mxu0 0
        %1039 = vmatpush1.bf16.msra.mxu0 %v814
        %1040 = vmatprep.subr.bf16.mxu0 0
        %1041 = vmatpush1.bf16.msra.mxu0 %v815
        %1042 = vmatprep.subr.bf16.mxu0 0
        %1043 = vmatpush1.bf16.msra.mxu0 %v816
        %1044 = vmatprep.subr.bf16.mxu0 0
        %1045 = vmatpush1.bf16.msra.mxu0 %v817
        %1046 = vmatprep.subr.bf16.mxu0 0
        %1047 = vmatpush1.bf16.msra.mxu0 %v818
        %1048 = vmatprep.subr.bf16.mxu0 0
        %1049 = vmatpush1.bf16.msra.mxu0 %v819
        %1050 = vmatprep.subr.bf16.mxu0 0
        %1051 = vmatpush1.bf16.msra.mxu0 %v820
        %1052 = vmatprep.subr.bf16.mxu0 0
        %1053 = vmatpush1.bf16.msra.mxu0 %v821
        %1054 = vmatprep.mubr.bf16.mxu0 %v315
        %1055 = vmatmul.mubr.bf16.gmra.mrb[0].mxu0 %v272
        %v1056 = vpop.f32.mrb[0].mxu0
        %v1057 = vadd.f32 %v1017, %v1056
        %v1058 = vpop.f32.mrb[0].mxu0
        %v1059 = vpop.f32.mrb[0].mxu0
        %v1060 = vpop.f32.mrb[0].mxu0
        %1061 = vdwg.mxu0
        %1062 = vmatprep.subr.bf16.mxu0 0
        %1063 = vmatpush1.bf16.msra.mxu0 %v822
        %1064 = vmatprep.subr.bf16.mxu0 0
        %1065 = vmatpush1.bf16.msra.mxu0 %v823
        %1066 = vmatprep.subr.bf16.mxu0 0
        %1067 = vmatpush1.bf16.msra.mxu0 %v824
        %1068 = vmatprep.subr.bf16.mxu0 0
        %1069 = vmatpush1.bf16.msra.mxu0 %v825
        %1070 = vmatprep.subr.bf16.mxu0 0
        %1071 = vmatpush1.bf16.msra.mxu0 %v826
        %1072 = vmatprep.subr.bf16.mxu0 0
        %1073 = vmatpush1.bf16.msra.mxu0 %v827
        %1074 = vmatprep.subr.bf16.mxu0 0
        %1075 = vmatpush1.bf16.msra.mxu0 %v828
        %1076 = vmatprep.subr.bf16.mxu0 0
        %1077 = vmatpush1.bf16.msra.mxu0 %v829
        %1078 = vmatprep.subr.bf16.mxu0 0
        %1079 = vmatpush1.bf16.msra.mxu0 0
        %1080 = vmatprep.subr.bf16.mxu0 0
        %1081 = vmatpush1.bf16.msra.mxu0 0
        %1082 = vmatprep.subr.bf16.mxu0 0
        %1083 = vmatpush1.bf16.msra.mxu0 0
        %1084 = vmatprep.subr.bf16.mxu0 0
        %1085 = vmatpush1.bf16.msra.mxu0 0
        %1086 = vmatprep.subr.bf16.mxu0 0
        %1087 = vmatpush1.bf16.msra.mxu0 0
        %1088 = vmatprep.subr.bf16.mxu0 0
        %1089 = vmatpush1.bf16.msra.mxu0 0
        %1090 = vmatprep.subr.bf16.mxu0 0
        %1091 = vmatpush1.bf16.msra.mxu0 0
        %1092 = vmatprep.subr.bf16.mxu0 0
        %1093 = vmatpush1.bf16.msra.mxu0 0
        %1094 = vmatprep.mubr.bf16.mxu0 0
        %1095 = vmatmul.mubr.bf16.gmra.mrb[0].mxu0 %v317
        %v1096 = vpop.f32.mrb[0].mxu0
        %v1097 = vadd.f32 %v1057, %v1096
        %v1098 = vpop.f32.mrb[0].mxu0
        %v1099 = vpop.f32.mrb[0].mxu0
        %v1100 = vpop.f32.mrb[0].mxu0
        %1101 = vdwg.mxu0
        %v1102 = vmax.f32 %v1097, 0.0
        %v1103 = vpack.c.bf16 %v1102, %v1102
        %v1105 = vunpack.c.l.b16 %v1103
        %v1106 = vpack.c.b16 %v1105, %v1105
        %v1108 = vshrl.u32 %v1106, 16
        %v1110 = vrot.slane %v1108, 7
        %v1111 = vshll.u32 %v1106, 16
        %v1113 = vor.u32 %v1110, %v1111
        %v1114 = vrot.slane %v1110, 4
        %s1117 = scalar_lea.vmem [#allocation2], 8
        %vm1118 = vcmask 1043456
        %vm1119 = vsmask.f32 7938
        %vm1120 = vmand %vm1118, %vm1119
        %v1121 = vld [vmem:[%s1117] sm:$0xf]
        %v1122 = vsel %vm1120, %v1113, %v1121
        %1123 = vst [vmem:[%s1117] sm:$0xf] %v1122
        %vm1124 = vcmask 1040384
        %vm1125 = vsmask.f32 256
        %vm1126 = vmand %vm1124, %vm1125
        %v1127 = vld [vmem:[%s1117 + $0x4] sm:$0x1]
        %v1128 = vsel %vm1126, %v1114, %v1127
        %1129 = vst [vmem:[%s1117 + $0x4] sm:$0x1] %v1128
        %v1130 = vld [vmem:[%s268] sm:$0xf]
        %v1131 = vld [vmem:[%s268 + $0x4] sm:$0x1]
        %v1132 = vld [vmem:[%s271] sm:$0xf]
        %v1133 = vld [vmem:[%s271 + $0x4] sm:$0x1]
        %s1134 = scalar_lea.vmem %s252, 24
        %v1135 = vld [vmem:[%s1134] sm:$0xf]
        %v1136 = vld [vmem:[%s1134 + $0x4] sm:$0x1]
        %v1139 = vunpack.c.l.b16 %v1130
        %v1140 = vunpack.c.l.b16 %v1131
        %v1141 = vpack.c.b16 %v1140, %v1139
        %v1143 = vshrl.u32 %v1141, 16
        %v1145 = vshll.u32 %v1141, 16
        %v1147 = vrot.slane %v1145, 1
        %v1148 = vor.u32 %v1143, %v1147
        %v1150 = vrot.slane %v1141, 1
        %v1154 = vunpack.c.l.b16 %v1132
        %v1155 = vunpack.c.l.b16 %v1133
        %v1156 = vpack.c.b16 %v1155, %v1154
        %v1158 = vshrl.u32 %v1156, 16
        %v1160 = vshll.u32 %v1156, 16
        %v1162 = vrot.slane %v1160, 1
        %v1163 = vor.u32 %v1158, %v1162
        %v1165 = vrot.slane %v1156, 1
        %v1169 = vunpack.c.l.b16 %v1135
        %v1170 = vunpack.c.l.b16 %v1136
        %v1171 = vpack.c.b16 %v1170, %v1169
        %v1173 = vshrl.u32 %v1171, 16
        %v1175 = vshll.u32 %v1171, 16
        %v1177 = vrot.slane %v1175, 1
        %v1178 = vor.u32 %v1173, %v1177
        %v1180 = vrot.slane %v1171, 1
        %v1182 = vld [vmem:[#allocation3] sm:$0xf]
        %v1183 = vld [vmem:[#allocation3 + $0x4] sm:$0xf]
        %v1184 = vld [vmem:[#allocation3 + $0x8] sm:$0xf]
        %v1185 = vld [vmem:[#allocation3 + $0xc] sm:$0xf]
        %v1186 = vld [vmem:[#allocation3 + $0x10] sm:$0xf]
        %v1187 = vld [vmem:[#allocation3 + $0x14] sm:$0xf]
        %v1188 = vld [vmem:[#allocation3 + $0x18] sm:$0xf]
        %v1189 = vld [vmem:[#allocation3 + $0x1c] sm:$0xf]
        %v1190 = vld [vmem:[#allocation3 + $0x20] sm:$0xf]
        %v1191 = vld [vmem:[#allocation3 + $0x24] sm:$0xf]
        %v1192 = vld [vmem:[#allocation3 + $0x28] sm:$0xf]
        %v1193 = vld [vmem:[#allocation3 + $0x2c] sm:$0xf]
        %v1194 = vld [vmem:[#allocation3 + $0x30] sm:$0xf]
        %v1195 = vld [vmem:[#allocation3 + $0x34] sm:$0xf]
        %v1196 = vld [vmem:[#allocation3 + $0x38] sm:$0xf]
        %v1197 = vld [vmem:[#allocation3 + $0x3c] sm:$0xf]
        %v1198 = vld [vmem:[#allocation3 + $0x40] sm:$0xf]
        %v1199 = vld [vmem:[#allocation3 + $0x44] sm:$0xf]
        %v1200 = vld [vmem:[#allocation3 + $0x48] sm:$0xf]
        %v1201 = vld [vmem:[#allocation3 + $0x4c] sm:$0xf]
        %v1202 = vld [vmem:[#allocation3 + $0x50] sm:$0xf]
        %v1203 = vld [vmem:[#allocation3 + $0x54] sm:$0xf]
        %v1204 = vld [vmem:[#allocation3 + $0x58] sm:$0xf]
        %v1205 = vld [vmem:[#allocation3 + $0x5c] sm:$0xf]
        %v1206 = vld [vmem:[#allocation3 + $0x60] sm:$0xf]
        %v1207 = vld [vmem:[#allocation3 + $0x64] sm:$0xf]
        %v1208 = vld [vmem:[#allocation3 + $0x68] sm:$0xf]
        %v1209 = vld [vmem:[#allocation3 + $0x6c] sm:$0xf]
        %v1210 = vld [vmem:[#allocation3 + $0x70] sm:$0xf]
        %v1211 = vld [vmem:[#allocation3 + $0x74] sm:$0xf]
        %v1212 = vld [vmem:[#allocation3 + $0x78] sm:$0xf]
        %v1213 = vld [vmem:[#allocation3 + $0x7c] sm:$0xf]
        %v1214 = vld [vmem:[#allocation3 + $0x80] sm:$0xf]
        %v1215 = vld [vmem:[#allocation3 + $0x84] sm:$0xf]
        %v1216 = vld [vmem:[#allocation3 + $0x88] sm:$0xf]
        %v1217 = vld [vmem:[#allocation3 + $0x8c] sm:$0xf]
        %v1218 = vld [vmem:[#allocation3 + $0x90] sm:$0xf]
        %v1219 = vld [vmem:[#allocation3 + $0x94] sm:$0xf]
        %v1220 = vld [vmem:[#allocation3 + $0x98] sm:$0xf]
        %v1221 = vld [vmem:[#allocation3 + $0x9c] sm:$0xf]
        %v1222 = vld [vmem:[#allocation3 + $0xa0] sm:$0xf]
        %v1223 = vld [vmem:[#allocation3 + $0xa4] sm:$0xf]
        %v1224 = vld [vmem:[#allocation3 + $0xa8] sm:$0xf]
        %v1225 = vld [vmem:[#allocation3 + $0xac] sm:$0xf]
        %v1226 = vld [vmem:[#allocation3 + $0xb0] sm:$0xf]
        %v1227 = vld [vmem:[#allocation3 + $0xb4] sm:$0xf]
        %v1228 = vld [vmem:[#allocation3 + $0xb8] sm:$0xf]
        %v1229 = vld [vmem:[#allocation3 + $0xbc] sm:$0xf]
        %v1230 = vld [vmem:[#allocation3 + $0xc0] sm:$0xf]
        %v1231 = vld [vmem:[#allocation3 + $0xc4] sm:$0xf]
        %v1232 = vld [vmem:[#allocation3 + $0xc8] sm:$0xf]
        %v1233 = vld [vmem:[#allocation3 + $0xcc] sm:$0xf]
        %v1234 = vld [vmem:[#allocation3 + $0xd0] sm:$0xf]
        %v1235 = vld [vmem:[#allocation3 + $0xd4] sm:$0xf]
        %v1236 = vld [vmem:[#allocation3 + $0xd8] sm:$0xf]
        %v1237 = vld [vmem:[#allocation3 + $0xdc] sm:$0xf]
        %v1238 = vld [vmem:[#allocation3 + $0xe0] sm:$0xf]
        %v1239 = vld [vmem:[#allocation3 + $0xe4] sm:$0xf]
        %v1240 = vld [vmem:[#allocation3 + $0xe8] sm:$0xf]
        %v1241 = vld [vmem:[#allocation3 + $0xec] sm:$0xf]
        %v1242 = vld [vmem:[#allocation3 + $0xf0] sm:$0xf]
        %v1243 = vld [vmem:[#allocation3 + $0xf4] sm:$0xf]
        %v1244 = vld [vmem:[#allocation3 + $0xf8] sm:$0xf]
        %v1245 = vld [vmem:[#allocation3 + $0xfc] sm:$0xf]
        %v1246 = vld [vmem:[#allocation3 + $0x100] sm:$0xf]
        %v1247 = vld [vmem:[#allocation3 + $0x104] sm:$0xf]
        %v1248 = vld [vmem:[#allocation3 + $0x108] sm:$0xf]
        %v1249 = vld [vmem:[#allocation3 + $0x10c] sm:$0xf]
        %v1250 = vld [vmem:[#allocation3 + $0x110] sm:$0xf]
        %v1251 = vld [vmem:[#allocation3 + $0x114] sm:$0xf]
        %v1252 = vld [vmem:[#allocation3 + $0x118] sm:$0xf]
        %v1253 = vld [vmem:[#allocation3 + $0x11c] sm:$0xf]
        %v1254 = vld [vmem:[#allocation3 + $0x120] sm:$0xf]
        %v1255 = vld [vmem:[#allocation3 + $0x124] sm:$0xf]
        %v1256 = vld [vmem:[#allocation3 + $0x128] sm:$0xf]
        %v1257 = vld [vmem:[#allocation3 + $0x12c] sm:$0xf]
        %v1258 = vld [vmem:[#allocation3 + $0x130] sm:$0xf]
        %v1259 = vld [vmem:[#allocation3 + $0x134] sm:$0xf]
        %v1260 = vld [vmem:[#allocation3 + $0x138] sm:$0xf]
        %v1261 = vld [vmem:[#allocation3 + $0x13c] sm:$0xf]
        %v1262 = vld [vmem:[#allocation3 + $0x140] sm:$0xf]
        %v1263 = vld [vmem:[#allocation3 + $0x144] sm:$0xf]
        %v1264 = vld [vmem:[#allocation3 + $0x148] sm:$0xf]
        %v1265 = vld [vmem:[#allocation3 + $0x14c] sm:$0xf]
        %v1266 = vld [vmem:[#allocation3 + $0x150] sm:$0xf]
        %v1267 = vld [vmem:[#allocation3 + $0x154] sm:$0xf]
        %v1268 = vld [vmem:[#allocation3 + $0x158] sm:$0xf]
        %v1269 = vld [vmem:[#allocation3 + $0x15c] sm:$0xf]
        %v1270 = vld [vmem:[#allocation3 + $0x160] sm:$0xf]
        %v1271 = vld [vmem:[#allocation3 + $0x164] sm:$0xf]
        %v1272 = vld [vmem:[#allocation3 + $0x168] sm:$0xf]
        %v1273 = vld [vmem:[#allocation3 + $0x16c] sm:$0xf]
        %v1274 = vld [vmem:[#allocation3 + $0x170] sm:$0xf]
        %v1275 = vld [vmem:[#allocation3 + $0x174] sm:$0xf]
        %v1276 = vld [vmem:[#allocation3 + $0x178] sm:$0xf]
        %v1277 = vld [vmem:[#allocation3 + $0x17c] sm:$0xf]
        %v1278 = vld [vmem:[#allocation3 + $0x180] sm:$0xf]
        %v1279 = vld [vmem:[#allocation3 + $0x184] sm:$0xf]
        %v1280 = vld [vmem:[#allocation3 + $0x188] sm:$0xf]
        %v1281 = vld [vmem:[#allocation3 + $0x18c] sm:$0xf]
        %v1282 = vld [vmem:[#allocation3 + $0x190] sm:$0xf]
        %v1283 = vld [vmem:[#allocation3 + $0x194] sm:$0xf]
        %v1284 = vld [vmem:[#allocation3 + $0x198] sm:$0xf]
        %v1285 = vld [vmem:[#allocation3 + $0x19c] sm:$0xf]
        %v1286 = vld [vmem:[#allocation3 + $0x1a0] sm:$0xf]
        %v1287 = vld [vmem:[#allocation3 + $0x1a4] sm:$0xf]
        %v1288 = vld [vmem:[#allocation3 + $0x1a8] sm:$0xf]
        %v1289 = vld [vmem:[#allocation3 + $0x1ac] sm:$0xf]
        %v1290 = vld [vmem:[#allocation3 + $0x1b0] sm:$0xf]
        %v1291 = vld [vmem:[#allocation3 + $0x1b4] sm:$0xf]
        %v1292 = vld [vmem:[#allocation3 + $0x1b8] sm:$0xf]
        %v1293 = vld [vmem:[#allocation3 + $0x1bc] sm:$0xf]
        %v1294 = vld [vmem:[#allocation3 + $0x1c0] sm:$0xf]
        %v1295 = vld [vmem:[#allocation3 + $0x1c4] sm:$0xf]
        %v1296 = vld [vmem:[#allocation3 + $0x1c8] sm:$0xf]
        %v1297 = vld [vmem:[#allocation3 + $0x1cc] sm:$0xf]
        %v1298 = vld [vmem:[#allocation3 + $0x1d0] sm:$0xf]
        %v1299 = vld [vmem:[#allocation3 + $0x1d4] sm:$0xf]
        %v1300 = vld [vmem:[#allocation3 + $0x1d8] sm:$0xf]
        %v1301 = vld [vmem:[#allocation3 + $0x1dc] sm:$0xf]
        %v1302 = vld [vmem:[#allocation3 + $0x1e0] sm:$0xf]
        %v1303 = vld [vmem:[#allocation3 + $0x1e4] sm:$0xf]
        %v1304 = vld [vmem:[#allocation3 + $0x1e8] sm:$0xf]
        %v1305 = vld [vmem:[#allocation3 + $0x1ec] sm:$0xf]
        %v1306 = vld [vmem:[#allocation3 + $0x1f0] sm:$0xf]
        %v1307 = vld [vmem:[#allocation3 + $0x1f4] sm:$0xf]
        %v1308 = vld [vmem:[#allocation3 + $0x1f8] sm:$0xf]
        %v1309 = vld [vmem:[#allocation3 + $0x1fc] sm:$0xf]
        %v1310 = vld [vmem:[#allocation3 + $0x200] sm:$0xf]
        %v1311 = vld [vmem:[#allocation3 + $0x204] sm:$0xf]
        %v1312 = vld [vmem:[#allocation3 + $0x208] sm:$0xf]
        %v1313 = vld [vmem:[#allocation3 + $0x20c] sm:$0xf]
        %v1314 = vld [vmem:[#allocation3 + $0x210] sm:$0xf]
        %v1315 = vld [vmem:[#allocation3 + $0x214] sm:$0xf]
        %v1316 = vld [vmem:[#allocation3 + $0x218] sm:$0xf]
        %v1317 = vld [vmem:[#allocation3 + $0x21c] sm:$0xf]
        %v1318 = vld [vmem:[#allocation3 + $0x220] sm:$0xf]
        %v1319 = vld [vmem:[#allocation3 + $0x224] sm:$0xf]
        %v1320 = vld [vmem:[#allocation3 + $0x228] sm:$0xf]
        %v1321 = vld [vmem:[#allocation3 + $0x22c] sm:$0xf]
        %v1322 = vld [vmem:[#allocation3 + $0x230] sm:$0xf]
        %v1323 = vld [vmem:[#allocation3 + $0x234] sm:$0xf]
        %v1324 = vld [vmem:[#allocation3 + $0x238] sm:$0xf]
        %v1325 = vld [vmem:[#allocation3 + $0x23c] sm:$0xf]
        %v1326 = vld [vmem:[%s2] sm:$0x1]
        %v1328 = vlaneseq
        %v1329 = vshrl.u32 %v1328, 7
        %v1330 = vsub.s32 0, %v1329
        %v1331 = vrot.slane %v1326, %v1330
        %v1477 = vunpack.c.l.b16 %v1182
        %v1478 = vunpack.c.l.b16 %v1183
        %v1479 = vunpack.c.l.b16 %v1184
        %v1480 = vunpack.c.l.b16 %v1185
        %v1481 = vunpack.c.l.b16 %v1186
        %v1482 = vunpack.c.l.b16 %v1187
        %v1483 = vunpack.c.l.b16 %v1188
        %v1484 = vunpack.c.l.b16 %v1189
        %v1485 = vunpack.c.l.b16 %v1190
        %v1486 = vunpack.c.l.b16 %v1191
        %v1487 = vunpack.c.l.b16 %v1192
        %v1488 = vunpack.c.l.b16 %v1193
        %v1489 = vunpack.c.l.b16 %v1194
        %v1490 = vunpack.c.l.b16 %v1195
        %v1491 = vunpack.c.l.b16 %v1196
        %v1492 = vunpack.c.l.b16 %v1197
        %v1493 = vunpack.c.l.b16 %v1198
        %v1494 = vunpack.c.l.b16 %v1199
        %v1495 = vunpack.c.l.b16 %v1200
        %v1496 = vunpack.c.l.b16 %v1201
        %v1497 = vunpack.c.l.b16 %v1202
        %v1498 = vunpack.c.l.b16 %v1203
        %v1499 = vunpack.c.l.b16 %v1204
        %v1500 = vunpack.c.l.b16 %v1205
        %v1501 = vunpack.c.l.b16 %v1206
        %v1502 = vunpack.c.l.b16 %v1207
        %v1503 = vunpack.c.l.b16 %v1208
        %v1504 = vunpack.c.l.b16 %v1209
        %v1505 = vunpack.c.l.b16 %v1210
        %v1506 = vunpack.c.l.b16 %v1211
        %v1507 = vunpack.c.l.b16 %v1212
        %v1508 = vunpack.c.l.b16 %v1213
        %v1509 = vunpack.c.l.b16 %v1214
        %v1510 = vunpack.c.l.b16 %v1215
        %v1511 = vunpack.c.l.b16 %v1216
        %v1512 = vunpack.c.l.b16 %v1217
        %v1513 = vunpack.c.l.b16 %v1218
        %v1514 = vunpack.c.l.b16 %v1219
        %v1515 = vunpack.c.l.b16 %v1220
        %v1516 = vunpack.c.l.b16 %v1221
        %v1517 = vunpack.c.l.b16 %v1222
        %v1518 = vunpack.c.l.b16 %v1223
        %v1519 = vunpack.c.l.b16 %v1224
        %v1520 = vunpack.c.l.b16 %v1225
        %v1521 = vunpack.c.l.b16 %v1226
        %v1522 = vunpack.c.l.b16 %v1227
        %v1523 = vunpack.c.l.b16 %v1228
        %v1524 = vunpack.c.l.b16 %v1229
        %v1525 = vunpack.c.l.b16 %v1230
        %v1526 = vunpack.c.l.b16 %v1231
        %v1527 = vunpack.c.l.b16 %v1232
        %v1528 = vunpack.c.l.b16 %v1233
        %v1529 = vunpack.c.l.b16 %v1234
        %v1530 = vunpack.c.l.b16 %v1235
        %v1531 = vunpack.c.l.b16 %v1236
        %v1532 = vunpack.c.l.b16 %v1237
        %v1533 = vunpack.c.l.b16 %v1238
        %v1534 = vunpack.c.l.b16 %v1239
        %v1535 = vunpack.c.l.b16 %v1240
        %v1536 = vunpack.c.l.b16 %v1241
        %v1537 = vunpack.c.l.b16 %v1242
        %v1538 = vunpack.c.l.b16 %v1243
        %v1539 = vunpack.c.l.b16 %v1244
        %v1540 = vunpack.c.l.b16 %v1245
        %v1541 = vunpack.c.l.b16 %v1246
        %v1542 = vunpack.c.l.b16 %v1247
        %v1543 = vunpack.c.l.b16 %v1248
        %v1544 = vunpack.c.l.b16 %v1249
        %v1545 = vunpack.c.l.b16 %v1250
        %v1546 = vunpack.c.l.b16 %v1251
        %v1547 = vunpack.c.l.b16 %v1252
        %v1548 = vunpack.c.l.b16 %v1253
        %v1549 = vunpack.c.l.b16 %v1254
        %v1550 = vunpack.c.l.b16 %v1255
        %v1551 = vunpack.c.l.b16 %v1256
        %v1552 = vunpack.c.l.b16 %v1257
        %v1553 = vunpack.c.l.b16 %v1258
        %v1554 = vunpack.c.l.b16 %v1259
        %v1555 = vunpack.c.l.b16 %v1260
        %v1556 = vunpack.c.l.b16 %v1261
        %v1557 = vunpack.c.l.b16 %v1262
        %v1558 = vunpack.c.l.b16 %v1263
        %v1559 = vunpack.c.l.b16 %v1264
        %v1560 = vunpack.c.l.b16 %v1265
        %v1561 = vunpack.c.l.b16 %v1266
        %v1562 = vunpack.c.l.b16 %v1267
        %v1563 = vunpack.c.l.b16 %v1268
        %v1564 = vunpack.c.l.b16 %v1269
        %v1565 = vunpack.c.l.b16 %v1270
        %v1566 = vunpack.c.l.b16 %v1271
        %v1567 = vunpack.c.l.b16 %v1272
        %v1568 = vunpack.c.l.b16 %v1273
        %v1569 = vunpack.c.l.b16 %v1274
        %v1570 = vunpack.c.l.b16 %v1275
        %v1571 = vunpack.c.l.b16 %v1276
        %v1572 = vunpack.c.l.b16 %v1277
        %v1573 = vunpack.c.l.b16 %v1278
        %v1574 = vunpack.c.l.b16 %v1279
        %v1575 = vunpack.c.l.b16 %v1280
        %v1576 = vunpack.c.l.b16 %v1281
        %v1577 = vunpack.c.l.b16 %v1282
        %v1578 = vunpack.c.l.b16 %v1283
        %v1579 = vunpack.c.l.b16 %v1284
        %v1580 = vunpack.c.l.b16 %v1285
        %v1581 = vunpack.c.l.b16 %v1286
        %v1582 = vunpack.c.l.b16 %v1287
        %v1583 = vunpack.c.l.b16 %v1288
        %v1584 = vunpack.c.l.b16 %v1289
        %v1585 = vunpack.c.l.b16 %v1290
        %v1586 = vunpack.c.l.b16 %v1291
        %v1587 = vunpack.c.l.b16 %v1292
        %v1588 = vunpack.c.l.b16 %v1293
        %v1589 = vunpack.c.l.b16 %v1294
        %v1590 = vunpack.c.l.b16 %v1295
        %v1591 = vunpack.c.l.b16 %v1296
        %v1592 = vunpack.c.l.b16 %v1297
        %v1593 = vunpack.c.l.b16 %v1298
        %v1594 = vunpack.c.l.b16 %v1299
        %v1595 = vunpack.c.l.b16 %v1300
        %v1596 = vunpack.c.l.b16 %v1301
        %v1597 = vunpack.c.l.b16 %v1302
        %v1598 = vunpack.c.l.b16 %v1303
        %v1599 = vunpack.c.l.b16 %v1304
        %v1600 = vunpack.c.l.b16 %v1305
        %v1601 = vunpack.c.l.b16 %v1306
        %v1602 = vunpack.c.l.b16 %v1307
        %v1603 = vunpack.c.l.b16 %v1308
        %v1604 = vunpack.c.l.b16 %v1309
        %v1605 = vunpack.c.l.b16 %v1310
        %v1606 = vunpack.c.l.b16 %v1311
        %v1607 = vunpack.c.l.b16 %v1312
        %v1608 = vunpack.c.l.b16 %v1313
        %v1609 = vunpack.c.l.b16 %v1314
        %v1610 = vunpack.c.l.b16 %v1315
        %v1611 = vunpack.c.l.b16 %v1316
        %v1612 = vunpack.c.l.b16 %v1317
        %v1613 = vunpack.c.l.b16 %v1318
        %v1614 = vunpack.c.l.b16 %v1319
        %v1615 = vunpack.c.l.b16 %v1320
        %v1616 = vunpack.c.l.b16 %v1321
        %v1617 = vunpack.c.l.b16 %v1322
        %v1618 = vunpack.c.l.b16 %v1323
        %v1619 = vunpack.c.l.b16 %v1324
        %v1620 = vunpack.c.l.b16 %v1325
        %v1621 = vpack.c.b16 %v1478, %v1477
        %v1622 = vpack.c.b16 %v1480, %v1479
        %v1623 = vpack.c.b16 %v1482, %v1481
        %v1624 = vpack.c.b16 %v1484, %v1483
        %v1625 = vpack.c.b16 %v1486, %v1485
        %v1626 = vpack.c.b16 %v1488, %v1487
        %v1627 = vpack.c.b16 %v1490, %v1489
        %v1628 = vpack.c.b16 %v1492, %v1491
        %v1629 = vpack.c.b16 %v1494, %v1493
        %v1630 = vpack.c.b16 %v1496, %v1495
        %v1631 = vpack.c.b16 %v1498, %v1497
        %v1632 = vpack.c.b16 %v1500, %v1499
        %v1633 = vpack.c.b16 %v1502, %v1501
        %v1634 = vpack.c.b16 %v1504, %v1503
        %v1635 = vpack.c.b16 %v1506, %v1505
        %v1636 = vpack.c.b16 %v1508, %v1507
        %v1637 = vpack.c.b16 %v1510, %v1509
        %v1638 = vpack.c.b16 %v1512, %v1511
        %v1639 = vpack.c.b16 %v1514, %v1513
        %v1640 = vpack.c.b16 %v1516, %v1515
        %v1641 = vpack.c.b16 %v1518, %v1517
        %v1642 = vpack.c.b16 %v1520, %v1519
        %v1643 = vpack.c.b16 %v1522, %v1521
        %v1644 = vpack.c.b16 %v1524, %v1523
        %v1645 = vpack.c.b16 %v1526, %v1525
        %v1646 = vpack.c.b16 %v1528, %v1527
        %v1647 = vpack.c.b16 %v1530, %v1529
        %v1648 = vpack.c.b16 %v1532, %v1531
        %v1649 = vpack.c.b16 %v1534, %v1533
        %v1650 = vpack.c.b16 %v1536, %v1535
        %v1651 = vpack.c.b16 %v1538, %v1537
        %v1652 = vpack.c.b16 %v1540, %v1539
        %v1653 = vpack.c.b16 %v1542, %v1541
        %v1654 = vpack.c.b16 %v1544, %v1543
        %v1655 = vpack.c.b16 %v1546, %v1545
        %v1656 = vpack.c.b16 %v1548, %v1547
        %v1657 = vpack.c.b16 %v1550, %v1549
        %v1658 = vpack.c.b16 %v1552, %v1551
        %v1659 = vpack.c.b16 %v1554, %v1553
        %v1660 = vpack.c.b16 %v1556, %v1555
        %v1661 = vpack.c.b16 %v1558, %v1557
        %v1662 = vpack.c.b16 %v1560, %v1559
        %v1663 = vpack.c.b16 %v1562, %v1561
        %v1664 = vpack.c.b16 %v1564, %v1563
        %v1665 = vpack.c.b16 %v1566, %v1565
        %v1666 = vpack.c.b16 %v1568, %v1567
        %v1667 = vpack.c.b16 %v1570, %v1569
        %v1668 = vpack.c.b16 %v1572, %v1571
        %v1669 = vpack.c.b16 %v1574, %v1573
        %v1670 = vpack.c.b16 %v1576, %v1575
        %v1671 = vpack.c.b16 %v1578, %v1577
        %v1672 = vpack.c.b16 %v1580, %v1579
        %v1673 = vpack.c.b16 %v1582, %v1581
        %v1674 = vpack.c.b16 %v1584, %v1583
        %v1675 = vpack.c.b16 %v1586, %v1585
        %v1676 = vpack.c.b16 %v1588, %v1587
        %v1677 = vpack.c.b16 %v1590, %v1589
        %v1678 = vpack.c.b16 %v1592, %v1591
        %v1679 = vpack.c.b16 %v1594, %v1593
        %v1680 = vpack.c.b16 %v1596, %v1595
        %v1681 = vpack.c.b16 %v1598, %v1597
        %v1682 = vpack.c.b16 %v1600, %v1599
        %v1683 = vpack.c.b16 %v1602, %v1601
        %v1684 = vpack.c.b16 %v1604, %v1603
        %v1685 = vpack.c.b16 %v1606, %v1605
        %v1686 = vpack.c.b16 %v1608, %v1607
        %v1687 = vpack.c.b16 %v1610, %v1609
        %v1688 = vpack.c.b16 %v1612, %v1611
        %v1689 = vpack.c.b16 %v1614, %v1613
        %v1690 = vpack.c.b16 %v1616, %v1615
        %v1691 = vpack.c.b16 %v1618, %v1617
        %v1692 = vpack.c.b16 %v1620, %v1619
        %1765 = vmatprep.subr.bf16.mxu0 0
        %1766 = vmatpush1.bf16.msra.mxu0 %v1621
        %1767 = vmatprep.subr.bf16.mxu0 0
        %1768 = vmatpush1.bf16.msra.mxu0 %v1622
        %1769 = vmatprep.subr.bf16.mxu0 0
        %1770 = vmatpush1.bf16.msra.mxu0 %v1623
        %1771 = vmatprep.subr.bf16.mxu0 0
        %1772 = vmatpush1.bf16.msra.mxu0 %v1624
        %1773 = vmatprep.subr.bf16.mxu0 0
        %1774 = vmatpush1.bf16.msra.mxu0 %v1625
        %1775 = vmatprep.subr.bf16.mxu0 0
        %1776 = vmatpush1.bf16.msra.mxu0 %v1626
        %1777 = vmatprep.subr.bf16.mxu0 0
        %1778 = vmatpush1.bf16.msra.mxu0 %v1627
        %1779 = vmatprep.subr.bf16.mxu0 0
        %1780 = vmatpush1.bf16.msra.mxu0 %v1628
        %1781 = vmatprep.subr.bf16.mxu0 0
        %1782 = vmatpush1.bf16.msra.mxu0 %v1629
        %1783 = vmatprep.subr.bf16.mxu0 0
        %1784 = vmatpush1.bf16.msra.mxu0 %v1630
        %1785 = vmatprep.subr.bf16.mxu0 0
        %1786 = vmatpush1.bf16.msra.mxu0 %v1631
        %1787 = vmatprep.subr.bf16.mxu0 0
        %1788 = vmatpush1.bf16.msra.mxu0 %v1632
        %1789 = vmatprep.subr.bf16.mxu0 0
        %1790 = vmatpush1.bf16.msra.mxu0 %v1633
        %1791 = vmatprep.subr.bf16.mxu0 0
        %1792 = vmatpush1.bf16.msra.mxu0 %v1634
        %1793 = vmatprep.subr.bf16.mxu0 0
        %1794 = vmatpush1.bf16.msra.mxu0 %v1635
        %1795 = vmatprep.subr.bf16.mxu0 0
        %1796 = vmatpush1.bf16.msra.mxu0 %v1636
        %1797 = vmatprep.mubr.bf16.mxu0 %v1148
        %1798 = vmatmul.mubr.bf16.gmra.mrb[0].mxu0 %v1130
        %v1799 = vpop.f32.mrb[0].mxu0
        %v1800 = vadd.f32 %v1331, %v1799
        %v1801 = vpop.f32.mrb[0].mxu0
        %v1802 = vpop.f32.mrb[0].mxu0
        %v1803 = vpop.f32.mrb[0].mxu0
        %1804 = vdwg.mxu0
        %1805 = vmatprep.subr.bf16.mxu0 0
        %1806 = vmatpush1.bf16.msra.mxu0 %v1637
        %1807 = vmatprep.subr.bf16.mxu0 0
        %1808 = vmatpush1.bf16.msra.mxu0 %v1638
        %1809 = vmatprep.subr.bf16.mxu0 0
        %1810 = vmatpush1.bf16.msra.mxu0 %v1639
        %1811 = vmatprep.subr.bf16.mxu0 0
        %1812 = vmatpush1.bf16.msra.mxu0 %v1640
        %1813 = vmatprep.subr.bf16.mxu0 0
        %1814 = vmatpush1.bf16.msra.mxu0 %v1641
        %1815 = vmatprep.subr.bf16.mxu0 0
        %1816 = vmatpush1.bf16.msra.mxu0 %v1642
        %1817 = vmatprep.subr.bf16.mxu0 0
        %1818 = vmatpush1.bf16.msra.mxu0 %v1643
        %1819 = vmatprep.subr.bf16.mxu0 0
        %1820 = vmatpush1.bf16.msra.mxu0 %v1644
        %1821 = vmatprep.subr.bf16.mxu0 0
        %1822 = vmatpush1.bf16.msra.mxu0 %v1645
        %1823 = vmatprep.subr.bf16.mxu0 0
        %1824 = vmatpush1.bf16.msra.mxu0 %v1646
        %1825 = vmatprep.subr.bf16.mxu0 0
        %1826 = vmatpush1.bf16.msra.mxu0 %v1647
        %1827 = vmatprep.subr.bf16.mxu0 0
        %1828 = vmatpush1.bf16.msra.mxu0 %v1648
        %1829 = vmatprep.subr.bf16.mxu0 0
        %1830 = vmatpush1.bf16.msra.mxu0 %v1649
        %1831 = vmatprep.subr.bf16.mxu0 0
        %1832 = vmatpush1.bf16.msra.mxu0 %v1650
        %1833 = vmatprep.subr.bf16.mxu0 0
        %1834 = vmatpush1.bf16.msra.mxu0 %v1651
        %1835 = vmatprep.subr.bf16.mxu0 0
        %1836 = vmatpush1.bf16.msra.mxu0 %v1652
        %1837 = vmatprep.mubr.bf16.mxu0 %v1132
        %1838 = vmatmul.mubr.bf16.gmra.mrb[0].mxu0 %v1150
        %v1839 = vpop.f32.mrb[0].mxu0
        %v1840 = vadd.f32 %v1800, %v1839
        %v1841 = vpop.f32.mrb[0].mxu0
        %v1842 = vpop.f32.mrb[0].mxu0
        %v1843 = vpop.f32.mrb[0].mxu0
        %1844 = vdwg.mxu0
        %1845 = vmatprep.subr.bf16.mxu0 0
        %1846 = vmatpush1.bf16.msra.mxu0 %v1653
        %1847 = vmatprep.subr.bf16.mxu0 0
        %1848 = vmatpush1.bf16.msra.mxu0 %v1654
        %1849 = vmatprep.subr.bf16.mxu0 0
        %1850 = vmatpush1.bf16.msra.mxu0 %v1655
        %1851 = vmatprep.subr.bf16.mxu0 0
        %1852 = vmatpush1.bf16.msra.mxu0 %v1656
        %1853 = vmatprep.subr.bf16.mxu0 0
        %1854 = vmatpush1.bf16.msra.mxu0 %v1657
        %1855 = vmatprep.subr.bf16.mxu0 0
        %1856 = vmatpush1.bf16.msra.mxu0 %v1658
        %1857 = vmatprep.subr.bf16.mxu0 0
        %1858 = vmatpush1.bf16.msra.mxu0 %v1659
        %1859 = vmatprep.subr.bf16.mxu0 0
        %1860 = vmatpush1.bf16.msra.mxu0 %v1660
        %1861 = vmatprep.subr.bf16.mxu0 0
        %1862 = vmatpush1.bf16.msra.mxu0 %v1661
        %1863 = vmatprep.subr.bf16.mxu0 0
        %1864 = vmatpush1.bf16.msra.mxu0 %v1662
        %1865 = vmatprep.subr.bf16.mxu0 0
        %1866 = vmatpush1.bf16.msra.mxu0 %v1663
        %1867 = vmatprep.subr.bf16.mxu0 0
        %1868 = vmatpush1.bf16.msra.mxu0 %v1664
        %1869 = vmatprep.subr.bf16.mxu0 0
        %1870 = vmatpush1.bf16.msra.mxu0 %v1665
        %1871 = vmatprep.subr.bf16.mxu0 0
        %1872 = vmatpush1.bf16.msra.mxu0 %v1666
        %1873 = vmatprep.subr.bf16.mxu0 0
        %1874 = vmatpush1.bf16.msra.mxu0 %v1667
        %1875 = vmatprep.subr.bf16.mxu0 0
        %1876 = vmatpush1.bf16.msra.mxu0 %v1668
        %1877 = vmatprep.mubr.bf16.mxu0 %v1165
        %1878 = vmatmul.mubr.bf16.gmra.mrb[0].mxu0 %v1163
        %v1879 = vpop.f32.mrb[0].mxu0
        %v1880 = vadd.f32 %v1840, %v1879
        %v1881 = vpop.f32.mrb[0].mxu0
        %v1882 = vpop.f32.mrb[0].mxu0
        %v1883 = vpop.f32.mrb[0].mxu0
        %1884 = vdwg.mxu0
        %1885 = vmatprep.subr.bf16.mxu0 0
        %1886 = vmatpush1.bf16.msra.mxu0 %v1669
        %1887 = vmatprep.subr.bf16.mxu0 0
        %1888 = vmatpush1.bf16.msra.mxu0 %v1670
        %1889 = vmatprep.subr.bf16.mxu0 0
        %1890 = vmatpush1.bf16.msra.mxu0 %v1671
        %1891 = vmatprep.subr.bf16.mxu0 0
        %1892 = vmatpush1.bf16.msra.mxu0 %v1672
        %1893 = vmatprep.subr.bf16.mxu0 0
        %1894 = vmatpush1.bf16.msra.mxu0 %v1673
        %1895 = vmatprep.subr.bf16.mxu0 0
        %1896 = vmatpush1.bf16.msra.mxu0 %v1674
        %1897 = vmatprep.subr.bf16.mxu0 0
        %1898 = vmatpush1.bf16.msra.mxu0 %v1675
        %1899 = vmatprep.subr.bf16.mxu0 0
        %1900 = vmatpush1.bf16.msra.mxu0 %v1676
        %1901 = vmatprep.subr.bf16.mxu0 0
        %1902 = vmatpush1.bf16.msra.mxu0 %v1677
        %1903 = vmatprep.subr.bf16.mxu0 0
        %1904 = vmatpush1.bf16.msra.mxu0 %v1678
        %1905 = vmatprep.subr.bf16.mxu0 0
        %1906 = vmatpush1.bf16.msra.mxu0 %v1679
        %1907 = vmatprep.subr.bf16.mxu0 0
        %1908 = vmatpush1.bf16.msra.mxu0 %v1680
        %1909 = vmatprep.subr.bf16.mxu0 0
        %1910 = vmatpush1.bf16.msra.mxu0 %v1681
        %1911 = vmatprep.subr.bf16.mxu0 0
        %1912 = vmatpush1.bf16.msra.mxu0 %v1682
        %1913 = vmatprep.subr.bf16.mxu0 0
        %1914 = vmatpush1.bf16.msra.mxu0 %v1683
        %1915 = vmatprep.subr.bf16.mxu0 0
        %1916 = vmatpush1.bf16.msra.mxu0 %v1684
        %1917 = vmatprep.mubr.bf16.mxu0 %v1178
        %1918 = vmatmul.mubr.bf16.gmra.mrb[0].mxu0 %v1135
        %v1919 = vpop.f32.mrb[0].mxu0
        %v1920 = vadd.f32 %v1880, %v1919
        %v1921 = vpop.f32.mrb[0].mxu0
        %v1922 = vpop.f32.mrb[0].mxu0
        %v1923 = vpop.f32.mrb[0].mxu0
        %1924 = vdwg.mxu0
        %1925 = vmatprep.subr.bf16.mxu0 0
        %1926 = vmatpush1.bf16.msra.mxu0 %v1685
        %1927 = vmatprep.subr.bf16.mxu0 0
        %1928 = vmatpush1.bf16.msra.mxu0 %v1686
        %1929 = vmatprep.subr.bf16.mxu0 0
        %1930 = vmatpush1.bf16.msra.mxu0 %v1687
        %1931 = vmatprep.subr.bf16.mxu0 0
        %1932 = vmatpush1.bf16.msra.mxu0 %v1688
        %1933 = vmatprep.subr.bf16.mxu0 0
        %1934 = vmatpush1.bf16.msra.mxu0 %v1689
        %1935 = vmatprep.subr.bf16.mxu0 0
        %1936 = vmatpush1.bf16.msra.mxu0 %v1690
        %1937 = vmatprep.subr.bf16.mxu0 0
        %1938 = vmatpush1.bf16.msra.mxu0 %v1691
        %1939 = vmatprep.subr.bf16.mxu0 0
        %1940 = vmatpush1.bf16.msra.mxu0 %v1692
        %1941 = vmatprep.subr.bf16.mxu0 0
        %1942 = vmatpush1.bf16.msra.mxu0 0
        %1943 = vmatprep.subr.bf16.mxu0 0
        %1944 = vmatpush1.bf16.msra.mxu0 0
        %1945 = vmatprep.subr.bf16.mxu0 0
        %1946 = vmatpush1.bf16.msra.mxu0 0
        %1947 = vmatprep.subr.bf16.mxu0 0
        %1948 = vmatpush1.bf16.msra.mxu0 0
        %1949 = vmatprep.subr.bf16.mxu0 0
        %1950 = vmatpush1.bf16.msra.mxu0 0
        %1951 = vmatprep.subr.bf16.mxu0 0
        %1952 = vmatpush1.bf16.msra.mxu0 0
        %1953 = vmatprep.subr.bf16.mxu0 0
        %1954 = vmatpush1.bf16.msra.mxu0 0
        %1955 = vmatprep.subr.bf16.mxu0 0
        %1956 = vmatpush1.bf16.msra.mxu0 0
        %1957 = vmatprep.mubr.bf16.mxu0 0
        %1958 = vmatmul.mubr.bf16.gmra.mrb[0].mxu0 %v1180
        %v1959 = vpop.f32.mrb[0].mxu0
        %v1960 = vadd.f32 %v1920, %v1959
        %v1961 = vpop.f32.mrb[0].mxu0
        %v1962 = vpop.f32.mrb[0].mxu0
        %v1963 = vpop.f32.mrb[0].mxu0
        %1964 = vdwg.mxu0
        %v1965 = vmax.f32 %v1960, 0.0
        %v1966 = vpack.c.bf16 %v1965, %v1965
        %v1968 = vunpack.c.l.b16 %v1966
        %v1969 = vpack.c.b16 %v1968, %v1968
        %v1971 = vshrl.u32 %v1969, 16
        %v1973 = vrot.slane %v1971, 7
        %v1974 = vshll.u32 %v1969, 16
        %v1976 = vor.u32 %v1973, %v1974
        %v1977 = vrot.slane %v1973, 4
        %s1980 = scalar_lea.vmem [#allocation2], 16
        %v1981 = vld [vmem:[%s1980] sm:$0xf]
        %v1982 = vsel %vm1120, %v1976, %v1981
        %1983 = vst [vmem:[%s1980] sm:$0xf] %v1982
        %v1984 = vld [vmem:[%s1980 + $0x4] sm:$0x1]
        %v1985 = vsel %vm1126, %v1977, %v1984
        %1986 = vst [vmem:[%s1980 + $0x4] sm:$0x1] %v1985
        %v1987 = vld [vmem:[%s271] sm:$0xf]
        %v1988 = vld [vmem:[%s271 + $0x4] sm:$0x1]
        %v1989 = vld [vmem:[%s1134] sm:$0xf]
        %v1990 = vld [vmem:[%s1134 + $0x4] sm:$0x1]
        %s1991 = scalar_lea.vmem %s252, 32
        %v1992 = vld [vmem:[%s1991] sm:$0xf]
        %v1993 = vld [vmem:[%s1991 + $0x4] sm:$0x1]
        %v1996 = vunpack.c.l.b16 %v1987
        %v1997 = vunpack.c.l.b16 %v1988
        %v1998 = vpack.c.b16 %v1997, %v1996
        %v2000 = vshrl.u32 %v1998, 16
        %v2002 = vshll.u32 %v1998, 16
        %v2004 = vrot.slane %v2002, 1
        %v2005 = vor.u32 %v2000, %v2004
        %v2007 = vrot.slane %v1998, 1
        %v2011 = vunpack.c.l.b16 %v1989
        %v2012 = vunpack.c.l.b16 %v1990
        %v2013 = vpack.c.b16 %v2012, %v2011
        %v2015 = vshrl.u32 %v2013, 16
        %v2017 = vshll.u32 %v2013, 16
        %v2019 = vrot.slane %v2017, 1
        %v2020 = vor.u32 %v2015, %v2019
        %v2022 = vrot.slane %v2013, 1
        %v2026 = vunpack.c.l.b16 %v1992
        %v2027 = vunpack.c.l.b16 %v1993
        %v2028 = vpack.c.b16 %v2027, %v2026
        %v2030 = vshrl.u32 %v2028, 16
        %v2032 = vshll.u32 %v2028, 16
        %v2034 = vrot.slane %v2032, 1
        %v2035 = vor.u32 %v2030, %v2034
        %v2037 = vrot.slane %v2028, 1
        %v2039 = vld [vmem:[#allocation3] sm:$0xf]
        %v2040 = vld [vmem:[#allocation3 + $0x4] sm:$0xf]
        %v2041 = vld [vmem:[#allocation3 + $0x8] sm:$0xf]
        %v2042 = vld [vmem:[#allocation3 + $0xc] sm:$0xf]
        %v2043 = vld [vmem:[#allocation3 + $0x10] sm:$0xf]
        %v2044 = vld [vmem:[#allocation3 + $0x14] sm:$0xf]
        %v2045 = vld [vmem:[#allocation3 + $0x18] sm:$0xf]
        %v2046 = vld [vmem:[#allocation3 + $0x1c] sm:$0xf]
        %v2047 = vld [vmem:[#allocation3 + $0x20] sm:$0xf]
        %v2048 = vld [vmem:[#allocation3 + $0x24] sm:$0xf]
        %v2049 = vld [vmem:[#allocation3 + $0x28] sm:$0xf]
        %v2050 = vld [vmem:[#allocation3 + $0x2c] sm:$0xf]
        %v2051 = vld [vmem:[#allocation3 + $0x30] sm:$0xf]
        %v2052 = vld [vmem:[#allocation3 + $0x34] sm:$0xf]
        %v2053 = vld [vmem:[#allocation3 + $0x38] sm:$0xf]
        %v2054 = vld [vmem:[#allocation3 + $0x3c] sm:$0xf]
        %v2055 = vld [vmem:[#allocation3 + $0x40] sm:$0xf]
        %v2056 = vld [vmem:[#allocation3 + $0x44] sm:$0xf]
        %v2057 = vld [vmem:[#allocation3 + $0x48] sm:$0xf]
        %v2058 = vld [vmem:[#allocation3 + $0x4c] sm:$0xf]
        %v2059 = vld [vmem:[#allocation3 + $0x50] sm:$0xf]
        %v2060 = vld [vmem:[#allocation3 + $0x54] sm:$0xf]
        %v2061 = vld [vmem:[#allocation3 + $0x58] sm:$0xf]
        %v2062 = vld [vmem:[#allocation3 + $0x5c] sm:$0xf]
        %v2063 = vld [vmem:[#allocation3 + $0x60] sm:$0xf]
        %v2064 = vld [vmem:[#allocation3 + $0x64] sm:$0xf]
        %v2065 = vld [vmem:[#allocation3 + $0x68] sm:$0xf]
        %v2066 = vld [vmem:[#allocation3 + $0x6c] sm:$0xf]
        %v2067 = vld [vmem:[#allocation3 + $0x70] sm:$0xf]
        %v2068 = vld [vmem:[#allocation3 + $0x74] sm:$0xf]
        %v2069 = vld [vmem:[#allocation3 + $0x78] sm:$0xf]
        %v2070 = vld [vmem:[#allocation3 + $0x7c] sm:$0xf]
        %v2071 = vld [vmem:[#allocation3 + $0x80] sm:$0xf]
        %v2072 = vld [vmem:[#allocation3 + $0x84] sm:$0xf]
        %v2073 = vld [vmem:[#allocation3 + $0x88] sm:$0xf]
        %v2074 = vld [vmem:[#allocation3 + $0x8c] sm:$0xf]
        %v2075 = vld [vmem:[#allocation3 + $0x90] sm:$0xf]
        %v2076 = vld [vmem:[#allocation3 + $0x94] sm:$0xf]
        %v2077 = vld [vmem:[#allocation3 + $0x98] sm:$0xf]
        %v2078 = vld [vmem:[#allocation3 + $0x9c] sm:$0xf]
        %v2079 = vld [vmem:[#allocation3 + $0xa0] sm:$0xf]
        %v2080 = vld [vmem:[#allocation3 + $0xa4] sm:$0xf]
        %v2081 = vld [vmem:[#allocation3 + $0xa8] sm:$0xf]
        %v2082 = vld [vmem:[#allocation3 + $0xac] sm:$0xf]
        %v2083 = vld [vmem:[#allocation3 + $0xb0] sm:$0xf]
        %v2084 = vld [vmem:[#allocation3 + $0xb4] sm:$0xf]
        %v2085 = vld [vmem:[#allocation3 + $0xb8] sm:$0xf]
        %v2086 = vld [vmem:[#allocation3 + $0xbc] sm:$0xf]
        %v2087 = vld [vmem:[#allocation3 + $0xc0] sm:$0xf]
        %v2088 = vld [vmem:[#allocation3 + $0xc4] sm:$0xf]
        %v2089 = vld [vmem:[#allocation3 + $0xc8] sm:$0xf]
        %v2090 = vld [vmem:[#allocation3 + $0xcc] sm:$0xf]
        %v2091 = vld [vmem:[#allocation3 + $0xd0] sm:$0xf]
        %v2092 = vld [vmem:[#allocation3 + $0xd4] sm:$0xf]
        %v2093 = vld [vmem:[#allocation3 + $0xd8] sm:$0xf]
        %v2094 = vld [vmem:[#allocation3 + $0xdc] sm:$0xf]
        %v2095 = vld [vmem:[#allocation3 + $0xe0] sm:$0xf]
        %v2096 = vld [vmem:[#allocation3 + $0xe4] sm:$0xf]
        %v2097 = vld [vmem:[#allocation3 + $0xe8] sm:$0xf]
        %v2098 = vld [vmem:[#allocation3 + $0xec] sm:$0xf]
        %v2099 = vld [vmem:[#allocation3 + $0xf0] sm:$0xf]
        %v2100 = vld [vmem:[#allocation3 + $0xf4] sm:$0xf]
        %v2101 = vld [vmem:[#allocation3 + $0xf8] sm:$0xf]
        %v2102 = vld [vmem:[#allocation3 + $0xfc] sm:$0xf]
        %v2103 = vld [vmem:[#allocation3 + $0x100] sm:$0xf]
        %v2104 = vld [vmem:[#allocation3 + $0x104] sm:$0xf]
        %v2105 = vld [vmem:[#allocation3 + $0x108] sm:$0xf]
        %v2106 = vld [vmem:[#allocation3 + $0x10c] sm:$0xf]
        %v2107 = vld [vmem:[#allocation3 + $0x110] sm:$0xf]
        %v2108 = vld [vmem:[#allocation3 + $0x114] sm:$0xf]
        %v2109 = vld [vmem:[#allocation3 + $0x118] sm:$0xf]
        %v2110 = vld [vmem:[#allocation3 + $0x11c] sm:$0xf]
        %v2111 = vld [vmem:[#allocation3 + $0x120] sm:$0xf]
        %v2112 = vld [vmem:[#allocation3 + $0x124] sm:$0xf]
        %v2113 = vld [vmem:[#allocation3 + $0x128] sm:$0xf]
        %v2114 = vld [vmem:[#allocation3 + $0x12c] sm:$0xf]
        %v2115 = vld [vmem:[#allocation3 + $0x130] sm:$0xf]
        %v2116 = vld [vmem:[#allocation3 + $0x134] sm:$0xf]
        %v2117 = vld [vmem:[#allocation3 + $0x138] sm:$0xf]
        %v2118 = vld [vmem:[#allocation3 + $0x13c] sm:$0xf]
        %v2119 = vld [vmem:[#allocation3 + $0x140] sm:$0xf]
        %v2120 = vld [vmem:[#allocation3 + $0x144] sm:$0xf]
        %v2121 = vld [vmem:[#allocation3 + $0x148] sm:$0xf]
        %v2122 = vld [vmem:[#allocation3 + $0x14c] sm:$0xf]
        %v2123 = vld [vmem:[#allocation3 + $0x150] sm:$0xf]
        %v2124 = vld [vmem:[#allocation3 + $0x154] sm:$0xf]
        %v2125 = vld [vmem:[#allocation3 + $0x158] sm:$0xf]
        %v2126 = vld [vmem:[#allocation3 + $0x15c] sm:$0xf]
        %v2127 = vld [vmem:[#allocation3 + $0x160] sm:$0xf]
        %v2128 = vld [vmem:[#allocation3 + $0x164] sm:$0xf]
        %v2129 = vld [vmem:[#allocation3 + $0x168] sm:$0xf]
        %v2130 = vld [vmem:[#allocation3 + $0x16c] sm:$0xf]
        %v2131 = vld [vmem:[#allocation3 + $0x170] sm:$0xf]
        %v2132 = vld [vmem:[#allocation3 + $0x174] sm:$0xf]
        %v2133 = vld [vmem:[#allocation3 + $0x178] sm:$0xf]
        %v2134 = vld [vmem:[#allocation3 + $0x17c] sm:$0xf]
        %v2135 = vld [vmem:[#allocation3 + $0x180] sm:$0xf]
        %v2136 = vld [vmem:[#allocation3 + $0x184] sm:$0xf]
        %v2137 = vld [vmem:[#allocation3 + $0x188] sm:$0xf]
        %v2138 = vld [vmem:[#allocation3 + $0x18c] sm:$0xf]
        %v2139 = vld [vmem:[#allocation3 + $0x190] sm:$0xf]
        %v2140 = vld [vmem:[#allocation3 + $0x194] sm:$0xf]
        %v2141 = vld [vmem:[#allocation3 + $0x198] sm:$0xf]
        %v2142 = vld [vmem:[#allocation3 + $0x19c] sm:$0xf]
        %v2143 = vld [vmem:[#allocation3 + $0x1a0] sm:$0xf]
        %v2144 = vld [vmem:[#allocation3 + $0x1a4] sm:$0xf]
        %v2145 = vld [vmem:[#allocation3 + $0x1a8] sm:$0xf]
        %v2146 = vld [vmem:[#allocation3 + $0x1ac] sm:$0xf]
        %v2147 = vld [vmem:[#allocation3 + $0x1b0] sm:$0xf]
        %v2148 = vld [vmem:[#allocation3 + $0x1b4] sm:$0xf]
        %v2149 = vld [vmem:[#allocation3 + $0x1b8] sm:$0xf]
        %v2150 = vld [vmem:[#allocation3 + $0x1bc] sm:$0xf]
        %v2151 = vld [vmem:[#allocation3 + $0x1c0] sm:$0xf]
        %v2152 = vld [vmem:[#allocation3 + $0x1c4] sm:$0xf]
        %v2153 = vld [vmem:[#allocation3 + $0x1c8] sm:$0xf]
        %v2154 = vld [vmem:[#allocation3 + $0x1cc] sm:$0xf]
        %v2155 = vld [vmem:[#allocation3 + $0x1d0] sm:$0xf]
        %v2156 = vld [vmem:[#allocation3 + $0x1d4] sm:$0xf]
        %v2157 = vld [vmem:[#allocation3 + $0x1d8] sm:$0xf]
        %v2158 = vld [vmem:[#allocation3 + $0x1dc] sm:$0xf]
        %v2159 = vld [vmem:[#allocation3 + $0x1e0] sm:$0xf]
        %v2160 = vld [vmem:[#allocation3 + $0x1e4] sm:$0xf]
        %v2161 = vld [vmem:[#allocation3 + $0x1e8] sm:$0xf]
        %v2162 = vld [vmem:[#allocation3 + $0x1ec] sm:$0xf]
        %v2163 = vld [vmem:[#allocation3 + $0x1f0] sm:$0xf]
        %v2164 = vld [vmem:[#allocation3 + $0x1f4] sm:$0xf]
        %v2165 = vld [vmem:[#allocation3 + $0x1f8] sm:$0xf]
        %v2166 = vld [vmem:[#allocation3 + $0x1fc] sm:$0xf]
        %v2167 = vld [vmem:[#allocation3 + $0x200] sm:$0xf]
        %v2168 = vld [vmem:[#allocation3 + $0x204] sm:$0xf]
        %v2169 = vld [vmem:[#allocation3 + $0x208] sm:$0xf]
        %v2170 = vld [vmem:[#allocation3 + $0x20c] sm:$0xf]
        %v2171 = vld [vmem:[#allocation3 + $0x210] sm:$0xf]
        %v2172 = vld [vmem:[#allocation3 + $0x214] sm:$0xf]
        %v2173 = vld [vmem:[#allocation3 + $0x218] sm:$0xf]
        %v2174 = vld [vmem:[#allocation3 + $0x21c] sm:$0xf]
        %v2175 = vld [vmem:[#allocation3 + $0x220] sm:$0xf]
        %v2176 = vld [vmem:[#allocation3 + $0x224] sm:$0xf]
        %v2177 = vld [vmem:[#allocation3 + $0x228] sm:$0xf]
        %v2178 = vld [vmem:[#allocation3 + $0x22c] sm:$0xf]
        %v2179 = vld [vmem:[#allocation3 + $0x230] sm:$0xf]
        %v2180 = vld [vmem:[#allocation3 + $0x234] sm:$0xf]
        %v2181 = vld [vmem:[#allocation3 + $0x238] sm:$0xf]
        %v2182 = vld [vmem:[#allocation3 + $0x23c] sm:$0xf]
        %v2183 = vld [vmem:[%s2] sm:$0x1]
        %v2185 = vlaneseq
        %v2186 = vshrl.u32 %v2185, 7
        %v2187 = vsub.s32 0, %v2186
        %v2188 = vrot.slane %v2183, %v2187
        %v2334 = vunpack.c.l.b16 %v2039
        %v2335 = vunpack.c.l.b16 %v2040
        %v2336 = vunpack.c.l.b16 %v2041
        %v2337 = vunpack.c.l.b16 %v2042
        %v2338 = vunpack.c.l.b16 %v2043
        %v2339 = vunpack.c.l.b16 %v2044
        %v2340 = vunpack.c.l.b16 %v2045
        %v2341 = vunpack.c.l.b16 %v2046
        %v2342 = vunpack.c.l.b16 %v2047
        %v2343 = vunpack.c.l.b16 %v2048
        %v2344 = vunpack.c.l.b16 %v2049
        %v2345 = vunpack.c.l.b16 %v2050
        %v2346 = vunpack.c.l.b16 %v2051
        %v2347 = vunpack.c.l.b16 %v2052
        %v2348 = vunpack.c.l.b16 %v2053
        %v2349 = vunpack.c.l.b16 %v2054
        %v2350 = vunpack.c.l.b16 %v2055
        %v2351 = vunpack.c.l.b16 %v2056
        %v2352 = vunpack.c.l.b16 %v2057
        %v2353 = vunpack.c.l.b16 %v2058
        %v2354 = vunpack.c.l.b16 %v2059
        %v2355 = vunpack.c.l.b16 %v2060
        %v2356 = vunpack.c.l.b16 %v2061
        %v2357 = vunpack.c.l.b16 %v2062
        %v2358 = vunpack.c.l.b16 %v2063
        %v2359 = vunpack.c.l.b16 %v2064
        %v2360 = vunpack.c.l.b16 %v2065
        %v2361 = vunpack.c.l.b16 %v2066
        %v2362 = vunpack.c.l.b16 %v2067
        %v2363 = vunpack.c.l.b16 %v2068
        %v2364 = vunpack.c.l.b16 %v2069
        %v2365 = vunpack.c.l.b16 %v2070
        %v2366 = vunpack.c.l.b16 %v2071
        %v2367 = vunpack.c.l.b16 %v2072
        %v2368 = vunpack.c.l.b16 %v2073
        %v2369 = vunpack.c.l.b16 %v2074
        %v2370 = vunpack.c.l.b16 %v2075
        %v2371 = vunpack.c.l.b16 %v2076
        %v2372 = vunpack.c.l.b16 %v2077
        %v2373 = vunpack.c.l.b16 %v2078
        %v2374 = vunpack.c.l.b16 %v2079
        %v2375 = vunpack.c.l.b16 %v2080
        %v2376 = vunpack.c.l.b16 %v2081
        %v2377 = vunpack.c.l.b16 %v2082
        %v2378 = vunpack.c.l.b16 %v2083
        %v2379 = vunpack.c.l.b16 %v2084
        %v2380 = vunpack.c.l.b16 %v2085
        %v2381 = vunpack.c.l.b16 %v2086
        %v2382 = vunpack.c.l.b16 %v2087
        %v2383 = vunpack.c.l.b16 %v2088
        %v2384 = vunpack.c.l.b16 %v2089
        %v2385 = vunpack.c.l.b16 %v2090
        %v2386 = vunpack.c.l.b16 %v2091
        %v2387 = vunpack.c.l.b16 %v2092
        %v2388 = vunpack.c.l.b16 %v2093
        %v2389 = vunpack.c.l.b16 %v2094
        %v2390 = vunpack.c.l.b16 %v2095
        %v2391 = vunpack.c.l.b16 %v2096
        %v2392 = vunpack.c.l.b16 %v2097
        %v2393 = vunpack.c.l.b16 %v2098
        %v2394 = vunpack.c.l.b16 %v2099
        %v2395 = vunpack.c.l.b16 %v2100
        %v2396 = vunpack.c.l.b16 %v2101
        %v2397 = vunpack.c.l.b16 %v2102
        %v2398 = vunpack.c.l.b16 %v2103
        %v2399 = vunpack.c.l.b16 %v2104
        %v2400 = vunpack.c.l.b16 %v2105
        %v2401 = vunpack.c.l.b16 %v2106
        %v2402 = vunpack.c.l.b16 %v2107
        %v2403 = vunpack.c.l.b16 %v2108
        %v2404 = vunpack.c.l.b16 %v2109
        %v2405 = vunpack.c.l.b16 %v2110
        %v2406 = vunpack.c.l.b16 %v2111
        %v2407 = vunpack.c.l.b16 %v2112
        %v2408 = vunpack.c.l.b16 %v2113
        %v2409 = vunpack.c.l.b16 %v2114
        %v2410 = vunpack.c.l.b16 %v2115
        %v2411 = vunpack.c.l.b16 %v2116
        %v2412 = vunpack.c.l.b16 %v2117
        %v2413 = vunpack.c.l.b16 %v2118
        %v2414 = vunpack.c.l.b16 %v2119
        %v2415 = vunpack.c.l.b16 %v2120
        %v2416 = vunpack.c.l.b16 %v2121
        %v2417 = vunpack.c.l.b16 %v2122
        %v2418 = vunpack.c.l.b16 %v2123
        %v2419 = vunpack.c.l.b16 %v2124
        %v2420 = vunpack.c.l.b16 %v2125
        %v2421 = vunpack.c.l.b16 %v2126
        %v2422 = vunpack.c.l.b16 %v2127
        %v2423 = vunpack.c.l.b16 %v2128
        %v2424 = vunpack.c.l.b16 %v2129
        %v2425 = vunpack.c.l.b16 %v2130
        %v2426 = vunpack.c.l.b16 %v2131
        %v2427 = vunpack.c.l.b16 %v2132
        %v2428 = vunpack.c.l.b16 %v2133
        %v2429 = vunpack.c.l.b16 %v2134
        %v2430 = vunpack.c.l.b16 %v2135
        %v2431 = vunpack.c.l.b16 %v2136
        %v2432 = vunpack.c.l.b16 %v2137
        %v2433 = vunpack.c.l.b16 %v2138
        %v2434 = vunpack.c.l.b16 %v2139
        %v2435 = vunpack.c.l.b16 %v2140
        %v2436 = vunpack.c.l.b16 %v2141
        %v2437 = vunpack.c.l.b16 %v2142
        %v2438 = vunpack.c.l.b16 %v2143
        %v2439 = vunpack.c.l.b16 %v2144
        %v2440 = vunpack.c.l.b16 %v2145
        %v2441 = vunpack.c.l.b16 %v2146
        %v2442 = vunpack.c.l.b16 %v2147
        %v2443 = vunpack.c.l.b16 %v2148
        %v2444 = vunpack.c.l.b16 %v2149
        %v2445 = vunpack.c.l.b16 %v2150
        %v2446 = vunpack.c.l.b16 %v2151
        %v2447 = vunpack.c.l.b16 %v2152
        %v2448 = vunpack.c.l.b16 %v2153
        %v2449 = vunpack.c.l.b16 %v2154
        %v2450 = vunpack.c.l.b16 %v2155
        %v2451 = vunpack.c.l.b16 %v2156
        %v2452 = vunpack.c.l.b16 %v2157
        %v2453 = vunpack.c.l.b16 %v2158
        %v2454 = vunpack.c.l.b16 %v2159
        %v2455 = vunpack.c.l.b16 %v2160
        %v2456 = vunpack.c.l.b16 %v2161
        %v2457 = vunpack.c.l.b16 %v2162
        %v2458 = vunpack.c.l.b16 %v2163
        %v2459 = vunpack.c.l.b16 %v2164
        %v2460 = vunpack.c.l.b16 %v2165
        %v2461 = vunpack.c.l.b16 %v2166
        %v2462 = vunpack.c.l.b16 %v2167
        %v2463 = vunpack.c.l.b16 %v2168
        %v2464 = vunpack.c.l.b16 %v2169
        %v2465 = vunpack.c.l.b16 %v2170
        %v2466 = vunpack.c.l.b16 %v2171
        %v2467 = vunpack.c.l.b16 %v2172
        %v2468 = vunpack.c.l.b16 %v2173
        %v2469 = vunpack.c.l.b16 %v2174
        %v2470 = vunpack.c.l.b16 %v2175
        %v2471 = vunpack.c.l.b16 %v2176
        %v2472 = vunpack.c.l.b16 %v2177
        %v2473 = vunpack.c.l.b16 %v2178
        %v2474 = vunpack.c.l.b16 %v2179
        %v2475 = vunpack.c.l.b16 %v2180
        %v2476 = vunpack.c.l.b16 %v2181
        %v2477 = vunpack.c.l.b16 %v2182
        %v2478 = vpack.c.b16 %v2335, %v2334
        %v2479 = vpack.c.b16 %v2337, %v2336
        %v2480 = vpack.c.b16 %v2339, %v2338
        %v2481 = vpack.c.b16 %v2341, %v2340
        %v2482 = vpack.c.b16 %v2343, %v2342
        %v2483 = vpack.c.b16 %v2345, %v2344
        %v2484 = vpack.c.b16 %v2347, %v2346
        %v2485 = vpack.c.b16 %v2349, %v2348
        %v2486 = vpack.c.b16 %v2351, %v2350
        %v2487 = vpack.c.b16 %v2353, %v2352
        %v2488 = vpack.c.b16 %v2355, %v2354
        %v2489 = vpack.c.b16 %v2357, %v2356
        %v2490 = vpack.c.b16 %v2359, %v2358
        %v2491 = vpack.c.b16 %v2361, %v2360
        %v2492 = vpack.c.b16 %v2363, %v2362
        %v2493 = vpack.c.b16 %v2365, %v2364
        %v2494 = vpack.c.b16 %v2367, %v2366
        %v2495 = vpack.c.b16 %v2369, %v2368
        %v2496 = vpack.c.b16 %v2371, %v2370
        %v2497 = vpack.c.b16 %v2373, %v2372
        %v2498 = vpack.c.b16 %v2375, %v2374
        %v2499 = vpack.c.b16 %v2377, %v2376
        %v2500 = vpack.c.b16 %v2379, %v2378
        %v2501 = vpack.c.b16 %v2381, %v2380
        %v2502 = vpack.c.b16 %v2383, %v2382
        %v2503 = vpack.c.b16 %v2385, %v2384
        %v2504 = vpack.c.b16 %v2387, %v2386
        %v2505 = vpack.c.b16 %v2389, %v2388
        %v2506 = vpack.c.b16 %v2391, %v2390
        %v2507 = vpack.c.b16 %v2393, %v2392
        %v2508 = vpack.c.b16 %v2395, %v2394
        %v2509 = vpack.c.b16 %v2397, %v2396
        %v2510 = vpack.c.b16 %v2399, %v2398
        %v2511 = vpack.c.b16 %v2401, %v2400
        %v2512 = vpack.c.b16 %v2403, %v2402
        %v2513 = vpack.c.b16 %v2405, %v2404
        %v2514 = vpack.c.b16 %v2407, %v2406
        %v2515 = vpack.c.b16 %v2409, %v2408
        %v2516 = vpack.c.b16 %v2411, %v2410
        %v2517 = vpack.c.b16 %v2413, %v2412
        %v2518 = vpack.c.b16 %v2415, %v2414
        %v2519 = vpack.c.b16 %v2417, %v2416
        %v2520 = vpack.c.b16 %v2419, %v2418
        %v2521 = vpack.c.b16 %v2421, %v2420
        %v2522 = vpack.c.b16 %v2423, %v2422
        %v2523 = vpack.c.b16 %v2425, %v2424
        %v2524 = vpack.c.b16 %v2427, %v2426
        %v2525 = vpack.c.b16 %v2429, %v2428
        %v2526 = vpack.c.b16 %v2431, %v2430
        %v2527 = vpack.c.b16 %v2433, %v2432
        %v2528 = vpack.c.b16 %v2435, %v2434
        %v2529 = vpack.c.b16 %v2437, %v2436
        %v2530 = vpack.c.b16 %v2439, %v2438
        %v2531 = vpack.c.b16 %v2441, %v2440
        %v2532 = vpack.c.b16 %v2443, %v2442
        %v2533 = vpack.c.b16 %v2445, %v2444
        %v2534 = vpack.c.b16 %v2447, %v2446
        %v2535 = vpack.c.b16 %v2449, %v2448
        %v2536 = vpack.c.b16 %v2451, %v2450
        %v2537 = vpack.c.b16 %v2453, %v2452
        %v2538 = vpack.c.b16 %v2455, %v2454
        %v2539 = vpack.c.b16 %v2457, %v2456
        %v2540 = vpack.c.b16 %v2459, %v2458
        %v2541 = vpack.c.b16 %v2461, %v2460
        %v2542 = vpack.c.b16 %v2463, %v2462
        %v2543 = vpack.c.b16 %v2465, %v2464
        %v2544 = vpack.c.b16 %v2467, %v2466
        %v2545 = vpack.c.b16 %v2469, %v2468
        %v2546 = vpack.c.b16 %v2471, %v2470
        %v2547 = vpack.c.b16 %v2473, %v2472
        %v2548 = vpack.c.b16 %v2475, %v2474
        %v2549 = vpack.c.b16 %v2477, %v2476
        %2622 = vmatprep.subr.bf16.mxu0 0
        %2623 = vmatpush1.bf16.msra.mxu0 %v2478
        %2624 = vmatprep.subr.bf16.mxu0 0
        %2625 = vmatpush1.bf16.msra.mxu0 %v2479
        %2626 = vmatprep.subr.bf16.mxu0 0
        %2627 = vmatpush1.bf16.msra.mxu0 %v2480
        %2628 = vmatprep.subr.bf16.mxu0 0
        %2629 = vmatpush1.bf16.msra.mxu0 %v2481
        %2630 = vmatprep.subr.bf16.mxu0 0
        %2631 = vmatpush1.bf16.msra.mxu0 %v2482
        %2632 = vmatprep.subr.bf16.mxu0 0
        %2633 = vmatpush1.bf16.msra.mxu0 %v2483
        %2634 = vmatprep.subr.bf16.mxu0 0
        %2635 = vmatpush1.bf16.msra.mxu0 %v2484
        %2636 = vmatprep.subr.bf16.mxu0 0
        %2637 = vmatpush1.bf16.msra.mxu0 %v2485
        %2638 = vmatprep.subr.bf16.mxu0 0
        %2639 = vmatpush1.bf16.msra.mxu0 %v2486
        %2640 = vmatprep.subr.bf16.mxu0 0
        %2641 = vmatpush1.bf16.msra.mxu0 %v2487
        %2642 = vmatprep.subr.bf16.mxu0 0
        %2643 = vmatpush1.bf16.msra.mxu0 %v2488
        %2644 = vmatprep.subr.bf16.mxu0 0
        %2645 = vmatpush1.bf16.msra.mxu0 %v2489
        %2646 = vmatprep.subr.bf16.mxu0 0
        %2647 = vmatpush1.bf16.msra.mxu0 %v2490
        %2648 = vmatprep.subr.bf16.mxu0 0
        %2649 = vmatpush1.bf16.msra.mxu0 %v2491
        %2650 = vmatprep.subr.bf16.mxu0 0
        %2651 = vmatpush1.bf16.msra.mxu0 %v2492
        %2652 = vmatprep.subr.bf16.mxu0 0
        %2653 = vmatpush1.bf16.msra.mxu0 %v2493
        %2654 = vmatprep.mubr.bf16.mxu0 %v2005
        %2655 = vmatmul.mubr.bf16.gmra.mrb[0].mxu0 %v1987
        %v2656 = vpop.f32.mrb[0].mxu0
        %v2657 = vadd.f32 %v2188, %v2656
        %v2658 = vpop.f32.mrb[0].mxu0
        %v2659 = vpop.f32.mrb[0].mxu0
        %v2660 = vpop.f32.mrb[0].mxu0
        %2661 = vdwg.mxu0
        %2662 = vmatprep.subr.bf16.mxu0 0
        %2663 = vmatpush1.bf16.msra.mxu0 %v2494
        %2664 = vmatprep.subr.bf16.mxu0 0
        %2665 = vmatpush1.bf16.msra.mxu0 %v2495
        %2666 = vmatprep.subr.bf16.mxu0 0
        %2667 = vmatpush1.bf16.msra.mxu0 %v2496
        %2668 = vmatprep.subr.bf16.mxu0 0
        %2669 = vmatpush1.bf16.msra.mxu0 %v2497
        %2670 = vmatprep.subr.bf16.mxu0 0
        %2671 = vmatpush1.bf16.msra.mxu0 %v2498
        %2672 = vmatprep.subr.bf16.mxu0 0
        %2673 = vmatpush1.bf16.msra.mxu0 %v2499
        %2674 = vmatprep.subr.bf16.mxu0 0
        %2675 = vmatpush1.bf16.msra.mxu0 %v2500
        %2676 = vmatprep.subr.bf16.mxu0 0
        %2677 = vmatpush1.bf16.msra.mxu0 %v2501
        %2678 = vmatprep.subr.bf16.mxu0 0
        %2679 = vmatpush1.bf16.msra.mxu0 %v2502
        %2680 = vmatprep.subr.bf16.mxu0 0
        %2681 = vmatpush1.bf16.msra.mxu0 %v2503
        %2682 = vmatprep.subr.bf16.mxu0 0
        %2683 = vmatpush1.bf16.msra.mxu0 %v2504
        %2684 = vmatprep.subr.bf16.mxu0 0
        %2685 = vmatpush1.bf16.msra.mxu0 %v2505
        %2686 = vmatprep.subr.bf16.mxu0 0
        %2687 = vmatpush1.bf16.msra.mxu0 %v2506
        %2688 = vmatprep.subr.bf16.mxu0 0
        %2689 = vmatpush1.bf16.msra.mxu0 %v2507
        %2690 = vmatprep.subr.bf16.mxu0 0
        %2691 = vmatpush1.bf16.msra.mxu0 %v2508
        %2692 = vmatprep.subr.bf16.mxu0 0
        %2693 = vmatpush1.bf16.msra.mxu0 %v2509
        %2694 = vmatprep.mubr.bf16.mxu0 %v1989
        %2695 = vmatmul.mubr.bf16.gmra.mrb[0].mxu0 %v2007
        %v2696 = vpop.f32.mrb[0].mxu0
        %v2697 = vadd.f32 %v2657, %v2696
        %v2698 = vpop.f32.mrb[0].mxu0
        %v2699 = vpop.f32.mrb[0].mxu0
        %v2700 = vpop.f32.mrb[0].mxu0
        %2701 = vdwg.mxu0
        %2702 = vmatprep.subr.bf16.mxu0 0
        %2703 = vmatpush1.bf16.msra.mxu0 %v2510
        %2704 = vmatprep.subr.bf16.mxu0 0
        %2705 = vmatpush1.bf16.msra.mxu0 %v2511
        %2706 = vmatprep.subr.bf16.mxu0 0
        %2707 = vmatpush1.bf16.msra.mxu0 %v2512
        %2708 = vmatprep.subr.bf16.mxu0 0
        %2709 = vmatpush1.bf16.msra.mxu0 %v2513
        %2710 = vmatprep.subr.bf16.mxu0 0
        %2711 = vmatpush1.bf16.msra.mxu0 %v2514
        %2712 = vmatprep.subr.bf16.mxu0 0
        %2713 = vmatpush1.bf16.msra.mxu0 %v2515
        %2714 = vmatprep.subr.bf16.mxu0 0
        %2715 = vmatpush1.bf16.msra.mxu0 %v2516
        %2716 = vmatprep.subr.bf16.mxu0 0
        %2717 = vmatpush1.bf16.msra.mxu0 %v2517
        %2718 = vmatprep.subr.bf16.mxu0 0
        %2719 = vmatpush1.bf16.msra.mxu0 %v2518
        %2720 = vmatprep.subr.bf16.mxu0 0
        %2721 = vmatpush1.bf16.msra.mxu0 %v2519
        %2722 = vmatprep.subr.bf16.mxu0 0
        %2723 = vmatpush1.bf16.msra.mxu0 %v2520
        %2724 = vmatprep.subr.bf16.mxu0 0
        %2725 = vmatpush1.bf16.msra.mxu0 %v2521
        %2726 = vmatprep.subr.bf16.mxu0 0
        %2727 = vmatpush1.bf16.msra.mxu0 %v2522
        %2728 = vmatprep.subr.bf16.mxu0 0
        %2729 = vmatpush1.bf16.msra.mxu0 %v2523
        %2730 = vmatprep.subr.bf16.mxu0 0
        %2731 = vmatpush1.bf16.msra.mxu0 %v2524
        %2732 = vmatprep.subr.bf16.mxu0 0
        %2733 = vmatpush1.bf16.msra.mxu0 %v2525
        %2734 = vmatprep.mubr.bf16.mxu0 %v2022
        %2735 = vmatmul.mubr.bf16.gmra.mrb[0].mxu0 %v2020
        %v2736 = vpop.f32.mrb[0].mxu0
        %v2737 = vadd.f32 %v2697, %v2736
        %v2738 = vpop.f32.mrb[0].mxu0
        %v2739 = vpop.f32.mrb[0].mxu0
        %v2740 = vpop.f32.mrb[0].mxu0
        %2741 = vdwg.mxu0
        %2742 = vmatprep.subr.bf16.mxu0 0
        %2743 = vmatpush1.bf16.msra.mxu0 %v2526
        %2744 = vmatprep.subr.bf16.mxu0 0
        %2745 = vmatpush1.bf16.msra.mxu0 %v2527
        %2746 = vmatprep.subr.bf16.mxu0 0
        %2747 = vmatpush1.bf16.msra.mxu0 %v2528
        %2748 = vmatprep.subr.bf16.mxu0 0
        %2749 = vmatpush1.bf16.msra.mxu0 %v2529
        %2750 = vmatprep.subr.bf16.mxu0 0
        %2751 = vmatpush1.bf16.msra.mxu0 %v2530
        %2752 = vmatprep.subr.bf16.mxu0 0
        %2753 = vmatpush1.bf16.msra.mxu0 %v2531
        %2754 = vmatprep.subr.bf16.mxu0 0
        %2755 = vmatpush1.bf16.msra.mxu0 %v2532
        %2756 = vmatprep.subr.bf16.mxu0 0
        %2757 = vmatpush1.bf16.msra.mxu0 %v2533
        %2758 = vmatprep.subr.bf16.mxu0 0
        %2759 = vmatpush1.bf16.msra.mxu0 %v2534
        %2760 = vmatprep.subr.bf16.mxu0 0
        %2761 = vmatpush1.bf16.msra.mxu0 %v2535
        %2762 = vmatprep.subr.bf16.mxu0 0
        %2763 = vmatpush1.bf16.msra.mxu0 %v2536
        %2764 = vmatprep.subr.bf16.mxu0 0
        %2765 = vmatpush1.bf16.msra.mxu0 %v2537
        %2766 = vmatprep.subr.bf16.mxu0 0
        %2767 = vmatpush1.bf16.msra.mxu0 %v2538
        %2768 = vmatprep.subr.bf16.mxu0 0
        %2769 = vmatpush1.bf16.msra.mxu0 %v2539
        %2770 = vmatprep.subr.bf16.mxu0 0
        %2771 = vmatpush1.bf16.msra.mxu0 %v2540
        %2772 = vmatprep.subr.bf16.mxu0 0
        %2773 = vmatpush1.bf16.msra.mxu0 %v2541
        %2774 = vmatprep.mubr.bf16.mxu0 %v2035
        %2775 = vmatmul.mubr.bf16.gmra.mrb[0].mxu0 %v1992
        %v2776 = vpop.f32.mrb[0].mxu0
        %v2777 = vadd.f32 %v2737, %v2776
        %v2778 = vpop.f32.mrb[0].mxu0
        %v2779 = vpop.f32.mrb[0].mxu0
        %v2780 = vpop.f32.mrb[0].mxu0
        %2781 = vdwg.mxu0
        %2782 = vmatprep.subr.bf16.mxu0 0
        %2783 = vmatpush1.bf16.msra.mxu0 %v2542
        %2784 = vmatprep.subr.bf16.mxu0 0
        %2785 = vmatpush1.bf16.msra.mxu0 %v2543
        %2786 = vmatprep.subr.bf16.mxu0 0
        %2787 = vmatpush1.bf16.msra.mxu0 %v2544
        %2788 = vmatprep.subr.bf16.mxu0 0
        %2789 = vmatpush1.bf16.msra.mxu0 %v2545
        %2790 = vmatprep.subr.bf16.mxu0 0
        %2791 = vmatpush1.bf16.msra.mxu0 %v2546
        %2792 = vmatprep.subr.bf16.mxu0 0
        %2793 = vmatpush1.bf16.msra.mxu0 %v2547
        %2794 = vmatprep.subr.bf16.mxu0 0
        %2795 = vmatpush1.bf16.msra.mxu0 %v2548
        %2796 = vmatprep.subr.bf16.mxu0 0
        %2797 = vmatpush1.bf16.msra.mxu0 %v2549
        %2798 = vmatprep.subr.bf16.mxu0 0
        %2799 = vmatpush1.bf16.msra.mxu0 0
        %2800 = vmatprep.subr.bf16.mxu0 0
        %2801 = vmatpush1.bf16.msra.mxu0 0
        %2802 = vmatprep.subr.bf16.mxu0 0
        %2803 = vmatpush1.bf16.msra.mxu0 0
        %2804 = vmatprep.subr.bf16.mxu0 0
        %2805 = vmatpush1.bf16.msra.mxu0 0
        %2806 = vmatprep.subr.bf16.mxu0 0
        %2807 = vmatpush1.bf16.msra.mxu0 0
        %2808 = vmatprep.subr.bf16.mxu0 0
        %2809 = vmatpush1.bf16.msra.mxu0 0
        %2810 = vmatprep.subr.bf16.mxu0 0
        %2811 = vmatpush1.bf16.msra.mxu0 0
        %2812 = vmatprep.subr.bf16.mxu0 0
        %2813 = vmatpush1.bf16.msra.mxu0 0
        %2814 = vmatprep.mubr.bf16.mxu0 0
        %2815 = vmatmul.mubr.bf16.gmra.mrb[0].mxu0 %v2037
        %v2816 = vpop.f32.mrb[0].mxu0
        %v2817 = vadd.f32 %v2777, %v2816
        %v2818 = vpop.f32.mrb[0].mxu0
        %v2819 = vpop.f32.mrb[0].mxu0
        %v2820 = vpop.f32.mrb[0].mxu0
        %2821 = vdwg.mxu0
        %v2822 = vmax.f32 %v2817, 0.0
        %v2823 = vpack.c.bf16 %v2822, %v2822
        %v2825 = vunpack.c.l.b16 %v2823
        %v2826 = vpack.c.b16 %v2825, %v2825
        %v2828 = vshrl.u32 %v2826, 16
        %v2830 = vrot.slane %v2828, 7
        %v2831 = vshll.u32 %v2826, 16
        %v2833 = vor.u32 %v2830, %v2831
        %v2834 = vrot.slane %v2830, 4
        %s2837 = scalar_lea.vmem [#allocation2], 24
        %v2838 = vld [vmem:[%s2837] sm:$0xf]
        %v2839 = vsel %vm1120, %v2833, %v2838
        %2840 = vst [vmem:[%s2837] sm:$0xf] %v2839
        %v2841 = vld [vmem:[%s2837 + $0x4] sm:$0x1]
        %v2842 = vsel %vm1126, %v2834, %v2841
        %2843 = vst [vmem:[%s2837 + $0x4] sm:$0x1] %v2842
        %v2844 = vld [vmem:[%s1134] sm:$0xf]
        %v2845 = vld [vmem:[%s1134 + $0x4] sm:$0x1]
        %v2846 = vld [vmem:[%s1991] sm:$0xf]
        %v2847 = vld [vmem:[%s1991 + $0x4] sm:$0x1]
        %s2848 = scalar_lea.vmem %s252, 40
        %v2849 = vld [vmem:[%s2848] sm:$0xf]
        %v2850 = vld [vmem:[%s2848 + $0x4] sm:$0x1]
        %v2853 = vunpack.c.l.b16 %v2844
        %v2854 = vunpack.c.l.b16 %v2845
        %v2855 = vpack.c.b16 %v2854, %v2853
        %v2857 = vshrl.u32 %v2855, 16
        %v2859 = vshll.u32 %v2855, 16
        %v2861 = vrot.slane %v2859, 1
        %v2862 = vor.u32 %v2857, %v2861
        %v2864 = vrot.slane %v2855, 1
        %v2868 = vunpack.c.l.b16 %v2846
        %v2869 = vunpack.c.l.b16 %v2847
        %v2870 = vpack.c.b16 %v2869, %v2868
        %v2872 = vshrl.u32 %v2870, 16
        %v2874 = vshll.u32 %v2870, 16
        %v2876 = vrot.slane %v2874, 1
        %v2877 = vor.u32 %v2872, %v2876
        %v2879 = vrot.slane %v2870, 1
        %v2883 = vunpack.c.l.b16 %v2849
        %v2884 = vunpack.c.l.b16 %v2850
        %v2885 = vpack.c.b16 %v2884, %v2883
        %v2887 = vshrl.u32 %v2885, 16
        %v2889 = vshll.u32 %v2885, 16
        %v2891 = vrot.slane %v2889, 1
        %v2892 = vor.u32 %v2887, %v2891
        %v2894 = vrot.slane %v2885, 1
        %v2896 = vld [vmem:[#allocation3] sm:$0xf]
        %v2897 = vld [vmem:[#allocation3 + $0x4] sm:$0xf]
        %v2898 = vld [vmem:[#allocation3 + $0x8] sm:$0xf]
        %v2899 = vld [vmem:[#allocation3 + $0xc] sm:$0xf]
        %v2900 = vld [vmem:[#allocation3 + $0x10] sm:$0xf]
        %v2901 = vld [vmem:[#allocation3 + $0x14] sm:$0xf]
        %v2902 = vld [vmem:[#allocation3 + $0x18] sm:$0xf]
        %v2903 = vld [vmem:[#allocation3 + $0x1c] sm:$0xf]
        %v2904 = vld [vmem:[#allocation3 + $0x20] sm:$0xf]
        %v2905 = vld [vmem:[#allocation3 + $0x24] sm:$0xf]
        %v2906 = vld [vmem:[#allocation3 + $0x28] sm:$0xf]
        %v2907 = vld [vmem:[#allocation3 + $0x2c] sm:$0xf]
        %v2908 = vld [vmem:[#allocation3 + $0x30] sm:$0xf]
        %v2909 = vld [vmem:[#allocation3 + $0x34] sm:$0xf]
        %v2910 = vld [vmem:[#allocation3 + $0x38] sm:$0xf]
        %v2911 = vld [vmem:[#allocation3 + $0x3c] sm:$0xf]
        %v2912 = vld [vmem:[#allocation3 + $0x40] sm:$0xf]
        %v2913 = vld [vmem:[#allocation3 + $0x44] sm:$0xf]
        %v2914 = vld [vmem:[#allocation3 + $0x48] sm:$0xf]
        %v2915 = vld [vmem:[#allocation3 + $0x4c] sm:$0xf]
        %v2916 = vld [vmem:[#allocation3 + $0x50] sm:$0xf]
        %v2917 = vld [vmem:[#allocation3 + $0x54] sm:$0xf]
        %v2918 = vld [vmem:[#allocation3 + $0x58] sm:$0xf]
        %v2919 = vld [vmem:[#allocation3 + $0x5c] sm:$0xf]
        %v2920 = vld [vmem:[#allocation3 + $0x60] sm:$0xf]
        %v2921 = vld [vmem:[#allocation3 + $0x64] sm:$0xf]
        %v2922 = vld [vmem:[#allocation3 + $0x68] sm:$0xf]
        %v2923 = vld [vmem:[#allocation3 + $0x6c] sm:$0xf]
        %v2924 = vld [vmem:[#allocation3 + $0x70] sm:$0xf]
        %v2925 = vld [vmem:[#allocation3 + $0x74] sm:$0xf]
        %v2926 = vld [vmem:[#allocation3 + $0x78] sm:$0xf]
        %v2927 = vld [vmem:[#allocation3 + $0x7c] sm:$0xf]
        %v2928 = vld [vmem:[#allocation3 + $0x80] sm:$0xf]
        %v2929 = vld [vmem:[#allocation3 + $0x84] sm:$0xf]
        %v2930 = vld [vmem:[#allocation3 + $0x88] sm:$0xf]
        %v2931 = vld [vmem:[#allocation3 + $0x8c] sm:$0xf]
        %v2932 = vld [vmem:[#allocation3 + $0x90] sm:$0xf]
        %v2933 = vld [vmem:[#allocation3 + $0x94] sm:$0xf]
        %v2934 = vld [vmem:[#allocation3 + $0x98] sm:$0xf]
        %v2935 = vld [vmem:[#allocation3 + $0x9c] sm:$0xf]
        %v2936 = vld [vmem:[#allocation3 + $0xa0] sm:$0xf]
        %v2937 = vld [vmem:[#allocation3 + $0xa4] sm:$0xf]
        %v2938 = vld [vmem:[#allocation3 + $0xa8] sm:$0xf]
        %v2939 = vld [vmem:[#allocation3 + $0xac] sm:$0xf]
        %v2940 = vld [vmem:[#allocation3 + $0xb0] sm:$0xf]
        %v2941 = vld [vmem:[#allocation3 + $0xb4] sm:$0xf]
        %v2942 = vld [vmem:[#allocation3 + $0xb8] sm:$0xf]
        %v2943 = vld [vmem:[#allocation3 + $0xbc] sm:$0xf]
        %v2944 = vld [vmem:[#allocation3 + $0xc0] sm:$0xf]
        %v2945 = vld [vmem:[#allocation3 + $0xc4] sm:$0xf]
        %v2946 = vld [vmem:[#allocation3 + $0xc8] sm:$0xf]
        %v2947 = vld [vmem:[#allocation3 + $0xcc] sm:$0xf]
        %v2948 = vld [vmem:[#allocation3 + $0xd0] sm:$0xf]
        %v2949 = vld [vmem:[#allocation3 + $0xd4] sm:$0xf]
        %v2950 = vld [vmem:[#allocation3 + $0xd8] sm:$0xf]
        %v2951 = vld [vmem:[#allocation3 + $0xdc] sm:$0xf]
        %v2952 = vld [vmem:[#allocation3 + $0xe0] sm:$0xf]
        %v2953 = vld [vmem:[#allocation3 + $0xe4] sm:$0xf]
        %v2954 = vld [vmem:[#allocation3 + $0xe8] sm:$0xf]
        %v2955 = vld [vmem:[#allocation3 + $0xec] sm:$0xf]
        %v2956 = vld [vmem:[#allocation3 + $0xf0] sm:$0xf]
        %v2957 = vld [vmem:[#allocation3 + $0xf4] sm:$0xf]
        %v2958 = vld [vmem:[#allocation3 + $0xf8] sm:$0xf]
        %v2959 = vld [vmem:[#allocation3 + $0xfc] sm:$0xf]
        %v2960 = vld [vmem:[#allocation3 + $0x100] sm:$0xf]
        %v2961 = vld [vmem:[#allocation3 + $0x104] sm:$0xf]
        %v2962 = vld [vmem:[#allocation3 + $0x108] sm:$0xf]
        %v2963 = vld [vmem:[#allocation3 + $0x10c] sm:$0xf]
        %v2964 = vld [vmem:[#allocation3 + $0x110] sm:$0xf]
        %v2965 = vld [vmem:[#allocation3 + $0x114] sm:$0xf]
        %v2966 = vld [vmem:[#allocation3 + $0x118] sm:$0xf]
        %v2967 = vld [vmem:[#allocation3 + $0x11c] sm:$0xf]
        %v2968 = vld [vmem:[#allocation3 + $0x120] sm:$0xf]
        %v2969 = vld [vmem:[#allocation3 + $0x124] sm:$0xf]
        %v2970 = vld [vmem:[#allocation3 + $0x128] sm:$0xf]
        %v2971 = vld [vmem:[#allocation3 + $0x12c] sm:$0xf]
        %v2972 = vld [vmem:[#allocation3 + $0x130] sm:$0xf]
        %v2973 = vld [vmem:[#allocation3 + $0x134] sm:$0xf]
        %v2974 = vld [vmem:[#allocation3 + $0x138] sm:$0xf]
        %v2975 = vld [vmem:[#allocation3 + $0x13c] sm:$0xf]
        %v2976 = vld [vmem:[#allocation3 + $0x140] sm:$0xf]
        %v2977 = vld [vmem:[#allocation3 + $0x144] sm:$0xf]
        %v2978 = vld [vmem:[#allocation3 + $0x148] sm:$0xf]
        %v2979 = vld [vmem:[#allocation3 + $0x14c] sm:$0xf]
        %v2980 = vld [vmem:[#allocation3 + $0x150] sm:$0xf]
        %v2981 = vld [vmem:[#allocation3 + $0x154] sm:$0xf]
        %v2982 = vld [vmem:[#allocation3 + $0x158] sm:$0xf]
        %v2983 = vld [vmem:[#allocation3 + $0x15c] sm:$0xf]
        %v2984 = vld [vmem:[#allocation3 + $0x160] sm:$0xf]
        %v2985 = vld [vmem:[#allocation3 + $0x164] sm:$0xf]
        %v2986 = vld [vmem:[#allocation3 + $0x168] sm:$0xf]
        %v2987 = vld [vmem:[#allocation3 + $0x16c] sm:$0xf]
        %v2988 = vld [vmem:[#allocation3 + $0x170] sm:$0xf]
        %v2989 = vld [vmem:[#allocation3 + $0x174] sm:$0xf]
        %v2990 = vld [vmem:[#allocation3 + $0x178] sm:$0xf]
        %v2991 = vld [vmem:[#allocation3 + $0x17c] sm:$0xf]
        %v2992 = vld [vmem:[#allocation3 + $0x180] sm:$0xf]
        %v2993 = vld [vmem:[#allocation3 + $0x184] sm:$0xf]
        %v2994 = vld [vmem:[#allocation3 + $0x188] sm:$0xf]
        %v2995 = vld [vmem:[#allocation3 + $0x18c] sm:$0xf]
        %v2996 = vld [vmem:[#allocation3 + $0x190] sm:$0xf]
        %v2997 = vld [vmem:[#allocation3 + $0x194] sm:$0xf]
        %v2998 = vld [vmem:[#allocation3 + $0x198] sm:$0xf]
        %v2999 = vld [vmem:[#allocation3 + $0x19c] sm:$0xf]
        %v3000 = vld [vmem:[#allocation3 + $0x1a0] sm:$0xf]
        %v3001 = vld [vmem:[#allocation3 + $0x1a4] sm:$0xf]
        %v3002 = vld [vmem:[#allocation3 + $0x1a8] sm:$0xf]
        %v3003 = vld [vmem:[#allocation3 + $0x1ac] sm:$0xf]
        %v3004 = vld [vmem:[#allocation3 + $0x1b0] sm:$0xf]
        %v3005 = vld [vmem:[#allocation3 + $0x1b4] sm:$0xf]
        %v3006 = vld [vmem:[#allocation3 + $0x1b8] sm:$0xf]
        %v3007 = vld [vmem:[#allocation3 + $0x1bc] sm:$0xf]
        %v3008 = vld [vmem:[#allocation3 + $0x1c0] sm:$0xf]
        %v3009 = vld [vmem:[#allocation3 + $0x1c4] sm:$0xf]
        %v3010 = vld [vmem:[#allocation3 + $0x1c8] sm:$0xf]
        %v3011 = vld [vmem:[#allocation3 + $0x1cc] sm:$0xf]
        %v3012 = vld [vmem:[#allocation3 + $0x1d0] sm:$0xf]
        %v3013 = vld [vmem:[#allocation3 + $0x1d4] sm:$0xf]
        %v3014 = vld [vmem:[#allocation3 + $0x1d8] sm:$0xf]
        %v3015 = vld [vmem:[#allocation3 + $0x1dc] sm:$0xf]
        %v3016 = vld [vmem:[#allocation3 + $0x1e0] sm:$0xf]
        %v3017 = vld [vmem:[#allocation3 + $0x1e4] sm:$0xf]
        %v3018 = vld [vmem:[#allocation3 + $0x1e8] sm:$0xf]
        %v3019 = vld [vmem:[#allocation3 + $0x1ec] sm:$0xf]
        %v3020 = vld [vmem:[#allocation3 + $0x1f0] sm:$0xf]
        %v3021 = vld [vmem:[#allocation3 + $0x1f4] sm:$0xf]
        %v3022 = vld [vmem:[#allocation3 + $0x1f8] sm:$0xf]
        %v3023 = vld [vmem:[#allocation3 + $0x1fc] sm:$0xf]
        %v3024 = vld [vmem:[#allocation3 + $0x200] sm:$0xf]
        %v3025 = vld [vmem:[#allocation3 + $0x204] sm:$0xf]
        %v3026 = vld [vmem:[#allocation3 + $0x208] sm:$0xf]
        %v3027 = vld [vmem:[#allocation3 + $0x20c] sm:$0xf]
        %v3028 = vld [vmem:[#allocation3 + $0x210] sm:$0xf]
        %v3029 = vld [vmem:[#allocation3 + $0x214] sm:$0xf]
        %v3030 = vld [vmem:[#allocation3 + $0x218] sm:$0xf]
        %v3031 = vld [vmem:[#allocation3 + $0x21c] sm:$0xf]
        %v3032 = vld [vmem:[#allocation3 + $0x220] sm:$0xf]
        %v3033 = vld [vmem:[#allocation3 + $0x224] sm:$0xf]
        %v3034 = vld [vmem:[#allocation3 + $0x228] sm:$0xf]
        %v3035 = vld [vmem:[#allocation3 + $0x22c] sm:$0xf]
        %v3036 = vld [vmem:[#allocation3 + $0x230] sm:$0xf]
        %v3037 = vld [vmem:[#allocation3 + $0x234] sm:$0xf]
        %v3038 = vld [vmem:[#allocation3 + $0x238] sm:$0xf]
        %v3039 = vld [vmem:[#allocation3 + $0x23c] sm:$0xf]
        %v3040 = vld [vmem:[%s2] sm:$0x1]
        %v3042 = vlaneseq
        %v3043 = vshrl.u32 %v3042, 7
        %v3044 = vsub.s32 0, %v3043
        %v3045 = vrot.slane %v3040, %v3044
        %v3191 = vunpack.c.l.b16 %v2896
        %v3192 = vunpack.c.l.b16 %v2897
        %v3193 = vunpack.c.l.b16 %v2898
        %v3194 = vunpack.c.l.b16 %v2899
        %v3195 = vunpack.c.l.b16 %v2900
        %v3196 = vunpack.c.l.b16 %v2901
        %v3197 = vunpack.c.l.b16 %v2902
        %v3198 = vunpack.c.l.b16 %v2903
        %v3199 = vunpack.c.l.b16 %v2904
        %v3200 = vunpack.c.l.b16 %v2905
        %v3201 = vunpack.c.l.b16 %v2906
        %v3202 = vunpack.c.l.b16 %v2907
        %v3203 = vunpack.c.l.b16 %v2908
        %v3204 = vunpack.c.l.b16 %v2909
        %v3205 = vunpack.c.l.b16 %v2910
        %v3206 = vunpack.c.l.b16 %v2911
        %v3207 = vunpack.c.l.b16 %v2912
        %v3208 = vunpack.c.l.b16 %v2913
        %v3209 = vunpack.c.l.b16 %v2914
        %v3210 = vunpack.c.l.b16 %v2915
        %v3211 = vunpack.c.l.b16 %v2916
        %v3212 = vunpack.c.l.b16 %v2917
        %v3213 = vunpack.c.l.b16 %v2918
        %v3214 = vunpack.c.l.b16 %v2919
        %v3215 = vunpack.c.l.b16 %v2920
        %v3216 = vunpack.c.l.b16 %v2921
        %v3217 = vunpack.c.l.b16 %v2922
        %v3218 = vunpack.c.l.b16 %v2923
        %v3219 = vunpack.c.l.b16 %v2924
        %v3220 = vunpack.c.l.b16 %v2925
        %v3221 = vunpack.c.l.b16 %v2926
        %v3222 = vunpack.c.l.b16 %v2927
        %v3223 = vunpack.c.l.b16 %v2928
        %v3224 = vunpack.c.l.b16 %v2929
        %v3225 = vunpack.c.l.b16 %v2930
        %v3226 = vunpack.c.l.b16 %v2931
        %v3227 = vunpack.c.l.b16 %v2932
        %v3228 = vunpack.c.l.b16 %v2933
        %v3229 = vunpack.c.l.b16 %v2934
        %v3230 = vunpack.c.l.b16 %v2935
        %v3231 = vunpack.c.l.b16 %v2936
        %v3232 = vunpack.c.l.b16 %v2937
        %v3233 = vunpack.c.l.b16 %v2938
        %v3234 = vunpack.c.l.b16 %v2939
        %v3235 = vunpack.c.l.b16 %v2940
        %v3236 = vunpack.c.l.b16 %v2941
        %v3237 = vunpack.c.l.b16 %v2942
        %v3238 = vunpack.c.l.b16 %v2943
        %v3239 = vunpack.c.l.b16 %v2944
        %v3240 = vunpack.c.l.b16 %v2945
        %v3241 = vunpack.c.l.b16 %v2946
        %v3242 = vunpack.c.l.b16 %v2947
        %v3243 = vunpack.c.l.b16 %v2948
        %v3244 = vunpack.c.l.b16 %v2949
        %v3245 = vunpack.c.l.b16 %v2950
        %v3246 = vunpack.c.l.b16 %v2951
        %v3247 = vunpack.c.l.b16 %v2952
        %v3248 = vunpack.c.l.b16 %v2953
        %v3249 = vunpack.c.l.b16 %v2954
        %v3250 = vunpack.c.l.b16 %v2955
        %v3251 = vunpack.c.l.b16 %v2956
        %v3252 = vunpack.c.l.b16 %v2957
        %v3253 = vunpack.c.l.b16 %v2958
        %v3254 = vunpack.c.l.b16 %v2959
        %v3255 = vunpack.c.l.b16 %v2960
        %v3256 = vunpack.c.l.b16 %v2961
        %v3257 = vunpack.c.l.b16 %v2962
        %v3258 = vunpack.c.l.b16 %v2963
        %v3259 = vunpack.c.l.b16 %v2964
        %v3260 = vunpack.c.l.b16 %v2965
        %v3261 = vunpack.c.l.b16 %v2966
        %v3262 = vunpack.c.l.b16 %v2967
        %v3263 = vunpack.c.l.b16 %v2968
        %v3264 = vunpack.c.l.b16 %v2969
        %v3265 = vunpack.c.l.b16 %v2970
        %v3266 = vunpack.c.l.b16 %v2971
        %v3267 = vunpack.c.l.b16 %v2972
        %v3268 = vunpack.c.l.b16 %v2973
        %v3269 = vunpack.c.l.b16 %v2974
        %v3270 = vunpack.c.l.b16 %v2975
        %v3271 = vunpack.c.l.b16 %v2976
        %v3272 = vunpack.c.l.b16 %v2977
        %v3273 = vunpack.c.l.b16 %v2978
        %v3274 = vunpack.c.l.b16 %v2979
        %v3275 = vunpack.c.l.b16 %v2980
        %v3276 = vunpack.c.l.b16 %v2981
        %v3277 = vunpack.c.l.b16 %v2982
        %v3278 = vunpack.c.l.b16 %v2983
        %v3279 = vunpack.c.l.b16 %v2984
        %v3280 = vunpack.c.l.b16 %v2985
        %v3281 = vunpack.c.l.b16 %v2986
        %v3282 = vunpack.c.l.b16 %v2987
        %v3283 = vunpack.c.l.b16 %v2988
        %v3284 = vunpack.c.l.b16 %v2989
        %v3285 = vunpack.c.l.b16 %v2990
        %v3286 = vunpack.c.l.b16 %v2991
        %v3287 = vunpack.c.l.b16 %v2992
        %v3288 = vunpack.c.l.b16 %v2993
        %v3289 = vunpack.c.l.b16 %v2994
        %v3290 = vunpack.c.l.b16 %v2995
        %v3291 = vunpack.c.l.b16 %v2996
        %v3292 = vunpack.c.l.b16 %v2997
        %v3293 = vunpack.c.l.b16 %v2998
        %v3294 = vunpack.c.l.b16 %v2999
        %v3295 = vunpack.c.l.b16 %v3000
        %v3296 = vunpack.c.l.b16 %v3001
        %v3297 = vunpack.c.l.b16 %v3002
        %v3298 = vunpack.c.l.b16 %v3003
        %v3299 = vunpack.c.l.b16 %v3004
        %v3300 = vunpack.c.l.b16 %v3005
        %v3301 = vunpack.c.l.b16 %v3006
        %v3302 = vunpack.c.l.b16 %v3007
        %v3303 = vunpack.c.l.b16 %v3008
        %v3304 = vunpack.c.l.b16 %v3009
        %v3305 = vunpack.c.l.b16 %v3010
        %v3306 = vunpack.c.l.b16 %v3011
        %v3307 = vunpack.c.l.b16 %v3012
        %v3308 = vunpack.c.l.b16 %v3013
        %v3309 = vunpack.c.l.b16 %v3014
        %v3310 = vunpack.c.l.b16 %v3015
        %v3311 = vunpack.c.l.b16 %v3016
        %v3312 = vunpack.c.l.b16 %v3017
        %v3313 = vunpack.c.l.b16 %v3018
        %v3314 = vunpack.c.l.b16 %v3019
        %v3315 = vunpack.c.l.b16 %v3020
        %v3316 = vunpack.c.l.b16 %v3021
        %v3317 = vunpack.c.l.b16 %v3022
        %v3318 = vunpack.c.l.b16 %v3023
        %v3319 = vunpack.c.l.b16 %v3024
        %v3320 = vunpack.c.l.b16 %v3025
        %v3321 = vunpack.c.l.b16 %v3026
        %v3322 = vunpack.c.l.b16 %v3027
        %v3323 = vunpack.c.l.b16 %v3028
        %v3324 = vunpack.c.l.b16 %v3029
        %v3325 = vunpack.c.l.b16 %v3030
        %v3326 = vunpack.c.l.b16 %v3031
        %v3327 = vunpack.c.l.b16 %v3032
        %v3328 = vunpack.c.l.b16 %v3033
        %v3329 = vunpack.c.l.b16 %v3034
        %v3330 = vunpack.c.l.b16 %v3035
        %v3331 = vunpack.c.l.b16 %v3036
        %v3332 = vunpack.c.l.b16 %v3037
        %v3333 = vunpack.c.l.b16 %v3038
        %v3334 = vunpack.c.l.b16 %v3039
        %v3335 = vpack.c.b16 %v3192, %v3191
        %v3336 = vpack.c.b16 %v3194, %v3193
        %v3337 = vpack.c.b16 %v3196, %v3195
        %v3338 = vpack.c.b16 %v3198, %v3197
        %v3339 = vpack.c.b16 %v3200, %v3199
        %v3340 = vpack.c.b16 %v3202, %v3201
        %v3341 = vpack.c.b16 %v3204, %v3203
        %v3342 = vpack.c.b16 %v3206, %v3205
        %v3343 = vpack.c.b16 %v3208, %v3207
        %v3344 = vpack.c.b16 %v3210, %v3209
        %v3345 = vpack.c.b16 %v3212, %v3211
        %v3346 = vpack.c.b16 %v3214, %v3213
        %v3347 = vpack.c.b16 %v3216, %v3215
        %v3348 = vpack.c.b16 %v3218, %v3217
        %v3349 = vpack.c.b16 %v3220, %v3219
        %v3350 = vpack.c.b16 %v3222, %v3221
        %v3351 = vpack.c.b16 %v3224, %v3223
        %v3352 = vpack.c.b16 %v3226, %v3225
        %v3353 = vpack.c.b16 %v3228, %v3227
        %v3354 = vpack.c.b16 %v3230, %v3229
        %v3355 = vpack.c.b16 %v3232, %v3231
        %v3356 = vpack.c.b16 %v3234, %v3233
        %v3357 = vpack.c.b16 %v3236, %v3235
        %v3358 = vpack.c.b16 %v3238, %v3237
        %v3359 = vpack.c.b16 %v3240, %v3239
        %v3360 = vpack.c.b16 %v3242, %v3241
        %v3361 = vpack.c.b16 %v3244, %v3243
        %v3362 = vpack.c.b16 %v3246, %v3245
        %v3363 = vpack.c.b16 %v3248, %v3247
        %v3364 = vpack.c.b16 %v3250, %v3249
        %v3365 = vpack.c.b16 %v3252, %v3251
        %v3366 = vpack.c.b16 %v3254, %v3253
        %v3367 = vpack.c.b16 %v3256, %v3255
        %v3368 = vpack.c.b16 %v3258, %v3257
        %v3369 = vpack.c.b16 %v3260, %v3259
        %v3370 = vpack.c.b16 %v3262, %v3261
        %v3371 = vpack.c.b16 %v3264, %v3263
        %v3372 = vpack.c.b16 %v3266, %v3265
        %v3373 = vpack.c.b16 %v3268, %v3267
        %v3374 = vpack.c.b16 %v3270, %v3269
        %v3375 = vpack.c.b16 %v3272, %v3271
        %v3376 = vpack.c.b16 %v3274, %v3273
        %v3377 = vpack.c.b16 %v3276, %v3275
        %v3378 = vpack.c.b16 %v3278, %v3277
        %v3379 = vpack.c.b16 %v3280, %v3279
        %v3380 = vpack.c.b16 %v3282, %v3281
        %v3381 = vpack.c.b16 %v3284, %v3283
        %v3382 = vpack.c.b16 %v3286, %v3285
        %v3383 = vpack.c.b16 %v3288, %v3287
        %v3384 = vpack.c.b16 %v3290, %v3289
        %v3385 = vpack.c.b16 %v3292, %v3291
        %v3386 = vpack.c.b16 %v3294, %v3293
        %v3387 = vpack.c.b16 %v3296, %v3295
        %v3388 = vpack.c.b16 %v3298, %v3297
        %v3389 = vpack.c.b16 %v3300, %v3299
        %v3390 = vpack.c.b16 %v3302, %v3301
        %v3391 = vpack.c.b16 %v3304, %v3303
        %v3392 = vpack.c.b16 %v3306, %v3305
        %v3393 = vpack.c.b16 %v3308, %v3307
        %v3394 = vpack.c.b16 %v3310, %v3309
        %v3395 = vpack.c.b16 %v3312, %v3311
        %v3396 = vpack.c.b16 %v3314, %v3313
        %v3397 = vpack.c.b16 %v3316, %v3315
        %v3398 = vpack.c.b16 %v3318, %v3317
        %v3399 = vpack.c.b16 %v3320, %v3319
        %v3400 = vpack.c.b16 %v3322, %v3321
        %v3401 = vpack.c.b16 %v3324, %v3323
        %v3402 = vpack.c.b16 %v3326, %v3325
        %v3403 = vpack.c.b16 %v3328, %v3327
        %v3404 = vpack.c.b16 %v3330, %v3329
        %v3405 = vpack.c.b16 %v3332, %v3331
        %v3406 = vpack.c.b16 %v3334, %v3333
        %3479 = vmatprep.subr.bf16.mxu0 0
        %3480 = vmatpush1.bf16.msra.mxu0 %v3335
        %3481 = vmatprep.subr.bf16.mxu0 0
        %3482 = vmatpush1.bf16.msra.mxu0 %v3336
        %3483 = vmatprep.subr.bf16.mxu0 0
        %3484 = vmatpush1.bf16.msra.mxu0 %v3337
        %3485 = vmatprep.subr.bf16.mxu0 0
        %3486 = vmatpush1.bf16.msra.mxu0 %v3338
        %3487 = vmatprep.subr.bf16.mxu0 0
        %3488 = vmatpush1.bf16.msra.mxu0 %v3339
        %3489 = vmatprep.subr.bf16.mxu0 0
        %3490 = vmatpush1.bf16.msra.mxu0 %v3340
        %3491 = vmatprep.subr.bf16.mxu0 0
        %3492 = vmatpush1.bf16.msra.mxu0 %v3341
        %3493 = vmatprep.subr.bf16.mxu0 0
        %3494 = vmatpush1.bf16.msra.mxu0 %v3342
        %3495 = vmatprep.subr.bf16.mxu0 0
        %3496 = vmatpush1.bf16.msra.mxu0 %v3343
        %3497 = vmatprep.subr.bf16.mxu0 0
        %3498 = vmatpush1.bf16.msra.mxu0 %v3344
        %3499 = vmatprep.subr.bf16.mxu0 0
        %3500 = vmatpush1.bf16.msra.mxu0 %v3345
        %3501 = vmatprep.subr.bf16.mxu0 0
        %3502 = vmatpush1.bf16.msra.mxu0 %v3346
        %3503 = vmatprep.subr.bf16.mxu0 0
        %3504 = vmatpush1.bf16.msra.mxu0 %v3347
        %3505 = vmatprep.subr.bf16.mxu0 0
        %3506 = vmatpush1.bf16.msra.mxu0 %v3348
        %3507 = vmatprep.subr.bf16.mxu0 0
        %3508 = vmatpush1.bf16.msra.mxu0 %v3349
        %3509 = vmatprep.subr.bf16.mxu0 0
        %3510 = vmatpush1.bf16.msra.mxu0 %v3350
        %3511 = vmatprep.mubr.bf16.mxu0 %v2862
        %3512 = vmatmul.mubr.bf16.gmra.mrb[0].mxu0 %v2844
        %v3513 = vpop.f32.mrb[0].mxu0
        %v3514 = vadd.f32 %v3045, %v3513
        %v3515 = vpop.f32.mrb[0].mxu0
        %v3516 = vpop.f32.mrb[0].mxu0
        %v3517 = vpop.f32.mrb[0].mxu0
        %3518 = vdwg.mxu0
        %3519 = vmatprep.subr.bf16.mxu0 0
        %3520 = vmatpush1.bf16.msra.mxu0 %v3351
        %3521 = vmatprep.subr.bf16.mxu0 0
        %3522 = vmatpush1.bf16.msra.mxu0 %v3352
        %3523 = vmatprep.subr.bf16.mxu0 0
        %3524 = vmatpush1.bf16.msra.mxu0 %v3353
        %3525 = vmatprep.subr.bf16.mxu0 0
        %3526 = vmatpush1.bf16.msra.mxu0 %v3354
        %3527 = vmatprep.subr.bf16.mxu0 0
        %3528 = vmatpush1.bf16.msra.mxu0 %v3355
        %3529 = vmatprep.subr.bf16.mxu0 0
        %3530 = vmatpush1.bf16.msra.mxu0 %v3356
        %3531 = vmatprep.subr.bf16.mxu0 0
        %3532 = vmatpush1.bf16.msra.mxu0 %v3357
        %3533 = vmatprep.subr.bf16.mxu0 0
        %3534 = vmatpush1.bf16.msra.mxu0 %v3358
        %3535 = vmatprep.subr.bf16.mxu0 0
        %3536 = vmatpush1.bf16.msra.mxu0 %v3359
        %3537 = vmatprep.subr.bf16.mxu0 0
        %3538 = vmatpush1.bf16.msra.mxu0 %v3360
        %3539 = vmatprep.subr.bf16.mxu0 0
        %3540 = vmatpush1.bf16.msra.mxu0 %v3361
        %3541 = vmatprep.subr.bf16.mxu0 0
        %3542 = vmatpush1.bf16.msra.mxu0 %v3362
        %3543 = vmatprep.subr.bf16.mxu0 0
        %3544 = vmatpush1.bf16.msra.mxu0 %v3363
        %3545 = vmatprep.subr.bf16.mxu0 0
        %3546 = vmatpush1.bf16.msra.mxu0 %v3364
        %3547 = vmatprep.subr.bf16.mxu0 0
        %3548 = vmatpush1.bf16.msra.mxu0 %v3365
        %3549 = vmatprep.subr.bf16.mxu0 0
        %3550 = vmatpush1.bf16.msra.mxu0 %v3366
        %3551 = vmatprep.mubr.bf16.mxu0 %v2846
        %3552 = vmatmul.mubr.bf16.gmra.mrb[0].mxu0 %v2864
        %v3553 = vpop.f32.mrb[0].mxu0
        %v3554 = vadd.f32 %v3514, %v3553
        %v3555 = vpop.f32.mrb[0].mxu0
        %v3556 = vpop.f32.mrb[0].mxu0
        %v3557 = vpop.f32.mrb[0].mxu0
        %3558 = vdwg.mxu0
        %3559 = vmatprep.subr.bf16.mxu0 0
        %3560 = vmatpush1.bf16.msra.mxu0 %v3367
        %3561 = vmatprep.subr.bf16.mxu0 0
        %3562 = vmatpush1.bf16.msra.mxu0 %v3368
        %3563 = vmatprep.subr.bf16.mxu0 0
        %3564 = vmatpush1.bf16.msra.mxu0 %v3369
        %3565 = vmatprep.subr.bf16.mxu0 0
        %3566 = vmatpush1.bf16.msra.mxu0 %v3370
        %3567 = vmatprep.subr.bf16.mxu0 0
        %3568 = vmatpush1.bf16.msra.mxu0 %v3371
        %3569 = vmatprep.subr.bf16.mxu0 0
        %3570 = vmatpush1.bf16.msra.mxu0 %v3372
        %3571 = vmatprep.subr.bf16.mxu0 0
        %3572 = vmatpush1.bf16.msra.mxu0 %v3373
        %3573 = vmatprep.subr.bf16.mxu0 0
        %3574 = vmatpush1.bf16.msra.mxu0 %v3374
        %3575 = vmatprep.subr.bf16.mxu0 0
        %3576 = vmatpush1.bf16.msra.mxu0 %v3375
        %3577 = vmatprep.subr.bf16.mxu0 0
        %3578 = vmatpush1.bf16.msra.mxu0 %v3376
        %3579 = vmatprep.subr.bf16.mxu0 0
        %3580 = vmatpush1.bf16.msra.mxu0 %v3377
        %3581 = vmatprep.subr.bf16.mxu0 0
        %3582 = vmatpush1.bf16.msra.mxu0 %v3378
        %3583 = vmatprep.subr.bf16.mxu0 0
        %3584 = vmatpush1.bf16.msra.mxu0 %v3379
        %3585 = vmatprep.subr.bf16.mxu0 0
        %3586 = vmatpush1.bf16.msra.mxu0 %v3380
        %3587 = vmatprep.subr.bf16.mxu0 0
        %3588 = vmatpush1.bf16.msra.mxu0 %v3381
        %3589 = vmatprep.subr.bf16.mxu0 0
        %3590 = vmatpush1.bf16.msra.mxu0 %v3382
        %3591 = vmatprep.mubr.bf16.mxu0 %v2879
        %3592 = vmatmul.mubr.bf16.gmra.mrb[0].mxu0 %v2877
        %v3593 = vpop.f32.mrb[0].mxu0
        %v3594 = vadd.f32 %v3554, %v3593
        %v3595 = vpop.f32.mrb[0].mxu0
        %v3596 = vpop.f32.mrb[0].mxu0
        %v3597 = vpop.f32.mrb[0].mxu0
        %3598 = vdwg.mxu0
        %3599 = vmatprep.subr.bf16.mxu0 0
        %3600 = vmatpush1.bf16.msra.mxu0 %v3383
        %3601 = vmatprep.subr.bf16.mxu0 0
        %3602 = vmatpush1.bf16.msra.mxu0 %v3384
        %3603 = vmatprep.subr.bf16.mxu0 0
        %3604 = vmatpush1.bf16.msra.mxu0 %v3385
        %3605 = vmatprep.subr.bf16.mxu0 0
        %3606 = vmatpush1.bf16.msra.mxu0 %v3386
        %3607 = vmatprep.subr.bf16.mxu0 0
        %3608 = vmatpush1.bf16.msra.mxu0 %v3387
        %3609 = vmatprep.subr.bf16.mxu0 0
        %3610 = vmatpush1.bf16.msra.mxu0 %v3388
        %3611 = vmatprep.subr.bf16.mxu0 0
        %3612 = vmatpush1.bf16.msra.mxu0 %v3389
        %3613 = vmatprep.subr.bf16.mxu0 0
        %3614 = vmatpush1.bf16.msra.mxu0 %v3390
        %3615 = vmatprep.subr.bf16.mxu0 0
        %3616 = vmatpush1.bf16.msra.mxu0 %v3391
        %3617 = vmatprep.subr.bf16.mxu0 0
        %3618 = vmatpush1.bf16.msra.mxu0 %v3392
        %3619 = vmatprep.subr.bf16.mxu0 0
        %3620 = vmatpush1.bf16.msra.mxu0 %v3393
        %3621 = vmatprep.subr.bf16.mxu0 0
        %3622 = vmatpush1.bf16.msra.mxu0 %v3394
        %3623 = vmatprep.subr.bf16.mxu0 0
        %3624 = vmatpush1.bf16.msra.mxu0 %v3395
        %3625 = vmatprep.subr.bf16.mxu0 0
        %3626 = vmatpush1.bf16.msra.mxu0 %v3396
        %3627 = vmatprep.subr.bf16.mxu0 0
        %3628 = vmatpush1.bf16.msra.mxu0 %v3397
        %3629 = vmatprep.subr.bf16.mxu0 0
        %3630 = vmatpush1.bf16.msra.mxu0 %v3398
        %3631 = vmatprep.mubr.bf16.mxu0 %v2892
        %3632 = vmatmul.mubr.bf16.gmra.mrb[0].mxu0 %v2849
        %v3633 = vpop.f32.mrb[0].mxu0
        %v3634 = vadd.f32 %v3594, %v3633
        %v3635 = vpop.f32.mrb[0].mxu0
        %v3636 = vpop.f32.mrb[0].mxu0
        %v3637 = vpop.f32.mrb[0].mxu0
        %3638 = vdwg.mxu0
        %3639 = vmatprep.subr.bf16.mxu0 0
        %3640 = vmatpush1.bf16.msra.mxu0 %v3399
        %3641 = vmatprep.subr.bf16.mxu0 0
        %3642 = vmatpush1.bf16.msra.mxu0 %v3400
        %3643 = vmatprep.subr.bf16.mxu0 0
        %3644 = vmatpush1.bf16.msra.mxu0 %v3401
        %3645 = vmatprep.subr.bf16.mxu0 0
        %3646 = vmatpush1.bf16.msra.mxu0 %v3402
        %3647 = vmatprep.subr.bf16.mxu0 0
        %3648 = vmatpush1.bf16.msra.mxu0 %v3403
        %3649 = vmatprep.subr.bf16.mxu0 0
        %3650 = vmatpush1.bf16.msra.mxu0 %v3404
        %3651 = vmatprep.subr.bf16.mxu0 0
        %3652 = vmatpush1.bf16.msra.mxu0 %v3405
        %3653 = vmatprep.subr.bf16.mxu0 0
        %3654 = vmatpush1.bf16.msra.mxu0 %v3406
        %3655 = vmatprep.subr.bf16.mxu0 0
        %3656 = vmatpush1.bf16.msra.mxu0 0
        %3657 = vmatprep.subr.bf16.mxu0 0
        %3658 = vmatpush1.bf16.msra.mxu0 0
        %3659 = vmatprep.subr.bf16.mxu0 0
        %3660 = vmatpush1.bf16.msra.mxu0 0
        %3661 = vmatprep.subr.bf16.mxu0 0
        %3662 = vmatpush1.bf16.msra.mxu0 0
        %3663 = vmatprep.subr.bf16.mxu0 0
        %3664 = vmatpush1.bf16.msra.mxu0 0
        %3665 = vmatprep.subr.bf16.mxu0 0
        %3666 = vmatpush1.bf16.msra.mxu0 0
        %3667 = vmatprep.subr.bf16.mxu0 0
        %3668 = vmatpush1.bf16.msra.mxu0 0
        %3669 = vmatprep.subr.bf16.mxu0 0
        %3670 = vmatpush1.bf16.msra.mxu0 0
        %3671 = vmatprep.mubr.bf16.mxu0 0
        %3672 = vmatmul.mubr.bf16.gmra.mrb[0].mxu0 %v2894
        %v3673 = vpop.f32.mrb[0].mxu0
        %v3674 = vadd.f32 %v3634, %v3673
        %v3675 = vpop.f32.mrb[0].mxu0
        %v3676 = vpop.f32.mrb[0].mxu0
        %v3677 = vpop.f32.mrb[0].mxu0
        %3678 = vdwg.mxu0
        %v3679 = vmax.f32 %v3674, 0.0
        %v3680 = vpack.c.bf16 %v3679, %v3679
        %v3682 = vunpack.c.l.b16 %v3680
        %v3683 = vpack.c.b16 %v3682, %v3682
        %v3685 = vshrl.u32 %v3683, 16
        %v3687 = vrot.slane %v3685, 7
        %v3688 = vshll.u32 %v3683, 16
        %v3690 = vor.u32 %v3687, %v3688
        %v3691 = vrot.slane %v3687, 4
        %s3694 = scalar_lea.vmem [#allocation2], 32
        %v3695 = vld [vmem:[%s3694] sm:$0xf]
        %v3696 = vsel %vm1120, %v3690, %v3695
        %3697 = vst [vmem:[%s3694] sm:$0xf] %v3696
        %v3698 = vld [vmem:[%s3694 + $0x4] sm:$0x1]
        %v3699 = vsel %vm1126, %v3691, %v3698
        %3700 = vst [vmem:[%s3694 + $0x4] sm:$0x1] %v3699
        %v3701 = vld [vmem:[#allocation2] sm:$0xf]
        %v3702 = vld [vmem:[#allocation2 + $0x4] sm:$0x1]
        %v3703 = vld [vmem:[%s1117] sm:$0xf]
        %v3704 = vld [vmem:[%s1117 + $0x4] sm:$0x1]
        %v3705 = vld [vmem:[%s1980] sm:$0xf]
        %v3706 = vld [vmem:[%s1980 + $0x4] sm:$0x1]
        %v3709 = vunpack.c.l.b16 %v3701
        %v3710 = vunpack.c.l.b16 %v3702
        %v3711 = vpack.c.b16 %v3710, %v3709
        %v3713 = vshrl.u32 %v3711, 16
        %v3715 = vshll.u32 %v3711, 16
        %v3717 = vrot.slane %v3715, 1
        %v3718 = vor.u32 %v3713, %v3717
        %v3720 = vrot.slane %v3711, 1
        %v3724 = vunpack.c.l.b16 %v3703
        %v3725 = vunpack.c.l.b16 %v3704
        %v3726 = vpack.c.b16 %v3725, %v3724
        %v3728 = vshrl.u32 %v3726, 16
        %v3730 = vshll.u32 %v3726, 16
        %v3732 = vrot.slane %v3730, 1
        %v3733 = vor.u32 %v3728, %v3732
        %v3735 = vrot.slane %v3726, 1
        %v3739 = vunpack.c.l.b16 %v3705
        %v3740 = vunpack.c.l.b16 %v3706
        %v3741 = vpack.c.b16 %v3740, %v3739
        %v3743 = vshrl.u32 %v3741, 16
        %v3745 = vshll.u32 %v3741, 16
        %v3747 = vrot.slane %v3745, 1
        %v3748 = vor.u32 %v3743, %v3747
        %v3750 = vrot.slane %v3741, 1
        %v3752 = vld [vmem:[#allocation6] sm:$0xf]
        %v3753 = vld [vmem:[#allocation6 + $0x4] sm:$0xf]
        %v3754 = vld [vmem:[#allocation6 + $0x8] sm:$0xf]
        %v3755 = vld [vmem:[#allocation6 + $0xc] sm:$0xf]
        %v3756 = vld [vmem:[#allocation6 + $0x10] sm:$0xf]
        %v3757 = vld [vmem:[#allocation6 + $0x14] sm:$0xf]
        %v3758 = vld [vmem:[#allocation6 + $0x18] sm:$0xf]
        %v3759 = vld [vmem:[#allocation6 + $0x1c] sm:$0xf]
        %v3760 = vld [vmem:[#allocation6 + $0x20] sm:$0xf]
        %v3761 = vld [vmem:[#allocation6 + $0x24] sm:$0xf]
        %v3762 = vld [vmem:[#allocation6 + $0x28] sm:$0xf]
        %v3763 = vld [vmem:[#allocation6 + $0x2c] sm:$0xf]
        %v3764 = vld [vmem:[#allocation6 + $0x30] sm:$0xf]
        %v3765 = vld [vmem:[#allocation6 + $0x34] sm:$0xf]
        %v3766 = vld [vmem:[#allocation6 + $0x38] sm:$0xf]
        %v3767 = vld [vmem:[#allocation6 + $0x3c] sm:$0xf]
        %v3768 = vld [vmem:[#allocation6 + $0x40] sm:$0xf]
        %v3769 = vld [vmem:[#allocation6 + $0x44] sm:$0xf]
        %v3770 = vld [vmem:[#allocation6 + $0x48] sm:$0xf]
        %v3771 = vld [vmem:[#allocation6 + $0x4c] sm:$0xf]
        %v3772 = vld [vmem:[#allocation6 + $0x50] sm:$0xf]
        %v3773 = vld [vmem:[#allocation6 + $0x54] sm:$0xf]
        %v3774 = vld [vmem:[#allocation6 + $0x58] sm:$0xf]
        %v3775 = vld [vmem:[#allocation6 + $0x5c] sm:$0xf]
        %v3776 = vld [vmem:[#allocation6 + $0x60] sm:$0xf]
        %v3777 = vld [vmem:[#allocation6 + $0x64] sm:$0xf]
        %v3778 = vld [vmem:[#allocation6 + $0x68] sm:$0xf]
        %v3779 = vld [vmem:[#allocation6 + $0x6c] sm:$0xf]
        %v3780 = vld [vmem:[#allocation6 + $0x70] sm:$0xf]
        %v3781 = vld [vmem:[#allocation6 + $0x74] sm:$0xf]
        %v3782 = vld [vmem:[#allocation6 + $0x78] sm:$0xf]
        %v3783 = vld [vmem:[#allocation6 + $0x7c] sm:$0xf]
        %v3784 = vld [vmem:[#allocation6 + $0x80] sm:$0xf]
        %v3785 = vld [vmem:[#allocation6 + $0x84] sm:$0xf]
        %v3786 = vld [vmem:[#allocation6 + $0x88] sm:$0xf]
        %v3787 = vld [vmem:[#allocation6 + $0x8c] sm:$0xf]
        %v3788 = vld [vmem:[#allocation6 + $0x90] sm:$0xf]
        %v3789 = vld [vmem:[#allocation6 + $0x94] sm:$0xf]
        %v3790 = vld [vmem:[#allocation6 + $0x98] sm:$0xf]
        %v3791 = vld [vmem:[#allocation6 + $0x9c] sm:$0xf]
        %v3792 = vld [vmem:[#allocation6 + $0xa0] sm:$0xf]
        %v3793 = vld [vmem:[#allocation6 + $0xa4] sm:$0xf]
        %v3794 = vld [vmem:[#allocation6 + $0xa8] sm:$0xf]
        %v3795 = vld [vmem:[#allocation6 + $0xac] sm:$0xf]
        %v3796 = vld [vmem:[#allocation6 + $0xb0] sm:$0xf]
        %v3797 = vld [vmem:[#allocation6 + $0xb4] sm:$0xf]
        %v3798 = vld [vmem:[#allocation6 + $0xb8] sm:$0xf]
        %v3799 = vld [vmem:[#allocation6 + $0xbc] sm:$0xf]
        %v3800 = vld [vmem:[#allocation6 + $0xc0] sm:$0xf]
        %v3801 = vld [vmem:[#allocation6 + $0xc4] sm:$0xf]
        %v3802 = vld [vmem:[#allocation6 + $0xc8] sm:$0xf]
        %v3803 = vld [vmem:[#allocation6 + $0xcc] sm:$0xf]
        %v3804 = vld [vmem:[#allocation6 + $0xd0] sm:$0xf]
        %v3805 = vld [vmem:[#allocation6 + $0xd4] sm:$0xf]
        %v3806 = vld [vmem:[#allocation6 + $0xd8] sm:$0xf]
        %v3807 = vld [vmem:[#allocation6 + $0xdc] sm:$0xf]
        %v3808 = vld [vmem:[#allocation6 + $0xe0] sm:$0xf]
        %v3809 = vld [vmem:[#allocation6 + $0xe4] sm:$0xf]
        %v3810 = vld [vmem:[#allocation6 + $0xe8] sm:$0xf]
        %v3811 = vld [vmem:[#allocation6 + $0xec] sm:$0xf]
        %v3812 = vld [vmem:[#allocation6 + $0xf0] sm:$0xf]
        %v3813 = vld [vmem:[#allocation6 + $0xf4] sm:$0xf]
        %v3814 = vld [vmem:[#allocation6 + $0xf8] sm:$0xf]
        %v3815 = vld [vmem:[#allocation6 + $0xfc] sm:$0xf]
        %v3816 = vld [vmem:[#allocation6 + $0x100] sm:$0xf]
        %v3817 = vld [vmem:[#allocation6 + $0x104] sm:$0xf]
        %v3818 = vld [vmem:[#allocation6 + $0x108] sm:$0xf]
        %v3819 = vld [vmem:[#allocation6 + $0x10c] sm:$0xf]
        %v3820 = vld [vmem:[#allocation6 + $0x110] sm:$0xf]
        %v3821 = vld [vmem:[#allocation6 + $0x114] sm:$0xf]
        %v3822 = vld [vmem:[#allocation6 + $0x118] sm:$0xf]
        %v3823 = vld [vmem:[#allocation6 + $0x11c] sm:$0xf]
        %v3824 = vld [vmem:[#allocation6 + $0x120] sm:$0xf]
        %v3825 = vld [vmem:[#allocation6 + $0x124] sm:$0xf]
        %v3826 = vld [vmem:[#allocation6 + $0x128] sm:$0xf]
        %v3827 = vld [vmem:[#allocation6 + $0x12c] sm:$0xf]
        %v3828 = vld [vmem:[#allocation6 + $0x130] sm:$0xf]
        %v3829 = vld [vmem:[#allocation6 + $0x134] sm:$0xf]
        %v3830 = vld [vmem:[#allocation6 + $0x138] sm:$0xf]
        %v3831 = vld [vmem:[#allocation6 + $0x13c] sm:$0xf]
        %v3832 = vld [vmem:[#allocation6 + $0x140] sm:$0xf]
        %v3833 = vld [vmem:[#allocation6 + $0x144] sm:$0xf]
        %v3834 = vld [vmem:[#allocation6 + $0x148] sm:$0xf]
        %v3835 = vld [vmem:[#allocation6 + $0x14c] sm:$0xf]
        %v3836 = vld [vmem:[#allocation6 + $0x150] sm:$0xf]
        %v3837 = vld [vmem:[#allocation6 + $0x154] sm:$0xf]
        %v3838 = vld [vmem:[#allocation6 + $0x158] sm:$0xf]
        %v3839 = vld [vmem:[#allocation6 + $0x15c] sm:$0xf]
        %v3840 = vld [vmem:[#allocation6 + $0x160] sm:$0xf]
        %v3841 = vld [vmem:[#allocation6 + $0x164] sm:$0xf]
        %v3842 = vld [vmem:[#allocation6 + $0x168] sm:$0xf]
        %v3843 = vld [vmem:[#allocation6 + $0x16c] sm:$0xf]
        %v3844 = vld [vmem:[#allocation6 + $0x170] sm:$0xf]
        %v3845 = vld [vmem:[#allocation6 + $0x174] sm:$0xf]
        %v3846 = vld [vmem:[#allocation6 + $0x178] sm:$0xf]
        %v3847 = vld [vmem:[#allocation6 + $0x17c] sm:$0xf]
        %v3848 = vld [vmem:[#allocation6 + $0x180] sm:$0xf]
        %v3849 = vld [vmem:[#allocation6 + $0x184] sm:$0xf]
        %v3850 = vld [vmem:[#allocation6 + $0x188] sm:$0xf]
        %v3851 = vld [vmem:[#allocation6 + $0x18c] sm:$0xf]
        %v3852 = vld [vmem:[#allocation6 + $0x190] sm:$0xf]
        %v3853 = vld [vmem:[#allocation6 + $0x194] sm:$0xf]
        %v3854 = vld [vmem:[#allocation6 + $0x198] sm:$0xf]
        %v3855 = vld [vmem:[#allocation6 + $0x19c] sm:$0xf]
        %v3856 = vld [vmem:[#allocation6 + $0x1a0] sm:$0xf]
        %v3857 = vld [vmem:[#allocation6 + $0x1a4] sm:$0xf]
        %v3858 = vld [vmem:[#allocation6 + $0x1a8] sm:$0xf]
        %v3859 = vld [vmem:[#allocation6 + $0x1ac] sm:$0xf]
        %v3860 = vld [vmem:[#allocation6 + $0x1b0] sm:$0xf]
        %v3861 = vld [vmem:[#allocation6 + $0x1b4] sm:$0xf]
        %v3862 = vld [vmem:[#allocation6 + $0x1b8] sm:$0xf]
        %v3863 = vld [vmem:[#allocation6 + $0x1bc] sm:$0xf]
        %v3864 = vld [vmem:[#allocation6 + $0x1c0] sm:$0xf]
        %v3865 = vld [vmem:[#allocation6 + $0x1c4] sm:$0xf]
        %v3866 = vld [vmem:[#allocation6 + $0x1c8] sm:$0xf]
        %v3867 = vld [vmem:[#allocation6 + $0x1cc] sm:$0xf]
        %v3868 = vld [vmem:[#allocation6 + $0x1d0] sm:$0xf]
        %v3869 = vld [vmem:[#allocation6 + $0x1d4] sm:$0xf]
        %v3870 = vld [vmem:[#allocation6 + $0x1d8] sm:$0xf]
        %v3871 = vld [vmem:[#allocation6 + $0x1dc] sm:$0xf]
        %v3872 = vld [vmem:[#allocation6 + $0x1e0] sm:$0xf]
        %v3873 = vld [vmem:[#allocation6 + $0x1e4] sm:$0xf]
        %v3874 = vld [vmem:[#allocation6 + $0x1e8] sm:$0xf]
        %v3875 = vld [vmem:[#allocation6 + $0x1ec] sm:$0xf]
        %v3876 = vld [vmem:[#allocation6 + $0x1f0] sm:$0xf]
        %v3877 = vld [vmem:[#allocation6 + $0x1f4] sm:$0xf]
        %v3878 = vld [vmem:[#allocation6 + $0x1f8] sm:$0xf]
        %v3879 = vld [vmem:[#allocation6 + $0x1fc] sm:$0xf]
        %v3880 = vld [vmem:[#allocation6 + $0x200] sm:$0xf]
        %v3881 = vld [vmem:[#allocation6 + $0x204] sm:$0xf]
        %v3882 = vld [vmem:[#allocation6 + $0x208] sm:$0xf]
        %v3883 = vld [vmem:[#allocation6 + $0x20c] sm:$0xf]
        %v3884 = vld [vmem:[#allocation6 + $0x210] sm:$0xf]
        %v3885 = vld [vmem:[#allocation6 + $0x214] sm:$0xf]
        %v3886 = vld [vmem:[#allocation6 + $0x218] sm:$0xf]
        %v3887 = vld [vmem:[#allocation6 + $0x21c] sm:$0xf]
        %v3888 = vld [vmem:[#allocation6 + $0x220] sm:$0xf]
        %v3889 = vld [vmem:[#allocation6 + $0x224] sm:$0xf]
        %v3890 = vld [vmem:[#allocation6 + $0x228] sm:$0xf]
        %v3891 = vld [vmem:[#allocation6 + $0x22c] sm:$0xf]
        %v3892 = vld [vmem:[#allocation6 + $0x230] sm:$0xf]
        %v3893 = vld [vmem:[#allocation6 + $0x234] sm:$0xf]
        %v3894 = vld [vmem:[#allocation6 + $0x238] sm:$0xf]
        %v3895 = vld [vmem:[#allocation6 + $0x23c] sm:$0xf]
        %v3896 = vld [vmem:[%s268] sm:$0xf]
        %v3897 = vld [vmem:[%s268 + $0x4] sm:$0x1]
        %v3898 = vunpack.c.l.bf16 %v3896
        %v3899 = vunpack.c.l.bf16 %v3897
        %v3900 = vld [vmem:[%s4] sm:$0x1]
        %v3902 = vlaneseq
        %v3903 = vshrl.u32 %v3902, 7
        %v3904 = vsub.s32 0, %v3903
        %v3905 = vrot.slane %v3900, %v3904
        %v4051 = vunpack.c.l.b16 %v3752
        %v4052 = vunpack.c.l.b16 %v3753
        %v4053 = vunpack.c.l.b16 %v3754
        %v4054 = vunpack.c.l.b16 %v3755
        %v4055 = vunpack.c.l.b16 %v3756
        %v4056 = vunpack.c.l.b16 %v3757
        %v4057 = vunpack.c.l.b16 %v3758
        %v4058 = vunpack.c.l.b16 %v3759
        %v4059 = vunpack.c.l.b16 %v3760
        %v4060 = vunpack.c.l.b16 %v3761
        %v4061 = vunpack.c.l.b16 %v3762
        %v4062 = vunpack.c.l.b16 %v3763
        %v4063 = vunpack.c.l.b16 %v3764
        %v4064 = vunpack.c.l.b16 %v3765
        %v4065 = vunpack.c.l.b16 %v3766
        %v4066 = vunpack.c.l.b16 %v3767
        %v4067 = vunpack.c.l.b16 %v3768
        %v4068 = vunpack.c.l.b16 %v3769
        %v4069 = vunpack.c.l.b16 %v3770
        %v4070 = vunpack.c.l.b16 %v3771
        %v4071 = vunpack.c.l.b16 %v3772
        %v4072 = vunpack.c.l.b16 %v3773
        %v4073 = vunpack.c.l.b16 %v3774
        %v4074 = vunpack.c.l.b16 %v3775
        %v4075 = vunpack.c.l.b16 %v3776
        %v4076 = vunpack.c.l.b16 %v3777
        %v4077 = vunpack.c.l.b16 %v3778
        %v4078 = vunpack.c.l.b16 %v3779
        %v4079 = vunpack.c.l.b16 %v3780
        %v4080 = vunpack.c.l.b16 %v3781
        %v4081 = vunpack.c.l.b16 %v3782
        %v4082 = vunpack.c.l.b16 %v3783
        %v4083 = vunpack.c.l.b16 %v3784
        %v4084 = vunpack.c.l.b16 %v3785
        %v4085 = vunpack.c.l.b16 %v3786
        %v4086 = vunpack.c.l.b16 %v3787
        %v4087 = vunpack.c.l.b16 %v3788
        %v4088 = vunpack.c.l.b16 %v3789
        %v4089 = vunpack.c.l.b16 %v3790
        %v4090 = vunpack.c.l.b16 %v3791
        %v4091 = vunpack.c.l.b16 %v3792
        %v4092 = vunpack.c.l.b16 %v3793
        %v4093 = vunpack.c.l.b16 %v3794
        %v4094 = vunpack.c.l.b16 %v3795
        %v4095 = vunpack.c.l.b16 %v3796
        %v4096 = vunpack.c.l.b16 %v3797
        %v4097 = vunpack.c.l.b16 %v3798
        %v4098 = vunpack.c.l.b16 %v3799
        %v4099 = vunpack.c.l.b16 %v3800
        %v4100 = vunpack.c.l.b16 %v3801
        %v4101 = vunpack.c.l.b16 %v3802
        %v4102 = vunpack.c.l.b16 %v3803
        %v4103 = vunpack.c.l.b16 %v3804
        %v4104 = vunpack.c.l.b16 %v3805
        %v4105 = vunpack.c.l.b16 %v3806
        %v4106 = vunpack.c.l.b16 %v3807
        %v4107 = vunpack.c.l.b16 %v3808
        %v4108 = vunpack.c.l.b16 %v3809
        %v4109 = vunpack.c.l.b16 %v3810
        %v4110 = vunpack.c.l.b16 %v3811
        %v4111 = vunpack.c.l.b16 %v3812
        %v4112 = vunpack.c.l.b16 %v3813
        %v4113 = vunpack.c.l.b16 %v3814
        %v4114 = vunpack.c.l.b16 %v3815
        %v4115 = vunpack.c.l.b16 %v3816
        %v4116 = vunpack.c.l.b16 %v3817
        %v4117 = vunpack.c.l.b16 %v3818
        %v4118 = vunpack.c.l.b16 %v3819
        %v4119 = vunpack.c.l.b16 %v3820
        %v4120 = vunpack.c.l.b16 %v3821
        %v4121 = vunpack.c.l.b16 %v3822
        %v4122 = vunpack.c.l.b16 %v3823
        %v4123 = vunpack.c.l.b16 %v3824
        %v4124 = vunpack.c.l.b16 %v3825
        %v4125 = vunpack.c.l.b16 %v3826
        %v4126 = vunpack.c.l.b16 %v3827
        %v4127 = vunpack.c.l.b16 %v3828
        %v4128 = vunpack.c.l.b16 %v3829
        %v4129 = vunpack.c.l.b16 %v3830
        %v4130 = vunpack.c.l.b16 %v3831
        %v4131 = vunpack.c.l.b16 %v3832
        %v4132 = vunpack.c.l.b16 %v3833
        %v4133 = vunpack.c.l.b16 %v3834
        %v4134 = vunpack.c.l.b16 %v3835
        %v4135 = vunpack.c.l.b16 %v3836
        %v4136 = vunpack.c.l.b16 %v3837
        %v4137 = vunpack.c.l.b16 %v3838
        %v4138 = vunpack.c.l.b16 %v3839
        %v4139 = vunpack.c.l.b16 %v3840
        %v4140 = vunpack.c.l.b16 %v3841
        %v4141 = vunpack.c.l.b16 %v3842
        %v4142 = vunpack.c.l.b16 %v3843
        %v4143 = vunpack.c.l.b16 %v3844
        %v4144 = vunpack.c.l.b16 %v3845
        %v4145 = vunpack.c.l.b16 %v3846
        %v4146 = vunpack.c.l.b16 %v3847
        %v4147 = vunpack.c.l.b16 %v3848
        %v4148 = vunpack.c.l.b16 %v3849
        %v4149 = vunpack.c.l.b16 %v3850
        %v4150 = vunpack.c.l.b16 %v3851
        %v4151 = vunpack.c.l.b16 %v3852
        %v4152 = vunpack.c.l.b16 %v3853
        %v4153 = vunpack.c.l.b16 %v3854
        %v4154 = vunpack.c.l.b16 %v3855
        %v4155 = vunpack.c.l.b16 %v3856
        %v4156 = vunpack.c.l.b16 %v3857
        %v4157 = vunpack.c.l.b16 %v3858
        %v4158 = vunpack.c.l.b16 %v3859
        %v4159 = vunpack.c.l.b16 %v3860
        %v4160 = vunpack.c.l.b16 %v3861
        %v4161 = vunpack.c.l.b16 %v3862
        %v4162 = vunpack.c.l.b16 %v3863
        %v4163 = vunpack.c.l.b16 %v3864
        %v4164 = vunpack.c.l.b16 %v3865
        %v4165 = vunpack.c.l.b16 %v3866
        %v4166 = vunpack.c.l.b16 %v3867
        %v4167 = vunpack.c.l.b16 %v3868
        %v4168 = vunpack.c.l.b16 %v3869
        %v4169 = vunpack.c.l.b16 %v3870
        %v4170 = vunpack.c.l.b16 %v3871
        %v4171 = vunpack.c.l.b16 %v3872
        %v4172 = vunpack.c.l.b16 %v3873
        %v4173 = vunpack.c.l.b16 %v3874
        %v4174 = vunpack.c.l.b16 %v3875
        %v4175 = vunpack.c.l.b16 %v3876
        %v4176 = vunpack.c.l.b16 %v3877
        %v4177 = vunpack.c.l.b16 %v3878
        %v4178 = vunpack.c.l.b16 %v3879
        %v4179 = vunpack.c.l.b16 %v3880
        %v4180 = vunpack.c.l.b16 %v3881
        %v4181 = vunpack.c.l.b16 %v3882
        %v4182 = vunpack.c.l.b16 %v3883
        %v4183 = vunpack.c.l.b16 %v3884
        %v4184 = vunpack.c.l.b16 %v3885
        %v4185 = vunpack.c.l.b16 %v3886
        %v4186 = vunpack.c.l.b16 %v3887
        %v4187 = vunpack.c.l.b16 %v3888
        %v4188 = vunpack.c.l.b16 %v3889
        %v4189 = vunpack.c.l.b16 %v3890
        %v4190 = vunpack.c.l.b16 %v3891
        %v4191 = vunpack.c.l.b16 %v3892
        %v4192 = vunpack.c.l.b16 %v3893
        %v4193 = vunpack.c.l.b16 %v3894
        %v4194 = vunpack.c.l.b16 %v3895
        %v4195 = vpack.c.b16 %v4052, %v4051
        %v4196 = vpack.c.b16 %v4054, %v4053
        %v4197 = vpack.c.b16 %v4056, %v4055
        %v4198 = vpack.c.b16 %v4058, %v4057
        %v4199 = vpack.c.b16 %v4060, %v4059
        %v4200 = vpack.c.b16 %v4062, %v4061
        %v4201 = vpack.c.b16 %v4064, %v4063
        %v4202 = vpack.c.b16 %v4066, %v4065
        %v4203 = vpack.c.b16 %v4068, %v4067
        %v4204 = vpack.c.b16 %v4070, %v4069
        %v4205 = vpack.c.b16 %v4072, %v4071
        %v4206 = vpack.c.b16 %v4074, %v4073
        %v4207 = vpack.c.b16 %v4076, %v4075
        %v4208 = vpack.c.b16 %v4078, %v4077
        %v4209 = vpack.c.b16 %v4080, %v4079
        %v4210 = vpack.c.b16 %v4082, %v4081
        %v4211 = vpack.c.b16 %v4084, %v4083
        %v4212 = vpack.c.b16 %v4086, %v4085
        %v4213 = vpack.c.b16 %v4088, %v4087
        %v4214 = vpack.c.b16 %v4090, %v4089
        %v4215 = vpack.c.b16 %v4092, %v4091
        %v4216 = vpack.c.b16 %v4094, %v4093
        %v4217 = vpack.c.b16 %v4096, %v4095
        %v4218 = vpack.c.b16 %v4098, %v4097
        %v4219 = vpack.c.b16 %v4100, %v4099
        %v4220 = vpack.c.b16 %v4102, %v4101
        %v4221 = vpack.c.b16 %v4104, %v4103
        %v4222 = vpack.c.b16 %v4106, %v4105
        %v4223 = vpack.c.b16 %v4108, %v4107
        %v4224 = vpack.c.b16 %v4110, %v4109
        %v4225 = vpack.c.b16 %v4112, %v4111
        %v4226 = vpack.c.b16 %v4114, %v4113
        %v4227 = vpack.c.b16 %v4116, %v4115
        %v4228 = vpack.c.b16 %v4118, %v4117
        %v4229 = vpack.c.b16 %v4120, %v4119
        %v4230 = vpack.c.b16 %v4122, %v4121
        %v4231 = vpack.c.b16 %v4124, %v4123
        %v4232 = vpack.c.b16 %v4126, %v4125
        %v4233 = vpack.c.b16 %v4128, %v4127
        %v4234 = vpack.c.b16 %v4130, %v4129
        %v4235 = vpack.c.b16 %v4132, %v4131
        %v4236 = vpack.c.b16 %v4134, %v4133
        %v4237 = vpack.c.b16 %v4136, %v4135
        %v4238 = vpack.c.b16 %v4138, %v4137
        %v4239 = vpack.c.b16 %v4140, %v4139
        %v4240 = vpack.c.b16 %v4142, %v4141
        %v4241 = vpack.c.b16 %v4144, %v4143
        %v4242 = vpack.c.b16 %v4146, %v4145
        %v4243 = vpack.c.b16 %v4148, %v4147
        %v4244 = vpack.c.b16 %v4150, %v4149
        %v4245 = vpack.c.b16 %v4152, %v4151
        %v4246 = vpack.c.b16 %v4154, %v4153
        %v4247 = vpack.c.b16 %v4156, %v4155
        %v4248 = vpack.c.b16 %v4158, %v4157
        %v4249 = vpack.c.b16 %v4160, %v4159
        %v4250 = vpack.c.b16 %v4162, %v4161
        %v4251 = vpack.c.b16 %v4164, %v4163
        %v4252 = vpack.c.b16 %v4166, %v4165
        %v4253 = vpack.c.b16 %v4168, %v4167
        %v4254 = vpack.c.b16 %v4170, %v4169
        %v4255 = vpack.c.b16 %v4172, %v4171
        %v4256 = vpack.c.b16 %v4174, %v4173
        %v4257 = vpack.c.b16 %v4176, %v4175
        %v4258 = vpack.c.b16 %v4178, %v4177
        %v4259 = vpack.c.b16 %v4180, %v4179
        %v4260 = vpack.c.b16 %v4182, %v4181
        %v4261 = vpack.c.b16 %v4184, %v4183
        %v4262 = vpack.c.b16 %v4186, %v4185
        %v4263 = vpack.c.b16 %v4188, %v4187
        %v4264 = vpack.c.b16 %v4190, %v4189
        %v4265 = vpack.c.b16 %v4192, %v4191
        %v4266 = vpack.c.b16 %v4194, %v4193
        %4339 = vmatprep.subr.bf16.mxu0 0
        %4340 = vmatpush1.bf16.msra.mxu0 %v4195
        %4341 = vmatprep.subr.bf16.mxu0 0
        %4342 = vmatpush1.bf16.msra.mxu0 %v4196
        %4343 = vmatprep.subr.bf16.mxu0 0
        %4344 = vmatpush1.bf16.msra.mxu0 %v4197
        %4345 = vmatprep.subr.bf16.mxu0 0
        %4346 = vmatpush1.bf16.msra.mxu0 %v4198
        %4347 = vmatprep.subr.bf16.mxu0 0
        %4348 = vmatpush1.bf16.msra.mxu0 %v4199
        %4349 = vmatprep.subr.bf16.mxu0 0
        %4350 = vmatpush1.bf16.msra.mxu0 %v4200
        %4351 = vmatprep.subr.bf16.mxu0 0
        %4352 = vmatpush1.bf16.msra.mxu0 %v4201
        %4353 = vmatprep.subr.bf16.mxu0 0
        %4354 = vmatpush1.bf16.msra.mxu0 %v4202
        %4355 = vmatprep.subr.bf16.mxu0 0
        %4356 = vmatpush1.bf16.msra.mxu0 %v4203
        %4357 = vmatprep.subr.bf16.mxu0 0
        %4358 = vmatpush1.bf16.msra.mxu0 %v4204
        %4359 = vmatprep.subr.bf16.mxu0 0
        %4360 = vmatpush1.bf16.msra.mxu0 %v4205
        %4361 = vmatprep.subr.bf16.mxu0 0
        %4362 = vmatpush1.bf16.msra.mxu0 %v4206
        %4363 = vmatprep.subr.bf16.mxu0 0
        %4364 = vmatpush1.bf16.msra.mxu0 %v4207
        %4365 = vmatprep.subr.bf16.mxu0 0
        %4366 = vmatpush1.bf16.msra.mxu0 %v4208
        %4367 = vmatprep.subr.bf16.mxu0 0
        %4368 = vmatpush1.bf16.msra.mxu0 %v4209
        %4369 = vmatprep.subr.bf16.mxu0 0
        %4370 = vmatpush1.bf16.msra.mxu0 %v4210
        %4371 = vmatprep.mubr.bf16.mxu0 %v3718
        %4372 = vmatmul.mubr.bf16.gmra.mrb[0].mxu0 %v3701
        %v4373 = vpop.f32.mrb[0].mxu0
        %v4374 = vadd.f32 %v3905, %v4373
        %v4375 = vpop.f32.mrb[0].mxu0
        %v4376 = vpop.f32.mrb[0].mxu0
        %v4377 = vpop.f32.mrb[0].mxu0
        %4378 = vdwg.mxu0
        %4379 = vmatprep.subr.bf16.mxu0 0
        %4380 = vmatpush1.bf16.msra.mxu0 %v4211
        %4381 = vmatprep.subr.bf16.mxu0 0
        %4382 = vmatpush1.bf16.msra.mxu0 %v4212
        %4383 = vmatprep.subr.bf16.mxu0 0
        %4384 = vmatpush1.bf16.msra.mxu0 %v4213
        %4385 = vmatprep.subr.bf16.mxu0 0
        %4386 = vmatpush1.bf16.msra.mxu0 %v4214
        %4387 = vmatprep.subr.bf16.mxu0 0
        %4388 = vmatpush1.bf16.msra.mxu0 %v4215
        %4389 = vmatprep.subr.bf16.mxu0 0
        %4390 = vmatpush1.bf16.msra.mxu0 %v4216
        %4391 = vmatprep.subr.bf16.mxu0 0
        %4392 = vmatpush1.bf16.msra.mxu0 %v4217
        %4393 = vmatprep.subr.bf16.mxu0 0
        %4394 = vmatpush1.bf16.msra.mxu0 %v4218
        %4395 = vmatprep.subr.bf16.mxu0 0
        %4396 = vmatpush1.bf16.msra.mxu0 %v4219
        %4397 = vmatprep.subr.bf16.mxu0 0
        %4398 = vmatpush1.bf16.msra.mxu0 %v4220
        %4399 = vmatprep.subr.bf16.mxu0 0
        %4400 = vmatpush1.bf16.msra.mxu0 %v4221
        %4401 = vmatprep.subr.bf16.mxu0 0
        %4402 = vmatpush1.bf16.msra.mxu0 %v4222
        %4403 = vmatprep.subr.bf16.mxu0 0
        %4404 = vmatpush1.bf16.msra.mxu0 %v4223
        %4405 = vmatprep.subr.bf16.mxu0 0
        %4406 = vmatpush1.bf16.msra.mxu0 %v4224
        %4407 = vmatprep.subr.bf16.mxu0 0
        %4408 = vmatpush1.bf16.msra.mxu0 %v4225
        %4409 = vmatprep.subr.bf16.mxu0 0
        %4410 = vmatpush1.bf16.msra.mxu0 %v4226
        %4411 = vmatprep.mubr.bf16.mxu0 %v3703
        %4412 = vmatmul.mubr.bf16.gmra.mrb[0].mxu0 %v3720
        %v4413 = vpop.f32.mrb[0].mxu0
        %v4414 = vadd.f32 %v4374, %v4413
        %v4415 = vpop.f32.mrb[0].mxu0
        %v4416 = vpop.f32.mrb[0].mxu0
        %v4417 = vpop.f32.mrb[0].mxu0
        %4418 = vdwg.mxu0
        %4419 = vmatprep.subr.bf16.mxu0 0
        %4420 = vmatpush1.bf16.msra.mxu0 %v4227
        %4421 = vmatprep.subr.bf16.mxu0 0
        %4422 = vmatpush1.bf16.msra.mxu0 %v4228
        %4423 = vmatprep.subr.bf16.mxu0 0
        %4424 = vmatpush1.bf16.msra.mxu0 %v4229
        %4425 = vmatprep.subr.bf16.mxu0 0
        %4426 = vmatpush1.bf16.msra.mxu0 %v4230
        %4427 = vmatprep.subr.bf16.mxu0 0
        %4428 = vmatpush1.bf16.msra.mxu0 %v4231
        %4429 = vmatprep.subr.bf16.mxu0 0
        %4430 = vmatpush1.bf16.msra.mxu0 %v4232
        %4431 = vmatprep.subr.bf16.mxu0 0
        %4432 = vmatpush1.bf16.msra.mxu0 %v4233
        %4433 = vmatprep.subr.bf16.mxu0 0
        %4434 = vmatpush1.bf16.msra.mxu0 %v4234
        %4435 = vmatprep.subr.bf16.mxu0 0
        %4436 = vmatpush1.bf16.msra.mxu0 %v4235
        %4437 = vmatprep.subr.bf16.mxu0 0
        %4438 = vmatpush1.bf16.msra.mxu0 %v4236
        %4439 = vmatprep.subr.bf16.mxu0 0
        %4440 = vmatpush1.bf16.msra.mxu0 %v4237
        %4441 = vmatprep.subr.bf16.mxu0 0
        %4442 = vmatpush1.bf16.msra.mxu0 %v4238
        %4443 = vmatprep.subr.bf16.mxu0 0
        %4444 = vmatpush1.bf16.msra.mxu0 %v4239
        %4445 = vmatprep.subr.bf16.mxu0 0
        %4446 = vmatpush1.bf16.msra.mxu0 %v4240
        %4447 = vmatprep.subr.bf16.mxu0 0
        %4448 = vmatpush1.bf16.msra.mxu0 %v4241
        %4449 = vmatprep.subr.bf16.mxu0 0
        %4450 = vmatpush1.bf16.msra.mxu0 %v4242
        %4451 = vmatprep.mubr.bf16.mxu0 %v3735
        %4452 = vmatmul.mubr.bf16.gmra.mrb[0].mxu0 %v3733
        %v4453 = vpop.f32.mrb[0].mxu0
        %v4454 = vadd.f32 %v4414, %v4453
        %v4455 = vpop.f32.mrb[0].mxu0
        %v4456 = vpop.f32.mrb[0].mxu0
        %v4457 = vpop.f32.mrb[0].mxu0
        %4458 = vdwg.mxu0
        %4459 = vmatprep.subr.bf16.mxu0 0
        %4460 = vmatpush1.bf16.msra.mxu0 %v4243
        %4461 = vmatprep.subr.bf16.mxu0 0
        %4462 = vmatpush1.bf16.msra.mxu0 %v4244
        %4463 = vmatprep.subr.bf16.mxu0 0
        %4464 = vmatpush1.bf16.msra.mxu0 %v4245
        %4465 = vmatprep.subr.bf16.mxu0 0
        %4466 = vmatpush1.bf16.msra.mxu0 %v4246
        %4467 = vmatprep.subr.bf16.mxu0 0
        %4468 = vmatpush1.bf16.msra.mxu0 %v4247
        %4469 = vmatprep.subr.bf16.mxu0 0
        %4470 = vmatpush1.bf16.msra.mxu0 %v4248
        %4471 = vmatprep.subr.bf16.mxu0 0
        %4472 = vmatpush1.bf16.msra.mxu0 %v4249
        %4473 = vmatprep.subr.bf16.mxu0 0
        %4474 = vmatpush1.bf16.msra.mxu0 %v4250
        %4475 = vmatprep.subr.bf16.mxu0 0
        %4476 = vmatpush1.bf16.msra.mxu0 %v4251
        %4477 = vmatprep.subr.bf16.mxu0 0
        %4478 = vmatpush1.bf16.msra.mxu0 %v4252
        %4479 = vmatprep.subr.bf16.mxu0 0
        %4480 = vmatpush1.bf16.msra.mxu0 %v4253
        %4481 = vmatprep.subr.bf16.mxu0 0
        %4482 = vmatpush1.bf16.msra.mxu0 %v4254
        %4483 = vmatprep.subr.bf16.mxu0 0
        %4484 = vmatpush1.bf16.msra.mxu0 %v4255
        %4485 = vmatprep.subr.bf16.mxu0 0
        %4486 = vmatpush1.bf16.msra.mxu0 %v4256
        %4487 = vmatprep.subr.bf16.mxu0 0
        %4488 = vmatpush1.bf16.msra.mxu0 %v4257
        %4489 = vmatprep.subr.bf16.mxu0 0
        %4490 = vmatpush1.bf16.msra.mxu0 %v4258
        %4491 = vmatprep.mubr.bf16.mxu0 %v3748
        %4492 = vmatmul.mubr.bf16.gmra.mrb[0].mxu0 %v3705
        %v4493 = vpop.f32.mrb[0].mxu0
        %v4494 = vadd.f32 %v4454, %v4493
        %v4495 = vpop.f32.mrb[0].mxu0
        %v4496 = vpop.f32.mrb[0].mxu0
        %v4497 = vpop.f32.mrb[0].mxu0
        %4498 = vdwg.mxu0
        %4499 = vmatprep.subr.bf16.mxu0 0
        %4500 = vmatpush1.bf16.msra.mxu0 %v4259
        %4501 = vmatprep.subr.bf16.mxu0 0
        %4502 = vmatpush1.bf16.msra.mxu0 %v4260
        %4503 = vmatprep.subr.bf16.mxu0 0
        %4504 = vmatpush1.bf16.msra.mxu0 %v4261
        %4505 = vmatprep.subr.bf16.mxu0 0
        %4506 = vmatpush1.bf16.msra.mxu0 %v4262
        %4507 = vmatprep.subr.bf16.mxu0 0
        %4508 = vmatpush1.bf16.msra.mxu0 %v4263
        %4509 = vmatprep.subr.bf16.mxu0 0
        %4510 = vmatpush1.bf16.msra.mxu0 %v4264
        %4511 = vmatprep.subr.bf16.mxu0 0
        %4512 = vmatpush1.bf16.msra.mxu0 %v4265
        %4513 = vmatprep.subr.bf16.mxu0 0
        %4514 = vmatpush1.bf16.msra.mxu0 %v4266
        %4515 = vmatprep.subr.bf16.mxu0 0
        %4516 = vmatpush1.bf16.msra.mxu0 0
        %4517 = vmatprep.subr.bf16.mxu0 0
        %4518 = vmatpush1.bf16.msra.mxu0 0
        %4519 = vmatprep.subr.bf16.mxu0 0
        %4520 = vmatpush1.bf16.msra.mxu0 0
        %4521 = vmatprep.subr.bf16.mxu0 0
        %4522 = vmatpush1.bf16.msra.mxu0 0
        %4523 = vmatprep.subr.bf16.mxu0 0
        %4524 = vmatpush1.bf16.msra.mxu0 0
        %4525 = vmatprep.subr.bf16.mxu0 0
        %4526 = vmatpush1.bf16.msra.mxu0 0
        %4527 = vmatprep.subr.bf16.mxu0 0
        %4528 = vmatpush1.bf16.msra.mxu0 0
        %4529 = vmatprep.subr.bf16.mxu0 0
        %4530 = vmatpush1.bf16.msra.mxu0 0
        %4531 = vmatprep.mubr.bf16.mxu0 0
        %4532 = vmatmul.mubr.bf16.gmra.mrb[0].mxu0 %v3750
        %v4533 = vpop.f32.mrb[0].mxu0
        %v4534 = vadd.f32 %v4494, %v4533
        %v4535 = vpop.f32.mrb[0].mxu0
        %v4536 = vpop.f32.mrb[0].mxu0
        %v4537 = vpop.f32.mrb[0].mxu0
        %4538 = vdwg.mxu0
        %vm4541 = vcmask 1046528
        %v4542 = vrot.slane %v3898, 1
        %v4543 = vrot.slane %v3899, 1
        %v4544 = vsel %vm4541, %v4542, %v4543
        %v4546 = vadd.f32 %v4534, %v4544
        %v4547 = vmax.f32 %v4546, 0.0
        %4548 = vst [vmem:[%s247] sm:$0xff] %v4547
        %v4549 = vld [vmem:[%s1117] sm:$0xf]
        %v4550 = vld [vmem:[%s1117 + $0x4] sm:$0x1]
        %v4551 = vld [vmem:[%s1980] sm:$0xf]
        %v4552 = vld [vmem:[%s1980 + $0x4] sm:$0x1]
        %v4553 = vld [vmem:[%s2837] sm:$0xf]
        %v4554 = vld [vmem:[%s2837 + $0x4] sm:$0x1]
        %v4557 = vunpack.c.l.b16 %v4549
        %v4558 = vunpack.c.l.b16 %v4550
        %v4559 = vpack.c.b16 %v4558, %v4557
        %v4561 = vshrl.u32 %v4559, 16
        %v4563 = vshll.u32 %v4559, 16
        %v4565 = vrot.slane %v4563, 1
        %v4566 = vor.u32 %v4561, %v4565
        %v4568 = vrot.slane %v4559, 1
        %v4572 = vunpack.c.l.b16 %v4551
        %v4573 = vunpack.c.l.b16 %v4552
        %v4574 = vpack.c.b16 %v4573, %v4572
        %v4576 = vshrl.u32 %v4574, 16
        %v4578 = vshll.u32 %v4574, 16
        %v4580 = vrot.slane %v4578, 1
        %v4581 = vor.u32 %v4576, %v4580
        %v4583 = vrot.slane %v4574, 1
        %v4587 = vunpack.c.l.b16 %v4553
        %v4588 = vunpack.c.l.b16 %v4554
        %v4589 = vpack.c.b16 %v4588, %v4587
        %v4591 = vshrl.u32 %v4589, 16
        %v4593 = vshll.u32 %v4589, 16
        %v4595 = vrot.slane %v4593, 1
        %v4596 = vor.u32 %v4591, %v4595
        %v4598 = vrot.slane %v4589, 1
        %v4600 = vld [vmem:[#allocation6] sm:$0xf]
        %v4601 = vld [vmem:[#allocation6 + $0x4] sm:$0xf]
        %v4602 = vld [vmem:[#allocation6 + $0x8] sm:$0xf]
        %v4603 = vld [vmem:[#allocation6 + $0xc] sm:$0xf]
        %v4604 = vld [vmem:[#allocation6 + $0x10] sm:$0xf]
        %v4605 = vld [vmem:[#allocation6 + $0x14] sm:$0xf]
        %v4606 = vld [vmem:[#allocation6 + $0x18] sm:$0xf]
        %v4607 = vld [vmem:[#allocation6 + $0x1c] sm:$0xf]
        %v4608 = vld [vmem:[#allocation6 + $0x20] sm:$0xf]
        %v4609 = vld [vmem:[#allocation6 + $0x24] sm:$0xf]
        %v4610 = vld [vmem:[#allocation6 + $0x28] sm:$0xf]
        %v4611 = vld [vmem:[#allocation6 + $0x2c] sm:$0xf]
        %v4612 = vld [vmem:[#allocation6 + $0x30] sm:$0xf]
        %v4613 = vld [vmem:[#allocation6 + $0x34] sm:$0xf]
        %v4614 = vld [vmem:[#allocation6 + $0x38] sm:$0xf]
        %v4615 = vld [vmem:[#allocation6 + $0x3c] sm:$0xf]
        %v4616 = vld [vmem:[#allocation6 + $0x40] sm:$0xf]
        %v4617 = vld [vmem:[#allocation6 + $0x44] sm:$0xf]
        %v4618 = vld [vmem:[#allocation6 + $0x48] sm:$0xf]
        %v4619 = vld [vmem:[#allocation6 + $0x4c] sm:$0xf]
        %v4620 = vld [vmem:[#allocation6 + $0x50] sm:$0xf]
        %v4621 = vld [vmem:[#allocation6 + $0x54] sm:$0xf]
        %v4622 = vld [vmem:[#allocation6 + $0x58] sm:$0xf]
        %v4623 = vld [vmem:[#allocation6 + $0x5c] sm:$0xf]
        %v4624 = vld [vmem:[#allocation6 + $0x60] sm:$0xf]
        %v4625 = vld [vmem:[#allocation6 + $0x64] sm:$0xf]
        %v4626 = vld [vmem:[#allocation6 + $0x68] sm:$0xf]
        %v4627 = vld [vmem:[#allocation6 + $0x6c] sm:$0xf]
        %v4628 = vld [vmem:[#allocation6 + $0x70] sm:$0xf]
        %v4629 = vld [vmem:[#allocation6 + $0x74] sm:$0xf]
        %v4630 = vld [vmem:[#allocation6 + $0x78] sm:$0xf]
        %v4631 = vld [vmem:[#allocation6 + $0x7c] sm:$0xf]
        %v4632 = vld [vmem:[#allocation6 + $0x80] sm:$0xf]
        %v4633 = vld [vmem:[#allocation6 + $0x84] sm:$0xf]
        %v4634 = vld [vmem:[#allocation6 + $0x88] sm:$0xf]
        %v4635 = vld [vmem:[#allocation6 + $0x8c] sm:$0xf]
        %v4636 = vld [vmem:[#allocation6 + $0x90] sm:$0xf]
        %v4637 = vld [vmem:[#allocation6 + $0x94] sm:$0xf]
        %v4638 = vld [vmem:[#allocation6 + $0x98] sm:$0xf]
        %v4639 = vld [vmem:[#allocation6 + $0x9c] sm:$0xf]
        %v4640 = vld [vmem:[#allocation6 + $0xa0] sm:$0xf]
        %v4641 = vld [vmem:[#allocation6 + $0xa4] sm:$0xf]
        %v4642 = vld [vmem:[#allocation6 + $0xa8] sm:$0xf]
        %v4643 = vld [vmem:[#allocation6 + $0xac] sm:$0xf]
        %v4644 = vld [vmem:[#allocation6 + $0xb0] sm:$0xf]
        %v4645 = vld [vmem:[#allocation6 + $0xb4] sm:$0xf]
        %v4646 = vld [vmem:[#allocation6 + $0xb8] sm:$0xf]
        %v4647 = vld [vmem:[#allocation6 + $0xbc] sm:$0xf]
        %v4648 = vld [vmem:[#allocation6 + $0xc0] sm:$0xf]
        %v4649 = vld [vmem:[#allocation6 + $0xc4] sm:$0xf]
        %v4650 = vld [vmem:[#allocation6 + $0xc8] sm:$0xf]
        %v4651 = vld [vmem:[#allocation6 + $0xcc] sm:$0xf]
        %v4652 = vld [vmem:[#allocation6 + $0xd0] sm:$0xf]
        %v4653 = vld [vmem:[#allocation6 + $0xd4] sm:$0xf]
        %v4654 = vld [vmem:[#allocation6 + $0xd8] sm:$0xf]
        %v4655 = vld [vmem:[#allocation6 + $0xdc] sm:$0xf]
        %v4656 = vld [vmem:[#allocation6 + $0xe0] sm:$0xf]
        %v4657 = vld [vmem:[#allocation6 + $0xe4] sm:$0xf]
        %v4658 = vld [vmem:[#allocation6 + $0xe8] sm:$0xf]
        %v4659 = vld [vmem:[#allocation6 + $0xec] sm:$0xf]
        %v4660 = vld [vmem:[#allocation6 + $0xf0] sm:$0xf]
        %v4661 = vld [vmem:[#allocation6 + $0xf4] sm:$0xf]
        %v4662 = vld [vmem:[#allocation6 + $0xf8] sm:$0xf]
        %v4663 = vld [vmem:[#allocation6 + $0xfc] sm:$0xf]
        %v4664 = vld [vmem:[#allocation6 + $0x100] sm:$0xf]
        %v4665 = vld [vmem:[#allocation6 + $0x104] sm:$0xf]
        %v4666 = vld [vmem:[#allocation6 + $0x108] sm:$0xf]
        %v4667 = vld [vmem:[#allocation6 + $0x10c] sm:$0xf]
        %v4668 = vld [vmem:[#allocation6 + $0x110] sm:$0xf]
        %v4669 = vld [vmem:[#allocation6 + $0x114] sm:$0xf]
        %v4670 = vld [vmem:[#allocation6 + $0x118] sm:$0xf]
        %v4671 = vld [vmem:[#allocation6 + $0x11c] sm:$0xf]
        %v4672 = vld [vmem:[#allocation6 + $0x120] sm:$0xf]
        %v4673 = vld [vmem:[#allocation6 + $0x124] sm:$0xf]
        %v4674 = vld [vmem:[#allocation6 + $0x128] sm:$0xf]
        %v4675 = vld [vmem:[#allocation6 + $0x12c] sm:$0xf]
        %v4676 = vld [vmem:[#allocation6 + $0x130] sm:$0xf]
        %v4677 = vld [vmem:[#allocation6 + $0x134] sm:$0xf]
        %v4678 = vld [vmem:[#allocation6 + $0x138] sm:$0xf]
        %v4679 = vld [vmem:[#allocation6 + $0x13c] sm:$0xf]
        %v4680 = vld [vmem:[#allocation6 + $0x140] sm:$0xf]
        %v4681 = vld [vmem:[#allocation6 + $0x144] sm:$0xf]
        %v4682 = vld [vmem:[#allocation6 + $0x148] sm:$0xf]
        %v4683 = vld [vmem:[#allocation6 + $0x14c] sm:$0xf]
        %v4684 = vld [vmem:[#allocation6 + $0x150] sm:$0xf]
        %v4685 = vld [vmem:[#allocation6 + $0x154] sm:$0xf]
        %v4686 = vld [vmem:[#allocation6 + $0x158] sm:$0xf]
        %v4687 = vld [vmem:[#allocation6 + $0x15c] sm:$0xf]
        %v4688 = vld [vmem:[#allocation6 + $0x160] sm:$0xf]
        %v4689 = vld [vmem:[#allocation6 + $0x164] sm:$0xf]
        %v4690 = vld [vmem:[#allocation6 + $0x168] sm:$0xf]
        %v4691 = vld [vmem:[#allocation6 + $0x16c] sm:$0xf]
        %v4692 = vld [vmem:[#allocation6 + $0x170] sm:$0xf]
        %v4693 = vld [vmem:[#allocation6 + $0x174] sm:$0xf]
        %v4694 = vld [vmem:[#allocation6 + $0x178] sm:$0xf]
        %v4695 = vld [vmem:[#allocation6 + $0x17c] sm:$0xf]
        %v4696 = vld [vmem:[#allocation6 + $0x180] sm:$0xf]
        %v4697 = vld [vmem:[#allocation6 + $0x184] sm:$0xf]
        %v4698 = vld [vmem:[#allocation6 + $0x188] sm:$0xf]
        %v4699 = vld [vmem:[#allocation6 + $0x18c] sm:$0xf]
        %v4700 = vld [vmem:[#allocation6 + $0x190] sm:$0xf]
        %v4701 = vld [vmem:[#allocation6 + $0x194] sm:$0xf]
        %v4702 = vld [vmem:[#allocation6 + $0x198] sm:$0xf]
        %v4703 = vld [vmem:[#allocation6 + $0x19c] sm:$0xf]
        %v4704 = vld [vmem:[#allocation6 + $0x1a0] sm:$0xf]
        %v4705 = vld [vmem:[#allocation6 + $0x1a4] sm:$0xf]
        %v4706 = vld [vmem:[#allocation6 + $0x1a8] sm:$0xf]
        %v4707 = vld [vmem:[#allocation6 + $0x1ac] sm:$0xf]
        %v4708 = vld [vmem:[#allocation6 + $0x1b0] sm:$0xf]
        %v4709 = vld [vmem:[#allocation6 + $0x1b4] sm:$0xf]
        %v4710 = vld [vmem:[#allocation6 + $0x1b8] sm:$0xf]
        %v4711 = vld [vmem:[#allocation6 + $0x1bc] sm:$0xf]
        %v4712 = vld [vmem:[#allocation6 + $0x1c0] sm:$0xf]
        %v4713 = vld [vmem:[#allocation6 + $0x1c4] sm:$0xf]
        %v4714 = vld [vmem:[#allocation6 + $0x1c8] sm:$0xf]
        %v4715 = vld [vmem:[#allocation6 + $0x1cc] sm:$0xf]
        %v4716 = vld [vmem:[#allocation6 + $0x1d0] sm:$0xf]
        %v4717 = vld [vmem:[#allocation6 + $0x1d4] sm:$0xf]
        %v4718 = vld [vmem:[#allocation6 + $0x1d8] sm:$0xf]
        %v4719 = vld [vmem:[#allocation6 + $0x1dc] sm:$0xf]
        %v4720 = vld [vmem:[#allocation6 + $0x1e0] sm:$0xf]
        %v4721 = vld [vmem:[#allocation6 + $0x1e4] sm:$0xf]
        %v4722 = vld [vmem:[#allocation6 + $0x1e8] sm:$0xf]
        %v4723 = vld [vmem:[#allocation6 + $0x1ec] sm:$0xf]
        %v4724 = vld [vmem:[#allocation6 + $0x1f0] sm:$0xf]
        %v4725 = vld [vmem:[#allocation6 + $0x1f4] sm:$0xf]
        %v4726 = vld [vmem:[#allocation6 + $0x1f8] sm:$0xf]
        %v4727 = vld [vmem:[#allocation6 + $0x1fc] sm:$0xf]
        %v4728 = vld [vmem:[#allocation6 + $0x200] sm:$0xf]
        %v4729 = vld [vmem:[#allocation6 + $0x204] sm:$0xf]
        %v4730 = vld [vmem:[#allocation6 + $0x208] sm:$0xf]
        %v4731 = vld [vmem:[#allocation6 + $0x20c] sm:$0xf]
        %v4732 = vld [vmem:[#allocation6 + $0x210] sm:$0xf]
        %v4733 = vld [vmem:[#allocation6 + $0x214] sm:$0xf]
        %v4734 = vld [vmem:[#allocation6 + $0x218] sm:$0xf]
        %v4735 = vld [vmem:[#allocation6 + $0x21c] sm:$0xf]
        %v4736 = vld [vmem:[#allocation6 + $0x220] sm:$0xf]
        %v4737 = vld [vmem:[#allocation6 + $0x224] sm:$0xf]
        %v4738 = vld [vmem:[#allocation6 + $0x228] sm:$0xf]
        %v4739 = vld [vmem:[#allocation6 + $0x22c] sm:$0xf]
        %v4740 = vld [vmem:[#allocation6 + $0x230] sm:$0xf]
        %v4741 = vld [vmem:[#allocation6 + $0x234] sm:$0xf]
        %v4742 = vld [vmem:[#allocation6 + $0x238] sm:$0xf]
        %v4743 = vld [vmem:[#allocation6 + $0x23c] sm:$0xf]
        %v4744 = vld [vmem:[%s271] sm:$0xf]
        %v4745 = vld [vmem:[%s271 + $0x4] sm:$0x1]
        %v4746 = vunpack.c.l.bf16 %v4744
        %v4747 = vunpack.c.l.bf16 %v4745
        %v4748 = vld [vmem:[%s4] sm:$0x1]
        %v4750 = vlaneseq
        %v4751 = vshrl.u32 %v4750, 7
        %v4752 = vsub.s32 0, %v4751
        %v4753 = vrot.slane %v4748, %v4752
        %v4899 = vunpack.c.l.b16 %v4600
        %v4900 = vunpack.c.l.b16 %v4601
        %v4901 = vunpack.c.l.b16 %v4602
        %v4902 = vunpack.c.l.b16 %v4603
        %v4903 = vunpack.c.l.b16 %v4604
        %v4904 = vunpack.c.l.b16 %v4605
        %v4905 = vunpack.c.l.b16 %v4606
        %v4906 = vunpack.c.l.b16 %v4607
        %v4907 = vunpack.c.l.b16 %v4608
        %v4908 = vunpack.c.l.b16 %v4609
        %v4909 = vunpack.c.l.b16 %v4610
        %v4910 = vunpack.c.l.b16 %v4611
        %v4911 = vunpack.c.l.b16 %v4612
        %v4912 = vunpack.c.l.b16 %v4613
        %v4913 = vunpack.c.l.b16 %v4614
        %v4914 = vunpack.c.l.b16 %v4615
        %v4915 = vunpack.c.l.b16 %v4616
        %v4916 = vunpack.c.l.b16 %v4617
        %v4917 = vunpack.c.l.b16 %v4618
        %v4918 = vunpack.c.l.b16 %v4619
        %v4919 = vunpack.c.l.b16 %v4620
        %v4920 = vunpack.c.l.b16 %v4621
        %v4921 = vunpack.c.l.b16 %v4622
        %v4922 = vunpack.c.l.b16 %v4623
        %v4923 = vunpack.c.l.b16 %v4624
        %v4924 = vunpack.c.l.b16 %v4625
        %v4925 = vunpack.c.l.b16 %v4626
        %v4926 = vunpack.c.l.b16 %v4627
        %v4927 = vunpack.c.l.b16 %v4628
        %v4928 = vunpack.c.l.b16 %v4629
        %v4929 = vunpack.c.l.b16 %v4630
        %v4930 = vunpack.c.l.b16 %v4631
        %v4931 = vunpack.c.l.b16 %v4632
        %v4932 = vunpack.c.l.b16 %v4633
        %v4933 = vunpack.c.l.b16 %v4634
        %v4934 = vunpack.c.l.b16 %v4635
        %v4935 = vunpack.c.l.b16 %v4636
        %v4936 = vunpack.c.l.b16 %v4637
        %v4937 = vunpack.c.l.b16 %v4638
        %v4938 = vunpack.c.l.b16 %v4639
        %v4939 = vunpack.c.l.b16 %v4640
        %v4940 = vunpack.c.l.b16 %v4641
        %v4941 = vunpack.c.l.b16 %v4642
        %v4942 = vunpack.c.l.b16 %v4643
        %v4943 = vunpack.c.l.b16 %v4644
        %v4944 = vunpack.c.l.b16 %v4645
        %v4945 = vunpack.c.l.b16 %v4646
        %v4946 = vunpack.c.l.b16 %v4647
        %v4947 = vunpack.c.l.b16 %v4648
        %v4948 = vunpack.c.l.b16 %v4649
        %v4949 = vunpack.c.l.b16 %v4650
        %v4950 = vunpack.c.l.b16 %v4651
        %v4951 = vunpack.c.l.b16 %v4652
        %v4952 = vunpack.c.l.b16 %v4653
        %v4953 = vunpack.c.l.b16 %v4654
        %v4954 = vunpack.c.l.b16 %v4655
        %v4955 = vunpack.c.l.b16 %v4656
        %v4956 = vunpack.c.l.b16 %v4657
        %v4957 = vunpack.c.l.b16 %v4658
        %v4958 = vunpack.c.l.b16 %v4659
        %v4959 = vunpack.c.l.b16 %v4660
        %v4960 = vunpack.c.l.b16 %v4661
        %v4961 = vunpack.c.l.b16 %v4662
        %v4962 = vunpack.c.l.b16 %v4663
        %v4963 = vunpack.c.l.b16 %v4664
        %v4964 = vunpack.c.l.b16 %v4665
        %v4965 = vunpack.c.l.b16 %v4666
        %v4966 = vunpack.c.l.b16 %v4667
        %v4967 = vunpack.c.l.b16 %v4668
        %v4968 = vunpack.c.l.b16 %v4669
        %v4969 = vunpack.c.l.b16 %v4670
        %v4970 = vunpack.c.l.b16 %v4671
        %v4971 = vunpack.c.l.b16 %v4672
        %v4972 = vunpack.c.l.b16 %v4673
        %v4973 = vunpack.c.l.b16 %v4674
        %v4974 = vunpack.c.l.b16 %v4675
        %v4975 = vunpack.c.l.b16 %v4676
        %v4976 = vunpack.c.l.b16 %v4677
        %v4977 = vunpack.c.l.b16 %v4678
        %v4978 = vunpack.c.l.b16 %v4679
        %v4979 = vunpack.c.l.b16 %v4680
        %v4980 = vunpack.c.l.b16 %v4681
        %v4981 = vunpack.c.l.b16 %v4682
        %v4982 = vunpack.c.l.b16 %v4683
        %v4983 = vunpack.c.l.b16 %v4684
        %v4984 = vunpack.c.l.b16 %v4685
        %v4985 = vunpack.c.l.b16 %v4686
        %v4986 = vunpack.c.l.b16 %v4687
        %v4987 = vunpack.c.l.b16 %v4688
        %v4988 = vunpack.c.l.b16 %v4689
        %v4989 = vunpack.c.l.b16 %v4690
        %v4990 = vunpack.c.l.b16 %v4691
        %v4991 = vunpack.c.l.b16 %v4692
        %v4992 = vunpack.c.l.b16 %v4693
        %v4993 = vunpack.c.l.b16 %v4694
        %v4994 = vunpack.c.l.b16 %v4695
        %v4995 = vunpack.c.l.b16 %v4696
        %v4996 = vunpack.c.l.b16 %v4697
        %v4997 = vunpack.c.l.b16 %v4698
        %v4998 = vunpack.c.l.b16 %v4699
        %v4999 = vunpack.c.l.b16 %v4700
        %v5000 = vunpack.c.l.b16 %v4701
        %v5001 = vunpack.c.l.b16 %v4702
        %v5002 = vunpack.c.l.b16 %v4703
        %v5003 = vunpack.c.l.b16 %v4704
        %v5004 = vunpack.c.l.b16 %v4705
        %v5005 = vunpack.c.l.b16 %v4706
        %v5006 = vunpack.c.l.b16 %v4707
        %v5007 = vunpack.c.l.b16 %v4708
        %v5008 = vunpack.c.l.b16 %v4709
        %v5009 = vunpack.c.l.b16 %v4710
        %v5010 = vunpack.c.l.b16 %v4711
        %v5011 = vunpack.c.l.b16 %v4712
        %v5012 = vunpack.c.l.b16 %v4713
        %v5013 = vunpack.c.l.b16 %v4714
        %v5014 = vunpack.c.l.b16 %v4715
        %v5015 = vunpack.c.l.b16 %v4716
        %v5016 = vunpack.c.l.b16 %v4717
        %v5017 = vunpack.c.l.b16 %v4718
        %v5018 = vunpack.c.l.b16 %v4719
        %v5019 = vunpack.c.l.b16 %v4720
        %v5020 = vunpack.c.l.b16 %v4721
        %v5021 = vunpack.c.l.b16 %v4722
        %v5022 = vunpack.c.l.b16 %v4723
        %v5023 = vunpack.c.l.b16 %v4724
        %v5024 = vunpack.c.l.b16 %v4725
        %v5025 = vunpack.c.l.b16 %v4726
        %v5026 = vunpack.c.l.b16 %v4727
        %v5027 = vunpack.c.l.b16 %v4728
        %v5028 = vunpack.c.l.b16 %v4729
        %v5029 = vunpack.c.l.b16 %v4730
        %v5030 = vunpack.c.l.b16 %v4731
        %v5031 = vunpack.c.l.b16 %v4732
        %v5032 = vunpack.c.l.b16 %v4733
        %v5033 = vunpack.c.l.b16 %v4734
        %v5034 = vunpack.c.l.b16 %v4735
        %v5035 = vunpack.c.l.b16 %v4736
        %v5036 = vunpack.c.l.b16 %v4737
        %v5037 = vunpack.c.l.b16 %v4738
        %v5038 = vunpack.c.l.b16 %v4739
        %v5039 = vunpack.c.l.b16 %v4740
        %v5040 = vunpack.c.l.b16 %v4741
        %v5041 = vunpack.c.l.b16 %v4742
        %v5042 = vunpack.c.l.b16 %v4743
        %v5043 = vpack.c.b16 %v4900, %v4899
        %v5044 = vpack.c.b16 %v4902, %v4901
        %v5045 = vpack.c.b16 %v4904, %v4903
        %v5046 = vpack.c.b16 %v4906, %v4905
        %v5047 = vpack.c.b16 %v4908, %v4907
        %v5048 = vpack.c.b16 %v4910, %v4909
        %v5049 = vpack.c.b16 %v4912, %v4911
        %v5050 = vpack.c.b16 %v4914, %v4913
        %v5051 = vpack.c.b16 %v4916, %v4915
        %v5052 = vpack.c.b16 %v4918, %v4917
        %v5053 = vpack.c.b16 %v4920, %v4919
        %v5054 = vpack.c.b16 %v4922, %v4921
        %v5055 = vpack.c.b16 %v4924, %v4923
        %v5056 = vpack.c.b16 %v4926, %v4925
        %v5057 = vpack.c.b16 %v4928, %v4927
        %v5058 = vpack.c.b16 %v4930, %v4929
        %v5059 = vpack.c.b16 %v4932, %v4931
        %v5060 = vpack.c.b16 %v4934, %v4933
        %v5061 = vpack.c.b16 %v4936, %v4935
        %v5062 = vpack.c.b16 %v4938, %v4937
        %v5063 = vpack.c.b16 %v4940, %v4939
        %v5064 = vpack.c.b16 %v4942, %v4941
        %v5065 = vpack.c.b16 %v4944, %v4943
        %v5066 = vpack.c.b16 %v4946, %v4945
        %v5067 = vpack.c.b16 %v4948, %v4947
        %v5068 = vpack.c.b16 %v4950, %v4949
        %v5069 = vpack.c.b16 %v4952, %v4951
        %v5070 = vpack.c.b16 %v4954, %v4953
        %v5071 = vpack.c.b16 %v4956, %v4955
        %v5072 = vpack.c.b16 %v4958, %v4957
        %v5073 = vpack.c.b16 %v4960, %v4959
        %v5074 = vpack.c.b16 %v4962, %v4961
        %v5075 = vpack.c.b16 %v4964, %v4963
        %v5076 = vpack.c.b16 %v4966, %v4965
        %v5077 = vpack.c.b16 %v4968, %v4967
        %v5078 = vpack.c.b16 %v4970, %v4969
        %v5079 = vpack.c.b16 %v4972, %v4971
        %v5080 = vpack.c.b16 %v4974, %v4973
        %v5081 = vpack.c.b16 %v4976, %v4975
        %v5082 = vpack.c.b16 %v4978, %v4977
        %v5083 = vpack.c.b16 %v4980, %v4979
        %v5084 = vpack.c.b16 %v4982, %v4981
        %v5085 = vpack.c.b16 %v4984, %v4983
        %v5086 = vpack.c.b16 %v4986, %v4985
        %v5087 = vpack.c.b16 %v4988, %v4987
        %v5088 = vpack.c.b16 %v4990, %v4989
        %v5089 = vpack.c.b16 %v4992, %v4991
        %v5090 = vpack.c.b16 %v4994, %v4993
        %v5091 = vpack.c.b16 %v4996, %v4995
        %v5092 = vpack.c.b16 %v4998, %v4997
        %v5093 = vpack.c.b16 %v5000, %v4999
        %v5094 = vpack.c.b16 %v5002, %v5001
        %v5095 = vpack.c.b16 %v5004, %v5003
        %v5096 = vpack.c.b16 %v5006, %v5005
        %v5097 = vpack.c.b16 %v5008, %v5007
        %v5098 = vpack.c.b16 %v5010, %v5009
        %v5099 = vpack.c.b16 %v5012, %v5011
        %v5100 = vpack.c.b16 %v5014, %v5013
        %v5101 = vpack.c.b16 %v5016, %v5015
        %v5102 = vpack.c.b16 %v5018, %v5017
        %v5103 = vpack.c.b16 %v5020, %v5019
        %v5104 = vpack.c.b16 %v5022, %v5021
        %v5105 = vpack.c.b16 %v5024, %v5023
        %v5106 = vpack.c.b16 %v5026, %v5025
        %v5107 = vpack.c.b16 %v5028, %v5027
        %v5108 = vpack.c.b16 %v5030, %v5029
        %v5109 = vpack.c.b16 %v5032, %v5031
        %v5110 = vpack.c.b16 %v5034, %v5033
        %v5111 = vpack.c.b16 %v5036, %v5035
        %v5112 = vpack.c.b16 %v5038, %v5037
        %v5113 = vpack.c.b16 %v5040, %v5039
        %v5114 = vpack.c.b16 %v5042, %v5041
        %5187 = vmatprep.subr.bf16.mxu0 0
        %5188 = vmatpush1.bf16.msra.mxu0 %v5043
        %5189 = vmatprep.subr.bf16.mxu0 0
        %5190 = vmatpush1.bf16.msra.mxu0 %v5044
        %5191 = vmatprep.subr.bf16.mxu0 0
        %5192 = vmatpush1.bf16.msra.mxu0 %v5045
        %5193 = vmatprep.subr.bf16.mxu0 0
        %5194 = vmatpush1.bf16.msra.mxu0 %v5046
        %5195 = vmatprep.subr.bf16.mxu0 0
        %5196 = vmatpush1.bf16.msra.mxu0 %v5047
        %5197 = vmatprep.subr.bf16.mxu0 0
        %5198 = vmatpush1.bf16.msra.mxu0 %v5048
        %5199 = vmatprep.subr.bf16.mxu0 0
        %5200 = vmatpush1.bf16.msra.mxu0 %v5049
        %5201 = vmatprep.subr.bf16.mxu0 0
        %5202 = vmatpush1.bf16.msra.mxu0 %v5050
        %5203 = vmatprep.subr.bf16.mxu0 0
        %5204 = vmatpush1.bf16.msra.mxu0 %v5051
        %5205 = vmatprep.subr.bf16.mxu0 0
        %5206 = vmatpush1.bf16.msra.mxu0 %v5052
        %5207 = vmatprep.subr.bf16.mxu0 0
        %5208 = vmatpush1.bf16.msra.mxu0 %v5053
        %5209 = vmatprep.subr.bf16.mxu0 0
        %5210 = vmatpush1.bf16.msra.mxu0 %v5054
        %5211 = vmatprep.subr.bf16.mxu0 0
        %5212 = vmatpush1.bf16.msra.mxu0 %v5055
        %5213 = vmatprep.subr.bf16.mxu0 0
        %5214 = vmatpush1.bf16.msra.mxu0 %v5056
        %5215 = vmatprep.subr.bf16.mxu0 0
        %5216 = vmatpush1.bf16.msra.mxu0 %v5057
        %5217 = vmatprep.subr.bf16.mxu0 0
        %5218 = vmatpush1.bf16.msra.mxu0 %v5058
        %5219 = vmatprep.mubr.bf16.mxu0 %v4566
        %5220 = vmatmul.mubr.bf16.gmra.mrb[0].mxu0 %v4549
        %v5221 = vpop.f32.mrb[0].mxu0
        %v5222 = vadd.f32 %v4753, %v5221
        %v5223 = vpop.f32.mrb[0].mxu0
        %v5224 = vpop.f32.mrb[0].mxu0
        %v5225 = vpop.f32.mrb[0].mxu0
        %5226 = vdwg.mxu0
        %5227 = vmatprep.subr.bf16.mxu0 0
        %5228 = vmatpush1.bf16.msra.mxu0 %v5059
        %5229 = vmatprep.subr.bf16.mxu0 0
        %5230 = vmatpush1.bf16.msra.mxu0 %v5060
        %5231 = vmatprep.subr.bf16.mxu0 0
        %5232 = vmatpush1.bf16.msra.mxu0 %v5061
        %5233 = vmatprep.subr.bf16.mxu0 0
        %5234 = vmatpush1.bf16.msra.mxu0 %v5062
        %5235 = vmatprep.subr.bf16.mxu0 0
        %5236 = vmatpush1.bf16.msra.mxu0 %v5063
        %5237 = vmatprep.subr.bf16.mxu0 0
        %5238 = vmatpush1.bf16.msra.mxu0 %v5064
        %5239 = vmatprep.subr.bf16.mxu0 0
        %5240 = vmatpush1.bf16.msra.mxu0 %v5065
        %5241 = vmatprep.subr.bf16.mxu0 0
        %5242 = vmatpush1.bf16.msra.mxu0 %v5066
        %5243 = vmatprep.subr.bf16.mxu0 0
        %5244 = vmatpush1.bf16.msra.mxu0 %v5067
        %5245 = vmatprep.subr.bf16.mxu0 0
        %5246 = vmatpush1.bf16.msra.mxu0 %v5068
        %5247 = vmatprep.subr.bf16.mxu0 0
        %5248 = vmatpush1.bf16.msra.mxu0 %v5069
        %5249 = vmatprep.subr.bf16.mxu0 0
        %5250 = vmatpush1.bf16.msra.mxu0 %v5070
        %5251 = vmatprep.subr.bf16.mxu0 0
        %5252 = vmatpush1.bf16.msra.mxu0 %v5071
        %5253 = vmatprep.subr.bf16.mxu0 0
        %5254 = vmatpush1.bf16.msra.mxu0 %v5072
        %5255 = vmatprep.subr.bf16.mxu0 0
        %5256 = vmatpush1.bf16.msra.mxu0 %v5073
        %5257 = vmatprep.subr.bf16.mxu0 0
        %5258 = vmatpush1.bf16.msra.mxu0 %v5074
        %5259 = vmatprep.mubr.bf16.mxu0 %v4551
        %5260 = vmatmul.mubr.bf16.gmra.mrb[0].mxu0 %v4568
        %v5261 = vpop.f32.mrb[0].mxu0
        %v5262 = vadd.f32 %v5222, %v5261
        %v5263 = vpop.f32.mrb[0].mxu0
        %v5264 = vpop.f32.mrb[0].mxu0
        %v5265 = vpop.f32.mrb[0].mxu0
        %5266 = vdwg.mxu0
        %5267 = vmatprep.subr.bf16.mxu0 0
        %5268 = vmatpush1.bf16.msra.mxu0 %v5075
        %5269 = vmatprep.subr.bf16.mxu0 0
        %5270 = vmatpush1.bf16.msra.mxu0 %v5076
        %5271 = vmatprep.subr.bf16.mxu0 0
        %5272 = vmatpush1.bf16.msra.mxu0 %v5077
        %5273 = vmatprep.subr.bf16.mxu0 0
        %5274 = vmatpush1.bf16.msra.mxu0 %v5078
        %5275 = vmatprep.subr.bf16.mxu0 0
        %5276 = vmatpush1.bf16.msra.mxu0 %v5079
        %5277 = vmatprep.subr.bf16.mxu0 0
        %5278 = vmatpush1.bf16.msra.mxu0 %v5080
        %5279 = vmatprep.subr.bf16.mxu0 0
        %5280 = vmatpush1.bf16.msra.mxu0 %v5081
        %5281 = vmatprep.subr.bf16.mxu0 0
        %5282 = vmatpush1.bf16.msra.mxu0 %v5082
        %5283 = vmatprep.subr.bf16.mxu0 0
        %5284 = vmatpush1.bf16.msra.mxu0 %v5083
        %5285 = vmatprep.subr.bf16.mxu0 0
        %5286 = vmatpush1.bf16.msra.mxu0 %v5084
        %5287 = vmatprep.subr.bf16.mxu0 0
        %5288 = vmatpush1.bf16.msra.mxu0 %v5085
        %5289 = vmatprep.subr.bf16.mxu0 0
        %5290 = vmatpush1.bf16.msra.mxu0 %v5086
        %5291 = vmatprep.subr.bf16.mxu0 0
        %5292 = vmatpush1.bf16.msra.mxu0 %v5087
        %5293 = vmatprep.subr.bf16.mxu0 0
        %5294 = vmatpush1.bf16.msra.mxu0 %v5088
        %5295 = vmatprep.subr.bf16.mxu0 0
        %5296 = vmatpush1.bf16.msra.mxu0 %v5089
        %5297 = vmatprep.subr.bf16.mxu0 0
        %5298 = vmatpush1.bf16.msra.mxu0 %v5090
        %5299 = vmatprep.mubr.bf16.mxu0 %v4583
        %5300 = vmatmul.mubr.bf16.gmra.mrb[0].mxu0 %v4581
        %v5301 = vpop.f32.mrb[0].mxu0
        %v5302 = vadd.f32 %v5262, %v5301
        %v5303 = vpop.f32.mrb[0].mxu0
        %v5304 = vpop.f32.mrb[0].mxu0
        %v5305 = vpop.f32.mrb[0].mxu0
        %5306 = vdwg.mxu0
        %5307 = vmatprep.subr.bf16.mxu0 0
        %5308 = vmatpush1.bf16.msra.mxu0 %v5091
        %5309 = vmatprep.subr.bf16.mxu0 0
        %5310 = vmatpush1.bf16.msra.mxu0 %v5092
        %5311 = vmatprep.subr.bf16.mxu0 0
        %5312 = vmatpush1.bf16.msra.mxu0 %v5093
        %5313 = vmatprep.subr.bf16.mxu0 0
        %5314 = vmatpush1.bf16.msra.mxu0 %v5094
        %5315 = vmatprep.subr.bf16.mxu0 0
        %5316 = vmatpush1.bf16.msra.mxu0 %v5095
        %5317 = vmatprep.subr.bf16.mxu0 0
        %5318 = vmatpush1.bf16.msra.mxu0 %v5096
        %5319 = vmatprep.subr.bf16.mxu0 0
        %5320 = vmatpush1.bf16.msra.mxu0 %v5097
        %5321 = vmatprep.subr.bf16.mxu0 0
        %5322 = vmatpush1.bf16.msra.mxu0 %v5098
        %5323 = vmatprep.subr.bf16.mxu0 0
        %5324 = vmatpush1.bf16.msra.mxu0 %v5099
        %5325 = vmatprep.subr.bf16.mxu0 0
        %5326 = vmatpush1.bf16.msra.mxu0 %v5100
        %5327 = vmatprep.subr.bf16.mxu0 0
        %5328 = vmatpush1.bf16.msra.mxu0 %v5101
        %5329 = vmatprep.subr.bf16.mxu0 0
        %5330 = vmatpush1.bf16.msra.mxu0 %v5102
        %5331 = vmatprep.subr.bf16.mxu0 0
        %5332 = vmatpush1.bf16.msra.mxu0 %v5103
        %5333 = vmatprep.subr.bf16.mxu0 0
        %5334 = vmatpush1.bf16.msra.mxu0 %v5104
        %5335 = vmatprep.subr.bf16.mxu0 0
        %5336 = vmatpush1.bf16.msra.mxu0 %v5105
        %5337 = vmatprep.subr.bf16.mxu0 0
        %5338 = vmatpush1.bf16.msra.mxu0 %v5106
        %5339 = vmatprep.mubr.bf16.mxu0 %v4596
        %5340 = vmatmul.mubr.bf16.gmra.mrb[0].mxu0 %v4553
        %v5341 = vpop.f32.mrb[0].mxu0
        %v5342 = vadd.f32 %v5302, %v5341
        %v5343 = vpop.f32.mrb[0].mxu0
        %v5344 = vpop.f32.mrb[0].mxu0
        %v5345 = vpop.f32.mrb[0].mxu0
        %5346 = vdwg.mxu0
        %5347 = vmatprep.subr.bf16.mxu0 0
        %5348 = vmatpush1.bf16.msra.mxu0 %v5107
        %5349 = vmatprep.subr.bf16.mxu0 0
        %5350 = vmatpush1.bf16.msra.mxu0 %v5108
        %5351 = vmatprep.subr.bf16.mxu0 0
        %5352 = vmatpush1.bf16.msra.mxu0 %v5109
        %5353 = vmatprep.subr.bf16.mxu0 0
        %5354 = vmatpush1.bf16.msra.mxu0 %v5110
        %5355 = vmatprep.subr.bf16.mxu0 0
        %5356 = vmatpush1.bf16.msra.mxu0 %v5111
        %5357 = vmatprep.subr.bf16.mxu0 0
        %5358 = vmatpush1.bf16.msra.mxu0 %v5112
        %5359 = vmatprep.subr.bf16.mxu0 0
        %5360 = vmatpush1.bf16.msra.mxu0 %v5113
        %5361 = vmatprep.subr.bf16.mxu0 0
        %5362 = vmatpush1.bf16.msra.mxu0 %v5114
        %5363 = vmatprep.subr.bf16.mxu0 0
        %5364 = vmatpush1.bf16.msra.mxu0 0
        %5365 = vmatprep.subr.bf16.mxu0 0
        %5366 = vmatpush1.bf16.msra.mxu0 0
        %5367 = vmatprep.subr.bf16.mxu0 0
        %5368 = vmatpush1.bf16.msra.mxu0 0
        %5369 = vmatprep.subr.bf16.mxu0 0
        %5370 = vmatpush1.bf16.msra.mxu0 0
        %5371 = vmatprep.subr.bf16.mxu0 0
        %5372 = vmatpush1.bf16.msra.mxu0 0
        %5373 = vmatprep.subr.bf16.mxu0 0
        %5374 = vmatpush1.bf16.msra.mxu0 0
        %5375 = vmatprep.subr.bf16.mxu0 0
        %5376 = vmatpush1.bf16.msra.mxu0 0
        %5377 = vmatprep.subr.bf16.mxu0 0
        %5378 = vmatpush1.bf16.msra.mxu0 0
        %5379 = vmatprep.mubr.bf16.mxu0 0
        %5380 = vmatmul.mubr.bf16.gmra.mrb[0].mxu0 %v4598
        %v5381 = vpop.f32.mrb[0].mxu0
        %v5382 = vadd.f32 %v5342, %v5381
        %v5383 = vpop.f32.mrb[0].mxu0
        %v5384 = vpop.f32.mrb[0].mxu0
        %v5385 = vpop.f32.mrb[0].mxu0
        %5386 = vdwg.mxu0
        %v5389 = vrot.slane %v4746, 1
        %v5390 = vrot.slane %v4747, 1
        %v5391 = vsel %vm4541, %v5389, %v5390
        %v5393 = vadd.f32 %v5382, %v5391
        %v5394 = vmax.f32 %v5393, 0.0
        %s5395 = scalar_lea.vmem %s247, 8 [#allocation8]
        %5396 = vst [vmem:[%s5395] sm:$0xff] %v5394
        %v5397 = vld [vmem:[%s1980] sm:$0xf]
        %v5398 = vld [vmem:[%s1980 + $0x4] sm:$0x1]
        %v5399 = vld [vmem:[%s2837] sm:$0xf]
        %v5400 = vld [vmem:[%s2837 + $0x4] sm:$0x1]
        %v5401 = vld [vmem:[%s3694] sm:$0xf]
        %v5402 = vld [vmem:[%s3694 + $0x4] sm:$0x1]
        %v5405 = vunpack.c.l.b16 %v5397
        %v5406 = vunpack.c.l.b16 %v5398
        %v5407 = vpack.c.b16 %v5406, %v5405
        %v5409 = vshrl.u32 %v5407, 16
        %v5411 = vshll.u32 %v5407, 16
        %v5413 = vrot.slane %v5411, 1
        %v5414 = vor.u32 %v5409, %v5413
        %v5416 = vrot.slane %v5407, 1
        %v5420 = vunpack.c.l.b16 %v5399
        %v5421 = vunpack.c.l.b16 %v5400
        %v5422 = vpack.c.b16 %v5421, %v5420
        %v5424 = vshrl.u32 %v5422, 16
        %v5426 = vshll.u32 %v5422, 16
        %v5428 = vrot.slane %v5426, 1
        %v5429 = vor.u32 %v5424, %v5428
        %v5431 = vrot.slane %v5422, 1
        %v5435 = vunpack.c.l.b16 %v5401
        %v5436 = vunpack.c.l.b16 %v5402
        %v5437 = vpack.c.b16 %v5436, %v5435
        %v5439 = vshrl.u32 %v5437, 16
        %v5441 = vshll.u32 %v5437, 16
        %v5443 = vrot.slane %v5441, 1
        %v5444 = vor.u32 %v5439, %v5443
        %v5446 = vrot.slane %v5437, 1
        %v5448 = vld [vmem:[#allocation6] sm:$0xf]
        %v5449 = vld [vmem:[#allocation6 + $0x4] sm:$0xf]
        %v5450 = vld [vmem:[#allocation6 + $0x8] sm:$0xf]
        %v5451 = vld [vmem:[#allocation6 + $0xc] sm:$0xf]
        %v5452 = vld [vmem:[#allocation6 + $0x10] sm:$0xf]
        %v5453 = vld [vmem:[#allocation6 + $0x14] sm:$0xf]
        %v5454 = vld [vmem:[#allocation6 + $0x18] sm:$0xf]
        %v5455 = vld [vmem:[#allocation6 + $0x1c] sm:$0xf]
        %v5456 = vld [vmem:[#allocation6 + $0x20] sm:$0xf]
        %v5457 = vld [vmem:[#allocation6 + $0x24] sm:$0xf]
        %v5458 = vld [vmem:[#allocation6 + $0x28] sm:$0xf]
        %v5459 = vld [vmem:[#allocation6 + $0x2c] sm:$0xf]
        %v5460 = vld [vmem:[#allocation6 + $0x30] sm:$0xf]
        %v5461 = vld [vmem:[#allocation6 + $0x34] sm:$0xf]
        %v5462 = vld [vmem:[#allocation6 + $0x38] sm:$0xf]
        %v5463 = vld [vmem:[#allocation6 + $0x3c] sm:$0xf]
        %v5464 = vld [vmem:[#allocation6 + $0x40] sm:$0xf]
        %v5465 = vld [vmem:[#allocation6 + $0x44] sm:$0xf]
        %v5466 = vld [vmem:[#allocation6 + $0x48] sm:$0xf]
        %v5467 = vld [vmem:[#allocation6 + $0x4c] sm:$0xf]
        %v5468 = vld [vmem:[#allocation6 + $0x50] sm:$0xf]
        %v5469 = vld [vmem:[#allocation6 + $0x54] sm:$0xf]
        %v5470 = vld [vmem:[#allocation6 + $0x58] sm:$0xf]
        %v5471 = vld [vmem:[#allocation6 + $0x5c] sm:$0xf]
        %v5472 = vld [vmem:[#allocation6 + $0x60] sm:$0xf]
        %v5473 = vld [vmem:[#allocation6 + $0x64] sm:$0xf]
        %v5474 = vld [vmem:[#allocation6 + $0x68] sm:$0xf]
        %v5475 = vld [vmem:[#allocation6 + $0x6c] sm:$0xf]
        %v5476 = vld [vmem:[#allocation6 + $0x70] sm:$0xf]
        %v5477 = vld [vmem:[#allocation6 + $0x74] sm:$0xf]
        %v5478 = vld [vmem:[#allocation6 + $0x78] sm:$0xf]
        %v5479 = vld [vmem:[#allocation6 + $0x7c] sm:$0xf]
        %v5480 = vld [vmem:[#allocation6 + $0x80] sm:$0xf]
        %v5481 = vld [vmem:[#allocation6 + $0x84] sm:$0xf]
        %v5482 = vld [vmem:[#allocation6 + $0x88] sm:$0xf]
        %v5483 = vld [vmem:[#allocation6 + $0x8c] sm:$0xf]
        %v5484 = vld [vmem:[#allocation6 + $0x90] sm:$0xf]
        %v5485 = vld [vmem:[#allocation6 + $0x94] sm:$0xf]
        %v5486 = vld [vmem:[#allocation6 + $0x98] sm:$0xf]
        %v5487 = vld [vmem:[#allocation6 + $0x9c] sm:$0xf]
        %v5488 = vld [vmem:[#allocation6 + $0xa0] sm:$0xf]
        %v5489 = vld [vmem:[#allocation6 + $0xa4] sm:$0xf]
        %v5490 = vld [vmem:[#allocation6 + $0xa8] sm:$0xf]
        %v5491 = vld [vmem:[#allocation6 + $0xac] sm:$0xf]
        %v5492 = vld [vmem:[#allocation6 + $0xb0] sm:$0xf]
        %v5493 = vld [vmem:[#allocation6 + $0xb4] sm:$0xf]
        %v5494 = vld [vmem:[#allocation6 + $0xb8] sm:$0xf]
        %v5495 = vld [vmem:[#allocation6 + $0xbc] sm:$0xf]
        %v5496 = vld [vmem:[#allocation6 + $0xc0] sm:$0xf]
        %v5497 = vld [vmem:[#allocation6 + $0xc4] sm:$0xf]
        %v5498 = vld [vmem:[#allocation6 + $0xc8] sm:$0xf]
        %v5499 = vld [vmem:[#allocation6 + $0xcc] sm:$0xf]
        %v5500 = vld [vmem:[#allocation6 + $0xd0] sm:$0xf]
        %v5501 = vld [vmem:[#allocation6 + $0xd4] sm:$0xf]
        %v5502 = vld [vmem:[#allocation6 + $0xd8] sm:$0xf]
        %v5503 = vld [vmem:[#allocation6 + $0xdc] sm:$0xf]
        %v5504 = vld [vmem:[#allocation6 + $0xe0] sm:$0xf]
        %v5505 = vld [vmem:[#allocation6 + $0xe4] sm:$0xf]
        %v5506 = vld [vmem:[#allocation6 + $0xe8] sm:$0xf]
        %v5507 = vld [vmem:[#allocation6 + $0xec] sm:$0xf]
        %v5508 = vld [vmem:[#allocation6 + $0xf0] sm:$0xf]
        %v5509 = vld [vmem:[#allocation6 + $0xf4] sm:$0xf]
        %v5510 = vld [vmem:[#allocation6 + $0xf8] sm:$0xf]
        %v5511 = vld [vmem:[#allocation6 + $0xfc] sm:$0xf]
        %v5512 = vld [vmem:[#allocation6 + $0x100] sm:$0xf]
        %v5513 = vld [vmem:[#allocation6 + $0x104] sm:$0xf]
        %v5514 = vld [vmem:[#allocation6 + $0x108] sm:$0xf]
        %v5515 = vld [vmem:[#allocation6 + $0x10c] sm:$0xf]
        %v5516 = vld [vmem:[#allocation6 + $0x110] sm:$0xf]
        %v5517 = vld [vmem:[#allocation6 + $0x114] sm:$0xf]
        %v5518 = vld [vmem:[#allocation6 + $0x118] sm:$0xf]
        %v5519 = vld [vmem:[#allocation6 + $0x11c] sm:$0xf]
        %v5520 = vld [vmem:[#allocation6 + $0x120] sm:$0xf]
        %v5521 = vld [vmem:[#allocation6 + $0x124] sm:$0xf]
        %v5522 = vld [vmem:[#allocation6 + $0x128] sm:$0xf]
        %v5523 = vld [vmem:[#allocation6 + $0x12c] sm:$0xf]
        %v5524 = vld [vmem:[#allocation6 + $0x130] sm:$0xf]
        %v5525 = vld [vmem:[#allocation6 + $0x134] sm:$0xf]
        %v5526 = vld [vmem:[#allocation6 + $0x138] sm:$0xf]
        %v5527 = vld [vmem:[#allocation6 + $0x13c] sm:$0xf]
        %v5528 = vld [vmem:[#allocation6 + $0x140] sm:$0xf]
        %v5529 = vld [vmem:[#allocation6 + $0x144] sm:$0xf]
        %v5530 = vld [vmem:[#allocation6 + $0x148] sm:$0xf]
        %v5531 = vld [vmem:[#allocation6 + $0x14c] sm:$0xf]
        %v5532 = vld [vmem:[#allocation6 + $0x150] sm:$0xf]
        %v5533 = vld [vmem:[#allocation6 + $0x154] sm:$0xf]
        %v5534 = vld [vmem:[#allocation6 + $0x158] sm:$0xf]
        %v5535 = vld [vmem:[#allocation6 + $0x15c] sm:$0xf]
        %v5536 = vld [vmem:[#allocation6 + $0x160] sm:$0xf]
        %v5537 = vld [vmem:[#allocation6 + $0x164] sm:$0xf]
        %v5538 = vld [vmem:[#allocation6 + $0x168] sm:$0xf]
        %v5539 = vld [vmem:[#allocation6 + $0x16c] sm:$0xf]
        %v5540 = vld [vmem:[#allocation6 + $0x170] sm:$0xf]
        %v5541 = vld [vmem:[#allocation6 + $0x174] sm:$0xf]
        %v5542 = vld [vmem:[#allocation6 + $0x178] sm:$0xf]
        %v5543 = vld [vmem:[#allocation6 + $0x17c] sm:$0xf]
        %v5544 = vld [vmem:[#allocation6 + $0x180] sm:$0xf]
        %v5545 = vld [vmem:[#allocation6 + $0x184] sm:$0xf]
        %v5546 = vld [vmem:[#allocation6 + $0x188] sm:$0xf]
        %v5547 = vld [vmem:[#allocation6 + $0x18c] sm:$0xf]
        %v5548 = vld [vmem:[#allocation6 + $0x190] sm:$0xf]
        %v5549 = vld [vmem:[#allocation6 + $0x194] sm:$0xf]
        %v5550 = vld [vmem:[#allocation6 + $0x198] sm:$0xf]
        %v5551 = vld [vmem:[#allocation6 + $0x19c] sm:$0xf]
        %v5552 = vld [vmem:[#allocation6 + $0x1a0] sm:$0xf]
        %v5553 = vld [vmem:[#allocation6 + $0x1a4] sm:$0xf]
        %v5554 = vld [vmem:[#allocation6 + $0x1a8] sm:$0xf]
        %v5555 = vld [vmem:[#allocation6 + $0x1ac] sm:$0xf]
        %v5556 = vld [vmem:[#allocation6 + $0x1b0] sm:$0xf]
        %v5557 = vld [vmem:[#allocation6 + $0x1b4] sm:$0xf]
        %v5558 = vld [vmem:[#allocation6 + $0x1b8] sm:$0xf]
        %v5559 = vld [vmem:[#allocation6 + $0x1bc] sm:$0xf]
        %v5560 = vld [vmem:[#allocation6 + $0x1c0] sm:$0xf]
        %v5561 = vld [vmem:[#allocation6 + $0x1c4] sm:$0xf]
        %v5562 = vld [vmem:[#allocation6 + $0x1c8] sm:$0xf]
        %v5563 = vld [vmem:[#allocation6 + $0x1cc] sm:$0xf]
        %v5564 = vld [vmem:[#allocation6 + $0x1d0] sm:$0xf]
        %v5565 = vld [vmem:[#allocation6 + $0x1d4] sm:$0xf]
        %v5566 = vld [vmem:[#allocation6 + $0x1d8] sm:$0xf]
        %v5567 = vld [vmem:[#allocation6 + $0x1dc] sm:$0xf]
        %v5568 = vld [vmem:[#allocation6 + $0x1e0] sm:$0xf]
        %v5569 = vld [vmem:[#allocation6 + $0x1e4] sm:$0xf]
        %v5570 = vld [vmem:[#allocation6 + $0x1e8] sm:$0xf]
        %v5571 = vld [vmem:[#allocation6 + $0x1ec] sm:$0xf]
        %v5572 = vld [vmem:[#allocation6 + $0x1f0] sm:$0xf]
        %v5573 = vld [vmem:[#allocation6 + $0x1f4] sm:$0xf]
        %v5574 = vld [vmem:[#allocation6 + $0x1f8] sm:$0xf]
        %v5575 = vld [vmem:[#allocation6 + $0x1fc] sm:$0xf]
        %v5576 = vld [vmem:[#allocation6 + $0x200] sm:$0xf]
        %v5577 = vld [vmem:[#allocation6 + $0x204] sm:$0xf]
        %v5578 = vld [vmem:[#allocation6 + $0x208] sm:$0xf]
        %v5579 = vld [vmem:[#allocation6 + $0x20c] sm:$0xf]
        %v5580 = vld [vmem:[#allocation6 + $0x210] sm:$0xf]
        %v5581 = vld [vmem:[#allocation6 + $0x214] sm:$0xf]
        %v5582 = vld [vmem:[#allocation6 + $0x218] sm:$0xf]
        %v5583 = vld [vmem:[#allocation6 + $0x21c] sm:$0xf]
        %v5584 = vld [vmem:[#allocation6 + $0x220] sm:$0xf]
        %v5585 = vld [vmem:[#allocation6 + $0x224] sm:$0xf]
        %v5586 = vld [vmem:[#allocation6 + $0x228] sm:$0xf]
        %v5587 = vld [vmem:[#allocation6 + $0x22c] sm:$0xf]
        %v5588 = vld [vmem:[#allocation6 + $0x230] sm:$0xf]
        %v5589 = vld [vmem:[#allocation6 + $0x234] sm:$0xf]
        %v5590 = vld [vmem:[#allocation6 + $0x238] sm:$0xf]
        %v5591 = vld [vmem:[#allocation6 + $0x23c] sm:$0xf]
        %v5592 = vld [vmem:[%s1134] sm:$0xf]
        %v5593 = vld [vmem:[%s1134 + $0x4] sm:$0x1]
        %v5594 = vunpack.c.l.bf16 %v5592
        %v5595 = vunpack.c.l.bf16 %v5593
        %v5596 = vld [vmem:[%s4] sm:$0x1]
        %v5598 = vlaneseq
        %v5599 = vshrl.u32 %v5598, 7
        %v5600 = vsub.s32 0, %v5599
        %v5601 = vrot.slane %v5596, %v5600
        %v5747 = vunpack.c.l.b16 %v5448
        %v5748 = vunpack.c.l.b16 %v5449
        %v5749 = vunpack.c.l.b16 %v5450
        %v5750 = vunpack.c.l.b16 %v5451
        %v5751 = vunpack.c.l.b16 %v5452
        %v5752 = vunpack.c.l.b16 %v5453
        %v5753 = vunpack.c.l.b16 %v5454
        %v5754 = vunpack.c.l.b16 %v5455
        %v5755 = vunpack.c.l.b16 %v5456
        %v5756 = vunpack.c.l.b16 %v5457
        %v5757 = vunpack.c.l.b16 %v5458
        %v5758 = vunpack.c.l.b16 %v5459
        %v5759 = vunpack.c.l.b16 %v5460
        %v5760 = vunpack.c.l.b16 %v5461
        %v5761 = vunpack.c.l.b16 %v5462
        %v5762 = vunpack.c.l.b16 %v5463
        %v5763 = vunpack.c.l.b16 %v5464
        %v5764 = vunpack.c.l.b16 %v5465
        %v5765 = vunpack.c.l.b16 %v5466
        %v5766 = vunpack.c.l.b16 %v5467
        %v5767 = vunpack.c.l.b16 %v5468
        %v5768 = vunpack.c.l.b16 %v5469
        %v5769 = vunpack.c.l.b16 %v5470
        %v5770 = vunpack.c.l.b16 %v5471
        %v5771 = vunpack.c.l.b16 %v5472
        %v5772 = vunpack.c.l.b16 %v5473
        %v5773 = vunpack.c.l.b16 %v5474
        %v5774 = vunpack.c.l.b16 %v5475
        %v5775 = vunpack.c.l.b16 %v5476
        %v5776 = vunpack.c.l.b16 %v5477
        %v5777 = vunpack.c.l.b16 %v5478
        %v5778 = vunpack.c.l.b16 %v5479
        %v5779 = vunpack.c.l.b16 %v5480
        %v5780 = vunpack.c.l.b16 %v5481
        %v5781 = vunpack.c.l.b16 %v5482
        %v5782 = vunpack.c.l.b16 %v5483
        %v5783 = vunpack.c.l.b16 %v5484
        %v5784 = vunpack.c.l.b16 %v5485
        %v5785 = vunpack.c.l.b16 %v5486
        %v5786 = vunpack.c.l.b16 %v5487
        %v5787 = vunpack.c.l.b16 %v5488
        %v5788 = vunpack.c.l.b16 %v5489
        %v5789 = vunpack.c.l.b16 %v5490
        %v5790 = vunpack.c.l.b16 %v5491
        %v5791 = vunpack.c.l.b16 %v5492
        %v5792 = vunpack.c.l.b16 %v5493
        %v5793 = vunpack.c.l.b16 %v5494
        %v5794 = vunpack.c.l.b16 %v5495
        %v5795 = vunpack.c.l.b16 %v5496
        %v5796 = vunpack.c.l.b16 %v5497
        %v5797 = vunpack.c.l.b16 %v5498
        %v5798 = vunpack.c.l.b16 %v5499
        %v5799 = vunpack.c.l.b16 %v5500
        %v5800 = vunpack.c.l.b16 %v5501
        %v5801 = vunpack.c.l.b16 %v5502
        %v5802 = vunpack.c.l.b16 %v5503
        %v5803 = vunpack.c.l.b16 %v5504
        %v5804 = vunpack.c.l.b16 %v5505
        %v5805 = vunpack.c.l.b16 %v5506
        %v5806 = vunpack.c.l.b16 %v5507
        %v5807 = vunpack.c.l.b16 %v5508
        %v5808 = vunpack.c.l.b16 %v5509
        %v5809 = vunpack.c.l.b16 %v5510
        %v5810 = vunpack.c.l.b16 %v5511
        %v5811 = vunpack.c.l.b16 %v5512
        %v5812 = vunpack.c.l.b16 %v5513
        %v5813 = vunpack.c.l.b16 %v5514
        %v5814 = vunpack.c.l.b16 %v5515
        %v5815 = vunpack.c.l.b16 %v5516
        %v5816 = vunpack.c.l.b16 %v5517
        %v5817 = vunpack.c.l.b16 %v5518
        %v5818 = vunpack.c.l.b16 %v5519
        %v5819 = vunpack.c.l.b16 %v5520
        %v5820 = vunpack.c.l.b16 %v5521
        %v5821 = vunpack.c.l.b16 %v5522
        %v5822 = vunpack.c.l.b16 %v5523
        %v5823 = vunpack.c.l.b16 %v5524
        %v5824 = vunpack.c.l.b16 %v5525
        %v5825 = vunpack.c.l.b16 %v5526
        %v5826 = vunpack.c.l.b16 %v5527
        %v5827 = vunpack.c.l.b16 %v5528
        %v5828 = vunpack.c.l.b16 %v5529
        %v5829 = vunpack.c.l.b16 %v5530
        %v5830 = vunpack.c.l.b16 %v5531
        %v5831 = vunpack.c.l.b16 %v5532
        %v5832 = vunpack.c.l.b16 %v5533
        %v5833 = vunpack.c.l.b16 %v5534
        %v5834 = vunpack.c.l.b16 %v5535
        %v5835 = vunpack.c.l.b16 %v5536
        %v5836 = vunpack.c.l.b16 %v5537
        %v5837 = vunpack.c.l.b16 %v5538
        %v5838 = vunpack.c.l.b16 %v5539
        %v5839 = vunpack.c.l.b16 %v5540
        %v5840 = vunpack.c.l.b16 %v5541
        %v5841 = vunpack.c.l.b16 %v5542
        %v5842 = vunpack.c.l.b16 %v5543
        %v5843 = vunpack.c.l.b16 %v5544
        %v5844 = vunpack.c.l.b16 %v5545
        %v5845 = vunpack.c.l.b16 %v5546
        %v5846 = vunpack.c.l.b16 %v5547
        %v5847 = vunpack.c.l.b16 %v5548
        %v5848 = vunpack.c.l.b16 %v5549
        %v5849 = vunpack.c.l.b16 %v5550
        %v5850 = vunpack.c.l.b16 %v5551
        %v5851 = vunpack.c.l.b16 %v5552
        %v5852 = vunpack.c.l.b16 %v5553
        %v5853 = vunpack.c.l.b16 %v5554
        %v5854 = vunpack.c.l.b16 %v5555
        %v5855 = vunpack.c.l.b16 %v5556
        %v5856 = vunpack.c.l.b16 %v5557
        %v5857 = vunpack.c.l.b16 %v5558
        %v5858 = vunpack.c.l.b16 %v5559
        %v5859 = vunpack.c.l.b16 %v5560
        %v5860 = vunpack.c.l.b16 %v5561
        %v5861 = vunpack.c.l.b16 %v5562
        %v5862 = vunpack.c.l.b16 %v5563
        %v5863 = vunpack.c.l.b16 %v5564
        %v5864 = vunpack.c.l.b16 %v5565
        %v5865 = vunpack.c.l.b16 %v5566
        %v5866 = vunpack.c.l.b16 %v5567
        %v5867 = vunpack.c.l.b16 %v5568
        %v5868 = vunpack.c.l.b16 %v5569
        %v5869 = vunpack.c.l.b16 %v5570
        %v5870 = vunpack.c.l.b16 %v5571
        %v5871 = vunpack.c.l.b16 %v5572
        %v5872 = vunpack.c.l.b16 %v5573
        %v5873 = vunpack.c.l.b16 %v5574
        %v5874 = vunpack.c.l.b16 %v5575
        %v5875 = vunpack.c.l.b16 %v5576
        %v5876 = vunpack.c.l.b16 %v5577
        %v5877 = vunpack.c.l.b16 %v5578
        %v5878 = vunpack.c.l.b16 %v5579
        %v5879 = vunpack.c.l.b16 %v5580
        %v5880 = vunpack.c.l.b16 %v5581
        %v5881 = vunpack.c.l.b16 %v5582
        %v5882 = vunpack.c.l.b16 %v5583
        %v5883 = vunpack.c.l.b16 %v5584
        %v5884 = vunpack.c.l.b16 %v5585
        %v5885 = vunpack.c.l.b16 %v5586
        %v5886 = vunpack.c.l.b16 %v5587
        %v5887 = vunpack.c.l.b16 %v5588
        %v5888 = vunpack.c.l.b16 %v5589
        %v5889 = vunpack.c.l.b16 %v5590
        %v5890 = vunpack.c.l.b16 %v5591
        %v5891 = vpack.c.b16 %v5748, %v5747
        %v5892 = vpack.c.b16 %v5750, %v5749
        %v5893 = vpack.c.b16 %v5752, %v5751
        %v5894 = vpack.c.b16 %v5754, %v5753
        %v5895 = vpack.c.b16 %v5756, %v5755
        %v5896 = vpack.c.b16 %v5758, %v5757
        %v5897 = vpack.c.b16 %v5760, %v5759
        %v5898 = vpack.c.b16 %v5762, %v5761
        %v5899 = vpack.c.b16 %v5764, %v5763
        %v5900 = vpack.c.b16 %v5766, %v5765
        %v5901 = vpack.c.b16 %v5768, %v5767
        %v5902 = vpack.c.b16 %v5770, %v5769
        %v5903 = vpack.c.b16 %v5772, %v5771
        %v5904 = vpack.c.b16 %v5774, %v5773
        %v5905 = vpack.c.b16 %v5776, %v5775
        %v5906 = vpack.c.b16 %v5778, %v5777
        %v5907 = vpack.c.b16 %v5780, %v5779
        %v5908 = vpack.c.b16 %v5782, %v5781
        %v5909 = vpack.c.b16 %v5784, %v5783
        %v5910 = vpack.c.b16 %v5786, %v5785
        %v5911 = vpack.c.b16 %v5788, %v5787
        %v5912 = vpack.c.b16 %v5790, %v5789
        %v5913 = vpack.c.b16 %v5792, %v5791
        %v5914 = vpack.c.b16 %v5794, %v5793
        %v5915 = vpack.c.b16 %v5796, %v5795
        %v5916 = vpack.c.b16 %v5798, %v5797
        %v5917 = vpack.c.b16 %v5800, %v5799
        %v5918 = vpack.c.b16 %v5802, %v5801
        %v5919 = vpack.c.b16 %v5804, %v5803
        %v5920 = vpack.c.b16 %v5806, %v5805
        %v5921 = vpack.c.b16 %v5808, %v5807
        %v5922 = vpack.c.b16 %v5810, %v5809
        %v5923 = vpack.c.b16 %v5812, %v5811
        %v5924 = vpack.c.b16 %v5814, %v5813
        %v5925 = vpack.c.b16 %v5816, %v5815
        %v5926 = vpack.c.b16 %v5818, %v5817
        %v5927 = vpack.c.b16 %v5820, %v5819
        %v5928 = vpack.c.b16 %v5822, %v5821
        %v5929 = vpack.c.b16 %v5824, %v5823
        %v5930 = vpack.c.b16 %v5826, %v5825
        %v5931 = vpack.c.b16 %v5828, %v5827
        %v5932 = vpack.c.b16 %v5830, %v5829
        %v5933 = vpack.c.b16 %v5832, %v5831
        %v5934 = vpack.c.b16 %v5834, %v5833
        %v5935 = vpack.c.b16 %v5836, %v5835
        %v5936 = vpack.c.b16 %v5838, %v5837
        %v5937 = vpack.c.b16 %v5840, %v5839
        %v5938 = vpack.c.b16 %v5842, %v5841
        %v5939 = vpack.c.b16 %v5844, %v5843
        %v5940 = vpack.c.b16 %v5846, %v5845
        %v5941 = vpack.c.b16 %v5848, %v5847
        %v5942 = vpack.c.b16 %v5850, %v5849
        %v5943 = vpack.c.b16 %v5852, %v5851
        %v5944 = vpack.c.b16 %v5854, %v5853
        %v5945 = vpack.c.b16 %v5856, %v5855
        %v5946 = vpack.c.b16 %v5858, %v5857
        %v5947 = vpack.c.b16 %v5860, %v5859
        %v5948 = vpack.c.b16 %v5862, %v5861
        %v5949 = vpack.c.b16 %v5864, %v5863
        %v5950 = vpack.c.b16 %v5866, %v5865
        %v5951 = vpack.c.b16 %v5868, %v5867
        %v5952 = vpack.c.b16 %v5870, %v5869
        %v5953 = vpack.c.b16 %v5872, %v5871
        %v5954 = vpack.c.b16 %v5874, %v5873
        %v5955 = vpack.c.b16 %v5876, %v5875
        %v5956 = vpack.c.b16 %v5878, %v5877
        %v5957 = vpack.c.b16 %v5880, %v5879
        %v5958 = vpack.c.b16 %v5882, %v5881
        %v5959 = vpack.c.b16 %v5884, %v5883
        %v5960 = vpack.c.b16 %v5886, %v5885
        %v5961 = vpack.c.b16 %v5888, %v5887
        %v5962 = vpack.c.b16 %v5890, %v5889
        %6035 = vmatprep.subr.bf16.mxu0 0
        %6036 = vmatpush1.bf16.msra.mxu0 %v5891
        %6037 = vmatprep.subr.bf16.mxu0 0
        %6038 = vmatpush1.bf16.msra.mxu0 %v5892
        %6039 = vmatprep.subr.bf16.mxu0 0
        %6040 = vmatpush1.bf16.msra.mxu0 %v5893
        %6041 = vmatprep.subr.bf16.mxu0 0
        %6042 = vmatpush1.bf16.msra.mxu0 %v5894
        %6043 = vmatprep.subr.bf16.mxu0 0
        %6044 = vmatpush1.bf16.msra.mxu0 %v5895
        %6045 = vmatprep.subr.bf16.mxu0 0
        %6046 = vmatpush1.bf16.msra.mxu0 %v5896
        %6047 = vmatprep.subr.bf16.mxu0 0
        %6048 = vmatpush1.bf16.msra.mxu0 %v5897
        %6049 = vmatprep.subr.bf16.mxu0 0
        %6050 = vmatpush1.bf16.msra.mxu0 %v5898
        %6051 = vmatprep.subr.bf16.mxu0 0
        %6052 = vmatpush1.bf16.msra.mxu0 %v5899
        %6053 = vmatprep.subr.bf16.mxu0 0
        %6054 = vmatpush1.bf16.msra.mxu0 %v5900
        %6055 = vmatprep.subr.bf16.mxu0 0
        %6056 = vmatpush1.bf16.msra.mxu0 %v5901
        %6057 = vmatprep.subr.bf16.mxu0 0
        %6058 = vmatpush1.bf16.msra.mxu0 %v5902
        %6059 = vmatprep.subr.bf16.mxu0 0
        %6060 = vmatpush1.bf16.msra.mxu0 %v5903
        %6061 = vmatprep.subr.bf16.mxu0 0
        %6062 = vmatpush1.bf16.msra.mxu0 %v5904
        %6063 = vmatprep.subr.bf16.mxu0 0
        %6064 = vmatpush1.bf16.msra.mxu0 %v5905
        %6065 = vmatprep.subr.bf16.mxu0 0
        %6066 = vmatpush1.bf16.msra.mxu0 %v5906
        %6067 = vmatprep.mubr.bf16.mxu0 %v5414
        %6068 = vmatmul.mubr.bf16.gmra.mrb[0].mxu0 %v5397
        %v6069 = vpop.f32.mrb[0].mxu0
        %v6070 = vadd.f32 %v5601, %v6069
        %v6071 = vpop.f32.mrb[0].mxu0
        %v6072 = vpop.f32.mrb[0].mxu0
        %v6073 = vpop.f32.mrb[0].mxu0
        %6074 = vdwg.mxu0
        %6075 = vmatprep.subr.bf16.mxu0 0
        %6076 = vmatpush1.bf16.msra.mxu0 %v5907
        %6077 = vmatprep.subr.bf16.mxu0 0
        %6078 = vmatpush1.bf16.msra.mxu0 %v5908
        %6079 = vmatprep.subr.bf16.mxu0 0
        %6080 = vmatpush1.bf16.msra.mxu0 %v5909
        %6081 = vmatprep.subr.bf16.mxu0 0
        %6082 = vmatpush1.bf16.msra.mxu0 %v5910
        %6083 = vmatprep.subr.bf16.mxu0 0
        %6084 = vmatpush1.bf16.msra.mxu0 %v5911
        %6085 = vmatprep.subr.bf16.mxu0 0
        %6086 = vmatpush1.bf16.msra.mxu0 %v5912
        %6087 = vmatprep.subr.bf16.mxu0 0
        %6088 = vmatpush1.bf16.msra.mxu0 %v5913
        %6089 = vmatprep.subr.bf16.mxu0 0
        %6090 = vmatpush1.bf16.msra.mxu0 %v5914
        %6091 = vmatprep.subr.bf16.mxu0 0
        %6092 = vmatpush1.bf16.msra.mxu0 %v5915
        %6093 = vmatprep.subr.bf16.mxu0 0
        %6094 = vmatpush1.bf16.msra.mxu0 %v5916
        %6095 = vmatprep.subr.bf16.mxu0 0
        %6096 = vmatpush1.bf16.msra.mxu0 %v5917
        %6097 = vmatprep.subr.bf16.mxu0 0
        %6098 = vmatpush1.bf16.msra.mxu0 %v5918
        %6099 = vmatprep.subr.bf16.mxu0 0
        %6100 = vmatpush1.bf16.msra.mxu0 %v5919
        %6101 = vmatprep.subr.bf16.mxu0 0
        %6102 = vmatpush1.bf16.msra.mxu0 %v5920
        %6103 = vmatprep.subr.bf16.mxu0 0
        %6104 = vmatpush1.bf16.msra.mxu0 %v5921
        %6105 = vmatprep.subr.bf16.mxu0 0
        %6106 = vmatpush1.bf16.msra.mxu0 %v5922
        %6107 = vmatprep.mubr.bf16.mxu0 %v5399
        %6108 = vmatmul.mubr.bf16.gmra.mrb[0].mxu0 %v5416
        %v6109 = vpop.f32.mrb[0].mxu0
        %v6110 = vadd.f32 %v6070, %v6109
        %v6111 = vpop.f32.mrb[0].mxu0
        %v6112 = vpop.f32.mrb[0].mxu0
        %v6113 = vpop.f32.mrb[0].mxu0
        %6114 = vdwg.mxu0
        %6115 = vmatprep.subr.bf16.mxu0 0
        %6116 = vmatpush1.bf16.msra.mxu0 %v5923
        %6117 = vmatprep.subr.bf16.mxu0 0
        %6118 = vmatpush1.bf16.msra.mxu0 %v5924
        %6119 = vmatprep.subr.bf16.mxu0 0
        %6120 = vmatpush1.bf16.msra.mxu0 %v5925
        %6121 = vmatprep.subr.bf16.mxu0 0
        %6122 = vmatpush1.bf16.msra.mxu0 %v5926
        %6123 = vmatprep.subr.bf16.mxu0 0
        %6124 = vmatpush1.bf16.msra.mxu0 %v5927
        %6125 = vmatprep.subr.bf16.mxu0 0
        %6126 = vmatpush1.bf16.msra.mxu0 %v5928
        %6127 = vmatprep.subr.bf16.mxu0 0
        %6128 = vmatpush1.bf16.msra.mxu0 %v5929
        %6129 = vmatprep.subr.bf16.mxu0 0
        %6130 = vmatpush1.bf16.msra.mxu0 %v5930
        %6131 = vmatprep.subr.bf16.mxu0 0
        %6132 = vmatpush1.bf16.msra.mxu0 %v5931
        %6133 = vmatprep.subr.bf16.mxu0 0
        %6134 = vmatpush1.bf16.msra.mxu0 %v5932
        %6135 = vmatprep.subr.bf16.mxu0 0
        %6136 = vmatpush1.bf16.msra.mxu0 %v5933
        %6137 = vmatprep.subr.bf16.mxu0 0
        %6138 = vmatpush1.bf16.msra.mxu0 %v5934
        %6139 = vmatprep.subr.bf16.mxu0 0
        %6140 = vmatpush1.bf16.msra.mxu0 %v5935
        %6141 = vmatprep.subr.bf16.mxu0 0
        %6142 = vmatpush1.bf16.msra.mxu0 %v5936
        %6143 = vmatprep.subr.bf16.mxu0 0
        %6144 = vmatpush1.bf16.msra.mxu0 %v5937
        %6145 = vmatprep.subr.bf16.mxu0 0
        %6146 = vmatpush1.bf16.msra.mxu0 %v5938
        %6147 = vmatprep.mubr.bf16.mxu0 %v5431
        %6148 = vmatmul.mubr.bf16.gmra.mrb[0].mxu0 %v5429
        %v6149 = vpop.f32.mrb[0].mxu0
        %v6150 = vadd.f32 %v6110, %v6149
        %v6151 = vpop.f32.mrb[0].mxu0
        %v6152 = vpop.f32.mrb[0].mxu0
        %v6153 = vpop.f32.mrb[0].mxu0
        %6154 = vdwg.mxu0
        %6155 = vmatprep.subr.bf16.mxu0 0
        %6156 = vmatpush1.bf16.msra.mxu0 %v5939
        %6157 = vmatprep.subr.bf16.mxu0 0
        %6158 = vmatpush1.bf16.msra.mxu0 %v5940
        %6159 = vmatprep.subr.bf16.mxu0 0
        %6160 = vmatpush1.bf16.msra.mxu0 %v5941
        %6161 = vmatprep.subr.bf16.mxu0 0
        %6162 = vmatpush1.bf16.msra.mxu0 %v5942
        %6163 = vmatprep.subr.bf16.mxu0 0
        %6164 = vmatpush1.bf16.msra.mxu0 %v5943
        %6165 = vmatprep.subr.bf16.mxu0 0
        %6166 = vmatpush1.bf16.msra.mxu0 %v5944
        %6167 = vmatprep.subr.bf16.mxu0 0
        %6168 = vmatpush1.bf16.msra.mxu0 %v5945
        %6169 = vmatprep.subr.bf16.mxu0 0
        %6170 = vmatpush1.bf16.msra.mxu0 %v5946
        %6171 = vmatprep.subr.bf16.mxu0 0
        %6172 = vmatpush1.bf16.msra.mxu0 %v5947
        %6173 = vmatprep.subr.bf16.mxu0 0
        %6174 = vmatpush1.bf16.msra.mxu0 %v5948
        %6175 = vmatprep.subr.bf16.mxu0 0
        %6176 = vmatpush1.bf16.msra.mxu0 %v5949
        %6177 = vmatprep.subr.bf16.mxu0 0
        %6178 = vmatpush1.bf16.msra.mxu0 %v5950
        %6179 = vmatprep.subr.bf16.mxu0 0
        %6180 = vmatpush1.bf16.msra.mxu0 %v5951
        %6181 = vmatprep.subr.bf16.mxu0 0
        %6182 = vmatpush1.bf16.msra.mxu0 %v5952
        %6183 = vmatprep.subr.bf16.mxu0 0
        %6184 = vmatpush1.bf16.msra.mxu0 %v5953
        %6185 = vmatprep.subr.bf16.mxu0 0
        %6186 = vmatpush1.bf16.msra.mxu0 %v5954
        %6187 = vmatprep.mubr.bf16.mxu0 %v5444
        %6188 = vmatmul.mubr.bf16.gmra.mrb[0].mxu0 %v5401
        %v6189 = vpop.f32.mrb[0].mxu0
        %v6190 = vadd.f32 %v6150, %v6189
        %v6191 = vpop.f32.mrb[0].mxu0
        %v6192 = vpop.f32.mrb[0].mxu0
        %v6193 = vpop.f32.mrb[0].mxu0
        %6194 = vdwg.mxu0
        %6195 = vmatprep.subr.bf16.mxu0 0
        %6196 = vmatpush1.bf16.msra.mxu0 %v5955
        %6197 = vmatprep.subr.bf16.mxu0 0
        %6198 = vmatpush1.bf16.msra.mxu0 %v5956
        %6199 = vmatprep.subr.bf16.mxu0 0
        %6200 = vmatpush1.bf16.msra.mxu0 %v5957
        %6201 = vmatprep.subr.bf16.mxu0 0
        %6202 = vmatpush1.bf16.msra.mxu0 %v5958
        %6203 = vmatprep.subr.bf16.mxu0 0
        %6204 = vmatpush1.bf16.msra.mxu0 %v5959
        %6205 = vmatprep.subr.bf16.mxu0 0
        %6206 = vmatpush1.bf16.msra.mxu0 %v5960
        %6207 = vmatprep.subr.bf16.mxu0 0
        %6208 = vmatpush1.bf16.msra.mxu0 %v5961
        %6209 = vmatprep.subr.bf16.mxu0 0
        %6210 = vmatpush1.bf16.msra.mxu0 %v5962
        %6211 = vmatprep.subr.bf16.mxu0 0
        %6212 = vmatpush1.bf16.msra.mxu0 0
        %6213 = vmatprep.subr.bf16.mxu0 0
        %6214 = vmatpush1.bf16.msra.mxu0 0
        %6215 = vmatprep.subr.bf16.mxu0 0
        %6216 = vmatpush1.bf16.msra.mxu0 0
        %6217 = vmatprep.subr.bf16.mxu0 0
        %6218 = vmatpush1.bf16.msra.mxu0 0
        %6219 = vmatprep.subr.bf16.mxu0 0
        %6220 = vmatpush1.bf16.msra.mxu0 0
        %6221 = vmatprep.subr.bf16.mxu0 0
        %6222 = vmatpush1.bf16.msra.mxu0 0
        %6223 = vmatprep.subr.bf16.mxu0 0
        %6224 = vmatpush1.bf16.msra.mxu0 0
        %6225 = vmatprep.subr.bf16.mxu0 0
        %6226 = vmatpush1.bf16.msra.mxu0 0
        %6227 = vmatprep.mubr.bf16.mxu0 0
        %6228 = vmatmul.mubr.bf16.gmra.mrb[0].mxu0 %v5446
        %v6229 = vpop.f32.mrb[0].mxu0
        %v6230 = vadd.f32 %v6190, %v6229
        %v6231 = vpop.f32.mrb[0].mxu0
        %v6232 = vpop.f32.mrb[0].mxu0
        %v6233 = vpop.f32.mrb[0].mxu0
        %6234 = vdwg.mxu0
        %v6237 = vrot.slane %v5594, 1
        %v6238 = vrot.slane %v5595, 1
        %v6239 = vsel %vm4541, %v6237, %v6238
        %v6241 = vadd.f32 %v6230, %v6239
        %v6242 = vmax.f32 %v6241, 0.0
        %s6243 = scalar_lea.vmem %s247, 16 [#allocation8]
        %6244 = vst [vmem:[%s6243] sm:$0xff] %v6242
        %v6245 = vld [vmem:[%s2837] sm:$0xf]
        %v6246 = vld [vmem:[%s2837 + $0x4] sm:$0x1]
        %v6247 = vld [vmem:[%s3694] sm:$0xf]
        %v6248 = vld [vmem:[%s3694 + $0x4] sm:$0x1]
        %s6249 = scalar_lea.vmem [#allocation2], 40
        %v6250 = vld [vmem:[%s6249] sm:$0xf]
        %v6251 = vld [vmem:[%s6249 + $0x4] sm:$0x1]
        %v6254 = vunpack.c.l.b16 %v6245
        %v6255 = vunpack.c.l.b16 %v6246
        %v6256 = vpack.c.b16 %v6255, %v6254
        %v6258 = vshrl.u32 %v6256, 16
        %v6260 = vshll.u32 %v6256, 16
        %v6262 = vrot.slane %v6260, 1
        %v6263 = vor.u32 %v6258, %v6262
        %v6265 = vrot.slane %v6256, 1
        %v6269 = vunpack.c.l.b16 %v6247
        %v6270 = vunpack.c.l.b16 %v6248
        %v6271 = vpack.c.b16 %v6270, %v6269
        %v6273 = vshrl.u32 %v6271, 16
        %v6275 = vshll.u32 %v6271, 16
        %v6277 = vrot.slane %v6275, 1
        %v6278 = vor.u32 %v6273, %v6277
        %v6280 = vrot.slane %v6271, 1
        %v6284 = vunpack.c.l.b16 %v6250
        %v6285 = vunpack.c.l.b16 %v6251
        %v6286 = vpack.c.b16 %v6285, %v6284
        %v6288 = vshrl.u32 %v6286, 16
        %v6290 = vshll.u32 %v6286, 16
        %v6292 = vrot.slane %v6290, 1
        %v6293 = vor.u32 %v6288, %v6292
        %v6295 = vrot.slane %v6286, 1
        %v6297 = vld [vmem:[#allocation6] sm:$0xf]
        %v6298 = vld [vmem:[#allocation6 + $0x4] sm:$0xf]
        %v6299 = vld [vmem:[#allocation6 + $0x8] sm:$0xf]
        %v6300 = vld [vmem:[#allocation6 + $0xc] sm:$0xf]
        %v6301 = vld [vmem:[#allocation6 + $0x10] sm:$0xf]
        %v6302 = vld [vmem:[#allocation6 + $0x14] sm:$0xf]
        %v6303 = vld [vmem:[#allocation6 + $0x18] sm:$0xf]
        %v6304 = vld [vmem:[#allocation6 + $0x1c] sm:$0xf]
        %v6305 = vld [vmem:[#allocation6 + $0x20] sm:$0xf]
        %v6306 = vld [vmem:[#allocation6 + $0x24] sm:$0xf]
        %v6307 = vld [vmem:[#allocation6 + $0x28] sm:$0xf]
        %v6308 = vld [vmem:[#allocation6 + $0x2c] sm:$0xf]
        %v6309 = vld [vmem:[#allocation6 + $0x30] sm:$0xf]
        %v6310 = vld [vmem:[#allocation6 + $0x34] sm:$0xf]
        %v6311 = vld [vmem:[#allocation6 + $0x38] sm:$0xf]
        %v6312 = vld [vmem:[#allocation6 + $0x3c] sm:$0xf]
        %v6313 = vld [vmem:[#allocation6 + $0x40] sm:$0xf]
        %v6314 = vld [vmem:[#allocation6 + $0x44] sm:$0xf]
        %v6315 = vld [vmem:[#allocation6 + $0x48] sm:$0xf]
        %v6316 = vld [vmem:[#allocation6 + $0x4c] sm:$0xf]
        %v6317 = vld [vmem:[#allocation6 + $0x50] sm:$0xf]
        %v6318 = vld [vmem:[#allocation6 + $0x54] sm:$0xf]
        %v6319 = vld [vmem:[#allocation6 + $0x58] sm:$0xf]
        %v6320 = vld [vmem:[#allocation6 + $0x5c] sm:$0xf]
        %v6321 = vld [vmem:[#allocation6 + $0x60] sm:$0xf]
        %v6322 = vld [vmem:[#allocation6 + $0x64] sm:$0xf]
        %v6323 = vld [vmem:[#allocation6 + $0x68] sm:$0xf]
        %v6324 = vld [vmem:[#allocation6 + $0x6c] sm:$0xf]
        %v6325 = vld [vmem:[#allocation6 + $0x70] sm:$0xf]
        %v6326 = vld [vmem:[#allocation6 + $0x74] sm:$0xf]
        %v6327 = vld [vmem:[#allocation6 + $0x78] sm:$0xf]
        %v6328 = vld [vmem:[#allocation6 + $0x7c] sm:$0xf]
        %v6329 = vld [vmem:[#allocation6 + $0x80] sm:$0xf]
        %v6330 = vld [vmem:[#allocation6 + $0x84] sm:$0xf]
        %v6331 = vld [vmem:[#allocation6 + $0x88] sm:$0xf]
        %v6332 = vld [vmem:[#allocation6 + $0x8c] sm:$0xf]
        %v6333 = vld [vmem:[#allocation6 + $0x90] sm:$0xf]
        %v6334 = vld [vmem:[#allocation6 + $0x94] sm:$0xf]
        %v6335 = vld [vmem:[#allocation6 + $0x98] sm:$0xf]
        %v6336 = vld [vmem:[#allocation6 + $0x9c] sm:$0xf]
        %v6337 = vld [vmem:[#allocation6 + $0xa0] sm:$0xf]
        %v6338 = vld [vmem:[#allocation6 + $0xa4] sm:$0xf]
        %v6339 = vld [vmem:[#allocation6 + $0xa8] sm:$0xf]
        %v6340 = vld [vmem:[#allocation6 + $0xac] sm:$0xf]
        %v6341 = vld [vmem:[#allocation6 + $0xb0] sm:$0xf]
        %v6342 = vld [vmem:[#allocation6 + $0xb4] sm:$0xf]
        %v6343 = vld [vmem:[#allocation6 + $0xb8] sm:$0xf]
        %v6344 = vld [vmem:[#allocation6 + $0xbc] sm:$0xf]
        %v6345 = vld [vmem:[#allocation6 + $0xc0] sm:$0xf]
        %v6346 = vld [vmem:[#allocation6 + $0xc4] sm:$0xf]
        %v6347 = vld [vmem:[#allocation6 + $0xc8] sm:$0xf]
        %v6348 = vld [vmem:[#allocation6 + $0xcc] sm:$0xf]
        %v6349 = vld [vmem:[#allocation6 + $0xd0] sm:$0xf]
        %v6350 = vld [vmem:[#allocation6 + $0xd4] sm:$0xf]
        %v6351 = vld [vmem:[#allocation6 + $0xd8] sm:$0xf]
        %v6352 = vld [vmem:[#allocation6 + $0xdc] sm:$0xf]
        %v6353 = vld [vmem:[#allocation6 + $0xe0] sm:$0xf]
        %v6354 = vld [vmem:[#allocation6 + $0xe4] sm:$0xf]
        %v6355 = vld [vmem:[#allocation6 + $0xe8] sm:$0xf]
        %v6356 = vld [vmem:[#allocation6 + $0xec] sm:$0xf]
        %v6357 = vld [vmem:[#allocation6 + $0xf0] sm:$0xf]
        %v6358 = vld [vmem:[#allocation6 + $0xf4] sm:$0xf]
        %v6359 = vld [vmem:[#allocation6 + $0xf8] sm:$0xf]
        %v6360 = vld [vmem:[#allocation6 + $0xfc] sm:$0xf]
        %v6361 = vld [vmem:[#allocation6 + $0x100] sm:$0xf]
        %v6362 = vld [vmem:[#allocation6 + $0x104] sm:$0xf]
        %v6363 = vld [vmem:[#allocation6 + $0x108] sm:$0xf]
        %v6364 = vld [vmem:[#allocation6 + $0x10c] sm:$0xf]
        %v6365 = vld [vmem:[#allocation6 + $0x110] sm:$0xf]
        %v6366 = vld [vmem:[#allocation6 + $0x114] sm:$0xf]
        %v6367 = vld [vmem:[#allocation6 + $0x118] sm:$0xf]
        %v6368 = vld [vmem:[#allocation6 + $0x11c] sm:$0xf]
        %v6369 = vld [vmem:[#allocation6 + $0x120] sm:$0xf]
        %v6370 = vld [vmem:[#allocation6 + $0x124] sm:$0xf]
        %v6371 = vld [vmem:[#allocation6 + $0x128] sm:$0xf]
        %v6372 = vld [vmem:[#allocation6 + $0x12c] sm:$0xf]
        %v6373 = vld [vmem:[#allocation6 + $0x130] sm:$0xf]
        %v6374 = vld [vmem:[#allocation6 + $0x134] sm:$0xf]
        %v6375 = vld [vmem:[#allocation6 + $0x138] sm:$0xf]
        %v6376 = vld [vmem:[#allocation6 + $0x13c] sm:$0xf]
        %v6377 = vld [vmem:[#allocation6 + $0x140] sm:$0xf]
        %v6378 = vld [vmem:[#allocation6 + $0x144] sm:$0xf]
        %v6379 = vld [vmem:[#allocation6 + $0x148] sm:$0xf]
        %v6380 = vld [vmem:[#allocation6 + $0x14c] sm:$0xf]
        %v6381 = vld [vmem:[#allocation6 + $0x150] sm:$0xf]
        %v6382 = vld [vmem:[#allocation6 + $0x154] sm:$0xf]
        %v6383 = vld [vmem:[#allocation6 + $0x158] sm:$0xf]
        %v6384 = vld [vmem:[#allocation6 + $0x15c] sm:$0xf]
        %v6385 = vld [vmem:[#allocation6 + $0x160] sm:$0xf]
        %v6386 = vld [vmem:[#allocation6 + $0x164] sm:$0xf]
        %v6387 = vld [vmem:[#allocation6 + $0x168] sm:$0xf]
        %v6388 = vld [vmem:[#allocation6 + $0x16c] sm:$0xf]
        %v6389 = vld [vmem:[#allocation6 + $0x170] sm:$0xf]
        %v6390 = vld [vmem:[#allocation6 + $0x174] sm:$0xf]
        %v6391 = vld [vmem:[#allocation6 + $0x178] sm:$0xf]
        %v6392 = vld [vmem:[#allocation6 + $0x17c] sm:$0xf]
        %v6393 = vld [vmem:[#allocation6 + $0x180] sm:$0xf]
        %v6394 = vld [vmem:[#allocation6 + $0x184] sm:$0xf]
        %v6395 = vld [vmem:[#allocation6 + $0x188] sm:$0xf]
        %v6396 = vld [vmem:[#allocation6 + $0x18c] sm:$0xf]
        %v6397 = vld [vmem:[#allocation6 + $0x190] sm:$0xf]
        %v6398 = vld [vmem:[#allocation6 + $0x194] sm:$0xf]
        %v6399 = vld [vmem:[#allocation6 + $0x198] sm:$0xf]
        %v6400 = vld [vmem:[#allocation6 + $0x19c] sm:$0xf]
        %v6401 = vld [vmem:[#allocation6 + $0x1a0] sm:$0xf]
        %v6402 = vld [vmem:[#allocation6 + $0x1a4] sm:$0xf]
        %v6403 = vld [vmem:[#allocation6 + $0x1a8] sm:$0xf]
        %v6404 = vld [vmem:[#allocation6 + $0x1ac] sm:$0xf]
        %v6405 = vld [vmem:[#allocation6 + $0x1b0] sm:$0xf]
        %v6406 = vld [vmem:[#allocation6 + $0x1b4] sm:$0xf]
        %v6407 = vld [vmem:[#allocation6 + $0x1b8] sm:$0xf]
        %v6408 = vld [vmem:[#allocation6 + $0x1bc] sm:$0xf]
        %v6409 = vld [vmem:[#allocation6 + $0x1c0] sm:$0xf]
        %v6410 = vld [vmem:[#allocation6 + $0x1c4] sm:$0xf]
        %v6411 = vld [vmem:[#allocation6 + $0x1c8] sm:$0xf]
        %v6412 = vld [vmem:[#allocation6 + $0x1cc] sm:$0xf]
        %v6413 = vld [vmem:[#allocation6 + $0x1d0] sm:$0xf]
        %v6414 = vld [vmem:[#allocation6 + $0x1d4] sm:$0xf]
        %v6415 = vld [vmem:[#allocation6 + $0x1d8] sm:$0xf]
        %v6416 = vld [vmem:[#allocation6 + $0x1dc] sm:$0xf]
        %v6417 = vld [vmem:[#allocation6 + $0x1e0] sm:$0xf]
        %v6418 = vld [vmem:[#allocation6 + $0x1e4] sm:$0xf]
        %v6419 = vld [vmem:[#allocation6 + $0x1e8] sm:$0xf]
        %v6420 = vld [vmem:[#allocation6 + $0x1ec] sm:$0xf]
        %v6421 = vld [vmem:[#allocation6 + $0x1f0] sm:$0xf]
        %v6422 = vld [vmem:[#allocation6 + $0x1f4] sm:$0xf]
        %v6423 = vld [vmem:[#allocation6 + $0x1f8] sm:$0xf]
        %v6424 = vld [vmem:[#allocation6 + $0x1fc] sm:$0xf]
        %v6425 = vld [vmem:[#allocation6 + $0x200] sm:$0xf]
        %v6426 = vld [vmem:[#allocation6 + $0x204] sm:$0xf]
        %v6427 = vld [vmem:[#allocation6 + $0x208] sm:$0xf]
        %v6428 = vld [vmem:[#allocation6 + $0x20c] sm:$0xf]
        %v6429 = vld [vmem:[#allocation6 + $0x210] sm:$0xf]
        %v6430 = vld [vmem:[#allocation6 + $0x214] sm:$0xf]
        %v6431 = vld [vmem:[#allocation6 + $0x218] sm:$0xf]
        %v6432 = vld [vmem:[#allocation6 + $0x21c] sm:$0xf]
        %v6433 = vld [vmem:[#allocation6 + $0x220] sm:$0xf]
        %v6434 = vld [vmem:[#allocation6 + $0x224] sm:$0xf]
        %v6435 = vld [vmem:[#allocation6 + $0x228] sm:$0xf]
        %v6436 = vld [vmem:[#allocation6 + $0x22c] sm:$0xf]
        %v6437 = vld [vmem:[#allocation6 + $0x230] sm:$0xf]
        %v6438 = vld [vmem:[#allocation6 + $0x234] sm:$0xf]
        %v6439 = vld [vmem:[#allocation6 + $0x238] sm:$0xf]
        %v6440 = vld [vmem:[#allocation6 + $0x23c] sm:$0xf]
        %v6441 = vld [vmem:[%s1991] sm:$0xf]
        %v6442 = vld [vmem:[%s1991 + $0x4] sm:$0x1]
        %v6443 = vunpack.c.l.bf16 %v6441
        %v6444 = vunpack.c.l.bf16 %v6442
        %v6445 = vld [vmem:[%s4] sm:$0x1]
        %v6447 = vlaneseq
        %v6448 = vshrl.u32 %v6447, 7
        %v6449 = vsub.s32 0, %v6448
        %v6450 = vrot.slane %v6445, %v6449
        %v6596 = vunpack.c.l.b16 %v6297
        %v6597 = vunpack.c.l.b16 %v6298
        %v6598 = vunpack.c.l.b16 %v6299
        %v6599 = vunpack.c.l.b16 %v6300
        %v6600 = vunpack.c.l.b16 %v6301
        %v6601 = vunpack.c.l.b16 %v6302
        %v6602 = vunpack.c.l.b16 %v6303
        %v6603 = vunpack.c.l.b16 %v6304
        %v6604 = vunpack.c.l.b16 %v6305
        %v6605 = vunpack.c.l.b16 %v6306
        %v6606 = vunpack.c.l.b16 %v6307
        %v6607 = vunpack.c.l.b16 %v6308
        %v6608 = vunpack.c.l.b16 %v6309
        %v6609 = vunpack.c.l.b16 %v6310
        %v6610 = vunpack.c.l.b16 %v6311
        %v6611 = vunpack.c.l.b16 %v6312
        %v6612 = vunpack.c.l.b16 %v6313
        %v6613 = vunpack.c.l.b16 %v6314
        %v6614 = vunpack.c.l.b16 %v6315
        %v6615 = vunpack.c.l.b16 %v6316
        %v6616 = vunpack.c.l.b16 %v6317
        %v6617 = vunpack.c.l.b16 %v6318
        %v6618 = vunpack.c.l.b16 %v6319
        %v6619 = vunpack.c.l.b16 %v6320
        %v6620 = vunpack.c.l.b16 %v6321
        %v6621 = vunpack.c.l.b16 %v6322
        %v6622 = vunpack.c.l.b16 %v6323
        %v6623 = vunpack.c.l.b16 %v6324
        %v6624 = vunpack.c.l.b16 %v6325
        %v6625 = vunpack.c.l.b16 %v6326
        %v6626 = vunpack.c.l.b16 %v6327
        %v6627 = vunpack.c.l.b16 %v6328
        %v6628 = vunpack.c.l.b16 %v6329
        %v6629 = vunpack.c.l.b16 %v6330
        %v6630 = vunpack.c.l.b16 %v6331
        %v6631 = vunpack.c.l.b16 %v6332
        %v6632 = vunpack.c.l.b16 %v6333
        %v6633 = vunpack.c.l.b16 %v6334
        %v6634 = vunpack.c.l.b16 %v6335
        %v6635 = vunpack.c.l.b16 %v6336
        %v6636 = vunpack.c.l.b16 %v6337
        %v6637 = vunpack.c.l.b16 %v6338
        %v6638 = vunpack.c.l.b16 %v6339
        %v6639 = vunpack.c.l.b16 %v6340
        %v6640 = vunpack.c.l.b16 %v6341
        %v6641 = vunpack.c.l.b16 %v6342
        %v6642 = vunpack.c.l.b16 %v6343
        %v6643 = vunpack.c.l.b16 %v6344
        %v6644 = vunpack.c.l.b16 %v6345
        %v6645 = vunpack.c.l.b16 %v6346
        %v6646 = vunpack.c.l.b16 %v6347
        %v6647 = vunpack.c.l.b16 %v6348
        %v6648 = vunpack.c.l.b16 %v6349
        %v6649 = vunpack.c.l.b16 %v6350
        %v6650 = vunpack.c.l.b16 %v6351
        %v6651 = vunpack.c.l.b16 %v6352
        %v6652 = vunpack.c.l.b16 %v6353
        %v6653 = vunpack.c.l.b16 %v6354
        %v6654 = vunpack.c.l.b16 %v6355
        %v6655 = vunpack.c.l.b16 %v6356
        %v6656 = vunpack.c.l.b16 %v6357
        %v6657 = vunpack.c.l.b16 %v6358
        %v6658 = vunpack.c.l.b16 %v6359
        %v6659 = vunpack.c.l.b16 %v6360
        %v6660 = vunpack.c.l.b16 %v6361
        %v6661 = vunpack.c.l.b16 %v6362
        %v6662 = vunpack.c.l.b16 %v6363
        %v6663 = vunpack.c.l.b16 %v6364
        %v6664 = vunpack.c.l.b16 %v6365
        %v6665 = vunpack.c.l.b16 %v6366
        %v6666 = vunpack.c.l.b16 %v6367
        %v6667 = vunpack.c.l.b16 %v6368
        %v6668 = vunpack.c.l.b16 %v6369
        %v6669 = vunpack.c.l.b16 %v6370
        %v6670 = vunpack.c.l.b16 %v6371
        %v6671 = vunpack.c.l.b16 %v6372
        %v6672 = vunpack.c.l.b16 %v6373
        %v6673 = vunpack.c.l.b16 %v6374
        %v6674 = vunpack.c.l.b16 %v6375
        %v6675 = vunpack.c.l.b16 %v6376
        %v6676 = vunpack.c.l.b16 %v6377
        %v6677 = vunpack.c.l.b16 %v6378
        %v6678 = vunpack.c.l.b16 %v6379
        %v6679 = vunpack.c.l.b16 %v6380
        %v6680 = vunpack.c.l.b16 %v6381
        %v6681 = vunpack.c.l.b16 %v6382
        %v6682 = vunpack.c.l.b16 %v6383
        %v6683 = vunpack.c.l.b16 %v6384
        %v6684 = vunpack.c.l.b16 %v6385
        %v6685 = vunpack.c.l.b16 %v6386
        %v6686 = vunpack.c.l.b16 %v6387
        %v6687 = vunpack.c.l.b16 %v6388
        %v6688 = vunpack.c.l.b16 %v6389
        %v6689 = vunpack.c.l.b16 %v6390
        %v6690 = vunpack.c.l.b16 %v6391
        %v6691 = vunpack.c.l.b16 %v6392
        %v6692 = vunpack.c.l.b16 %v6393
        %v6693 = vunpack.c.l.b16 %v6394
        %v6694 = vunpack.c.l.b16 %v6395
        %v6695 = vunpack.c.l.b16 %v6396
        %v6696 = vunpack.c.l.b16 %v6397
        %v6697 = vunpack.c.l.b16 %v6398
        %v6698 = vunpack.c.l.b16 %v6399
        %v6699 = vunpack.c.l.b16 %v6400
        %v6700 = vunpack.c.l.b16 %v6401
        %v6701 = vunpack.c.l.b16 %v6402
        %v6702 = vunpack.c.l.b16 %v6403
        %v6703 = vunpack.c.l.b16 %v6404
        %v6704 = vunpack.c.l.b16 %v6405
        %v6705 = vunpack.c.l.b16 %v6406
        %v6706 = vunpack.c.l.b16 %v6407
        %v6707 = vunpack.c.l.b16 %v6408
        %v6708 = vunpack.c.l.b16 %v6409
        %v6709 = vunpack.c.l.b16 %v6410
        %v6710 = vunpack.c.l.b16 %v6411
        %v6711 = vunpack.c.l.b16 %v6412
        %v6712 = vunpack.c.l.b16 %v6413
        %v6713 = vunpack.c.l.b16 %v6414
        %v6714 = vunpack.c.l.b16 %v6415
        %v6715 = vunpack.c.l.b16 %v6416
        %v6716 = vunpack.c.l.b16 %v6417
        %v6717 = vunpack.c.l.b16 %v6418
        %v6718 = vunpack.c.l.b16 %v6419
        %v6719 = vunpack.c.l.b16 %v6420
        %v6720 = vunpack.c.l.b16 %v6421
        %v6721 = vunpack.c.l.b16 %v6422
        %v6722 = vunpack.c.l.b16 %v6423
        %v6723 = vunpack.c.l.b16 %v6424
        %v6724 = vunpack.c.l.b16 %v6425
        %v6725 = vunpack.c.l.b16 %v6426
        %v6726 = vunpack.c.l.b16 %v6427
        %v6727 = vunpack.c.l.b16 %v6428
        %v6728 = vunpack.c.l.b16 %v6429
        %v6729 = vunpack.c.l.b16 %v6430
        %v6730 = vunpack.c.l.b16 %v6431
        %v6731 = vunpack.c.l.b16 %v6432
        %v6732 = vunpack.c.l.b16 %v6433
        %v6733 = vunpack.c.l.b16 %v6434
        %v6734 = vunpack.c.l.b16 %v6435
        %v6735 = vunpack.c.l.b16 %v6436
        %v6736 = vunpack.c.l.b16 %v6437
        %v6737 = vunpack.c.l.b16 %v6438
        %v6738 = vunpack.c.l.b16 %v6439
        %v6739 = vunpack.c.l.b16 %v6440
        %v6740 = vpack.c.b16 %v6597, %v6596
        %v6741 = vpack.c.b16 %v6599, %v6598
        %v6742 = vpack.c.b16 %v6601, %v6600
        %v6743 = vpack.c.b16 %v6603, %v6602
        %v6744 = vpack.c.b16 %v6605, %v6604
        %v6745 = vpack.c.b16 %v6607, %v6606
        %v6746 = vpack.c.b16 %v6609, %v6608
        %v6747 = vpack.c.b16 %v6611, %v6610
        %v6748 = vpack.c.b16 %v6613, %v6612
        %v6749 = vpack.c.b16 %v6615, %v6614
        %v6750 = vpack.c.b16 %v6617, %v6616
        %v6751 = vpack.c.b16 %v6619, %v6618
        %v6752 = vpack.c.b16 %v6621, %v6620
        %v6753 = vpack.c.b16 %v6623, %v6622
        %v6754 = vpack.c.b16 %v6625, %v6624
        %v6755 = vpack.c.b16 %v6627, %v6626
        %v6756 = vpack.c.b16 %v6629, %v6628
        %v6757 = vpack.c.b16 %v6631, %v6630
        %v6758 = vpack.c.b16 %v6633, %v6632
        %v6759 = vpack.c.b16 %v6635, %v6634
        %v6760 = vpack.c.b16 %v6637, %v6636
        %v6761 = vpack.c.b16 %v6639, %v6638
        %v6762 = vpack.c.b16 %v6641, %v6640
        %v6763 = vpack.c.b16 %v6643, %v6642
        %v6764 = vpack.c.b16 %v6645, %v6644
        %v6765 = vpack.c.b16 %v6647, %v6646
        %v6766 = vpack.c.b16 %v6649, %v6648
        %v6767 = vpack.c.b16 %v6651, %v6650
        %v6768 = vpack.c.b16 %v6653, %v6652
        %v6769 = vpack.c.b16 %v6655, %v6654
        %v6770 = vpack.c.b16 %v6657, %v6656
        %v6771 = vpack.c.b16 %v6659, %v6658
        %v6772 = vpack.c.b16 %v6661, %v6660
        %v6773 = vpack.c.b16 %v6663, %v6662
        %v6774 = vpack.c.b16 %v6665, %v6664
        %v6775 = vpack.c.b16 %v6667, %v6666
        %v6776 = vpack.c.b16 %v6669, %v6668
        %v6777 = vpack.c.b16 %v6671, %v6670
        %v6778 = vpack.c.b16 %v6673, %v6672
        %v6779 = vpack.c.b16 %v6675, %v6674
        %v6780 = vpack.c.b16 %v6677, %v6676
        %v6781 = vpack.c.b16 %v6679, %v6678
        %v6782 = vpack.c.b16 %v6681, %v6680
        %v6783 = vpack.c.b16 %v6683, %v6682
        %v6784 = vpack.c.b16 %v6685, %v6684
        %v6785 = vpack.c.b16 %v6687, %v6686
        %v6786 = vpack.c.b16 %v6689, %v6688
        %v6787 = vpack.c.b16 %v6691, %v6690
        %v6788 = vpack.c.b16 %v6693, %v6692
        %v6789 = vpack.c.b16 %v6695, %v6694
        %v6790 = vpack.c.b16 %v6697, %v6696
        %v6791 = vpack.c.b16 %v6699, %v6698
        %v6792 = vpack.c.b16 %v6701, %v6700
        %v6793 = vpack.c.b16 %v6703, %v6702
        %v6794 = vpack.c.b16 %v6705, %v6704
        %v6795 = vpack.c.b16 %v6707, %v6706
        %v6796 = vpack.c.b16 %v6709, %v6708
        %v6797 = vpack.c.b16 %v6711, %v6710
        %v6798 = vpack.c.b16 %v6713, %v6712
        %v6799 = vpack.c.b16 %v6715, %v6714
        %v6800 = vpack.c.b16 %v6717, %v6716
        %v6801 = vpack.c.b16 %v6719, %v6718
        %v6802 = vpack.c.b16 %v6721, %v6720
        %v6803 = vpack.c.b16 %v6723, %v6722
        %v6804 = vpack.c.b16 %v6725, %v6724
        %v6805 = vpack.c.b16 %v6727, %v6726
        %v6806 = vpack.c.b16 %v6729, %v6728
        %v6807 = vpack.c.b16 %v6731, %v6730
        %v6808 = vpack.c.b16 %v6733, %v6732
        %v6809 = vpack.c.b16 %v6735, %v6734
        %v6810 = vpack.c.b16 %v6737, %v6736
        %v6811 = vpack.c.b16 %v6739, %v6738
        %6884 = vmatprep.subr.bf16.mxu0 0
        %6885 = vmatpush1.bf16.msra.mxu0 %v6740
        %6886 = vmatprep.subr.bf16.mxu0 0
        %6887 = vmatpush1.bf16.msra.mxu0 %v6741
        %6888 = vmatprep.subr.bf16.mxu0 0
        %6889 = vmatpush1.bf16.msra.mxu0 %v6742
        %6890 = vmatprep.subr.bf16.mxu0 0
        %6891 = vmatpush1.bf16.msra.mxu0 %v6743
        %6892 = vmatprep.subr.bf16.mxu0 0
        %6893 = vmatpush1.bf16.msra.mxu0 %v6744
        %6894 = vmatprep.subr.bf16.mxu0 0
        %6895 = vmatpush1.bf16.msra.mxu0 %v6745
        %6896 = vmatprep.subr.bf16.mxu0 0
        %6897 = vmatpush1.bf16.msra.mxu0 %v6746
        %6898 = vmatprep.subr.bf16.mxu0 0
        %6899 = vmatpush1.bf16.msra.mxu0 %v6747
        %6900 = vmatprep.subr.bf16.mxu0 0
        %6901 = vmatpush1.bf16.msra.mxu0 %v6748
        %6902 = vmatprep.subr.bf16.mxu0 0
        %6903 = vmatpush1.bf16.msra.mxu0 %v6749
        %6904 = vmatprep.subr.bf16.mxu0 0
        %6905 = vmatpush1.bf16.msra.mxu0 %v6750
        %6906 = vmatprep.subr.bf16.mxu0 0
        %6907 = vmatpush1.bf16.msra.mxu0 %v6751
        %6908 = vmatprep.subr.bf16.mxu0 0
        %6909 = vmatpush1.bf16.msra.mxu0 %v6752
        %6910 = vmatprep.subr.bf16.mxu0 0
        %6911 = vmatpush1.bf16.msra.mxu0 %v6753
        %6912 = vmatprep.subr.bf16.mxu0 0
        %6913 = vmatpush1.bf16.msra.mxu0 %v6754
        %6914 = vmatprep.subr.bf16.mxu0 0
        %6915 = vmatpush1.bf16.msra.mxu0 %v6755
        %6916 = vmatprep.mubr.bf16.mxu0 %v6263
        %6917 = vmatmul.mubr.bf16.gmra.mrb[0].mxu0 %v6245
        %v6918 = vpop.f32.mrb[0].mxu0
        %v6919 = vadd.f32 %v6450, %v6918
        %v6920 = vpop.f32.mrb[0].mxu0
        %v6921 = vpop.f32.mrb[0].mxu0
        %v6922 = vpop.f32.mrb[0].mxu0
        %6923 = vdwg.mxu0
        %6924 = vmatprep.subr.bf16.mxu0 0
        %6925 = vmatpush1.bf16.msra.mxu0 %v6756
        %6926 = vmatprep.subr.bf16.mxu0 0
        %6927 = vmatpush1.bf16.msra.mxu0 %v6757
        %6928 = vmatprep.subr.bf16.mxu0 0
        %6929 = vmatpush1.bf16.msra.mxu0 %v6758
        %6930 = vmatprep.subr.bf16.mxu0 0
        %6931 = vmatpush1.bf16.msra.mxu0 %v6759
        %6932 = vmatprep.subr.bf16.mxu0 0
        %6933 = vmatpush1.bf16.msra.mxu0 %v6760
        %6934 = vmatprep.subr.bf16.mxu0 0
        %6935 = vmatpush1.bf16.msra.mxu0 %v6761
        %6936 = vmatprep.subr.bf16.mxu0 0
        %6937 = vmatpush1.bf16.msra.mxu0 %v6762
        %6938 = vmatprep.subr.bf16.mxu0 0
        %6939 = vmatpush1.bf16.msra.mxu0 %v6763
        %6940 = vmatprep.subr.bf16.mxu0 0
        %6941 = vmatpush1.bf16.msra.mxu0 %v6764
        %6942 = vmatprep.subr.bf16.mxu0 0
        %6943 = vmatpush1.bf16.msra.mxu0 %v6765
        %6944 = vmatprep.subr.bf16.mxu0 0
        %6945 = vmatpush1.bf16.msra.mxu0 %v6766
        %6946 = vmatprep.subr.bf16.mxu0 0
        %6947 = vmatpush1.bf16.msra.mxu0 %v6767
        %6948 = vmatprep.subr.bf16.mxu0 0
        %6949 = vmatpush1.bf16.msra.mxu0 %v6768
        %6950 = vmatprep.subr.bf16.mxu0 0
        %6951 = vmatpush1.bf16.msra.mxu0 %v6769
        %6952 = vmatprep.subr.bf16.mxu0 0
        %6953 = vmatpush1.bf16.msra.mxu0 %v6770
        %6954 = vmatprep.subr.bf16.mxu0 0
        %6955 = vmatpush1.bf16.msra.mxu0 %v6771
        %6956 = vmatprep.mubr.bf16.mxu0 %v6247
        %6957 = vmatmul.mubr.bf16.gmra.mrb[0].mxu0 %v6265
        %v6958 = vpop.f32.mrb[0].mxu0
        %v6959 = vadd.f32 %v6919, %v6958
        %v6960 = vpop.f32.mrb[0].mxu0
        %v6961 = vpop.f32.mrb[0].mxu0
        %v6962 = vpop.f32.mrb[0].mxu0
        %6963 = vdwg.mxu0
        %6964 = vmatprep.subr.bf16.mxu0 0
        %6965 = vmatpush1.bf16.msra.mxu0 %v6772
        %6966 = vmatprep.subr.bf16.mxu0 0
        %6967 = vmatpush1.bf16.msra.mxu0 %v6773
        %6968 = vmatprep.subr.bf16.mxu0 0
        %6969 = vmatpush1.bf16.msra.mxu0 %v6774
        %6970 = vmatprep.subr.bf16.mxu0 0
        %6971 = vmatpush1.bf16.msra.mxu0 %v6775
        %6972 = vmatprep.subr.bf16.mxu0 0
        %6973 = vmatpush1.bf16.msra.mxu0 %v6776
        %6974 = vmatprep.subr.bf16.mxu0 0
        %6975 = vmatpush1.bf16.msra.mxu0 %v6777
        %6976 = vmatprep.subr.bf16.mxu0 0
        %6977 = vmatpush1.bf16.msra.mxu0 %v6778
        %6978 = vmatprep.subr.bf16.mxu0 0
        %6979 = vmatpush1.bf16.msra.mxu0 %v6779
        %6980 = vmatprep.subr.bf16.mxu0 0
        %6981 = vmatpush1.bf16.msra.mxu0 %v6780
        %6982 = vmatprep.subr.bf16.mxu0 0
        %6983 = vmatpush1.bf16.msra.mxu0 %v6781
        %6984 = vmatprep.subr.bf16.mxu0 0
        %6985 = vmatpush1.bf16.msra.mxu0 %v6782
        %6986 = vmatprep.subr.bf16.mxu0 0
        %6987 = vmatpush1.bf16.msra.mxu0 %v6783
        %6988 = vmatprep.subr.bf16.mxu0 0
        %6989 = vmatpush1.bf16.msra.mxu0 %v6784
        %6990 = vmatprep.subr.bf16.mxu0 0
        %6991 = vmatpush1.bf16.msra.mxu0 %v6785
        %6992 = vmatprep.subr.bf16.mxu0 0
        %6993 = vmatpush1.bf16.msra.mxu0 %v6786
        %6994 = vmatprep.subr.bf16.mxu0 0
        %6995 = vmatpush1.bf16.msra.mxu0 %v6787
        %6996 = vmatprep.mubr.bf16.mxu0 %v6280
        %6997 = vmatmul.mubr.bf16.gmra.mrb[0].mxu0 %v6278
        %v6998 = vpop.f32.mrb[0].mxu0
        %v6999 = vadd.f32 %v6959, %v6998
        %v7000 = vpop.f32.mrb[0].mxu0
        %v7001 = vpop.f32.mrb[0].mxu0
        %v7002 = vpop.f32.mrb[0].mxu0
        %7003 = vdwg.mxu0
        %7004 = vmatprep.subr.bf16.mxu0 0
        %7005 = vmatpush1.bf16.msra.mxu0 %v6788
        %7006 = vmatprep.subr.bf16.mxu0 0
        %7007 = vmatpush1.bf16.msra.mxu0 %v6789
        %7008 = vmatprep.subr.bf16.mxu0 0
        %7009 = vmatpush1.bf16.msra.mxu0 %v6790
        %7010 = vmatprep.subr.bf16.mxu0 0
        %7011 = vmatpush1.bf16.msra.mxu0 %v6791
        %7012 = vmatprep.subr.bf16.mxu0 0
        %7013 = vmatpush1.bf16.msra.mxu0 %v6792
        %7014 = vmatprep.subr.bf16.mxu0 0
        %7015 = vmatpush1.bf16.msra.mxu0 %v6793
        %7016 = vmatprep.subr.bf16.mxu0 0
        %7017 = vmatpush1.bf16.msra.mxu0 %v6794
        %7018 = vmatprep.subr.bf16.mxu0 0
        %7019 = vmatpush1.bf16.msra.mxu0 %v6795
        %7020 = vmatprep.subr.bf16.mxu0 0
        %7021 = vmatpush1.bf16.msra.mxu0 %v6796
        %7022 = vmatprep.subr.bf16.mxu0 0
        %7023 = vmatpush1.bf16.msra.mxu0 %v6797
        %7024 = vmatprep.subr.bf16.mxu0 0
        %7025 = vmatpush1.bf16.msra.mxu0 %v6798
        %7026 = vmatprep.subr.bf16.mxu0 0
        %7027 = vmatpush1.bf16.msra.mxu0 %v6799
        %7028 = vmatprep.subr.bf16.mxu0 0
        %7029 = vmatpush1.bf16.msra.mxu0 %v6800
        %7030 = vmatprep.subr.bf16.mxu0 0
        %7031 = vmatpush1.bf16.msra.mxu0 %v6801
        %7032 = vmatprep.subr.bf16.mxu0 0
        %7033 = vmatpush1.bf16.msra.mxu0 %v6802
        %7034 = vmatprep.subr.bf16.mxu0 0
        %7035 = vmatpush1.bf16.msra.mxu0 %v6803
        %7036 = vmatprep.mubr.bf16.mxu0 %v6293
        %7037 = vmatmul.mubr.bf16.gmra.mrb[0].mxu0 %v6250
        %v7038 = vpop.f32.mrb[0].mxu0
        %v7039 = vadd.f32 %v6999, %v7038
        %v7040 = vpop.f32.mrb[0].mxu0
        %v7041 = vpop.f32.mrb[0].mxu0
        %v7042 = vpop.f32.mrb[0].mxu0
        %7043 = vdwg.mxu0
        %7044 = vmatprep.subr.bf16.mxu0 0
        %7045 = vmatpush1.bf16.msra.mxu0 %v6804
        %7046 = vmatprep.subr.bf16.mxu0 0
        %7047 = vmatpush1.bf16.msra.mxu0 %v6805
        %7048 = vmatprep.subr.bf16.mxu0 0
        %7049 = vmatpush1.bf16.msra.mxu0 %v6806
        %7050 = vmatprep.subr.bf16.mxu0 0
        %7051 = vmatpush1.bf16.msra.mxu0 %v6807
        %7052 = vmatprep.subr.bf16.mxu0 0
        %7053 = vmatpush1.bf16.msra.mxu0 %v6808
        %7054 = vmatprep.subr.bf16.mxu0 0
        %7055 = vmatpush1.bf16.msra.mxu0 %v6809
        %7056 = vmatprep.subr.bf16.mxu0 0
        %7057 = vmatpush1.bf16.msra.mxu0 %v6810
        %7058 = vmatprep.subr.bf16.mxu0 0
        %7059 = vmatpush1.bf16.msra.mxu0 %v6811
        %7060 = vmatprep.subr.bf16.mxu0 0
        %7061 = vmatpush1.bf16.msra.mxu0 0
        %7062 = vmatprep.subr.bf16.mxu0 0
        %7063 = vmatpush1.bf16.msra.mxu0 0
        %7064 = vmatprep.subr.bf16.mxu0 0
        %7065 = vmatpush1.bf16.msra.mxu0 0
        %7066 = vmatprep.subr.bf16.mxu0 0
        %7067 = vmatpush1.bf16.msra.mxu0 0
        %7068 = vmatprep.subr.bf16.mxu0 0
        %7069 = vmatpush1.bf16.msra.mxu0 0
        %7070 = vmatprep.subr.bf16.mxu0 0
        %7071 = vmatpush1.bf16.msra.mxu0 0
        %7072 = vmatprep.subr.bf16.mxu0 0
        %7073 = vmatpush1.bf16.msra.mxu0 0
        %7074 = vmatprep.subr.bf16.mxu0 0
        %7075 = vmatpush1.bf16.msra.mxu0 0
        %7076 = vmatprep.mubr.bf16.mxu0 0
        %7077 = vmatmul.mubr.bf16.gmra.mrb[0].mxu0 %v6295
        %v7078 = vpop.f32.mrb[0].mxu0
        %v7079 = vadd.f32 %v7039, %v7078
        %v7080 = vpop.f32.mrb[0].mxu0
        %v7081 = vpop.f32.mrb[0].mxu0
        %v7082 = vpop.f32.mrb[0].mxu0
        %7083 = vdwg.mxu0
        %v7086 = vrot.slane %v6443, 1
        %v7087 = vrot.slane %v6444, 1
        %v7088 = vsel %vm4541, %v7086, %v7087
        %v7090 = vadd.f32 %v7079, %v7088
        %v7091 = vmax.f32 %v7090, 0.0
        %s7092 = scalar_lea.vmem %s247, 24 [#allocation8]
        %7093 = vst [vmem:[%s7092] sm:$0xff] %v7091
        %s7094 = sand.u32 %s139, 1
        %s7095 = scalar_lea.sflag [#allocation5], %s7094
        %s7096 = sand.u32 %s139, 1
        %s7097 = smul.addr %s7096, 32
        %s7098 = scalar_lea.vmem [#allocation8], %s7097
        // Predicated region
        $region49: #{tpu_custom_call.1} parent=39 // pred_check
          %p7099 = pneg %p149
        $region50: #{tpu_custom_call.1} parent=39 // pred_check_branch
          %7101 = sbr.rel (%p7099) target = $region52
        $region51: #{tpu_custom_call.1} parent=39 // pred_region
          %s7103 = ssub.s32 512, 512
          %7104 = vsyncadd %s7095, %s7103
          %s7105 = smul.addr %s21, 4
          %s7106 = smul.addr %s7105, 128
          %s7107 = scalar_lea.hbm %s5, %s7106
          %s7108 = sshll.u32 %s7098, 4
          %s7109 = int_to_ptr.vmem [resolvable:$true] %s7108
          %7114 = dma.vmem_to_hbm [thread:$0]  %s7109, 512, %s7107, %s7095, 128, 128, 8
        $region52: #{tpu_custom_call.1} parent=39 // pred_fallthru
          _
      $region40: #{tpu_custom_call.1} parent=5 // pred_fallthru
        _
      %p7115 = scmp.le.s32.totalorder 2, %s16
      // Predicated region
      $region53: #{tpu_custom_call.1} parent=5 // pred_check
        %p7116 = pneg %p7115
      $region54: #{tpu_custom_call.1} parent=5 // pred_check_branch
        %7118 = sbr.rel (%p7116) target = $region56
      $region55: #{tpu_custom_call.1} parent=5 // pred_region
        %s7119 = ssub.s32 %s16, 2
        // Predicated region
        $region57: #{tpu_custom_call.1} parent=55 // pred_check
          %p7120 = pneg %p155
        $region58: #{tpu_custom_call.1} parent=55 // pred_check_branch
          %7122 = sbr.rel (%p7120) target = $region60
        $region59: #{tpu_custom_call.1} parent=55 // pred_region
          %s7123 = sand.u32 %s140, 1
          %s7124 = scalar_lea.sflag [#allocation5], %s7123
          %s7125 = sand.u32 %s140, 1
          %s7126 = smul.addr %s7125, 32
          %s7127 = scalar_lea.vmem [#allocation8], %s7126
          %7128 = dma.done %s7124, 512
        $region60: #{tpu_custom_call.1} parent=55 // pred_fallthru
          _
      $region56: #{tpu_custom_call.1} parent=5 // pred_fallthru
        _
    $region6: #{tpu_custom_call.1} parent=1 // loop_footer
      %s20 = sadd.s32 1, %s16
    $region7: #{tpu_custom_call.1} parent=1 // loop_footer_branch
      %15 = sbr.rel target = $region3
    $region8: #{tpu_custom_call.1} parent=1 // loop_exit
      _
    %7129 = vsyncpa [#allocation4], 1
    %s7130 = scalar_lea.sflag [#allocation4], 1
    %7131 = vsyncpa %s7130, 1
    %7132 = vsyncpa [#allocation7], 1
    %7133 = vsyncpa [#allocation5], 1
    %s7134 = scalar_lea.sflag [#allocation5], 1
    %7135 = vsyncpa %s7134, 1

</llo_original>
